<compile_context>
chip_gen: v6e
topology: v6e:2x2x1
jax: 0.10.0
libtpu: 0.0.40
codegen_flags: <defaults>
</compile_context>

<pallas_src>
import jax
import jax.numpy as jnp
from jax import lax
from jax.experimental import pallas as pl
from jax.experimental.pallas import tpu as pltpu


# ---------------------------------------------------------------------------
# Fused whole-network kernel (one grid step per batch element)
# ---------------------------------------------------------------------------
def _net_kernel(patches_ref, w1_ref, b1_ref, w2_ref, b2_ref,
                wf1_ref, bf1_ref, wf2_ref, bf2_ref,
                sel1_ref, sel2_ref, out_ref):
    f32 = jnp.float32
    bf16 = jnp.bfloat16

    # ---- conv1 (im2col matmul) + bias + relu:  (576,25)@(25,20) -> (576,20) ----
    # rows = oh*24 + ow, lanes = output channel
    a1 = jnp.dot(patches_ref[...], w1_ref[...], preferred_element_type=f32)
    a1 = jnp.maximum(a1 + b1_ref[...], 0.0)                       # (576, 20)

    # ---- max-pool 2x2/2  (24,24)->(12,12) ----
    # shifted maxes over H (+24 rows) and W (+1 row), then pick the window
    # anchors with an exact one-hot selection matmul (bf16 MXU).
    mh = jnp.maximum(a1[:-24, :], a1[24:, :])                     # (552, 20)
    mw = jnp.maximum(mh[:-1, :], mh[1:, :])                       # (551, 20)
    # p1 rows = ph*12 + pw (stride 12); rows 144..147 are zero padding.
    p1 = jnp.dot(sel1_ref[...], mw.astype(bf16),
                 preferred_element_type=f32)                      # (148, 20)
    p1b = p1.astype(bf16)

    # ---- conv2 as 25 constant-row-shift matmuls + bias + relu ----
    # output rows r = oh*12 + ow (oh in 0..7, ow in 0..11; only ow<8 valid).
    # tap (kh,kw) contributes p1[r + kh*12 + kw, :] @ W_tap -- one contiguous
    # slice per tap, no gathers / concats.
    a2 = jnp.zeros((96, 50), f32)
    for kh in range(5):
        for kw in range(5):
            t = kh * 5 + kw
            off = kh * 12 + kw
            a2 = a2 + jnp.dot(p1b[off:off + 96, :],
                              w2_ref[t * 20:(t + 1) * 20, :],
                              preferred_element_type=f32)
    a2 = jnp.maximum(a2 + b2_ref[...], 0.0)                       # (96, 50)

    # ---- max-pool 2x2/2 on the stride-12 layout  (8,8)->(4,4) ----
    mh2 = jnp.maximum(a2[:84, :], a2[12:, :])                     # (84, 50)
    mw2 = jnp.maximum(mh2[:-1, :], mh2[1:, :])                    # (83, 50)
    p2 = jnp.dot(sel2_ref[...], mw2.astype(bf16),
                 preferred_element_type=f32)                      # (16, 50) rows = po*4+pw
    p2b = p2.astype(bf16)

    # ---- fc1 (PyTorch NCHW flatten folded into the weight row order) + relu ----
    h = bf1_ref[...]                                              # (1, 500), start from bias
    for s in range(16):
        h = h + jnp.dot(p2b[s:s + 1, :],
                        wf1_ref[s * 50:(s + 1) * 50, :],
                        preferred_element_type=f32)
    h = jnp.maximum(h, 0.0)

    # ---- fc2 ----
    out = jnp.dot(h.astype(bf16), wf2_ref[...], preferred_element_type=f32)
    out_ref[...] = out + bf2_ref[...]                             # (1, 10)


# ---------------------------------------------------------------------------
# Wrapper
# ---------------------------------------------------------------------------
def net_forward(x_nchw, p):
    """x_nchw: (B, 1, 28, 28) f32; p: prepared params (see prepare_params)."""
    B = x_nchw.shape[0]
    x = x_nchw.reshape(B, 28, 28)
    # conv1 patch extraction (tiny XLA glue, ~75 KB), column order t = kh*5+kw.
    # TODO(synk): building these patches in-kernel needs lane<->sublane
    # relayouts on a 1-channel image; cheaper to leave as one fused XLA op.
    patches = jnp.stack(
        [x[:, kh:kh + 24, kw:kw + 24] for kh in range(5) for kw in range(5)],
        axis=-1).reshape(B, 576, 25).astype(jnp.bfloat16)

    out = pl.pallas_call(
        _net_kernel,
        out_shape=jax.ShapeDtypeStruct((B, 1, 10), jnp.float32),
        grid=(B,),
        in_specs=[
            pl.BlockSpec((None, 576, 25), lambda b: (b, 0, 0)),   # conv1 patches (per image)
            pl.BlockSpec((25, 20), lambda b: (0, 0)),             # conv1 weight
            pl.BlockSpec((1, 20), lambda b: (0, 0)),              # conv1 bias
            pl.BlockSpec((500, 50), lambda b: (0, 0)),            # conv2 weight (tap-major rows)
            pl.BlockSpec((1, 50), lambda b: (0, 0)),              # conv2 bias
            pl.BlockSpec((800, 500), lambda b: (0, 0)),           # fc1 weight (flatten-permuted)
            pl.BlockSpec((1, 500), lambda b: (0, 0)),             # fc1 bias
            pl.BlockSpec((500, 10), lambda b: (0, 0)),            # fc2 weight
            pl.BlockSpec((1, 10), lambda b: (0, 0)),              # fc2 bias
            pl.BlockSpec((148, 551), lambda b: (0, 0)),           # pool1 row selector (padded)
            pl.BlockSpec((16, 83), lambda b: (0, 0)),             # pool2 row selector
        ],
        out_specs=pl.BlockSpec((None, 1, 10), lambda b: (b, 0, 0)),
        compiler_params=pltpu.CompilerParams(
            dimension_semantics=("parallel",)),
    )(patches, p["w1"], p["b1"], p["w2"], p["b2"],
      p["wf1"], p["bf1"], p["wf2"], p["bf2"], p["sel1"], p["sel2"])
    return out.reshape(B, 10)


def _pool1_selector():
    """(148, 551) one-hot rows picking 2x2-window anchors of the 24x24 conv1
    map (pooled row ph*12+pw -> anchor 48*ph+2*pw).  Rows 144..147 are zero
    padding so conv2's shifted slices never run out of range."""
    idx = jnp.arange(148)
    ph, pw = idx // 12, idx % 12
    anchor = 48 * ph + 2 * pw
    sel = jax.nn.one_hot(anchor, 551, dtype=jnp.float32)
    sel = sel * (idx < 144).astype(jnp.float32)[:, None]
    return sel.astype(jnp.bfloat16)


def _pool2_selector():
    """(16, 83) one-hot rows picking 2x2-window anchors on the stride-12
    conv2 output layout (pooled row po*4+pw -> anchor 24*po+2*pw)."""
    idx = jnp.arange(16)
    po, pw = idx // 4, idx % 4
    anchor = 24 * po + 2 * pw
    return jax.nn.one_hot(anchor, 83, dtype=jnp.float32).astype(jnp.bfloat16)


def prepare_params(p):
    """One-time layout/dtype prep of the PyTorch-style parameters."""
    bf16 = jnp.bfloat16
    f32 = jnp.float32
    return {
        # conv1: OIHW (20,1,5,5) -> (25,20), row = kh*5+kw (matches patch columns)
        "w1": p["conv1_w"].reshape(20, 25).T.astype(bf16),
        "b1": p["conv1_b"].reshape(1, 20).astype(f32),
        # conv2: OIHW (50,20,5,5) -> (500,50), row = (kh*5+kw)*20 + cin
        "w2": p["conv2_w"].transpose(2, 3, 1, 0).reshape(500, 50).astype(bf16),
        "b2": p["conv2_b"].reshape(1, 50).astype(f32),
        # fc1: PyTorch input index c*16 + s  ->  our order s*50 + c
        "wf1": p["fc1_w"].reshape(500, 50, 16).transpose(2, 1, 0)
                          .reshape(800, 500).astype(bf16),
        "bf1": p["fc1_b"].reshape(1, 500).astype(f32),
        "wf2": p["fc2_w"].T.astype(bf16),                        # (500, 10)
        "bf2": p["fc2_b"].reshape(1, 10).astype(f32),
        # exact 0/1 row-selection matrices for the two max-pools (bf16 MXU)
        "sel1": _pool1_selector(),                               # (148, 551)
        "sel2": _pool2_selector(),                               # (16, 83)
    }


# ---------------------------------------------------------------------------
# Pure-JAX f32 reference (correctness check)
# ---------------------------------------------------------------------------
def ref_forward(x, p):
    dn = ("NCHW", "OIHW", "NCHW")
    y = lax.conv_general_dilated(x, p["conv1_w"], (1, 1), "VALID", dimension_numbers=dn)
    y = jax.nn.relu(y + p["conv1_b"][None, :, None, None])
    y = lax.reduce_window(y, -jnp.inf, lax.max, (1, 1, 2, 2), (1, 1, 2, 2), "VALID")
    y = lax.conv_general_dilated(y, p["conv2_w"], (1, 1), "VALID", dimension_numbers=dn)
    y = jax.nn.relu(y + p["conv2_b"][None, :, None, None])
    y = lax.reduce_window(y, -jnp.inf, lax.max, (1, 1, 2, 2), (1, 1, 2, 2), "VALID")
    y = y.reshape(y.shape[0], -1)
    y = jax.nn.relu(y @ p["fc1_w"].T + p["fc1_b"])
    return y @ p["fc2_w"].T + p["fc2_b"]


def init_params(key):
    ks = jax.random.split(key, 8)

    def w(k, shape, fan_in):
        return (jax.random.normal(k, shape, jnp.float32) / jnp.sqrt(fan_in)).astype(jnp.float32)

    return {
        "conv1_w": w(ks[0], (20, 1, 5, 5), 1 * 5 * 5),
        "conv1_b": w(ks[1], (20,), 25.0),
        "conv2_w": w(ks[2], (50, 20, 5, 5), 20 * 5 * 5),
        "conv2_b": w(ks[3], (50,), 500.0),
        "fc1_w": w(ks[4], (500, 800), 800.0),
        "fc1_b": w(ks[5], (500,), 800.0),
        "fc2_w": w(ks[6], (10, 500), 500.0),
        "fc2_b": w(ks[7], (10,), 500.0),
    }


if __name__ == "__main__":
    key = jax.random.PRNGKey(0)
    k_x, k_p = jax.random.split(key)
    # The architecture (4*4*50 flatten) requires 1x28x28 inputs.
    x = jax.random.normal(k_x, (2, 1, 28, 28), jnp.float32)
    params = init_params(k_p)
    kparams = prepare_params(params)

    fwd = jax.jit(net_forward)
    out = jax.block_until_ready(fwd(x, kparams))
    assert out.shape == (2, 10), out.shape

    ref = ref_forward(x, params)
    max_diff = jnp.max(jnp.abs(out - ref))
    # bf16 MXU inputs with f32 accumulation -> small, bounded mismatch vs f32 ref.
    assert jnp.allclose(out, ref, rtol=3e-2, atol=3e-2), f"max abs diff {max_diff}"

    print("KERNEL_OK")
</pallas_src>

<mosaic_0001>
module attributes {stable_mosaic.version = 11 : i64} {
  func.func @_net_kernel(%arg0: i32, %arg1: memref<1x576x25xbf16, #tpu.memory_space<vmem>>, %arg2: memref<25x20xbf16, #tpu.memory_space<vmem>>, %arg3: memref<1x20xf32, #tpu.memory_space<vmem>>, %arg4: memref<500x50xbf16, #tpu.memory_space<vmem>>, %arg5: memref<1x50xf32, #tpu.memory_space<vmem>>, %arg6: memref<800x500xbf16, #tpu.memory_space<vmem>>, %arg7: memref<1x500xf32, #tpu.memory_space<vmem>>, %arg8: memref<500x10xbf16, #tpu.memory_space<vmem>>, %arg9: memref<1x10xf32, #tpu.memory_space<vmem>>, %arg10: memref<148x551xbf16, #tpu.memory_space<vmem>>, %arg11: memref<16x83xbf16, #tpu.memory_space<vmem>>, %arg12: memref<1x1x10xf32, #tpu.memory_space<vmem>>) attributes {dimension_semantics = [#tpu.dimension_semantics<parallel>], iteration_bounds = array<i64: 2>, scalar_prefetch = 0 : i64, scratch_operands = 0 : i64, tpu.core_type = #tpu.core_type<tc>, window_params = [{transform_indices = @transform_0, window_bounds = array<i64: 1, 576, 25>}, {pipeline_mode = #tpu.pipeline_mode<synchronous>, transform_indices = @transform_1, window_bounds = array<i64: 25, 20>}, {pipeline_mode = #tpu.pipeline_mode<synchronous>, transform_indices = @transform_2, window_bounds = array<i64: 1, 20>}, {pipeline_mode = #tpu.pipeline_mode<synchronous>, transform_indices = @transform_3, window_bounds = array<i64: 500, 50>}, {pipeline_mode = #tpu.pipeline_mode<synchronous>, transform_indices = @transform_4, window_bounds = array<i64: 1, 50>}, {pipeline_mode = #tpu.pipeline_mode<synchronous>, transform_indices = @transform_5, window_bounds = array<i64: 800, 500>}, {pipeline_mode = #tpu.pipeline_mode<synchronous>, transform_indices = @transform_6, window_bounds = array<i64: 1, 500>}, {pipeline_mode = #tpu.pipeline_mode<synchronous>, transform_indices = @transform_7, window_bounds = array<i64: 500, 10>}, {pipeline_mode = #tpu.pipeline_mode<synchronous>, transform_indices = @transform_8, window_bounds = array<i64: 1, 10>}, {pipeline_mode = #tpu.pipeline_mode<synchronous>, transform_indices = @transform_9, window_bounds = array<i64: 148, 551>}, {pipeline_mode = #tpu.pipeline_mode<synchronous>, transform_indices = @transform_10, window_bounds = array<i64: 16, 83>}, {transform_indices = @transform_11, window_bounds = array<i64: 1, 1, 10>}]} {
    %c0 = arith.constant 0 : index
    %c0_0 = arith.constant 0 : index
    %c0_1 = arith.constant 0 : index
    %0 = vector.load %arg1[%c0, %c0_0, %c0_1] : memref<1x576x25xbf16, #tpu.memory_space<vmem>>, vector<1x576x25xbf16>
    %1 = vector.shape_cast %0 : vector<1x576x25xbf16> to vector<576x25xbf16>
    %c0_2 = arith.constant 0 : index
    %c0_3 = arith.constant 0 : index
    %2 = vector.load %arg2[%c0_2, %c0_3] : memref<25x20xbf16, #tpu.memory_space<vmem>>, vector<25x20xbf16>
    %cst = arith.constant dense<0.000000e+00> : vector<576x20xf32>
    %3 = tpu.matmul %1, %2, %cst {dimension_numbers = #tpu.dot_dimension_numbers<[1], [0], [0], [1], [0, 0, 1, 1], [], []>} : vector<576x25xbf16>, vector<25x20xbf16>, vector<576x20xf32> -> vector<576x20xf32>
    %c0_4 = arith.constant 0 : index
    %c0_5 = arith.constant 0 : index
    %4 = vector.load %arg3[%c0_4, %c0_5] : memref<1x20xf32, #tpu.memory_space<vmem>>, vector<1x20xf32>
    %5 = vector.broadcast %4 : vector<1x20xf32> to vector<576x20xf32>
    %6 = arith.addf %3, %5 : vector<576x20xf32>
    %cst_6 = arith.constant 0.000000e+00 : f32
    %7 = vector.broadcast %cst_6 : f32 to vector<576x20xf32>
    %8 = arith.maximumf %6, %7 : vector<576x20xf32>
    %9 = vector.extract_strided_slice %8 {offsets = [0, 0], sizes = [552, 20], strides = [1, 1]} : vector<576x20xf32> to vector<552x20xf32>
    %10 = vector.extract_strided_slice %8 {offsets = [24, 0], sizes = [552, 20], strides = [1, 1]} : vector<576x20xf32> to vector<552x20xf32>
    %11 = arith.maximumf %9, %10 : vector<552x20xf32>
    %12 = vector.extract_strided_slice %11 {offsets = [0, 0], sizes = [551, 20], strides = [1, 1]} : vector<552x20xf32> to vector<551x20xf32>
    %13 = vector.extract_strided_slice %11 {offsets = [1, 0], sizes = [551, 20], strides = [1, 1]} : vector<552x20xf32> to vector<551x20xf32>
    %14 = arith.maximumf %12, %13 : vector<551x20xf32>
    %c0_7 = arith.constant 0 : index
    %c0_8 = arith.constant 0 : index
    %15 = vector.load %arg10[%c0_7, %c0_8] : memref<148x551xbf16, #tpu.memory_space<vmem>>, vector<148x551xbf16>
    %16 = arith.truncf %14 : vector<551x20xf32> to vector<551x20xbf16>
    %cst_9 = arith.constant dense<0.000000e+00> : vector<148x20xf32>
    %17 = tpu.matmul %15, %16, %cst_9 {dimension_numbers = #tpu.dot_dimension_numbers<[1], [0], [0], [1], [0, 0, 1, 1], [], []>} : vector<148x551xbf16>, vector<551x20xbf16>, vector<148x20xf32> -> vector<148x20xf32>
    %18 = arith.truncf %17 : vector<148x20xf32> to vector<148x20xbf16>
    %cst_10 = arith.constant 0.000000e+00 : f32
    %19 = vector.broadcast %cst_10 : f32 to vector<96x50xf32>
    %20 = vector.extract_strided_slice %18 {offsets = [0, 0], sizes = [96, 20], strides = [1, 1]} : vector<148x20xbf16> to vector<96x20xbf16>
    %c0_11 = arith.constant 0 : index
    %c0_12 = arith.constant 0 : index
    %21 = vector.load %arg4[%c0_11, %c0_12] : memref<500x50xbf16, #tpu.memory_space<vmem>>, vector<20x50xbf16>
    %cst_13 = arith.constant dense<0.000000e+00> : vector<96x50xf32>
    %22 = tpu.matmul %20, %21, %cst_13 {dimension_numbers = #tpu.dot_dimension_numbers<[1], [0], [0], [1], [0, 0, 1, 1], [], []>} : vector<96x20xbf16>, vector<20x50xbf16>, vector<96x50xf32> -> vector<96x50xf32>
    %23 = arith.addf %19, %22 : vector<96x50xf32>
    %24 = vector.extract_strided_slice %18 {offsets = [1, 0], sizes = [96, 20], strides = [1, 1]} : vector<148x20xbf16> to vector<96x20xbf16>
    %c20 = arith.constant 20 : index
    %c0_14 = arith.constant 0 : index
    %25 = vector.load %arg4[%c20, %c0_14] : memref<500x50xbf16, #tpu.memory_space<vmem>>, vector<20x50xbf16>
    %cst_15 = arith.constant dense<0.000000e+00> : vector<96x50xf32>
    %26 = tpu.matmul %24, %25, %cst_15 {dimension_numbers = #tpu.dot_dimension_numbers<[1], [0], [0], [1], [0, 0, 1, 1], [], []>} : vector<96x20xbf16>, vector<20x50xbf16>, vector<96x50xf32> -> vector<96x50xf32>
    %27 = arith.addf %23, %26 : vector<96x50xf32>
    %28 = vector.extract_strided_slice %18 {offsets = [2, 0], sizes = [96, 20], strides = [1, 1]} : vector<148x20xbf16> to vector<96x20xbf16>
    %c40 = arith.constant 40 : index
    %c0_16 = arith.constant 0 : index
    %29 = vector.load %arg4[%c40, %c0_16] : memref<500x50xbf16, #tpu.memory_space<vmem>>, vector<20x50xbf16>
    %cst_17 = arith.constant dense<0.000000e+00> : vector<96x50xf32>
    %30 = tpu.matmul %28, %29, %cst_17 {dimension_numbers = #tpu.dot_dimension_numbers<[1], [0], [0], [1], [0, 0, 1, 1], [], []>} : vector<96x20xbf16>, vector<20x50xbf16>, vector<96x50xf32> -> vector<96x50xf32>
    %31 = arith.addf %27, %30 : vector<96x50xf32>
    %32 = vector.extract_strided_slice %18 {offsets = [3, 0], sizes = [96, 20], strides = [1, 1]} : vector<148x20xbf16> to vector<96x20xbf16>
    %c60 = arith.constant 60 : index
    %c0_18 = arith.constant 0 : index
    %33 = vector.load %arg4[%c60, %c0_18] : memref<500x50xbf16, #tpu.memory_space<vmem>>, vector<20x50xbf16>
    %cst_19 = arith.constant dense<0.000000e+00> : vector<96x50xf32>
    %34 = tpu.matmul %32, %33, %cst_19 {dimension_numbers = #tpu.dot_dimension_numbers<[1], [0], [0], [1], [0, 0, 1, 1], [], []>} : vector<96x20xbf16>, vector<20x50xbf16>, vector<96x50xf32> -> vector<96x50xf32>
    %35 = arith.addf %31, %34 : vector<96x50xf32>
    %36 = vector.extract_strided_slice %18 {offsets = [4, 0], sizes = [96, 20], strides = [1, 1]} : vector<148x20xbf16> to vector<96x20xbf16>
    %c80 = arith.constant 80 : index
    %c0_20 = arith.constant 0 : index
    %37 = vector.load %arg4[%c80, %c0_20] : memref<500x50xbf16, #tpu.memory_space<vmem>>, vector<20x50xbf16>
    %cst_21 = arith.constant dense<0.000000e+00> : vector<96x50xf32>
    %38 = tpu.matmul %36, %37, %cst_21 {dimension_numbers = #tpu.dot_dimension_numbers<[1], [0], [0], [1], [0, 0, 1, 1], [], []>} : vector<96x20xbf16>, vector<20x50xbf16>, vector<96x50xf32> -> vector<96x50xf32>
    %39 = arith.addf %35, %38 : vector<96x50xf32>
    %40 = vector.extract_strided_slice %18 {offsets = [12, 0], sizes = [96, 20], strides = [1, 1]} : vector<148x20xbf16> to vector<96x20xbf16>
    %c100 = arith.constant 100 : index
    %c0_22 = arith.constant 0 : index
    %41 = vector.load %arg4[%c100, %c0_22] : memref<500x50xbf16, #tpu.memory_space<vmem>>, vector<20x50xbf16>
    %cst_23 = arith.constant dense<0.000000e+00> : vector<96x50xf32>
    %42 = tpu.matmul %40, %41, %cst_23 {dimension_numbers = #tpu.dot_dimension_numbers<[1], [0], [0], [1], [0, 0, 1, 1], [], []>} : vector<96x20xbf16>, vector<20x50xbf16>, vector<96x50xf32> -> vector<96x50xf32>
    %43 = arith.addf %39, %42 : vector<96x50xf32>
    %44 = vector.extract_strided_slice %18 {offsets = [13, 0], sizes = [96, 20], strides = [1, 1]} : vector<148x20xbf16> to vector<96x20xbf16>
    %c120 = arith.constant 120 : index
    %c0_24 = arith.constant 0 : index
    %45 = vector.load %arg4[%c120, %c0_24] : memref<500x50xbf16, #tpu.memory_space<vmem>>, vector<20x50xbf16>
    %cst_25 = arith.constant dense<0.000000e+00> : vector<96x50xf32>
    %46 = tpu.matmul %44, %45, %cst_25 {dimension_numbers = #tpu.dot_dimension_numbers<[1], [0], [0], [1], [0, 0, 1, 1], [], []>} : vector<96x20xbf16>, vector<20x50xbf16>, vector<96x50xf32> -> vector<96x50xf32>
    %47 = arith.addf %43, %46 : vector<96x50xf32>
    %48 = vector.extract_strided_slice %18 {offsets = [14, 0], sizes = [96, 20], strides = [1, 1]} : vector<148x20xbf16> to vector<96x20xbf16>
    %c140 = arith.constant 140 : index
    %c0_26 = arith.constant 0 : index
    %49 = vector.load %arg4[%c140, %c0_26] : memref<500x50xbf16, #tpu.memory_space<vmem>>, vector<20x50xbf16>
    %cst_27 = arith.constant dense<0.000000e+00> : vector<96x50xf32>
    %50 = tpu.matmul %48, %49, %cst_27 {dimension_numbers = #tpu.dot_dimension_numbers<[1], [0], [0], [1], [0, 0, 1, 1], [], []>} : vector<96x20xbf16>, vector<20x50xbf16>, vector<96x50xf32> -> vector<96x50xf32>
    %51 = arith.addf %47, %50 : vector<96x50xf32>
    %52 = vector.extract_strided_slice %18 {offsets = [15, 0], sizes = [96, 20], strides = [1, 1]} : vector<148x20xbf16> to vector<96x20xbf16>
    %c160 = arith.constant 160 : index
    %c0_28 = arith.constant 0 : index
    %53 = vector.load %arg4[%c160, %c0_28] : memref<500x50xbf16, #tpu.memory_space<vmem>>, vector<20x50xbf16>
    %cst_29 = arith.constant dense<0.000000e+00> : vector<96x50xf32>
    %54 = tpu.matmul %52, %53, %cst_29 {dimension_numbers = #tpu.dot_dimension_numbers<[1], [0], [0], [1], [0, 0, 1, 1], [], []>} : vector<96x20xbf16>, vector<20x50xbf16>, vector<96x50xf32> -> vector<96x50xf32>
    %55 = arith.addf %51, %54 : vector<96x50xf32>
    %56 = vector.extract_strided_slice %18 {offsets = [16, 0], sizes = [96, 20], strides = [1, 1]} : vector<148x20xbf16> to vector<96x20xbf16>
    %c180 = arith.constant 180 : index
    %c0_30 = arith.constant 0 : index
    %57 = vector.load %arg4[%c180, %c0_30] : memref<500x50xbf16, #tpu.memory_space<vmem>>, vector<20x50xbf16>
    %cst_31 = arith.constant dense<0.000000e+00> : vector<96x50xf32>
    %58 = tpu.matmul %56, %57, %cst_31 {dimension_numbers = #tpu.dot_dimension_numbers<[1], [0], [0], [1], [0, 0, 1, 1], [], []>} : vector<96x20xbf16>, vector<20x50xbf16>, vector<96x50xf32> -> vector<96x50xf32>
    %59 = arith.addf %55, %58 : vector<96x50xf32>
    %60 = vector.extract_strided_slice %18 {offsets = [24, 0], sizes = [96, 20], strides = [1, 1]} : vector<148x20xbf16> to vector<96x20xbf16>
    %c200 = arith.constant 200 : index
    %c0_32 = arith.constant 0 : index
    %61 = vector.load %arg4[%c200, %c0_32] : memref<500x50xbf16, #tpu.memory_space<vmem>>, vector<20x50xbf16>
    %cst_33 = arith.constant dense<0.000000e+00> : vector<96x50xf32>
    %62 = tpu.matmul %60, %61, %cst_33 {dimension_numbers = #tpu.dot_dimension_numbers<[1], [0], [0], [1], [0, 0, 1, 1], [], []>} : vector<96x20xbf16>, vector<20x50xbf16>, vector<96x50xf32> -> vector<96x50xf32>
    %63 = arith.addf %59, %62 : vector<96x50xf32>
    %64 = vector.extract_strided_slice %18 {offsets = [25, 0], sizes = [96, 20], strides = [1, 1]} : vector<148x20xbf16> to vector<96x20xbf16>
    %c220 = arith.constant 220 : index
    %c0_34 = arith.constant 0 : index
    %65 = vector.load %arg4[%c220, %c0_34] : memref<500x50xbf16, #tpu.memory_space<vmem>>, vector<20x50xbf16>
    %cst_35 = arith.constant dense<0.000000e+00> : vector<96x50xf32>
    %66 = tpu.matmul %64, %65, %cst_35 {dimension_numbers = #tpu.dot_dimension_numbers<[1], [0], [0], [1], [0, 0, 1, 1], [], []>} : vector<96x20xbf16>, vector<20x50xbf16>, vector<96x50xf32> -> vector<96x50xf32>
    %67 = arith.addf %63, %66 : vector<96x50xf32>
    %68 = vector.extract_strided_slice %18 {offsets = [26, 0], sizes = [96, 20], strides = [1, 1]} : vector<148x20xbf16> to vector<96x20xbf16>
    %c240 = arith.constant 240 : index
    %c0_36 = arith.constant 0 : index
    %69 = vector.load %arg4[%c240, %c0_36] : memref<500x50xbf16, #tpu.memory_space<vmem>>, vector<20x50xbf16>
    %cst_37 = arith.constant dense<0.000000e+00> : vector<96x50xf32>
    %70 = tpu.matmul %68, %69, %cst_37 {dimension_numbers = #tpu.dot_dimension_numbers<[1], [0], [0], [1], [0, 0, 1, 1], [], []>} : vector<96x20xbf16>, vector<20x50xbf16>, vector<96x50xf32> -> vector<96x50xf32>
    %71 = arith.addf %67, %70 : vector<96x50xf32>
    %72 = vector.extract_strided_slice %18 {offsets = [27, 0], sizes = [96, 20], strides = [1, 1]} : vector<148x20xbf16> to vector<96x20xbf16>
    %c260 = arith.constant 260 : index
    %c0_38 = arith.constant 0 : index
    %73 = vector.load %arg4[%c260, %c0_38] : memref<500x50xbf16, #tpu.memory_space<vmem>>, vector<20x50xbf16>
    %cst_39 = arith.constant dense<0.000000e+00> : vector<96x50xf32>
    %74 = tpu.matmul %72, %73, %cst_39 {dimension_numbers = #tpu.dot_dimension_numbers<[1], [0], [0], [1], [0, 0, 1, 1], [], []>} : vector<96x20xbf16>, vector<20x50xbf16>, vector<96x50xf32> -> vector<96x50xf32>
    %75 = arith.addf %71, %74 : vector<96x50xf32>
    %76 = vector.extract_strided_slice %18 {offsets = [28, 0], sizes = [96, 20], strides = [1, 1]} : vector<148x20xbf16> to vector<96x20xbf16>
    %c280 = arith.constant 280 : index
    %c0_40 = arith.constant 0 : index
    %77 = vector.load %arg4[%c280, %c0_40] : memref<500x50xbf16, #tpu.memory_space<vmem>>, vector<20x50xbf16>
    %cst_41 = arith.constant dense<0.000000e+00> : vector<96x50xf32>
    %78 = tpu.matmul %76, %77, %cst_41 {dimension_numbers = #tpu.dot_dimension_numbers<[1], [0], [0], [1], [0, 0, 1, 1], [], []>} : vector<96x20xbf16>, vector<20x50xbf16>, vector<96x50xf32> -> vector<96x50xf32>
    %79 = arith.addf %75, %78 : vector<96x50xf32>
    %80 = vector.extract_strided_slice %18 {offsets = [36, 0], sizes = [96, 20], strides = [1, 1]} : vector<148x20xbf16> to vector<96x20xbf16>
    %c300 = arith.constant 300 : index
    %c0_42 = arith.constant 0 : index
    %81 = vector.load %arg4[%c300, %c0_42] : memref<500x50xbf16, #tpu.memory_space<vmem>>, vector<20x50xbf16>
    %cst_43 = arith.constant dense<0.000000e+00> : vector<96x50xf32>
    %82 = tpu.matmul %80, %81, %cst_43 {dimension_numbers = #tpu.dot_dimension_numbers<[1], [0], [0], [1], [0, 0, 1, 1], [], []>} : vector<96x20xbf16>, vector<20x50xbf16>, vector<96x50xf32> -> vector<96x50xf32>
    %83 = arith.addf %79, %82 : vector<96x50xf32>
    %84 = vector.extract_strided_slice %18 {offsets = [37, 0], sizes = [96, 20], strides = [1, 1]} : vector<148x20xbf16> to vector<96x20xbf16>
    %c320 = arith.constant 320 : index
    %c0_44 = arith.constant 0 : index
    %85 = vector.load %arg4[%c320, %c0_44] : memref<500x50xbf16, #tpu.memory_space<vmem>>, vector<20x50xbf16>
    %cst_45 = arith.constant dense<0.000000e+00> : vector<96x50xf32>
    %86 = tpu.matmul %84, %85, %cst_45 {dimension_numbers = #tpu.dot_dimension_numbers<[1], [0], [0], [1], [0, 0, 1, 1], [], []>} : vector<96x20xbf16>, vector<20x50xbf16>, vector<96x50xf32> -> vector<96x50xf32>
    %87 = arith.addf %83, %86 : vector<96x50xf32>
    %88 = vector.extract_strided_slice %18 {offsets = [38, 0], sizes = [96, 20], strides = [1, 1]} : vector<148x20xbf16> to vector<96x20xbf16>
    %c340 = arith.constant 340 : index
    %c0_46 = arith.constant 0 : index
    %89 = vector.load %arg4[%c340, %c0_46] : memref<500x50xbf16, #tpu.memory_space<vmem>>, vector<20x50xbf16>
    %cst_47 = arith.constant dense<0.000000e+00> : vector<96x50xf32>
    %90 = tpu.matmul %88, %89, %cst_47 {dimension_numbers = #tpu.dot_dimension_numbers<[1], [0], [0], [1], [0, 0, 1, 1], [], []>} : vector<96x20xbf16>, vector<20x50xbf16>, vector<96x50xf32> -> vector<96x50xf32>
    %91 = arith.addf %87, %90 : vector<96x50xf32>
    %92 = vector.extract_strided_slice %18 {offsets = [39, 0], sizes = [96, 20], strides = [1, 1]} : vector<148x20xbf16> to vector<96x20xbf16>
    %c360 = arith.constant 360 : index
    %c0_48 = arith.constant 0 : index
    %93 = vector.load %arg4[%c360, %c0_48] : memref<500x50xbf16, #tpu.memory_space<vmem>>, vector<20x50xbf16>
    %cst_49 = arith.constant dense<0.000000e+00> : vector<96x50xf32>
    %94 = tpu.matmul %92, %93, %cst_49 {dimension_numbers = #tpu.dot_dimension_numbers<[1], [0], [0], [1], [0, 0, 1, 1], [], []>} : vector<96x20xbf16>, vector<20x50xbf16>, vector<96x50xf32> -> vector<96x50xf32>
    %95 = arith.addf %91, %94 : vector<96x50xf32>
    %96 = vector.extract_strided_slice %18 {offsets = [40, 0], sizes = [96, 20], strides = [1, 1]} : vector<148x20xbf16> to vector<96x20xbf16>
    %c380 = arith.constant 380 : index
    %c0_50 = arith.constant 0 : index
    %97 = vector.load %arg4[%c380, %c0_50] : memref<500x50xbf16, #tpu.memory_space<vmem>>, vector<20x50xbf16>
    %cst_51 = arith.constant dense<0.000000e+00> : vector<96x50xf32>
    %98 = tpu.matmul %96, %97, %cst_51 {dimension_numbers = #tpu.dot_dimension_numbers<[1], [0], [0], [1], [0, 0, 1, 1], [], []>} : vector<96x20xbf16>, vector<20x50xbf16>, vector<96x50xf32> -> vector<96x50xf32>
    %99 = arith.addf %95, %98 : vector<96x50xf32>
    %100 = vector.extract_strided_slice %18 {offsets = [48, 0], sizes = [96, 20], strides = [1, 1]} : vector<148x20xbf16> to vector<96x20xbf16>
    %c400 = arith.constant 400 : index
    %c0_52 = arith.constant 0 : index
    %101 = vector.load %arg4[%c400, %c0_52] : memref<500x50xbf16, #tpu.memory_space<vmem>>, vector<20x50xbf16>
    %cst_53 = arith.constant dense<0.000000e+00> : vector<96x50xf32>
    %102 = tpu.matmul %100, %101, %cst_53 {dimension_numbers = #tpu.dot_dimension_numbers<[1], [0], [0], [1], [0, 0, 1, 1], [], []>} : vector<96x20xbf16>, vector<20x50xbf16>, vector<96x50xf32> -> vector<96x50xf32>
    %103 = arith.addf %99, %102 : vector<96x50xf32>
    %104 = vector.extract_strided_slice %18 {offsets = [49, 0], sizes = [96, 20], strides = [1, 1]} : vector<148x20xbf16> to vector<96x20xbf16>
    %c420 = arith.constant 420 : index
    %c0_54 = arith.constant 0 : index
    %105 = vector.load %arg4[%c420, %c0_54] : memref<500x50xbf16, #tpu.memory_space<vmem>>, vector<20x50xbf16>
    %cst_55 = arith.constant dense<0.000000e+00> : vector<96x50xf32>
    %106 = tpu.matmul %104, %105, %cst_55 {dimension_numbers = #tpu.dot_dimension_numbers<[1], [0], [0], [1], [0, 0, 1, 1], [], []>} : vector<96x20xbf16>, vector<20x50xbf16>, vector<96x50xf32> -> vector<96x50xf32>
    %107 = arith.addf %103, %106 : vector<96x50xf32>
    %108 = vector.extract_strided_slice %18 {offsets = [50, 0], sizes = [96, 20], strides = [1, 1]} : vector<148x20xbf16> to vector<96x20xbf16>
    %c440 = arith.constant 440 : index
    %c0_56 = arith.constant 0 : index
    %109 = vector.load %arg4[%c440, %c0_56] : memref<500x50xbf16, #tpu.memory_space<vmem>>, vector<20x50xbf16>
    %cst_57 = arith.constant dense<0.000000e+00> : vector<96x50xf32>
    %110 = tpu.matmul %108, %109, %cst_57 {dimension_numbers = #tpu.dot_dimension_numbers<[1], [0], [0], [1], [0, 0, 1, 1], [], []>} : vector<96x20xbf16>, vector<20x50xbf16>, vector<96x50xf32> -> vector<96x50xf32>
    %111 = arith.addf %107, %110 : vector<96x50xf32>
    %112 = vector.extract_strided_slice %18 {offsets = [51, 0], sizes = [96, 20], strides = [1, 1]} : vector<148x20xbf16> to vector<96x20xbf16>
    %c460 = arith.constant 460 : index
    %c0_58 = arith.constant 0 : index
    %113 = vector.load %arg4[%c460, %c0_58] : memref<500x50xbf16, #tpu.memory_space<vmem>>, vector<20x50xbf16>
    %cst_59 = arith.constant dense<0.000000e+00> : vector<96x50xf32>
    %114 = tpu.matmul %112, %113, %cst_59 {dimension_numbers = #tpu.dot_dimension_numbers<[1], [0], [0], [1], [0, 0, 1, 1], [], []>} : vector<96x20xbf16>, vector<20x50xbf16>, vector<96x50xf32> -> vector<96x50xf32>
    %115 = arith.addf %111, %114 : vector<96x50xf32>
    %116 = vector.extract_strided_slice %18 {offsets = [52, 0], sizes = [96, 20], strides = [1, 1]} : vector<148x20xbf16> to vector<96x20xbf16>
    %c480 = arith.constant 480 : index
    %c0_60 = arith.constant 0 : index
    %117 = vector.load %arg4[%c480, %c0_60] : memref<500x50xbf16, #tpu.memory_space<vmem>>, vector<20x50xbf16>
    %cst_61 = arith.constant dense<0.000000e+00> : vector<96x50xf32>
    %118 = tpu.matmul %116, %117, %cst_61 {dimension_numbers = #tpu.dot_dimension_numbers<[1], [0], [0], [1], [0, 0, 1, 1], [], []>} : vector<96x20xbf16>, vector<20x50xbf16>, vector<96x50xf32> -> vector<96x50xf32>
    %119 = arith.addf %115, %118 : vector<96x50xf32>
    %c0_62 = arith.constant 0 : index
    %c0_63 = arith.constant 0 : index
    %120 = vector.load %arg5[%c0_62, %c0_63] : memref<1x50xf32, #tpu.memory_space<vmem>>, vector<1x50xf32>
    %121 = vector.broadcast %120 : vector<1x50xf32> to vector<96x50xf32>
    %122 = arith.addf %119, %121 : vector<96x50xf32>
    %cst_64 = arith.constant 0.000000e+00 : f32
    %123 = vector.broadcast %cst_64 : f32 to vector<96x50xf32>
    %124 = arith.maximumf %122, %123 : vector<96x50xf32>
    %125 = vector.extract_strided_slice %124 {offsets = [0, 0], sizes = [84, 50], strides = [1, 1]} : vector<96x50xf32> to vector<84x50xf32>
    %126 = vector.extract_strided_slice %124 {offsets = [12, 0], sizes = [84, 50], strides = [1, 1]} : vector<96x50xf32> to vector<84x50xf32>
    %127 = arith.maximumf %125, %126 : vector<84x50xf32>
    %128 = vector.extract_strided_slice %127 {offsets = [0, 0], sizes = [83, 50], strides = [1, 1]} : vector<84x50xf32> to vector<83x50xf32>
    %129 = vector.extract_strided_slice %127 {offsets = [1, 0], sizes = [83, 50], strides = [1, 1]} : vector<84x50xf32> to vector<83x50xf32>
    %130 = arith.maximumf %128, %129 : vector<83x50xf32>
    %c0_65 = arith.constant 0 : index
    %c0_66 = arith.constant 0 : index
    %131 = vector.load %arg11[%c0_65, %c0_66] : memref<16x83xbf16, #tpu.memory_space<vmem>>, vector<16x83xbf16>
    %132 = arith.truncf %130 : vector<83x50xf32> to vector<83x50xbf16>
    %cst_67 = arith.constant dense<0.000000e+00> : vector<16x50xf32>
    %133 = tpu.matmul %131, %132, %cst_67 {dimension_numbers = #tpu.dot_dimension_numbers<[1], [0], [0], [1], [0, 0, 1, 1], [], []>} : vector<16x83xbf16>, vector<83x50xbf16>, vector<16x50xf32> -> vector<16x50xf32>
    %134 = arith.truncf %133 : vector<16x50xf32> to vector<16x50xbf16>
    %c0_68 = arith.constant 0 : index
    %c0_69 = arith.constant 0 : index
    %135 = vector.load %arg7[%c0_68, %c0_69] : memref<1x500xf32, #tpu.memory_space<vmem>>, vector<1x500xf32>
    %136 = vector.extract_strided_slice %134 {offsets = [0, 0], sizes = [1, 50], strides = [1, 1]} : vector<16x50xbf16> to vector<1x50xbf16>
    %c0_70 = arith.constant 0 : index
    %c0_71 = arith.constant 0 : index
    %137 = vector.load %arg6[%c0_70, %c0_71] : memref<800x500xbf16, #tpu.memory_space<vmem>>, vector<50x500xbf16>
    %cst_72 = arith.constant dense<0.000000e+00> : vector<1x500xf32>
    %138 = tpu.matmul %136, %137, %cst_72 {dimension_numbers = #tpu.dot_dimension_numbers<[1], [0], [0], [1], [0, 0, 1, 1], [], []>} : vector<1x50xbf16>, vector<50x500xbf16>, vector<1x500xf32> -> vector<1x500xf32>
    %139 = arith.addf %135, %138 : vector<1x500xf32>
    %140 = vector.extract_strided_slice %134 {offsets = [1, 0], sizes = [1, 50], strides = [1, 1]} : vector<16x50xbf16> to vector<1x50xbf16>
    %c50 = arith.constant 50 : index
    %c0_73 = arith.constant 0 : index
    %141 = vector.load %arg6[%c50, %c0_73] : memref<800x500xbf16, #tpu.memory_space<vmem>>, vector<50x500xbf16>
    %cst_74 = arith.constant dense<0.000000e+00> : vector<1x500xf32>
    %142 = tpu.matmul %140, %141, %cst_74 {dimension_numbers = #tpu.dot_dimension_numbers<[1], [0], [0], [1], [0, 0, 1, 1], [], []>} : vector<1x50xbf16>, vector<50x500xbf16>, vector<1x500xf32> -> vector<1x500xf32>
    %143 = arith.addf %139, %142 : vector<1x500xf32>
    %144 = vector.extract_strided_slice %134 {offsets = [2, 0], sizes = [1, 50], strides = [1, 1]} : vector<16x50xbf16> to vector<1x50xbf16>
    %c100_75 = arith.constant 100 : index
    %c0_76 = arith.constant 0 : index
    %145 = vector.load %arg6[%c100_75, %c0_76] : memref<800x500xbf16, #tpu.memory_space<vmem>>, vector<50x500xbf16>
    %cst_77 = arith.constant dense<0.000000e+00> : vector<1x500xf32>
    %146 = tpu.matmul %144, %145, %cst_77 {dimension_numbers = #tpu.dot_dimension_numbers<[1], [0], [0], [1], [0, 0, 1, 1], [], []>} : vector<1x50xbf16>, vector<50x500xbf16>, vector<1x500xf32> -> vector<1x500xf32>
    %147 = arith.addf %143, %146 : vector<1x500xf32>
    %148 = vector.extract_strided_slice %134 {offsets = [3, 0], sizes = [1, 50], strides = [1, 1]} : vector<16x50xbf16> to vector<1x50xbf16>
    %c150 = arith.constant 150 : index
    %c0_78 = arith.constant 0 : index
    %149 = vector.load %arg6[%c150, %c0_78] : memref<800x500xbf16, #tpu.memory_space<vmem>>, vector<50x500xbf16>
    %cst_79 = arith.constant dense<0.000000e+00> : vector<1x500xf32>
    %150 = tpu.matmul %148, %149, %cst_79 {dimension_numbers = #tpu.dot_dimension_numbers<[1], [0], [0], [1], [0, 0, 1, 1], [], []>} : vector<1x50xbf16>, vector<50x500xbf16>, vector<1x500xf32> -> vector<1x500xf32>
    %151 = arith.addf %147, %150 : vector<1x500xf32>
    %152 = vector.extract_strided_slice %134 {offsets = [4, 0], sizes = [1, 50], strides = [1, 1]} : vector<16x50xbf16> to vector<1x50xbf16>
    %c200_80 = arith.constant 200 : index
    %c0_81 = arith.constant 0 : index
    %153 = vector.load %arg6[%c200_80, %c0_81] : memref<800x500xbf16, #tpu.memory_space<vmem>>, vector<50x500xbf16>
    %cst_82 = arith.constant dense<0.000000e+00> : vector<1x500xf32>
    %154 = tpu.matmul %152, %153, %cst_82 {dimension_numbers = #tpu.dot_dimension_numbers<[1], [0], [0], [1], [0, 0, 1, 1], [], []>} : vector<1x50xbf16>, vector<50x500xbf16>, vector<1x500xf32> -> vector<1x500xf32>
    %155 = arith.addf %151, %154 : vector<1x500xf32>
    %156 = vector.extract_strided_slice %134 {offsets = [5, 0], sizes = [1, 50], strides = [1, 1]} : vector<16x50xbf16> to vector<1x50xbf16>
    %c250 = arith.constant 250 : index
    %c0_83 = arith.constant 0 : index
    %157 = vector.load %arg6[%c250, %c0_83] : memref<800x500xbf16, #tpu.memory_space<vmem>>, vector<50x500xbf16>
    %cst_84 = arith.constant dense<0.000000e+00> : vector<1x500xf32>
    %158 = tpu.matmul %156, %157, %cst_84 {dimension_numbers = #tpu.dot_dimension_numbers<[1], [0], [0], [1], [0, 0, 1, 1], [], []>} : vector<1x50xbf16>, vector<50x500xbf16>, vector<1x500xf32> -> vector<1x500xf32>
    %159 = arith.addf %155, %158 : vector<1x500xf32>
    %160 = vector.extract_strided_slice %134 {offsets = [6, 0], sizes = [1, 50], strides = [1, 1]} : vector<16x50xbf16> to vector<1x50xbf16>
    %c300_85 = arith.constant 300 : index
    %c0_86 = arith.constant 0 : index
    %161 = vector.load %arg6[%c300_85, %c0_86] : memref<800x500xbf16, #tpu.memory_space<vmem>>, vector<50x500xbf16>
    %cst_87 = arith.constant dense<0.000000e+00> : vector<1x500xf32>
    %162 = tpu.matmul %160, %161, %cst_87 {dimension_numbers = #tpu.dot_dimension_numbers<[1], [0], [0], [1], [0, 0, 1, 1], [], []>} : vector<1x50xbf16>, vector<50x500xbf16>, vector<1x500xf32> -> vector<1x500xf32>
    %163 = arith.addf %159, %162 : vector<1x500xf32>
    %164 = vector.extract_strided_slice %134 {offsets = [7, 0], sizes = [1, 50], strides = [1, 1]} : vector<16x50xbf16> to vector<1x50xbf16>
    %c350 = arith.constant 350 : index
    %c0_88 = arith.constant 0 : index
    %165 = vector.load %arg6[%c350, %c0_88] : memref<800x500xbf16, #tpu.memory_space<vmem>>, vector<50x500xbf16>
    %cst_89 = arith.constant dense<0.000000e+00> : vector<1x500xf32>
    %166 = tpu.matmul %164, %165, %cst_89 {dimension_numbers = #tpu.dot_dimension_numbers<[1], [0], [0], [1], [0, 0, 1, 1], [], []>} : vector<1x50xbf16>, vector<50x500xbf16>, vector<1x500xf32> -> vector<1x500xf32>
    %167 = arith.addf %163, %166 : vector<1x500xf32>
    %168 = vector.extract_strided_slice %134 {offsets = [8, 0], sizes = [1, 50], strides = [1, 1]} : vector<16x50xbf16> to vector<1x50xbf16>
    %c400_90 = arith.constant 400 : index
    %c0_91 = arith.constant 0 : index
    %169 = vector.load %arg6[%c400_90, %c0_91] : memref<800x500xbf16, #tpu.memory_space<vmem>>, vector<50x500xbf16>
    %cst_92 = arith.constant dense<0.000000e+00> : vector<1x500xf32>
    %170 = tpu.matmul %168, %169, %cst_92 {dimension_numbers = #tpu.dot_dimension_numbers<[1], [0], [0], [1], [0, 0, 1, 1], [], []>} : vector<1x50xbf16>, vector<50x500xbf16>, vector<1x500xf32> -> vector<1x500xf32>
    %171 = arith.addf %167, %170 : vector<1x500xf32>
    %172 = vector.extract_strided_slice %134 {offsets = [9, 0], sizes = [1, 50], strides = [1, 1]} : vector<16x50xbf16> to vector<1x50xbf16>
    %c450 = arith.constant 450 : index
    %c0_93 = arith.constant 0 : index
    %173 = vector.load %arg6[%c450, %c0_93] : memref<800x500xbf16, #tpu.memory_space<vmem>>, vector<50x500xbf16>
    %cst_94 = arith.constant dense<0.000000e+00> : vector<1x500xf32>
    %174 = tpu.matmul %172, %173, %cst_94 {dimension_numbers = #tpu.dot_dimension_numbers<[1], [0], [0], [1], [0, 0, 1, 1], [], []>} : vector<1x50xbf16>, vector<50x500xbf16>, vector<1x500xf32> -> vector<1x500xf32>
    %175 = arith.addf %171, %174 : vector<1x500xf32>
    %176 = vector.extract_strided_slice %134 {offsets = [10, 0], sizes = [1, 50], strides = [1, 1]} : vector<16x50xbf16> to vector<1x50xbf16>
    %c500 = arith.constant 500 : index
    %c0_95 = arith.constant 0 : index
    %177 = vector.load %arg6[%c500, %c0_95] : memref<800x500xbf16, #tpu.memory_space<vmem>>, vector<50x500xbf16>
    %cst_96 = arith.constant dense<0.000000e+00> : vector<1x500xf32>
    %178 = tpu.matmul %176, %177, %cst_96 {dimension_numbers = #tpu.dot_dimension_numbers<[1], [0], [0], [1], [0, 0, 1, 1], [], []>} : vector<1x50xbf16>, vector<50x500xbf16>, vector<1x500xf32> -> vector<1x500xf32>
    %179 = arith.addf %175, %178 : vector<1x500xf32>
    %180 = vector.extract_strided_slice %134 {offsets = [11, 0], sizes = [1, 50], strides = [1, 1]} : vector<16x50xbf16> to vector<1x50xbf16>
    %c550 = arith.constant 550 : index
    %c0_97 = arith.constant 0 : index
    %181 = vector.load %arg6[%c550, %c0_97] : memref<800x500xbf16, #tpu.memory_space<vmem>>, vector<50x500xbf16>
    %cst_98 = arith.constant dense<0.000000e+00> : vector<1x500xf32>
    %182 = tpu.matmul %180, %181, %cst_98 {dimension_numbers = #tpu.dot_dimension_numbers<[1], [0], [0], [1], [0, 0, 1, 1], [], []>} : vector<1x50xbf16>, vector<50x500xbf16>, vector<1x500xf32> -> vector<1x500xf32>
    %183 = arith.addf %179, %182 : vector<1x500xf32>
    %184 = vector.extract_strided_slice %134 {offsets = [12, 0], sizes = [1, 50], strides = [1, 1]} : vector<16x50xbf16> to vector<1x50xbf16>
    %c600 = arith.constant 600 : index
    %c0_99 = arith.constant 0 : index
    %185 = vector.load %arg6[%c600, %c0_99] : memref<800x500xbf16, #tpu.memory_space<vmem>>, vector<50x500xbf16>
    %cst_100 = arith.constant dense<0.000000e+00> : vector<1x500xf32>
    %186 = tpu.matmul %184, %185, %cst_100 {dimension_numbers = #tpu.dot_dimension_numbers<[1], [0], [0], [1], [0, 0, 1, 1], [], []>} : vector<1x50xbf16>, vector<50x500xbf16>, vector<1x500xf32> -> vector<1x500xf32>
    %187 = arith.addf %183, %186 : vector<1x500xf32>
    %188 = vector.extract_strided_slice %134 {offsets = [13, 0], sizes = [1, 50], strides = [1, 1]} : vector<16x50xbf16> to vector<1x50xbf16>
    %c650 = arith.constant 650 : index
    %c0_101 = arith.constant 0 : index
    %189 = vector.load %arg6[%c650, %c0_101] : memref<800x500xbf16, #tpu.memory_space<vmem>>, vector<50x500xbf16>
    %cst_102 = arith.constant dense<0.000000e+00> : vector<1x500xf32>
    %190 = tpu.matmul %188, %189, %cst_102 {dimension_numbers = #tpu.dot_dimension_numbers<[1], [0], [0], [1], [0, 0, 1, 1], [], []>} : vector<1x50xbf16>, vector<50x500xbf16>, vector<1x500xf32> -> vector<1x500xf32>
    %191 = arith.addf %187, %190 : vector<1x500xf32>
    %192 = vector.extract_strided_slice %134 {offsets = [14, 0], sizes = [1, 50], strides = [1, 1]} : vector<16x50xbf16> to vector<1x50xbf16>
    %c700 = arith.constant 700 : index
    %c0_103 = arith.constant 0 : index
    %193 = vector.load %arg6[%c700, %c0_103] : memref<800x500xbf16, #tpu.memory_space<vmem>>, vector<50x500xbf16>
    %cst_104 = arith.constant dense<0.000000e+00> : vector<1x500xf32>
    %194 = tpu.matmul %192, %193, %cst_104 {dimension_numbers = #tpu.dot_dimension_numbers<[1], [0], [0], [1], [0, 0, 1, 1], [], []>} : vector<1x50xbf16>, vector<50x500xbf16>, vector<1x500xf32> -> vector<1x500xf32>
    %195 = arith.addf %191, %194 : vector<1x500xf32>
    %196 = vector.extract_strided_slice %134 {offsets = [15, 0], sizes = [1, 50], strides = [1, 1]} : vector<16x50xbf16> to vector<1x50xbf16>
    %c750 = arith.constant 750 : index
    %c0_105 = arith.constant 0 : index
    %197 = vector.load %arg6[%c750, %c0_105] : memref<800x500xbf16, #tpu.memory_space<vmem>>, vector<50x500xbf16>
    %cst_106 = arith.constant dense<0.000000e+00> : vector<1x500xf32>
    %198 = tpu.matmul %196, %197, %cst_106 {dimension_numbers = #tpu.dot_dimension_numbers<[1], [0], [0], [1], [0, 0, 1, 1], [], []>} : vector<1x50xbf16>, vector<50x500xbf16>, vector<1x500xf32> -> vector<1x500xf32>
    %199 = arith.addf %195, %198 : vector<1x500xf32>
    %cst_107 = arith.constant 0.000000e+00 : f32
    %200 = vector.broadcast %cst_107 : f32 to vector<1x500xf32>
    %201 = arith.maximumf %199, %200 : vector<1x500xf32>
    %202 = arith.truncf %201 : vector<1x500xf32> to vector<1x500xbf16>
    %c0_108 = arith.constant 0 : index
    %c0_109 = arith.constant 0 : index
    %203 = vector.load %arg8[%c0_108, %c0_109] : memref<500x10xbf16, #tpu.memory_space<vmem>>, vector<500x10xbf16>
    %cst_110 = arith.constant dense<0.000000e+00> : vector<1x10xf32>
    %204 = tpu.matmul %202, %203, %cst_110 {dimension_numbers = #tpu.dot_dimension_numbers<[1], [0], [0], [1], [0, 0, 1, 1], [], []>} : vector<1x500xbf16>, vector<500x10xbf16>, vector<1x10xf32> -> vector<1x10xf32>
    %c0_111 = arith.constant 0 : index
    %c0_112 = arith.constant 0 : index
    %205 = vector.load %arg9[%c0_111, %c0_112] : memref<1x10xf32, #tpu.memory_space<vmem>>, vector<1x10xf32>
    %206 = arith.addf %204, %205 : vector<1x10xf32>
    %c0_113 = arith.constant 0 : index
    %c0_114 = arith.constant 0 : index
    %c0_115 = arith.constant 0 : index
    %207 = vector.load %arg12[%c0_113, %c0_114, %c0_115] : memref<1x1x10xf32, #tpu.memory_space<vmem>>, vector<1x1x10xf32>
    %208 = vector.shape_cast %207 : vector<1x1x10xf32> to vector<1x10xf32>
    %209 = vector.shape_cast %206 : vector<1x10xf32> to vector<1x1x10xf32>
    tpu.vector_store %arg12[%c0_113, %c0_114, %c0_115], %209 {strides = array<i32>} : memref<1x1x10xf32, #tpu.memory_space<vmem>>, vector<1x1x10xf32>,
    return
  }
  func.func @transform_0(%arg0: i32) -> (i32, i32, i32) {
    %c0_i32 = arith.constant 0 : i32
    %c0_i32_0 = arith.constant 0 : i32
    %c0_i32_1 = arith.constant 0 : i32
    return %arg0, %c0_i32, %c0_i32_0 : i32, i32, i32
  }
  func.func @transform_1(%arg0: i32) -> (i32, i32) {
    %c0_i32 = arith.constant 0 : i32
    %c0_i32_0 = arith.constant 0 : i32
    %c0_i32_1 = arith.constant 0 : i32
    return %c0_i32, %c0_i32_0 : i32, i32
  }
  func.func @transform_2(%arg0: i32) -> (i32, i32) {
    %c0_i32 = arith.constant 0 : i32
    %c0_i32_0 = arith.constant 0 : i32
    %c0_i32_1 = arith.constant 0 : i32
    return %c0_i32, %c0_i32_0 : i32, i32
  }
  func.func @transform_3(%arg0: i32) -> (i32, i32) {
    %c0_i32 = arith.constant 0 : i32
    %c0_i32_0 = arith.constant 0 : i32
    %c0_i32_1 = arith.constant 0 : i32
    return %c0_i32, %c0_i32_0 : i32, i32
  }
  func.func @transform_4(%arg0: i32) -> (i32, i32) {
    %c0_i32 = arith.constant 0 : i32
    %c0_i32_0 = arith.constant 0 : i32
    %c0_i32_1 = arith.constant 0 : i32
    return %c0_i32, %c0_i32_0 : i32, i32
  }
  func.func @transform_5(%arg0: i32) -> (i32, i32) {
    %c0_i32 = arith.constant 0 : i32
    %c0_i32_0 = arith.constant 0 : i32
    %c0_i32_1 = arith.constant 0 : i32
    return %c0_i32, %c0_i32_0 : i32, i32
  }
  func.func @transform_6(%arg0: i32) -> (i32, i32) {
    %c0_i32 = arith.constant 0 : i32
    %c0_i32_0 = arith.constant 0 : i32
    %c0_i32_1 = arith.constant 0 : i32
    return %c0_i32, %c0_i32_0 : i32, i32
  }
  func.func @transform_7(%arg0: i32) -> (i32, i32) {
    %c0_i32 = arith.constant 0 : i32
    %c0_i32_0 = arith.constant 0 : i32
    %c0_i32_1 = arith.constant 0 : i32
    return %c0_i32, %c0_i32_0 : i32, i32
  }
  func.func @transform_8(%arg0: i32) -> (i32, i32) {
    %c0_i32 = arith.constant 0 : i32
    %c0_i32_0 = arith.constant 0 : i32
    %c0_i32_1 = arith.constant 0 : i32
    return %c0_i32, %c0_i32_0 : i32, i32
  }
  func.func @transform_9(%arg0: i32) -> (i32, i32) {
    %c0_i32 = arith.constant 0 : i32
    %c0_i32_0 = arith.constant 0 : i32
    %c0_i32_1 = arith.constant 0 : i32
    return %c0_i32, %c0_i32_0 : i32, i32
  }
  func.func @transform_10(%arg0: i32) -> (i32, i32) {
    %c0_i32 = arith.constant 0 : i32
    %c0_i32_0 = arith.constant 0 : i32
    %c0_i32_1 = arith.constant 0 : i32
    return %c0_i32, %c0_i32_0 : i32, i32
  }
  func.func @transform_11(%arg0: i32) -> (i32, i32, i32) {
    %c0_i32 = arith.constant 0 : i32
    %c0_i32_0 = arith.constant 0 : i32
    %c0_i32_1 = arith.constant 0 : i32
    return %arg0, %c0_i32, %c0_i32_0 : i32, i32, i32
  }
}

</mosaic_0001>

<llo_original>
// kernel: net_forward.1
$region0: #{net_forward.1}
  #allocation0 [shape = 'u32[]', space=smem, size = 0x4, offset = 0x4, fixed_abs, tag = 'smem constant byte address 0x4 - core index']
  #allocation1 [shape = 'u32[144,128]{1,0:T(1,128)}', space=vmem, size = 0x12000, scoped, tag = 'internal scratch']
  %s0 = inlined_call_operand.vmem [shape: bf16[2,576,25], index: 0, kind: input, shape index: {}]
  %s1 = inlined_call_operand.vmem [shape: bf16[25,20], index: 1, kind: input, shape index: {}]
  %s2 = inlined_call_operand.vmem [shape: f32[1,20], index: 2, kind: input, shape index: {}]
  %s3 = inlined_call_operand.vmem [shape: bf16[500,50], index: 3, kind: input, shape index: {}]
  %s4 = inlined_call_operand.vmem [shape: f32[1,50], index: 4, kind: input, shape index: {}]
  %s5 = inlined_call_operand.vmem [shape: bf16[800,500], index: 5, kind: input, shape index: {}]
  %s6 = inlined_call_operand.vmem [shape: f32[1,500], index: 6, kind: input, shape index: {}]
  %s7 = inlined_call_operand.vmem [shape: bf16[500,10], index: 7, kind: input, shape index: {}]
  %s8 = inlined_call_operand.vmem [shape: f32[1,10], index: 8, kind: input, shape index: {}]
  %s9 = inlined_call_operand.vmem [shape: bf16[148,551], index: 9, kind: input, shape index: {}]
  %s10 = inlined_call_operand.vmem [shape: bf16[16,83], index: 10, kind: input, shape index: {}]
  %s11 = inlined_call_operand.hbm [shape: f32[2,1,10], index: 11, kind: output, shape index: {}]
  %s12 = sld [smem:[#allocation0]]
  $region77: #{net_forward.1} parent=0
    _
  %s14 = ssub.s32 1, %s12
  %s15 = scalar_select 0, %s14, %s12
  $region1: #{net_forward.1} parent=0
    #allocation2 [shape = 'u8[1024]{0}', space=vmem, size = 0x400, scoped, tag = 'output window, operand 0']
    #allocation3 [shape = 's32[2]{0}', space=sflag, size = 0x8, scoped, tag = 'scoped memory for net_forward.1']
    %16 = vsyncpa [#allocation3], 0
    %s17 = scalar_lea.sflag [#allocation3], 1
    %18 = vsyncpa %s17, 0
    loop: start=0, step=1, limit=4
    $region2: #{net_forward.1} parent=1 // loop_pre_header
      _
    $region3: #{net_forward.1} parent=1 // loop_header
      %s20 = sphi 0, %s24
      %p21 = scmp.ge.s32.totalorder %s20, 4
      %s30 = sphi 0, %s32
      %s33 = sphi 0, %s30
      %s34 = sphi 0, %s33
      %s50 = sphi 0, %s34
      %s54 = sphi 0, %s54
      %s56 = sphi 0, %s54
      %s57 = sphi 0, %s56
      %s71 = sphi 0, %s57
      %s75 = sphi 0, %s75
      %s77 = sphi 0, %s75
      %s78 = sphi 0, %s77
      %s92 = sphi 0, %s78
      %s96 = sphi 0, %s96
      %s98 = sphi 0, %s96
      %s99 = sphi 0, %s98
      %s113 = sphi 0, %s99
      %s117 = sphi 0, %s117
      %s119 = sphi 0, %s117
      %s120 = sphi 0, %s119
      %s134 = sphi 0, %s120
      %s138 = sphi 0, %s138
      %s140 = sphi 0, %s138
      %s141 = sphi 0, %s140
      %s155 = sphi 0, %s141
      %s159 = sphi 0, %s159
      %s161 = sphi 0, %s159
      %s162 = sphi 0, %s161
      %s176 = sphi 0, %s162
      %s180 = sphi 0, %s180
      %s182 = sphi 0, %s180
      %s183 = sphi 0, %s182
      %s197 = sphi 0, %s183
      %s201 = sphi 0, %s201
      %s203 = sphi 0, %s201
      %s204 = sphi 0, %s203
      %s218 = sphi 0, %s204
      %s222 = sphi 0, %s222
      %s224 = sphi 0, %s222
      %s225 = sphi 0, %s224
      %s239 = sphi 0, %s225
      %s243 = sphi 0, %s243
      %s245 = sphi 0, %s243
      %s246 = sphi 0, %s245
      %s260 = sphi 0, %s246
      %s266 = sphi 0, %s268
      %s269 = sphi 0, %s266
      %s270 = sphi 0, %s269
      %s286 = sphi 0, %s270
    $region4: #{net_forward.1} parent=1 // loop_header_branch
      %23 = sbr.rel (%p21) target = $region8
    $region5: #{net_forward.1} parent=1 // loop_body
      %s25 = ssub.s32 %s20, 1
      %s26 = ssub.s32 %s20, 2
      %s27 = sadd.s32 %s20, 1
      %s28 = ssub.s32 %s20, %s27
      %p29 = scmp.eq.s32.totalorder %s28, 0
      %s31 = sadd.s32 %s30, 1
      %s32 = scalar_select %p29, %s30, %s31
      %p35 = pneg %p29
      %p36 = scmp.eq.s32.totalorder %s20, 1
      %p37 = por %p35, %p36
      %p38 = scmp.ne.s32.totalorder %s30, %s33
      %p39 = scmp.eq.s32.totalorder %s20, 0
      %p40 = por %p38, %p39
      %p41 = scmp.ne.s32.totalorder %s30, %s33
      %p42 = scmp.eq.s32.totalorder %s25, 1
      %p43 = por %p41, %p42
      %p44 = scmp.ne.s32.totalorder %s33, %s34
      %p45 = scmp.eq.s32.totalorder %s25, 0
      %p46 = por %p44, %p45
      %p47 = scmp.ne.s32.totalorder %s33, %s34
      %p48 = scmp.eq.s32.totalorder %s26, 1
      %p49 = por %p47, %p48
      %p51 = scmp.ne.s32.totalorder %s34, %s50
      %p52 = scmp.eq.s32.totalorder %s26, 0
      %p53 = por %p51, %p52
      %s55 = sadd.s32 %s54, 1
      %p58 = scmp.eq.s32.totalorder %s20, 1
      %p59 = scmp.ne.s32.totalorder %s54, %s56
      %p60 = scmp.eq.s32.totalorder %s20, 0
      %p61 = por %p59, %p60
      %p62 = scmp.ne.s32.totalorder %s54, %s56
      %p63 = scmp.eq.s32.totalorder %s25, 1
      %p64 = por %p62, %p63
      %p65 = scmp.ne.s32.totalorder %s56, %s57
      %p66 = scmp.eq.s32.totalorder %s25, 0
      %p67 = por %p65, %p66
      %p68 = scmp.ne.s32.totalorder %s56, %s57
      %p69 = scmp.eq.s32.totalorder %s26, 1
      %p70 = por %p68, %p69
      %p72 = scmp.ne.s32.totalorder %s57, %s71
      %p73 = scmp.eq.s32.totalorder %s26, 0
      %p74 = por %p72, %p73
      %s76 = sadd.s32 %s75, 1
      %p79 = scmp.eq.s32.totalorder %s20, 1
      %p80 = scmp.ne.s32.totalorder %s75, %s77
      %p81 = scmp.eq.s32.totalorder %s20, 0
      %p82 = por %p80, %p81
      %p83 = scmp.ne.s32.totalorder %s75, %s77
      %p84 = scmp.eq.s32.totalorder %s25, 1
      %p85 = por %p83, %p84
      %p86 = scmp.ne.s32.totalorder %s77, %s78
      %p87 = scmp.eq.s32.totalorder %s25, 0
      %p88 = por %p86, %p87
      %p89 = scmp.ne.s32.totalorder %s77, %s78
      %p90 = scmp.eq.s32.totalorder %s26, 1
      %p91 = por %p89, %p90
      %p93 = scmp.ne.s32.totalorder %s78, %s92
      %p94 = scmp.eq.s32.totalorder %s26, 0
      %p95 = por %p93, %p94
      %s97 = sadd.s32 %s96, 1
      %p100 = scmp.eq.s32.totalorder %s20, 1
      %p101 = scmp.ne.s32.totalorder %s96, %s98
      %p102 = scmp.eq.s32.totalorder %s20, 0
      %p103 = por %p101, %p102
      %p104 = scmp.ne.s32.totalorder %s96, %s98
      %p105 = scmp.eq.s32.totalorder %s25, 1
      %p106 = por %p104, %p105
      %p107 = scmp.ne.s32.totalorder %s98, %s99
      %p108 = scmp.eq.s32.totalorder %s25, 0
      %p109 = por %p107, %p108
      %p110 = scmp.ne.s32.totalorder %s98, %s99
      %p111 = scmp.eq.s32.totalorder %s26, 1
      %p112 = por %p110, %p111
      %p114 = scmp.ne.s32.totalorder %s99, %s113
      %p115 = scmp.eq.s32.totalorder %s26, 0
      %p116 = por %p114, %p115
      %s118 = sadd.s32 %s117, 1
      %p121 = scmp.eq.s32.totalorder %s20, 1
      %p122 = scmp.ne.s32.totalorder %s117, %s119
      %p123 = scmp.eq.s32.totalorder %s20, 0
      %p124 = por %p122, %p123
      %p125 = scmp.ne.s32.totalorder %s117, %s119
      %p126 = scmp.eq.s32.totalorder %s25, 1
      %p127 = por %p125, %p126
      %p128 = scmp.ne.s32.totalorder %s119, %s120
      %p129 = scmp.eq.s32.totalorder %s25, 0
      %p130 = por %p128, %p129
      %p131 = scmp.ne.s32.totalorder %s119, %s120
      %p132 = scmp.eq.s32.totalorder %s26, 1
      %p133 = por %p131, %p132
      %p135 = scmp.ne.s32.totalorder %s120, %s134
      %p136 = scmp.eq.s32.totalorder %s26, 0
      %p137 = por %p135, %p136
      %s139 = sadd.s32 %s138, 1
      %p142 = scmp.eq.s32.totalorder %s20, 1
      %p143 = scmp.ne.s32.totalorder %s138, %s140
      %p144 = scmp.eq.s32.totalorder %s20, 0
      %p145 = por %p143, %p144
      %p146 = scmp.ne.s32.totalorder %s138, %s140
      %p147 = scmp.eq.s32.totalorder %s25, 1
      %p148 = por %p146, %p147
      %p149 = scmp.ne.s32.totalorder %s140, %s141
      %p150 = scmp.eq.s32.totalorder %s25, 0
      %p151 = por %p149, %p150
      %p152 = scmp.ne.s32.totalorder %s140, %s141
      %p153 = scmp.eq.s32.totalorder %s26, 1
      %p154 = por %p152, %p153
      %p156 = scmp.ne.s32.totalorder %s141, %s155
      %p157 = scmp.eq.s32.totalorder %s26, 0
      %p158 = por %p156, %p157
      %s160 = sadd.s32 %s159, 1
      %p163 = scmp.eq.s32.totalorder %s20, 1
      %p164 = scmp.ne.s32.totalorder %s159, %s161
      %p165 = scmp.eq.s32.totalorder %s20, 0
      %p166 = por %p164, %p165
      %p167 = scmp.ne.s32.totalorder %s159, %s161
      %p168 = scmp.eq.s32.totalorder %s25, 1
      %p169 = por %p167, %p168
      %p170 = scmp.ne.s32.totalorder %s161, %s162
      %p171 = scmp.eq.s32.totalorder %s25, 0
      %p172 = por %p170, %p171
      %p173 = scmp.ne.s32.totalorder %s161, %s162
      %p174 = scmp.eq.s32.totalorder %s26, 1
      %p175 = por %p173, %p174
      %p177 = scmp.ne.s32.totalorder %s162, %s176
      %p178 = scmp.eq.s32.totalorder %s26, 0
      %p179 = por %p177, %p178
      %s181 = sadd.s32 %s180, 1
      %p184 = scmp.eq.s32.totalorder %s20, 1
      %p185 = scmp.ne.s32.totalorder %s180, %s182
      %p186 = scmp.eq.s32.totalorder %s20, 0
      %p187 = por %p185, %p186
      %p188 = scmp.ne.s32.totalorder %s180, %s182
      %p189 = scmp.eq.s32.totalorder %s25, 1
      %p190 = por %p188, %p189
      %p191 = scmp.ne.s32.totalorder %s182, %s183
      %p192 = scmp.eq.s32.totalorder %s25, 0
      %p193 = por %p191, %p192
      %p194 = scmp.ne.s32.totalorder %s182, %s183
      %p195 = scmp.eq.s32.totalorder %s26, 1
      %p196 = por %p194, %p195
      %p198 = scmp.ne.s32.totalorder %s183, %s197
      %p199 = scmp.eq.s32.totalorder %s26, 0
      %p200 = por %p198, %p199
      %s202 = sadd.s32 %s201, 1
      %p205 = scmp.eq.s32.totalorder %s20, 1
      %p206 = scmp.ne.s32.totalorder %s201, %s203
      %p207 = scmp.eq.s32.totalorder %s20, 0
      %p208 = por %p206, %p207
      %p209 = scmp.ne.s32.totalorder %s201, %s203
      %p210 = scmp.eq.s32.totalorder %s25, 1
      %p211 = por %p209, %p210
      %p212 = scmp.ne.s32.totalorder %s203, %s204
      %p213 = scmp.eq.s32.totalorder %s25, 0
      %p214 = por %p212, %p213
      %p215 = scmp.ne.s32.totalorder %s203, %s204
      %p216 = scmp.eq.s32.totalorder %s26, 1
      %p217 = por %p215, %p216
      %p219 = scmp.ne.s32.totalorder %s204, %s218
      %p220 = scmp.eq.s32.totalorder %s26, 0
      %p221 = por %p219, %p220
      %s223 = sadd.s32 %s222, 1
      %p226 = scmp.eq.s32.totalorder %s20, 1
      %p227 = scmp.ne.s32.totalorder %s222, %s224
      %p228 = scmp.eq.s32.totalorder %s20, 0
      %p229 = por %p227, %p228
      %p230 = scmp.ne.s32.totalorder %s222, %s224
      %p231 = scmp.eq.s32.totalorder %s25, 1
      %p232 = por %p230, %p231
      %p233 = scmp.ne.s32.totalorder %s224, %s225
      %p234 = scmp.eq.s32.totalorder %s25, 0
      %p235 = por %p233, %p234
      %p236 = scmp.ne.s32.totalorder %s224, %s225
      %p237 = scmp.eq.s32.totalorder %s26, 1
      %p238 = por %p236, %p237
      %p240 = scmp.ne.s32.totalorder %s225, %s239
      %p241 = scmp.eq.s32.totalorder %s26, 0
      %p242 = por %p240, %p241
      %s244 = sadd.s32 %s243, 1
      %p247 = scmp.eq.s32.totalorder %s20, 1
      %p248 = scmp.ne.s32.totalorder %s243, %s245
      %p249 = scmp.eq.s32.totalorder %s20, 0
      %p250 = por %p248, %p249
      %p251 = scmp.ne.s32.totalorder %s243, %s245
      %p252 = scmp.eq.s32.totalorder %s25, 1
      %p253 = por %p251, %p252
      %p254 = scmp.ne.s32.totalorder %s245, %s246
      %p255 = scmp.eq.s32.totalorder %s25, 0
      %p256 = por %p254, %p255
      %p257 = scmp.ne.s32.totalorder %s245, %s246
      %p258 = scmp.eq.s32.totalorder %s26, 1
      %p259 = por %p257, %p258
      %p261 = scmp.ne.s32.totalorder %s246, %s260
      %p262 = scmp.eq.s32.totalorder %s26, 0
      %p263 = por %p261, %p262
      %s264 = ssub.s32 %s20, %s27
      %p265 = scmp.eq.s32.totalorder %s264, 0
      %s267 = sadd.s32 %s266, 1
      %s268 = scalar_select %p265, %s266, %s267
      %p271 = pneg %p265
      %p272 = scmp.eq.s32.totalorder %s20, 1
      %p273 = por %p271, %p272
      %p274 = scmp.ne.s32.totalorder %s266, %s269
      %p275 = scmp.eq.s32.totalorder %s20, 0
      %p276 = por %p274, %p275
      %p277 = scmp.ne.s32.totalorder %s266, %s269
      %p278 = scmp.eq.s32.totalorder %s25, 1
      %p279 = por %p277, %p278
      %p280 = scmp.ne.s32.totalorder %s269, %s270
      %p281 = scmp.eq.s32.totalorder %s25, 0
      %p282 = por %p280, %p281
      %p283 = scmp.ne.s32.totalorder %s269, %s270
      %p284 = scmp.eq.s32.totalorder %s26, 1
      %p285 = por %p283, %p284
      %p287 = scmp.ne.s32.totalorder %s270, %s286
      %p288 = scmp.eq.s32.totalorder %s26, 0
      %p289 = por %p287, %p288
      %p290 = scmp.le.s32.totalorder 1, %s20
      %p291 = scmp.lt.s32.totalorder %s20, 3
      %p292 = pnand %p290, %p291
      %p293 = pneg %p292
      // Predicated region
      $region9: #{net_forward.1} parent=5 // pred_check
        _
      $region10: #{net_forward.1} parent=5 // pred_check_branch
        %295 = sbr.rel (%p292) target = $region12
      $region11: #{net_forward.1} parent=5 // pred_region
        %s296 = ssub.s32 %s20, 1
        // Predicated region
        $region13: #{net_forward.1} parent=11 // pred_check
          %p297 = pneg %p67
        $region14: #{net_forward.1} parent=11 // pred_check_branch
          %299 = sbr.rel (%p297) target = $region16
        $region15: #{net_forward.1} parent=11 // pred_region
          _
        $region16: #{net_forward.1} parent=11 // pred_fallthru
          _
        // Predicated region
        $region17: #{net_forward.1} parent=11 // pred_check
          %p300 = pneg %p88
        $region18: #{net_forward.1} parent=11 // pred_check_branch
          %302 = sbr.rel (%p300) target = $region20
        $region19: #{net_forward.1} parent=11 // pred_region
          _
        $region20: #{net_forward.1} parent=11 // pred_fallthru
          _
        // Predicated region
        $region21: #{net_forward.1} parent=11 // pred_check
          %p303 = pneg %p109
        $region22: #{net_forward.1} parent=11 // pred_check_branch
          %305 = sbr.rel (%p303) target = $region24
        $region23: #{net_forward.1} parent=11 // pred_region
          _
        $region24: #{net_forward.1} parent=11 // pred_fallthru
          _
        // Predicated region
        $region25: #{net_forward.1} parent=11 // pred_check
          %p306 = pneg %p130
        $region26: #{net_forward.1} parent=11 // pred_check_branch
          %308 = sbr.rel (%p306) target = $region28
        $region27: #{net_forward.1} parent=11 // pred_region
          _
        $region28: #{net_forward.1} parent=11 // pred_fallthru
          _
        // Predicated region
        $region29: #{net_forward.1} parent=11 // pred_check
          %p309 = pneg %p151
        $region30: #{net_forward.1} parent=11 // pred_check_branch
          %311 = sbr.rel (%p309) target = $region32
        $region31: #{net_forward.1} parent=11 // pred_region
          _
        $region32: #{net_forward.1} parent=11 // pred_fallthru
          _
        // Predicated region
        $region33: #{net_forward.1} parent=11 // pred_check
          %p312 = pneg %p172
        $region34: #{net_forward.1} parent=11 // pred_check_branch
          %314 = sbr.rel (%p312) target = $region36
        $region35: #{net_forward.1} parent=11 // pred_region
          _
        $region36: #{net_forward.1} parent=11 // pred_fallthru
          _
        // Predicated region
        $region37: #{net_forward.1} parent=11 // pred_check
          %p315 = pneg %p193
        $region38: #{net_forward.1} parent=11 // pred_check_branch
          %317 = sbr.rel (%p315) target = $region40
        $region39: #{net_forward.1} parent=11 // pred_region
          _
        $region40: #{net_forward.1} parent=11 // pred_fallthru
          _
        // Predicated region
        $region41: #{net_forward.1} parent=11 // pred_check
          %p318 = pneg %p214
        $region42: #{net_forward.1} parent=11 // pred_check_branch
          %320 = sbr.rel (%p318) target = $region44
        $region43: #{net_forward.1} parent=11 // pred_region
          _
        $region44: #{net_forward.1} parent=11 // pred_fallthru
          _
        // Predicated region
        $region45: #{net_forward.1} parent=11 // pred_check
          %p321 = pneg %p235
        $region46: #{net_forward.1} parent=11 // pred_check_branch
          %323 = sbr.rel (%p321) target = $region48
        $region47: #{net_forward.1} parent=11 // pred_region
          _
        $region48: #{net_forward.1} parent=11 // pred_fallthru
          _
        // Predicated region
        $region49: #{net_forward.1} parent=11 // pred_check
          %p324 = pneg %p256
        $region50: #{net_forward.1} parent=11 // pred_check_branch
          %326 = sbr.rel (%p324) target = $region52
        $region51: #{net_forward.1} parent=11 // pred_region
          _
        $region52: #{net_forward.1} parent=11 // pred_fallthru
          _
      $region12: #{net_forward.1} parent=5 // pred_fallthru
        _
      %p327 = scmp.lt.s32.totalorder %s20, 2
      // Predicated region
      $region53: #{net_forward.1} parent=5 // pred_check
        %p328 = pneg %p327
      $region54: #{net_forward.1} parent=5 // pred_check_branch
        %330 = sbr.rel (%p328) target = $region56
      $region55: #{net_forward.1} parent=5 // pred_region
        // Predicated region
        $region57: #{net_forward.1} parent=55 // pred_check
          %p331 = pneg %p40
        $region58: #{net_forward.1} parent=55 // pred_check_branch
          %333 = sbr.rel (%p331) target = $region60
        $region59: #{net_forward.1} parent=55 // pred_region
          %p334 = scmp.lt.s32.totalorder %s20, 1
          %s335 = scalar_select %p334, %s20, 1
          %s336 = smul.addr %s335, 72
          %s337 = smul.addr %s336, 4
          %s338 = scalar_lea.vmem %s0, %s337
        $region60: #{net_forward.1} parent=55 // pred_fallthru
          _
      $region56: #{net_forward.1} parent=5 // pred_fallthru
        _
      %p339 = scmp.le.s32.totalorder 1, %s20
      %p340 = scmp.lt.s32.totalorder %s20, 3
      %p341 = pnand %p339, %p340
      %p342 = pneg %p341
      // Predicated region
      $region61: #{net_forward.1} parent=5 // pred_check
        _
      $region62: #{net_forward.1} parent=5 // pred_check_branch
        %344 = sbr.rel (%p341) target = $region64
      $region63: #{net_forward.1} parent=5 // pred_region
        %s345 = ssub.s32 %s20, 1
        %p346 = scmp.lt.s32.totalorder %s25, 1
        %s347 = scalar_select %p346, %s25, 1
        %s348 = smul.addr %s347, 72
        %s349 = smul.addr %s348, 4
        %s350 = scalar_lea.vmem %s0, %s349
        %p351 = pneg %p46
        %p352 = pneg %p43
        %p353 = pneg %p67
        %p354 = pneg %p64
        %p355 = pneg %p88
        %p356 = pneg %p85
        %p357 = pneg %p109
        %p358 = pneg %p106
        %p359 = pneg %p130
        %p360 = pneg %p127
        %p361 = pneg %p151
        %p362 = pneg %p148
        %p363 = pneg %p172
        %p364 = pneg %p169
        %p365 = pneg %p193
        %p366 = pneg %p190
        %p367 = pneg %p214
        %p368 = pneg %p211
        %p369 = pneg %p235
        %p370 = pneg %p232
        %p371 = pneg %p256
        %p372 = pneg %p253
        %p373 = pneg %p282
        %p374 = pneg %p279
        %s375 = sand.u32 %s269, 1
        %s376 = scalar_lea.sflag [#allocation3], %s375
        %s377 = sand.u32 %s269, 1
        %s378 = scalar_lea.vmem [#allocation2], %s377
        %p379 = scmp.lt.s32.totalorder %s25, 1
        %s380 = scalar_select %p379, %s25, 1
        %s381 = smul.addr %s380, 72
        %s382 = smul.addr %s381, 4
        %s383 = scalar_lea.vmem %s0, %s382
        %v385 = vld [vmem:[%s383] sm:$0xf]
        %v386 = vld [vmem:[%s383 + $0x4] sm:$0xf]
        %v387 = vld [vmem:[%s383 + $0x8] sm:$0xf]
        %v388 = vld [vmem:[%s383 + $0xc] sm:$0xf]
        %v389 = vld [vmem:[%s383 + $0x10] sm:$0xf]
        %v390 = vld [vmem:[%s383 + $0x14] sm:$0xf]
        %v391 = vld [vmem:[%s383 + $0x18] sm:$0xf]
        %v392 = vld [vmem:[%s383 + $0x1c] sm:$0xf]
        %v393 = vld [vmem:[%s383 + $0x20] sm:$0xf]
        %v394 = vld [vmem:[%s383 + $0x24] sm:$0xf]
        %v395 = vld [vmem:[%s383 + $0x28] sm:$0xf]
        %v396 = vld [vmem:[%s383 + $0x2c] sm:$0xf]
        %v397 = vld [vmem:[%s383 + $0x30] sm:$0xf]
        %v398 = vld [vmem:[%s383 + $0x34] sm:$0xf]
        %v399 = vld [vmem:[%s383 + $0x38] sm:$0xf]
        %v400 = vld [vmem:[%s383 + $0x3c] sm:$0xf]
        %v401 = vld [vmem:[%s383 + $0x40] sm:$0xf]
        %v402 = vld [vmem:[%s383 + $0x44] sm:$0xf]
        %v403 = vld [vmem:[%s383 + $0x48] sm:$0xf]
        %v404 = vld [vmem:[%s383 + $0x4c] sm:$0xf]
        %v405 = vld [vmem:[%s383 + $0x50] sm:$0xf]
        %v406 = vld [vmem:[%s383 + $0x54] sm:$0xf]
        %v407 = vld [vmem:[%s383 + $0x58] sm:$0xf]
        %v408 = vld [vmem:[%s383 + $0x5c] sm:$0xf]
        %v409 = vld [vmem:[%s383 + $0x60] sm:$0xf]
        %v410 = vld [vmem:[%s383 + $0x64] sm:$0xf]
        %v411 = vld [vmem:[%s383 + $0x68] sm:$0xf]
        %v412 = vld [vmem:[%s383 + $0x6c] sm:$0xf]
        %v413 = vld [vmem:[%s383 + $0x70] sm:$0xf]
        %v414 = vld [vmem:[%s383 + $0x74] sm:$0xf]
        %v415 = vld [vmem:[%s383 + $0x78] sm:$0xf]
        %v416 = vld [vmem:[%s383 + $0x7c] sm:$0xf]
        %v417 = vld [vmem:[%s383 + $0x80] sm:$0xf]
        %v418 = vld [vmem:[%s383 + $0x84] sm:$0xf]
        %v419 = vld [vmem:[%s383 + $0x88] sm:$0xf]
        %v420 = vld [vmem:[%s383 + $0x8c] sm:$0xf]
        %v421 = vld [vmem:[%s383 + $0x90] sm:$0xf]
        %v422 = vld [vmem:[%s383 + $0x94] sm:$0xf]
        %v423 = vld [vmem:[%s383 + $0x98] sm:$0xf]
        %v424 = vld [vmem:[%s383 + $0x9c] sm:$0xf]
        %v425 = vld [vmem:[%s383 + $0xa0] sm:$0xf]
        %v426 = vld [vmem:[%s383 + $0xa4] sm:$0xf]
        %v427 = vld [vmem:[%s383 + $0xa8] sm:$0xf]
        %v428 = vld [vmem:[%s383 + $0xac] sm:$0xf]
        %v429 = vld [vmem:[%s383 + $0xb0] sm:$0xf]
        %v430 = vld [vmem:[%s383 + $0xb4] sm:$0xf]
        %v431 = vld [vmem:[%s383 + $0xb8] sm:$0xf]
        %v432 = vld [vmem:[%s383 + $0xbc] sm:$0xf]
        %v433 = vld [vmem:[%s383 + $0xc0] sm:$0xf]
        %v434 = vld [vmem:[%s383 + $0xc4] sm:$0xf]
        %v435 = vld [vmem:[%s383 + $0xc8] sm:$0xf]
        %v436 = vld [vmem:[%s383 + $0xcc] sm:$0xf]
        %v437 = vld [vmem:[%s383 + $0xd0] sm:$0xf]
        %v438 = vld [vmem:[%s383 + $0xd4] sm:$0xf]
        %v439 = vld [vmem:[%s383 + $0xd8] sm:$0xf]
        %v440 = vld [vmem:[%s383 + $0xdc] sm:$0xf]
        %v441 = vld [vmem:[%s383 + $0xe0] sm:$0xf]
        %v442 = vld [vmem:[%s383 + $0xe4] sm:$0xf]
        %v443 = vld [vmem:[%s383 + $0xe8] sm:$0xf]
        %v444 = vld [vmem:[%s383 + $0xec] sm:$0xf]
        %v445 = vld [vmem:[%s383 + $0xf0] sm:$0xf]
        %v446 = vld [vmem:[%s383 + $0xf4] sm:$0xf]
        %v447 = vld [vmem:[%s383 + $0xf8] sm:$0xf]
        %v448 = vld [vmem:[%s383 + $0xfc] sm:$0xf]
        %v449 = vld [vmem:[%s383 + $0x100] sm:$0xf]
        %v450 = vld [vmem:[%s383 + $0x104] sm:$0xf]
        %v451 = vld [vmem:[%s383 + $0x108] sm:$0xf]
        %v452 = vld [vmem:[%s383 + $0x10c] sm:$0xf]
        %v453 = vld [vmem:[%s383 + $0x110] sm:$0xf]
        %v454 = vld [vmem:[%s383 + $0x114] sm:$0xf]
        %v455 = vld [vmem:[%s383 + $0x118] sm:$0xf]
        %v456 = vld [vmem:[%s383 + $0x11c] sm:$0xf]
        %v457 = vld [vmem:[%s1] sm:$0xf]
        %v458 = vld [vmem:[%s1 + $0x4] sm:$0xf]
        %v459 = vld [vmem:[%s1 + $0x8] sm:$0xf]
        %v460 = vld [vmem:[%s1 + $0xc] sm:$0x1]
        %v461 = vld [vmem:[%s2] sm:$0x1]
        %v463 = vlaneseq
        %v464 = vshrl.u32 %v463, 7
        %v465 = vsub.s32 0, %v464
        %v466 = vrot.slane %v461, %v465
        %v540 = vunpack.c.l.b16 %v385
        %v541 = vunpack.c.l.b16 %v386
        %v542 = vunpack.c.l.b16 %v387
        %v543 = vunpack.c.l.b16 %v388
        %v544 = vunpack.c.l.b16 %v389
        %v545 = vunpack.c.l.b16 %v390
        %v546 = vunpack.c.l.b16 %v391
        %v547 = vunpack.c.l.b16 %v392
        %v548 = vunpack.c.l.b16 %v393
        %v549 = vunpack.c.l.b16 %v394
        %v550 = vunpack.c.l.b16 %v395
        %v551 = vunpack.c.l.b16 %v396
        %v552 = vunpack.c.l.b16 %v397
        %v553 = vunpack.c.l.b16 %v398
        %v554 = vunpack.c.l.b16 %v399
        %v555 = vunpack.c.l.b16 %v400
        %v556 = vunpack.c.l.b16 %v401
        %v557 = vunpack.c.l.b16 %v402
        %v558 = vunpack.c.l.b16 %v403
        %v559 = vunpack.c.l.b16 %v404
        %v560 = vunpack.c.l.b16 %v405
        %v561 = vunpack.c.l.b16 %v406
        %v562 = vunpack.c.l.b16 %v407
        %v563 = vunpack.c.l.b16 %v408
        %v564 = vunpack.c.l.b16 %v409
        %v565 = vunpack.c.l.b16 %v410
        %v566 = vunpack.c.l.b16 %v411
        %v567 = vunpack.c.l.b16 %v412
        %v568 = vunpack.c.l.b16 %v413
        %v569 = vunpack.c.l.b16 %v414
        %v570 = vunpack.c.l.b16 %v415
        %v571 = vunpack.c.l.b16 %v416
        %v572 = vunpack.c.l.b16 %v417
        %v573 = vunpack.c.l.b16 %v418
        %v574 = vunpack.c.l.b16 %v419
        %v575 = vunpack.c.l.b16 %v420
        %v576 = vunpack.c.l.b16 %v421
        %v577 = vunpack.c.l.b16 %v422
        %v578 = vunpack.c.l.b16 %v423
        %v579 = vunpack.c.l.b16 %v424
        %v580 = vunpack.c.l.b16 %v425
        %v581 = vunpack.c.l.b16 %v426
        %v582 = vunpack.c.l.b16 %v427
        %v583 = vunpack.c.l.b16 %v428
        %v584 = vunpack.c.l.b16 %v429
        %v585 = vunpack.c.l.b16 %v430
        %v586 = vunpack.c.l.b16 %v431
        %v587 = vunpack.c.l.b16 %v432
        %v588 = vunpack.c.l.b16 %v433
        %v589 = vunpack.c.l.b16 %v434
        %v590 = vunpack.c.l.b16 %v435
        %v591 = vunpack.c.l.b16 %v436
        %v592 = vunpack.c.l.b16 %v437
        %v593 = vunpack.c.l.b16 %v438
        %v594 = vunpack.c.l.b16 %v439
        %v595 = vunpack.c.l.b16 %v440
        %v596 = vunpack.c.l.b16 %v441
        %v597 = vunpack.c.l.b16 %v442
        %v598 = vunpack.c.l.b16 %v443
        %v599 = vunpack.c.l.b16 %v444
        %v600 = vunpack.c.l.b16 %v445
        %v601 = vunpack.c.l.b16 %v446
        %v602 = vunpack.c.l.b16 %v447
        %v603 = vunpack.c.l.b16 %v448
        %v604 = vunpack.c.l.b16 %v449
        %v605 = vunpack.c.l.b16 %v450
        %v606 = vunpack.c.l.b16 %v451
        %v607 = vunpack.c.l.b16 %v452
        %v608 = vunpack.c.l.b16 %v453
        %v609 = vunpack.c.l.b16 %v454
        %v610 = vunpack.c.l.b16 %v455
        %v611 = vunpack.c.l.b16 %v456
        %v612 = vpack.c.b16 %v541, %v540
        %v613 = vpack.c.b16 %v543, %v542
        %v614 = vpack.c.b16 %v545, %v544
        %v615 = vpack.c.b16 %v547, %v546
        %v616 = vpack.c.b16 %v549, %v548
        %v617 = vpack.c.b16 %v551, %v550
        %v618 = vpack.c.b16 %v553, %v552
        %v619 = vpack.c.b16 %v555, %v554
        %v620 = vpack.c.b16 %v557, %v556
        %v621 = vpack.c.b16 %v559, %v558
        %v622 = vpack.c.b16 %v561, %v560
        %v623 = vpack.c.b16 %v563, %v562
        %v624 = vpack.c.b16 %v565, %v564
        %v625 = vpack.c.b16 %v567, %v566
        %v626 = vpack.c.b16 %v569, %v568
        %v627 = vpack.c.b16 %v571, %v570
        %v628 = vpack.c.b16 %v573, %v572
        %v629 = vpack.c.b16 %v575, %v574
        %v630 = vpack.c.b16 %v577, %v576
        %v631 = vpack.c.b16 %v579, %v578
        %v632 = vpack.c.b16 %v581, %v580
        %v633 = vpack.c.b16 %v583, %v582
        %v634 = vpack.c.b16 %v585, %v584
        %v635 = vpack.c.b16 %v587, %v586
        %v636 = vpack.c.b16 %v589, %v588
        %v637 = vpack.c.b16 %v591, %v590
        %v638 = vpack.c.b16 %v593, %v592
        %v639 = vpack.c.b16 %v595, %v594
        %v640 = vpack.c.b16 %v597, %v596
        %v641 = vpack.c.b16 %v599, %v598
        %v642 = vpack.c.b16 %v601, %v600
        %v643 = vpack.c.b16 %v603, %v602
        %v644 = vpack.c.b16 %v605, %v604
        %v645 = vpack.c.b16 %v607, %v606
        %v646 = vpack.c.b16 %v609, %v608
        %v647 = vpack.c.b16 %v611, %v610
        %v652 = vunpack.c.l.b16 %v457
        %v653 = vunpack.c.l.b16 %v458
        %v654 = vunpack.c.l.b16 %v459
        %v655 = vunpack.c.l.b16 %v460
        %v656 = vpack.c.b16 %v653, %v652
        %v657 = vpack.c.b16 %v655, %v654
        %vm659 = vcmask 203776
        %v661 = vsel %vm659, %v612, 0
        %v664 = vsel %vm659, %v613, 0
        %v667 = vsel %vm659, %v614, 0
        %v670 = vsel %vm659, %v615, 0
        %v673 = vsel %vm659, %v616, 0
        %v676 = vsel %vm659, %v617, 0
        %v679 = vsel %vm659, %v618, 0
        %v682 = vsel %vm659, %v619, 0
        %v685 = vsel %vm659, %v620, 0
        %v688 = vsel %vm659, %v621, 0
        %v691 = vsel %vm659, %v622, 0
        %v694 = vsel %vm659, %v623, 0
        %v697 = vsel %vm659, %v624, 0
        %v700 = vsel %vm659, %v625, 0
        %v703 = vsel %vm659, %v626, 0
        %v706 = vsel %vm659, %v627, 0
        %v709 = vsel %vm659, %v628, 0
        %v712 = vsel %vm659, %v629, 0
        %v715 = vsel %vm659, %v630, 0
        %v718 = vsel %vm659, %v631, 0
        %v721 = vsel %vm659, %v632, 0
        %v724 = vsel %vm659, %v633, 0
        %v727 = vsel %vm659, %v634, 0
        %v730 = vsel %vm659, %v635, 0
        %v733 = vsel %vm659, %v636, 0
        %v736 = vsel %vm659, %v637, 0
        %v739 = vsel %vm659, %v638, 0
        %v742 = vsel %vm659, %v639, 0
        %v745 = vsel %vm659, %v640, 0
        %v748 = vsel %vm659, %v641, 0
        %v751 = vsel %vm659, %v642, 0
        %v754 = vsel %vm659, %v643, 0
        %v757 = vsel %vm659, %v644, 0
        %v760 = vsel %vm659, %v645, 0
        %v763 = vsel %vm659, %v646, 0
        %v766 = vsel %vm659, %v647, 0
        %vm768 = vcmask 1043456
        %vm769 = vcmask 1044480
        %v770 = vsel %vm768, 4294967295, 65535
        %v771 = vsel %vm769, %v770, 0
        %v773 = vand.u32 %v657, %v771
        %775 = vmatprep.subr.bf16.mxu0 0
        %776 = vmatpush1.bf16.msra.mxu0 0
        %777 = vmatprep.subr.bf16.mxu0 0
        %778 = vmatpush1.bf16.msra.mxu0 0
        %779 = vmatprep.subr.bf16.mxu0 0
        %780 = vmatpush1.bf16.msra.mxu0 0
        %781 = vmatprep.subr.bf16.mxu0 0
        %782 = vmatpush1.bf16.msra.mxu0 0
        %783 = vmatprep.subr.bf16.mxu0 0
        %784 = vmatpush1.bf16.msra.mxu0 0
        %785 = vmatprep.subr.bf16.mxu0 0
        %786 = vmatpush1.bf16.msra.mxu0 0
        %787 = vmatprep.subr.bf16.mxu0 0
        %788 = vmatpush1.bf16.msra.mxu0 %v773
        %789 = vmatprep.subr.bf16.mxu0 0
        %790 = vmatpush1.bf16.msra.mxu0 %v656
        %791 = vmatprep.subr.bf16.mxu0 0
        %792 = vmatpush2.bf16.msra.mxu0 0
        %793 = vmatprep.subr.bf16.mxu0 0
        %794 = vmatpush2.bf16.msra.mxu0 0
        %795 = vmatprep.subr.bf16.mxu0 0
        %796 = vmatpush2.bf16.msra.mxu0 0
        %797 = vmatprep.subr.bf16.mxu0 0
        %798 = vmatpush2.bf16.msra.mxu0 0
        %799 = vmatprep.subr.bf16.mxu0 0
        %800 = vmatpush2.bf16.msra.mxu0 0
        %801 = vmatprep.subr.bf16.mxu0 0
        %802 = vmatpush2.bf16.msra.mxu0 0
        %803 = vmatprep.subr.bf16.mxu0 0
        %804 = vmatpush2.bf16.msra.mxu0 0
        %805 = vmatprep.subr.bf16.mxu0 0
        %806 = vmatpush2.bf16.msra.mxu0 0
        %807 = vmatprep.mubr.bf16.mxu0 0
        %808 = vmatmul.mubr.bf16.gmra.mxu0 %v661
        %v809 = vpop.f32.mrf.mxu0
        %v810 = vadd.f32 %v466, %v809
        %v811 = vpop.f32.mrf.mxu0
        %v812 = vpop.f32.mrf.mxu0
        %v813 = vadd.f32 %v466, %v812
        %v814 = vpop.f32.mrf.mxu0
        %815 = vmatprep.mubr.bf16.mxu0 0
        %816 = vmatmul.mubr.bf16.gmra.mxu0 %v664
        %v817 = vpop.f32.mrf.mxu0
        %v818 = vadd.f32 %v466, %v817
        %v819 = vpop.f32.mrf.mxu0
        %v820 = vpop.f32.mrf.mxu0
        %v821 = vadd.f32 %v466, %v820
        %v822 = vpop.f32.mrf.mxu0
        %823 = vmatprep.mubr.bf16.mxu0 0
        %824 = vmatmul.mubr.bf16.gmra.mxu0 %v667
        %v825 = vpop.f32.mrf.mxu0
        %v826 = vadd.f32 %v466, %v825
        %v827 = vpop.f32.mrf.mxu0
        %v828 = vpop.f32.mrf.mxu0
        %v829 = vadd.f32 %v466, %v828
        %v830 = vpop.f32.mrf.mxu0
        %831 = vmatprep.mubr.bf16.mxu0 0
        %832 = vmatmul.mubr.bf16.gmra.mxu0 %v670
        %v833 = vpop.f32.mrf.mxu0
        %v834 = vadd.f32 %v466, %v833
        %v835 = vpop.f32.mrf.mxu0
        %v836 = vpop.f32.mrf.mxu0
        %v837 = vadd.f32 %v466, %v836
        %v838 = vpop.f32.mrf.mxu0
        %839 = vmatprep.mubr.bf16.mxu0 0
        %840 = vmatmul.mubr.bf16.gmra.mxu0 %v673
        %v841 = vpop.f32.mrf.mxu0
        %v842 = vadd.f32 %v466, %v841
        %v843 = vpop.f32.mrf.mxu0
        %v844 = vpop.f32.mrf.mxu0
        %v845 = vadd.f32 %v466, %v844
        %v846 = vpop.f32.mrf.mxu0
        %847 = vmatprep.mubr.bf16.mxu0 0
        %848 = vmatmul.mubr.bf16.gmra.mxu0 %v676
        %v849 = vpop.f32.mrf.mxu0
        %v850 = vadd.f32 %v466, %v849
        %v851 = vpop.f32.mrf.mxu0
        %v852 = vpop.f32.mrf.mxu0
        %v853 = vadd.f32 %v466, %v852
        %v854 = vpop.f32.mrf.mxu0
        %855 = vmatprep.mubr.bf16.mxu0 0
        %856 = vmatmul.mubr.bf16.gmra.mxu0 %v679
        %v857 = vpop.f32.mrf.mxu0
        %v858 = vadd.f32 %v466, %v857
        %v859 = vpop.f32.mrf.mxu0
        %v860 = vpop.f32.mrf.mxu0
        %v861 = vadd.f32 %v466, %v860
        %v862 = vpop.f32.mrf.mxu0
        %863 = vmatprep.mubr.bf16.mxu0 0
        %864 = vmatmul.mubr.bf16.gmra.mxu0 %v682
        %v865 = vpop.f32.mrf.mxu0
        %v866 = vadd.f32 %v466, %v865
        %v867 = vpop.f32.mrf.mxu0
        %v868 = vpop.f32.mrf.mxu0
        %v869 = vadd.f32 %v466, %v868
        %v870 = vpop.f32.mrf.mxu0
        %871 = vmatprep.mubr.bf16.mxu0 0
        %872 = vmatmul.mubr.bf16.gmra.mxu0 %v685
        %v873 = vpop.f32.mrf.mxu0
        %v874 = vadd.f32 %v466, %v873
        %v875 = vpop.f32.mrf.mxu0
        %v876 = vpop.f32.mrf.mxu0
        %v877 = vadd.f32 %v466, %v876
        %v878 = vpop.f32.mrf.mxu0
        %879 = vmatprep.mubr.bf16.mxu0 0
        %880 = vmatmul.mubr.bf16.gmra.mxu0 %v688
        %v881 = vpop.f32.mrf.mxu0
        %v882 = vadd.f32 %v466, %v881
        %v883 = vpop.f32.mrf.mxu0
        %v884 = vpop.f32.mrf.mxu0
        %v885 = vadd.f32 %v466, %v884
        %v886 = vpop.f32.mrf.mxu0
        %887 = vmatprep.mubr.bf16.mxu0 0
        %888 = vmatmul.mubr.bf16.gmra.mxu0 %v691
        %v889 = vpop.f32.mrf.mxu0
        %v890 = vadd.f32 %v466, %v889
        %v891 = vpop.f32.mrf.mxu0
        %v892 = vpop.f32.mrf.mxu0
        %v893 = vadd.f32 %v466, %v892
        %v894 = vpop.f32.mrf.mxu0
        %895 = vmatprep.mubr.bf16.mxu0 0
        %896 = vmatmul.mubr.bf16.gmra.mxu0 %v694
        %v897 = vpop.f32.mrf.mxu0
        %v898 = vadd.f32 %v466, %v897
        %v899 = vpop.f32.mrf.mxu0
        %v900 = vpop.f32.mrf.mxu0
        %v901 = vadd.f32 %v466, %v900
        %v902 = vpop.f32.mrf.mxu0
        %903 = vmatprep.mubr.bf16.mxu0 0
        %904 = vmatmul.mubr.bf16.gmra.mxu0 %v697
        %v905 = vpop.f32.mrf.mxu0
        %v906 = vadd.f32 %v466, %v905
        %v907 = vpop.f32.mrf.mxu0
        %v908 = vpop.f32.mrf.mxu0
        %v909 = vadd.f32 %v466, %v908
        %v910 = vpop.f32.mrf.mxu0
        %911 = vmatprep.mubr.bf16.mxu0 0
        %912 = vmatmul.mubr.bf16.gmra.mxu0 %v700
        %v913 = vpop.f32.mrf.mxu0
        %v914 = vadd.f32 %v466, %v913
        %v915 = vpop.f32.mrf.mxu0
        %v916 = vpop.f32.mrf.mxu0
        %v917 = vadd.f32 %v466, %v916
        %v918 = vpop.f32.mrf.mxu0
        %919 = vmatprep.mubr.bf16.mxu0 0
        %920 = vmatmul.mubr.bf16.gmra.mxu0 %v703
        %v921 = vpop.f32.mrf.mxu0
        %v922 = vadd.f32 %v466, %v921
        %v923 = vpop.f32.mrf.mxu0
        %v924 = vpop.f32.mrf.mxu0
        %v925 = vadd.f32 %v466, %v924
        %v926 = vpop.f32.mrf.mxu0
        %927 = vmatprep.mubr.bf16.mxu0 0
        %928 = vmatmul.mubr.bf16.gmra.mxu0 %v706
        %v929 = vpop.f32.mrf.mxu0
        %v930 = vadd.f32 %v466, %v929
        %v931 = vpop.f32.mrf.mxu0
        %v932 = vpop.f32.mrf.mxu0
        %v933 = vadd.f32 %v466, %v932
        %v934 = vpop.f32.mrf.mxu0
        %935 = vmatprep.mubr.bf16.mxu0 0
        %936 = vmatmul.mubr.bf16.gmra.mxu0 %v709
        %v937 = vpop.f32.mrf.mxu0
        %v938 = vadd.f32 %v466, %v937
        %v939 = vpop.f32.mrf.mxu0
        %v940 = vpop.f32.mrf.mxu0
        %v941 = vadd.f32 %v466, %v940
        %v942 = vpop.f32.mrf.mxu0
        %943 = vmatprep.mubr.bf16.mxu0 0
        %944 = vmatmul.mubr.bf16.gmra.mxu0 %v712
        %v945 = vpop.f32.mrf.mxu0
        %v946 = vadd.f32 %v466, %v945
        %v947 = vpop.f32.mrf.mxu0
        %v948 = vpop.f32.mrf.mxu0
        %v949 = vadd.f32 %v466, %v948
        %v950 = vpop.f32.mrf.mxu0
        %951 = vmatprep.mubr.bf16.mxu0 0
        %952 = vmatmul.mubr.bf16.gmra.mxu0 %v715
        %v953 = vpop.f32.mrf.mxu0
        %v954 = vadd.f32 %v466, %v953
        %v955 = vpop.f32.mrf.mxu0
        %v956 = vpop.f32.mrf.mxu0
        %v957 = vadd.f32 %v466, %v956
        %v958 = vpop.f32.mrf.mxu0
        %959 = vmatprep.mubr.bf16.mxu0 0
        %960 = vmatmul.mubr.bf16.gmra.mxu0 %v718
        %v961 = vpop.f32.mrf.mxu0
        %v962 = vadd.f32 %v466, %v961
        %v963 = vpop.f32.mrf.mxu0
        %v964 = vpop.f32.mrf.mxu0
        %v965 = vadd.f32 %v466, %v964
        %v966 = vpop.f32.mrf.mxu0
        %967 = vmatprep.mubr.bf16.mxu0 0
        %968 = vmatmul.mubr.bf16.gmra.mxu0 %v721
        %v969 = vpop.f32.mrf.mxu0
        %v970 = vadd.f32 %v466, %v969
        %v971 = vpop.f32.mrf.mxu0
        %v972 = vpop.f32.mrf.mxu0
        %v973 = vadd.f32 %v466, %v972
        %v974 = vpop.f32.mrf.mxu0
        %975 = vmatprep.mubr.bf16.mxu0 0
        %976 = vmatmul.mubr.bf16.gmra.mxu0 %v724
        %v977 = vpop.f32.mrf.mxu0
        %v978 = vadd.f32 %v466, %v977
        %v979 = vpop.f32.mrf.mxu0
        %v980 = vpop.f32.mrf.mxu0
        %v981 = vadd.f32 %v466, %v980
        %v982 = vpop.f32.mrf.mxu0
        %983 = vmatprep.mubr.bf16.mxu0 0
        %984 = vmatmul.mubr.bf16.gmra.mxu0 %v727
        %v985 = vpop.f32.mrf.mxu0
        %v986 = vadd.f32 %v466, %v985
        %v987 = vpop.f32.mrf.mxu0
        %v988 = vpop.f32.mrf.mxu0
        %v989 = vadd.f32 %v466, %v988
        %v990 = vpop.f32.mrf.mxu0
        %991 = vmatprep.mubr.bf16.mxu0 0
        %992 = vmatmul.mubr.bf16.gmra.mxu0 %v730
        %v993 = vpop.f32.mrf.mxu0
        %v994 = vadd.f32 %v466, %v993
        %v995 = vpop.f32.mrf.mxu0
        %v996 = vpop.f32.mrf.mxu0
        %v997 = vadd.f32 %v466, %v996
        %v998 = vpop.f32.mrf.mxu0
        %999 = vmatprep.mubr.bf16.mxu0 0
        %1000 = vmatmul.mubr.bf16.gmra.mxu0 %v733
        %v1001 = vpop.f32.mrf.mxu0
        %v1002 = vadd.f32 %v466, %v1001
        %v1003 = vpop.f32.mrf.mxu0
        %v1004 = vpop.f32.mrf.mxu0
        %v1005 = vadd.f32 %v466, %v1004
        %v1006 = vpop.f32.mrf.mxu0
        %1007 = vmatprep.mubr.bf16.mxu0 0
        %1008 = vmatmul.mubr.bf16.gmra.mxu0 %v736
        %v1009 = vpop.f32.mrf.mxu0
        %v1010 = vadd.f32 %v466, %v1009
        %v1011 = vpop.f32.mrf.mxu0
        %v1012 = vpop.f32.mrf.mxu0
        %v1013 = vadd.f32 %v466, %v1012
        %v1014 = vpop.f32.mrf.mxu0
        %1015 = vmatprep.mubr.bf16.mxu0 0
        %1016 = vmatmul.mubr.bf16.gmra.mxu0 %v739
        %v1017 = vpop.f32.mrf.mxu0
        %v1018 = vadd.f32 %v466, %v1017
        %v1019 = vpop.f32.mrf.mxu0
        %v1020 = vpop.f32.mrf.mxu0
        %v1021 = vadd.f32 %v466, %v1020
        %v1022 = vpop.f32.mrf.mxu0
        %1023 = vmatprep.mubr.bf16.mxu0 0
        %1024 = vmatmul.mubr.bf16.gmra.mxu0 %v742
        %v1025 = vpop.f32.mrf.mxu0
        %v1026 = vadd.f32 %v466, %v1025
        %v1027 = vpop.f32.mrf.mxu0
        %v1028 = vpop.f32.mrf.mxu0
        %v1029 = vadd.f32 %v466, %v1028
        %v1030 = vpop.f32.mrf.mxu0
        %1031 = vmatprep.mubr.bf16.mxu0 0
        %1032 = vmatmul.mubr.bf16.gmra.mxu0 %v745
        %v1033 = vpop.f32.mrf.mxu0
        %v1034 = vadd.f32 %v466, %v1033
        %v1035 = vpop.f32.mrf.mxu0
        %v1036 = vpop.f32.mrf.mxu0
        %v1037 = vadd.f32 %v466, %v1036
        %v1038 = vpop.f32.mrf.mxu0
        %1039 = vmatprep.mubr.bf16.mxu0 0
        %1040 = vmatmul.mubr.bf16.gmra.mxu0 %v748
        %v1041 = vpop.f32.mrf.mxu0
        %v1042 = vadd.f32 %v466, %v1041
        %v1043 = vpop.f32.mrf.mxu0
        %v1044 = vpop.f32.mrf.mxu0
        %v1045 = vadd.f32 %v466, %v1044
        %v1046 = vpop.f32.mrf.mxu0
        %1047 = vmatprep.mubr.bf16.mxu0 0
        %1048 = vmatmul.mubr.bf16.gmra.mxu0 %v751
        %v1049 = vpop.f32.mrf.mxu0
        %v1050 = vadd.f32 %v466, %v1049
        %v1051 = vpop.f32.mrf.mxu0
        %v1052 = vpop.f32.mrf.mxu0
        %v1053 = vadd.f32 %v466, %v1052
        %v1054 = vpop.f32.mrf.mxu0
        %1055 = vmatprep.mubr.bf16.mxu0 0
        %1056 = vmatmul.mubr.bf16.gmra.mxu0 %v754
        %v1057 = vpop.f32.mrf.mxu0
        %v1058 = vadd.f32 %v466, %v1057
        %v1059 = vpop.f32.mrf.mxu0
        %v1060 = vpop.f32.mrf.mxu0
        %v1061 = vadd.f32 %v466, %v1060
        %v1062 = vpop.f32.mrf.mxu0
        %1063 = vmatprep.mubr.bf16.mxu0 0
        %1064 = vmatmul.mubr.bf16.gmra.mxu0 %v757
        %v1065 = vpop.f32.mrf.mxu0
        %v1066 = vadd.f32 %v466, %v1065
        %v1067 = vpop.f32.mrf.mxu0
        %v1068 = vpop.f32.mrf.mxu0
        %v1069 = vadd.f32 %v466, %v1068
        %v1070 = vpop.f32.mrf.mxu0
        %1071 = vmatprep.mubr.bf16.mxu0 0
        %1072 = vmatmul.mubr.bf16.gmra.mxu0 %v760
        %v1073 = vpop.f32.mrf.mxu0
        %v1074 = vadd.f32 %v466, %v1073
        %v1075 = vpop.f32.mrf.mxu0
        %v1076 = vpop.f32.mrf.mxu0
        %v1077 = vadd.f32 %v466, %v1076
        %v1078 = vpop.f32.mrf.mxu0
        %1079 = vmatprep.mubr.bf16.mxu0 0
        %1080 = vmatmul.mubr.bf16.gmra.mxu0 %v763
        %v1081 = vpop.f32.mrf.mxu0
        %v1082 = vadd.f32 %v466, %v1081
        %v1083 = vpop.f32.mrf.mxu0
        %v1084 = vpop.f32.mrf.mxu0
        %v1085 = vadd.f32 %v466, %v1084
        %v1086 = vpop.f32.mrf.mxu0
        %1087 = vmatprep.mubr.bf16.mxu0 0
        %1088 = vmatmul.mubr.bf16.gmra.mxu0 %v766
        %v1089 = vpop.f32.mrf.mxu0
        %v1090 = vadd.f32 %v466, %v1089
        %v1091 = vpop.f32.mrf.mxu0
        %v1092 = vpop.f32.mrf.mxu0
        %v1093 = vadd.f32 %v466, %v1092
        %v1094 = vpop.f32.mrf.mxu0
        %1095 = vdwg.mxu0
        %v1096 = vmax.f32 %v810, 0.0
        %v1097 = vmax.f32 %v813, 0.0
        %v1098 = vmax.f32 %v818, 0.0
        %v1099 = vmax.f32 %v821, 0.0
        %v1100 = vmax.f32 %v826, 0.0
        %v1101 = vmax.f32 %v829, 0.0
        %v1102 = vmax.f32 %v834, 0.0
        %v1103 = vmax.f32 %v837, 0.0
        %v1104 = vmax.f32 %v842, 0.0
        %v1105 = vmax.f32 %v845, 0.0
        %v1106 = vmax.f32 %v850, 0.0
        %v1107 = vmax.f32 %v853, 0.0
        %v1108 = vmax.f32 %v858, 0.0
        %v1109 = vmax.f32 %v861, 0.0
        %v1110 = vmax.f32 %v866, 0.0
        %v1111 = vmax.f32 %v869, 0.0
        %v1112 = vmax.f32 %v874, 0.0
        %v1113 = vmax.f32 %v877, 0.0
        %v1114 = vmax.f32 %v882, 0.0
        %v1115 = vmax.f32 %v885, 0.0
        %v1116 = vmax.f32 %v890, 0.0
        %v1117 = vmax.f32 %v893, 0.0
        %v1118 = vmax.f32 %v898, 0.0
        %v1119 = vmax.f32 %v901, 0.0
        %v1120 = vmax.f32 %v906, 0.0
        %v1121 = vmax.f32 %v909, 0.0
        %v1122 = vmax.f32 %v914, 0.0
        %v1123 = vmax.f32 %v917, 0.0
        %v1124 = vmax.f32 %v922, 0.0
        %v1125 = vmax.f32 %v925, 0.0
        %v1126 = vmax.f32 %v930, 0.0
        %v1127 = vmax.f32 %v933, 0.0
        %v1128 = vmax.f32 %v938, 0.0
        %v1129 = vmax.f32 %v941, 0.0
        %v1130 = vmax.f32 %v946, 0.0
        %v1131 = vmax.f32 %v949, 0.0
        %v1132 = vmax.f32 %v954, 0.0
        %v1133 = vmax.f32 %v957, 0.0
        %v1134 = vmax.f32 %v962, 0.0
        %v1135 = vmax.f32 %v965, 0.0
        %v1136 = vmax.f32 %v970, 0.0
        %v1137 = vmax.f32 %v973, 0.0
        %v1138 = vmax.f32 %v978, 0.0
        %v1139 = vmax.f32 %v981, 0.0
        %v1140 = vmax.f32 %v986, 0.0
        %v1141 = vmax.f32 %v989, 0.0
        %v1142 = vmax.f32 %v994, 0.0
        %v1143 = vmax.f32 %v997, 0.0
        %v1144 = vmax.f32 %v1002, 0.0
        %v1145 = vmax.f32 %v1005, 0.0
        %v1146 = vmax.f32 %v1010, 0.0
        %v1147 = vmax.f32 %v1013, 0.0
        %v1148 = vmax.f32 %v1018, 0.0
        %v1149 = vmax.f32 %v1021, 0.0
        %v1150 = vmax.f32 %v1026, 0.0
        %v1151 = vmax.f32 %v1029, 0.0
        %v1152 = vmax.f32 %v1034, 0.0
        %v1153 = vmax.f32 %v1037, 0.0
        %v1154 = vmax.f32 %v1042, 0.0
        %v1155 = vmax.f32 %v1045, 0.0
        %v1156 = vmax.f32 %v1050, 0.0
        %v1157 = vmax.f32 %v1053, 0.0
        %v1158 = vmax.f32 %v1058, 0.0
        %v1159 = vmax.f32 %v1061, 0.0
        %v1160 = vmax.f32 %v1066, 0.0
        %v1161 = vmax.f32 %v1069, 0.0
        %v1162 = vmax.f32 %v1074, 0.0
        %v1163 = vmax.f32 %v1077, 0.0
        %v1164 = vmax.f32 %v1082, 0.0
        %v1165 = vmax.f32 %v1085, 0.0
        %v1166 = vmax.f32 %v1090, 0.0
        %v1167 = vmax.f32 %v1093, 0.0
        %v1168 = vmax.f32 %v1096, %v1099
        %v1169 = vmax.f32 %v1097, %v1100
        %v1170 = vmax.f32 %v1098, %v1101
        %v1171 = vmax.f32 %v1099, %v1102
        %v1172 = vmax.f32 %v1100, %v1103
        %v1173 = vmax.f32 %v1101, %v1104
        %v1174 = vmax.f32 %v1102, %v1105
        %v1175 = vmax.f32 %v1103, %v1106
        %v1176 = vmax.f32 %v1104, %v1107
        %v1177 = vmax.f32 %v1105, %v1108
        %v1178 = vmax.f32 %v1106, %v1109
        %v1179 = vmax.f32 %v1107, %v1110
        %v1180 = vmax.f32 %v1108, %v1111
        %v1181 = vmax.f32 %v1109, %v1112
        %v1182 = vmax.f32 %v1110, %v1113
        %v1183 = vmax.f32 %v1111, %v1114
        %v1184 = vmax.f32 %v1112, %v1115
        %v1185 = vmax.f32 %v1113, %v1116
        %v1186 = vmax.f32 %v1114, %v1117
        %v1187 = vmax.f32 %v1115, %v1118
        %v1188 = vmax.f32 %v1116, %v1119
        %v1189 = vmax.f32 %v1117, %v1120
        %v1190 = vmax.f32 %v1118, %v1121
        %v1191 = vmax.f32 %v1119, %v1122
        %v1192 = vmax.f32 %v1120, %v1123
        %v1193 = vmax.f32 %v1121, %v1124
        %v1194 = vmax.f32 %v1122, %v1125
        %v1195 = vmax.f32 %v1123, %v1126
        %v1196 = vmax.f32 %v1124, %v1127
        %v1197 = vmax.f32 %v1125, %v1128
        %v1198 = vmax.f32 %v1126, %v1129
        %v1199 = vmax.f32 %v1127, %v1130
        %v1200 = vmax.f32 %v1128, %v1131
        %v1201 = vmax.f32 %v1129, %v1132
        %v1202 = vmax.f32 %v1130, %v1133
        %v1203 = vmax.f32 %v1131, %v1134
        %v1204 = vmax.f32 %v1132, %v1135
        %v1205 = vmax.f32 %v1133, %v1136
        %v1206 = vmax.f32 %v1134, %v1137
        %v1207 = vmax.f32 %v1135, %v1138
        %v1208 = vmax.f32 %v1136, %v1139
        %v1209 = vmax.f32 %v1137, %v1140
        %v1210 = vmax.f32 %v1138, %v1141
        %v1211 = vmax.f32 %v1139, %v1142
        %v1212 = vmax.f32 %v1140, %v1143
        %v1213 = vmax.f32 %v1141, %v1144
        %v1214 = vmax.f32 %v1142, %v1145
        %v1215 = vmax.f32 %v1143, %v1146
        %v1216 = vmax.f32 %v1144, %v1147
        %v1217 = vmax.f32 %v1145, %v1148
        %v1218 = vmax.f32 %v1146, %v1149
        %v1219 = vmax.f32 %v1147, %v1150
        %v1220 = vmax.f32 %v1148, %v1151
        %v1221 = vmax.f32 %v1149, %v1152
        %v1222 = vmax.f32 %v1150, %v1153
        %v1223 = vmax.f32 %v1151, %v1154
        %v1224 = vmax.f32 %v1152, %v1155
        %v1225 = vmax.f32 %v1153, %v1156
        %v1226 = vmax.f32 %v1154, %v1157
        %v1227 = vmax.f32 %v1155, %v1158
        %v1228 = vmax.f32 %v1156, %v1159
        %v1229 = vmax.f32 %v1157, %v1160
        %v1230 = vmax.f32 %v1158, %v1161
        %v1231 = vmax.f32 %v1159, %v1162
        %v1232 = vmax.f32 %v1160, %v1163
        %v1233 = vmax.f32 %v1161, %v1164
        %v1234 = vmax.f32 %v1162, %v1165
        %v1235 = vmax.f32 %v1163, %v1166
        %v1236 = vmax.f32 %v1164, %v1167
        %vm1306 = vcmask 1046528
        %v1307 = vrot.slane %v1168, 1
        %v1308 = vrot.slane %v1169, 1
        %v1309 = vsel %vm1306, %v1307, %v1308
        %v1310 = vrot.slane %v1170, 1
        %v1311 = vsel %vm1306, %v1308, %v1310
        %v1312 = vrot.slane %v1171, 1
        %v1313 = vsel %vm1306, %v1310, %v1312
        %v1314 = vrot.slane %v1172, 1
        %v1315 = vsel %vm1306, %v1312, %v1314
        %v1316 = vrot.slane %v1173, 1
        %v1317 = vsel %vm1306, %v1314, %v1316
        %v1318 = vrot.slane %v1174, 1
        %v1319 = vsel %vm1306, %v1316, %v1318
        %v1320 = vrot.slane %v1175, 1
        %v1321 = vsel %vm1306, %v1318, %v1320
        %v1322 = vrot.slane %v1176, 1
        %v1323 = vsel %vm1306, %v1320, %v1322
        %v1324 = vrot.slane %v1177, 1
        %v1325 = vsel %vm1306, %v1322, %v1324
        %v1326 = vrot.slane %v1178, 1
        %v1327 = vsel %vm1306, %v1324, %v1326
        %v1328 = vrot.slane %v1179, 1
        %v1329 = vsel %vm1306, %v1326, %v1328
        %v1330 = vrot.slane %v1180, 1
        %v1331 = vsel %vm1306, %v1328, %v1330
        %v1332 = vrot.slane %v1181, 1
        %v1333 = vsel %vm1306, %v1330, %v1332
        %v1334 = vrot.slane %v1182, 1
        %v1335 = vsel %vm1306, %v1332, %v1334
        %v1336 = vrot.slane %v1183, 1
        %v1337 = vsel %vm1306, %v1334, %v1336
        %v1338 = vrot.slane %v1184, 1
        %v1339 = vsel %vm1306, %v1336, %v1338
        %v1340 = vrot.slane %v1185, 1
        %v1341 = vsel %vm1306, %v1338, %v1340
        %v1342 = vrot.slane %v1186, 1
        %v1343 = vsel %vm1306, %v1340, %v1342
        %v1344 = vrot.slane %v1187, 1
        %v1345 = vsel %vm1306, %v1342, %v1344
        %v1346 = vrot.slane %v1188, 1
        %v1347 = vsel %vm1306, %v1344, %v1346
        %v1348 = vrot.slane %v1189, 1
        %v1349 = vsel %vm1306, %v1346, %v1348
        %v1350 = vrot.slane %v1190, 1
        %v1351 = vsel %vm1306, %v1348, %v1350
        %v1352 = vrot.slane %v1191, 1
        %v1353 = vsel %vm1306, %v1350, %v1352
        %v1354 = vrot.slane %v1192, 1
        %v1355 = vsel %vm1306, %v1352, %v1354
        %v1356 = vrot.slane %v1193, 1
        %v1357 = vsel %vm1306, %v1354, %v1356
        %v1358 = vrot.slane %v1194, 1
        %v1359 = vsel %vm1306, %v1356, %v1358
        %v1360 = vrot.slane %v1195, 1
        %v1361 = vsel %vm1306, %v1358, %v1360
        %v1362 = vrot.slane %v1196, 1
        %v1363 = vsel %vm1306, %v1360, %v1362
        %v1364 = vrot.slane %v1197, 1
        %v1365 = vsel %vm1306, %v1362, %v1364
        %v1366 = vrot.slane %v1198, 1
        %v1367 = vsel %vm1306, %v1364, %v1366
        %v1368 = vrot.slane %v1199, 1
        %v1369 = vsel %vm1306, %v1366, %v1368
        %v1370 = vrot.slane %v1200, 1
        %v1371 = vsel %vm1306, %v1368, %v1370
        %v1372 = vrot.slane %v1201, 1
        %v1373 = vsel %vm1306, %v1370, %v1372
        %v1374 = vrot.slane %v1202, 1
        %v1375 = vsel %vm1306, %v1372, %v1374
        %v1376 = vrot.slane %v1203, 1
        %v1377 = vsel %vm1306, %v1374, %v1376
        %v1378 = vrot.slane %v1204, 1
        %v1379 = vsel %vm1306, %v1376, %v1378
        %v1380 = vrot.slane %v1205, 1
        %v1381 = vsel %vm1306, %v1378, %v1380
        %v1382 = vrot.slane %v1206, 1
        %v1383 = vsel %vm1306, %v1380, %v1382
        %v1384 = vrot.slane %v1207, 1
        %v1385 = vsel %vm1306, %v1382, %v1384
        %v1386 = vrot.slane %v1208, 1
        %v1387 = vsel %vm1306, %v1384, %v1386
        %v1388 = vrot.slane %v1209, 1
        %v1389 = vsel %vm1306, %v1386, %v1388
        %v1390 = vrot.slane %v1210, 1
        %v1391 = vsel %vm1306, %v1388, %v1390
        %v1392 = vrot.slane %v1211, 1
        %v1393 = vsel %vm1306, %v1390, %v1392
        %v1394 = vrot.slane %v1212, 1
        %v1395 = vsel %vm1306, %v1392, %v1394
        %v1396 = vrot.slane %v1213, 1
        %v1397 = vsel %vm1306, %v1394, %v1396
        %v1398 = vrot.slane %v1214, 1
        %v1399 = vsel %vm1306, %v1396, %v1398
        %v1400 = vrot.slane %v1215, 1
        %v1401 = vsel %vm1306, %v1398, %v1400
        %v1402 = vrot.slane %v1216, 1
        %v1403 = vsel %vm1306, %v1400, %v1402
        %v1404 = vrot.slane %v1217, 1
        %v1405 = vsel %vm1306, %v1402, %v1404
        %v1406 = vrot.slane %v1218, 1
        %v1407 = vsel %vm1306, %v1404, %v1406
        %v1408 = vrot.slane %v1219, 1
        %v1409 = vsel %vm1306, %v1406, %v1408
        %v1410 = vrot.slane %v1220, 1
        %v1411 = vsel %vm1306, %v1408, %v1410
        %v1412 = vrot.slane %v1221, 1
        %v1413 = vsel %vm1306, %v1410, %v1412
        %v1414 = vrot.slane %v1222, 1
        %v1415 = vsel %vm1306, %v1412, %v1414
        %v1416 = vrot.slane %v1223, 1
        %v1417 = vsel %vm1306, %v1414, %v1416
        %v1418 = vrot.slane %v1224, 1
        %v1419 = vsel %vm1306, %v1416, %v1418
        %v1420 = vrot.slane %v1225, 1
        %v1421 = vsel %vm1306, %v1418, %v1420
        %v1422 = vrot.slane %v1226, 1
        %v1423 = vsel %vm1306, %v1420, %v1422
        %v1424 = vrot.slane %v1227, 1
        %v1425 = vsel %vm1306, %v1422, %v1424
        %v1426 = vrot.slane %v1228, 1
        %v1427 = vsel %vm1306, %v1424, %v1426
        %v1428 = vrot.slane %v1229, 1
        %v1429 = vsel %vm1306, %v1426, %v1428
        %v1430 = vrot.slane %v1230, 1
        %v1431 = vsel %vm1306, %v1428, %v1430
        %v1432 = vrot.slane %v1231, 1
        %v1433 = vsel %vm1306, %v1430, %v1432
        %v1434 = vrot.slane %v1232, 1
        %v1435 = vsel %vm1306, %v1432, %v1434
        %v1436 = vrot.slane %v1233, 1
        %v1437 = vsel %vm1306, %v1434, %v1436
        %v1438 = vrot.slane %v1234, 1
        %v1439 = vsel %vm1306, %v1436, %v1438
        %v1440 = vrot.slane %v1235, 1
        %v1441 = vsel %vm1306, %v1438, %v1440
        %v1442 = vrot.slane %v1236, 1
        %v1443 = vsel %vm1306, %v1440, %v1442
        %v1513 = vmax.f32 %v1168, %v1309
        %v1514 = vmax.f32 %v1169, %v1311
        %v1515 = vmax.f32 %v1170, %v1313
        %v1516 = vmax.f32 %v1171, %v1315
        %v1517 = vmax.f32 %v1172, %v1317
        %v1518 = vmax.f32 %v1173, %v1319
        %v1519 = vmax.f32 %v1174, %v1321
        %v1520 = vmax.f32 %v1175, %v1323
        %v1521 = vmax.f32 %v1176, %v1325
        %v1522 = vmax.f32 %v1177, %v1327
        %v1523 = vmax.f32 %v1178, %v1329
        %v1524 = vmax.f32 %v1179, %v1331
        %v1525 = vmax.f32 %v1180, %v1333
        %v1526 = vmax.f32 %v1181, %v1335
        %v1527 = vmax.f32 %v1182, %v1337
        %v1528 = vmax.f32 %v1183, %v1339
        %v1529 = vmax.f32 %v1184, %v1341
        %v1530 = vmax.f32 %v1185, %v1343
        %v1531 = vmax.f32 %v1186, %v1345
        %v1532 = vmax.f32 %v1187, %v1347
        %v1533 = vmax.f32 %v1188, %v1349
        %v1534 = vmax.f32 %v1189, %v1351
        %v1535 = vmax.f32 %v1190, %v1353
        %v1536 = vmax.f32 %v1191, %v1355
        %v1537 = vmax.f32 %v1192, %v1357
        %v1538 = vmax.f32 %v1193, %v1359
        %v1539 = vmax.f32 %v1194, %v1361
        %v1540 = vmax.f32 %v1195, %v1363
        %v1541 = vmax.f32 %v1196, %v1365
        %v1542 = vmax.f32 %v1197, %v1367
        %v1543 = vmax.f32 %v1198, %v1369
        %v1544 = vmax.f32 %v1199, %v1371
        %v1545 = vmax.f32 %v1200, %v1373
        %v1546 = vmax.f32 %v1201, %v1375
        %v1547 = vmax.f32 %v1202, %v1377
        %v1548 = vmax.f32 %v1203, %v1379
        %v1549 = vmax.f32 %v1204, %v1381
        %v1550 = vmax.f32 %v1205, %v1383
        %v1551 = vmax.f32 %v1206, %v1385
        %v1552 = vmax.f32 %v1207, %v1387
        %v1553 = vmax.f32 %v1208, %v1389
        %v1554 = vmax.f32 %v1209, %v1391
        %v1555 = vmax.f32 %v1210, %v1393
        %v1556 = vmax.f32 %v1211, %v1395
        %v1557 = vmax.f32 %v1212, %v1397
        %v1558 = vmax.f32 %v1213, %v1399
        %v1559 = vmax.f32 %v1214, %v1401
        %v1560 = vmax.f32 %v1215, %v1403
        %v1561 = vmax.f32 %v1216, %v1405
        %v1562 = vmax.f32 %v1217, %v1407
        %v1563 = vmax.f32 %v1218, %v1409
        %v1564 = vmax.f32 %v1219, %v1411
        %v1565 = vmax.f32 %v1220, %v1413
        %v1566 = vmax.f32 %v1221, %v1415
        %v1567 = vmax.f32 %v1222, %v1417
        %v1568 = vmax.f32 %v1223, %v1419
        %v1569 = vmax.f32 %v1224, %v1421
        %v1570 = vmax.f32 %v1225, %v1423
        %v1571 = vmax.f32 %v1226, %v1425
        %v1572 = vmax.f32 %v1227, %v1427
        %v1573 = vmax.f32 %v1228, %v1429
        %v1574 = vmax.f32 %v1229, %v1431
        %v1575 = vmax.f32 %v1230, %v1433
        %v1576 = vmax.f32 %v1231, %v1435
        %v1577 = vmax.f32 %v1232, %v1437
        %v1578 = vmax.f32 %v1233, %v1439
        %v1579 = vmax.f32 %v1234, %v1441
        %v1580 = vmax.f32 %v1235, %v1443
        %v1581 = vmax.f32 %v1236, %v1442
        %v1582 = vld [vmem:[%s9] sm:$0xff]
        %v1583 = vld [vmem:[%s9 + $0x8] sm:$0xff]
        %v1584 = vld [vmem:[%s9 + $0x10] sm:$0xf]
        %v1585 = vld [vmem:[%s9 + $0x14] sm:$0xff]
        %v1586 = vld [vmem:[%s9 + $0x1c] sm:$0xff]
        %v1587 = vld [vmem:[%s9 + $0x24] sm:$0xf]
        %v1588 = vld [vmem:[%s9 + $0x28] sm:$0xff]
        %v1589 = vld [vmem:[%s9 + $0x30] sm:$0xff]
        %v1590 = vld [vmem:[%s9 + $0x38] sm:$0xf]
        %v1591 = vld [vmem:[%s9 + $0x3c] sm:$0xff]
        %v1592 = vld [vmem:[%s9 + $0x44] sm:$0xff]
        %v1593 = vld [vmem:[%s9 + $0x4c] sm:$0xf]
        %v1594 = vld [vmem:[%s9 + $0x50] sm:$0xff]
        %v1595 = vld [vmem:[%s9 + $0x58] sm:$0xff]
        %v1596 = vld [vmem:[%s9 + $0x60] sm:$0xf]
        %v1597 = vld [vmem:[%s9 + $0x64] sm:$0xff]
        %v1598 = vld [vmem:[%s9 + $0x6c] sm:$0xff]
        %v1599 = vld [vmem:[%s9 + $0x74] sm:$0xf]
        %v1600 = vld [vmem:[%s9 + $0x78] sm:$0xff]
        %v1601 = vld [vmem:[%s9 + $0x80] sm:$0xff]
        %v1602 = vld [vmem:[%s9 + $0x88] sm:$0xf]
        %v1603 = vld [vmem:[%s9 + $0x8c] sm:$0xff]
        %v1604 = vld [vmem:[%s9 + $0x94] sm:$0xff]
        %v1605 = vld [vmem:[%s9 + $0x9c] sm:$0xf]
        %v1606 = vld [vmem:[%s9 + $0xa0] sm:$0xff]
        %v1607 = vld [vmem:[%s9 + $0xa8] sm:$0xff]
        %v1608 = vld [vmem:[%s9 + $0xb0] sm:$0xf]
        %v1609 = vld [vmem:[%s9 + $0xb4] sm:$0xff]
        %v1610 = vld [vmem:[%s9 + $0xbc] sm:$0xff]
        %v1611 = vld [vmem:[%s9 + $0xc4] sm:$0xf]
        %v1612 = vld [vmem:[%s9 + $0xc8] sm:$0xff]
        %v1613 = vld [vmem:[%s9 + $0xd0] sm:$0xff]
        %v1614 = vld [vmem:[%s9 + $0xd8] sm:$0xf]
        %v1615 = vld [vmem:[%s9 + $0xdc] sm:$0xff]
        %v1616 = vld [vmem:[%s9 + $0xe4] sm:$0xff]
        %v1617 = vld [vmem:[%s9 + $0xec] sm:$0xf]
        %v1618 = vld [vmem:[%s9 + $0xf0] sm:$0xff]
        %v1619 = vld [vmem:[%s9 + $0xf8] sm:$0xff]
        %v1620 = vld [vmem:[%s9 + $0x100] sm:$0xf]
        %v1621 = vld [vmem:[%s9 + $0x104] sm:$0xff]
        %v1622 = vld [vmem:[%s9 + $0x10c] sm:$0xff]
        %v1623 = vld [vmem:[%s9 + $0x114] sm:$0xf]
        %v1624 = vld [vmem:[%s9 + $0x118] sm:$0xff]
        %v1625 = vld [vmem:[%s9 + $0x120] sm:$0xff]
        %v1626 = vld [vmem:[%s9 + $0x128] sm:$0xf]
        %v1627 = vld [vmem:[%s9 + $0x12c] sm:$0xff]
        %v1628 = vld [vmem:[%s9 + $0x134] sm:$0xff]
        %v1629 = vld [vmem:[%s9 + $0x13c] sm:$0xf]
        %v1630 = vld [vmem:[%s9 + $0x140] sm:$0xff]
        %v1631 = vld [vmem:[%s9 + $0x148] sm:$0xff]
        %v1632 = vld [vmem:[%s9 + $0x150] sm:$0xf]
        %v1633 = vld [vmem:[%s9 + $0x154] sm:$0xff]
        %v1634 = vld [vmem:[%s9 + $0x15c] sm:$0xff]
        %v1635 = vld [vmem:[%s9 + $0x164] sm:$0xf]
        %v1636 = vld [vmem:[%s9 + $0x168] sm:$0x33]
        %v1637 = vld [vmem:[%s9 + $0x170] sm:$0x33]
        %v1638 = vld [vmem:[%s9 + $0x178] sm:$0x3]
        %v1639 = vpack.c.bf16 %v1514, %v1513
        %v1640 = vpack.c.bf16 %v1516, %v1515
        %v1641 = vpack.c.bf16 %v1518, %v1517
        %v1642 = vpack.c.bf16 %v1520, %v1519
        %v1643 = vpack.c.bf16 %v1522, %v1521
        %v1644 = vpack.c.bf16 %v1524, %v1523
        %v1645 = vpack.c.bf16 %v1526, %v1525
        %v1646 = vpack.c.bf16 %v1528, %v1527
        %v1647 = vpack.c.bf16 %v1530, %v1529
        %v1648 = vpack.c.bf16 %v1532, %v1531
        %v1649 = vpack.c.bf16 %v1534, %v1533
        %v1650 = vpack.c.bf16 %v1536, %v1535
        %v1651 = vpack.c.bf16 %v1538, %v1537
        %v1652 = vpack.c.bf16 %v1540, %v1539
        %v1653 = vpack.c.bf16 %v1542, %v1541
        %v1654 = vpack.c.bf16 %v1544, %v1543
        %v1655 = vpack.c.bf16 %v1546, %v1545
        %v1656 = vpack.c.bf16 %v1548, %v1547
        %v1657 = vpack.c.bf16 %v1550, %v1549
        %v1658 = vpack.c.bf16 %v1552, %v1551
        %v1659 = vpack.c.bf16 %v1554, %v1553
        %v1660 = vpack.c.bf16 %v1556, %v1555
        %v1661 = vpack.c.bf16 %v1558, %v1557
        %v1662 = vpack.c.bf16 %v1560, %v1559
        %v1663 = vpack.c.bf16 %v1562, %v1561
        %v1664 = vpack.c.bf16 %v1564, %v1563
        %v1665 = vpack.c.bf16 %v1566, %v1565
        %v1666 = vpack.c.bf16 %v1568, %v1567
        %v1667 = vpack.c.bf16 %v1570, %v1569
        %v1668 = vpack.c.bf16 %v1572, %v1571
        %v1669 = vpack.c.bf16 %v1574, %v1573
        %v1670 = vpack.c.bf16 %v1576, %v1575
        %v1671 = vpack.c.bf16 %v1578, %v1577
        %v1672 = vpack.c.bf16 %v1580, %v1579
        %v1673 = vpack.c.bf16 %v1581, %v1581
        %v1731 = vunpack.c.l.b16 %v1582
        %v1732 = vunpack.c.h.b16 %v1582
        %v1733 = vunpack.c.l.b16 %v1583
        %v1734 = vunpack.c.h.b16 %v1583
        %v1735 = vunpack.c.l.b16 %v1584
        %v1736 = vunpack.c.l.b16 %v1585
        %v1737 = vunpack.c.h.b16 %v1585
        %v1738 = vunpack.c.l.b16 %v1586
        %v1739 = vunpack.c.h.b16 %v1586
        %v1740 = vunpack.c.l.b16 %v1587
        %v1741 = vunpack.c.l.b16 %v1588
        %v1742 = vunpack.c.h.b16 %v1588
        %v1743 = vunpack.c.l.b16 %v1589
        %v1744 = vunpack.c.h.b16 %v1589
        %v1745 = vunpack.c.l.b16 %v1590
        %v1746 = vunpack.c.l.b16 %v1591
        %v1747 = vunpack.c.h.b16 %v1591
        %v1748 = vunpack.c.l.b16 %v1592
        %v1749 = vunpack.c.h.b16 %v1592
        %v1750 = vunpack.c.l.b16 %v1593
        %v1751 = vunpack.c.l.b16 %v1594
        %v1752 = vunpack.c.h.b16 %v1594
        %v1753 = vunpack.c.l.b16 %v1595
        %v1754 = vunpack.c.h.b16 %v1595
        %v1755 = vunpack.c.l.b16 %v1596
        %v1756 = vunpack.c.l.b16 %v1597
        %v1757 = vunpack.c.h.b16 %v1597
        %v1758 = vunpack.c.l.b16 %v1598
        %v1759 = vunpack.c.h.b16 %v1598
        %v1760 = vunpack.c.l.b16 %v1599
        %v1761 = vunpack.c.l.b16 %v1600
        %v1762 = vunpack.c.h.b16 %v1600
        %v1763 = vunpack.c.l.b16 %v1601
        %v1764 = vunpack.c.h.b16 %v1601
        %v1765 = vunpack.c.l.b16 %v1602
        %v1766 = vunpack.c.l.b16 %v1603
        %v1767 = vunpack.c.h.b16 %v1603
        %v1768 = vunpack.c.l.b16 %v1604
        %v1769 = vunpack.c.h.b16 %v1604
        %v1770 = vunpack.c.l.b16 %v1605
        %v1771 = vunpack.c.l.b16 %v1606
        %v1772 = vunpack.c.h.b16 %v1606
        %v1773 = vunpack.c.l.b16 %v1607
        %v1774 = vunpack.c.h.b16 %v1607
        %v1775 = vunpack.c.l.b16 %v1608
        %v1776 = vunpack.c.l.b16 %v1609
        %v1777 = vunpack.c.h.b16 %v1609
        %v1778 = vunpack.c.l.b16 %v1610
        %v1779 = vunpack.c.h.b16 %v1610
        %v1780 = vunpack.c.l.b16 %v1611
        %v1781 = vunpack.c.l.b16 %v1612
        %v1782 = vunpack.c.h.b16 %v1612
        %v1783 = vunpack.c.l.b16 %v1613
        %v1784 = vunpack.c.h.b16 %v1613
        %v1785 = vunpack.c.l.b16 %v1614
        %v1786 = vunpack.c.l.b16 %v1615
        %v1787 = vunpack.c.h.b16 %v1615
        %v1788 = vunpack.c.l.b16 %v1616
        %v1789 = vunpack.c.h.b16 %v1616
        %v1790 = vunpack.c.l.b16 %v1617
        %v1791 = vunpack.c.l.b16 %v1618
        %v1792 = vunpack.c.h.b16 %v1618
        %v1793 = vunpack.c.l.b16 %v1619
        %v1794 = vunpack.c.h.b16 %v1619
        %v1795 = vunpack.c.l.b16 %v1620
        %v1796 = vunpack.c.l.b16 %v1621
        %v1797 = vunpack.c.h.b16 %v1621
        %v1798 = vunpack.c.l.b16 %v1622
        %v1799 = vunpack.c.h.b16 %v1622
        %v1800 = vunpack.c.l.b16 %v1623
        %v1801 = vunpack.c.l.b16 %v1624
        %v1802 = vunpack.c.h.b16 %v1624
        %v1803 = vunpack.c.l.b16 %v1625
        %v1804 = vunpack.c.h.b16 %v1625
        %v1805 = vunpack.c.l.b16 %v1626
        %v1806 = vunpack.c.l.b16 %v1627
        %v1807 = vunpack.c.h.b16 %v1627
        %v1808 = vunpack.c.l.b16 %v1628
        %v1809 = vunpack.c.h.b16 %v1628
        %v1810 = vunpack.c.l.b16 %v1629
        %v1811 = vunpack.c.l.b16 %v1630
        %v1812 = vunpack.c.h.b16 %v1630
        %v1813 = vunpack.c.l.b16 %v1631
        %v1814 = vunpack.c.h.b16 %v1631
        %v1815 = vunpack.c.l.b16 %v1632
        %v1816 = vunpack.c.l.b16 %v1633
        %v1817 = vunpack.c.h.b16 %v1633
        %v1818 = vunpack.c.l.b16 %v1634
        %v1819 = vunpack.c.h.b16 %v1634
        %v1820 = vunpack.c.l.b16 %v1635
        %v1821 = vunpack.c.l.b16 %v1636
        %v1822 = vunpack.c.h.b16 %v1636
        %v1823 = vunpack.c.l.b16 %v1637
        %v1824 = vunpack.c.h.b16 %v1637
        %v1825 = vunpack.c.l.b16 %v1638
        %v1826 = vpack.c.b16 %v1736, %v1731
        %v1827 = vpack.c.b16 %v1737, %v1732
        %v1828 = vpack.c.b16 %v1738, %v1733
        %v1829 = vpack.c.b16 %v1739, %v1734
        %v1830 = vpack.c.b16 %v1740, %v1735
        %v1831 = vpack.c.b16 %v1746, %v1741
        %v1832 = vpack.c.b16 %v1747, %v1742
        %v1833 = vpack.c.b16 %v1748, %v1743
        %v1834 = vpack.c.b16 %v1749, %v1744
        %v1835 = vpack.c.b16 %v1750, %v1745
        %v1836 = vpack.c.b16 %v1756, %v1751
        %v1837 = vpack.c.b16 %v1757, %v1752
        %v1838 = vpack.c.b16 %v1758, %v1753
        %v1839 = vpack.c.b16 %v1759, %v1754
        %v1840 = vpack.c.b16 %v1760, %v1755
        %v1841 = vpack.c.b16 %v1766, %v1761
        %v1842 = vpack.c.b16 %v1767, %v1762
        %v1843 = vpack.c.b16 %v1768, %v1763
        %v1844 = vpack.c.b16 %v1769, %v1764
        %v1845 = vpack.c.b16 %v1770, %v1765
        %v1846 = vpack.c.b16 %v1776, %v1771
        %v1847 = vpack.c.b16 %v1777, %v1772
        %v1848 = vpack.c.b16 %v1778, %v1773
        %v1849 = vpack.c.b16 %v1779, %v1774
        %v1850 = vpack.c.b16 %v1780, %v1775
        %v1851 = vpack.c.b16 %v1786, %v1781
        %v1852 = vpack.c.b16 %v1787, %v1782
        %v1853 = vpack.c.b16 %v1788, %v1783
        %v1854 = vpack.c.b16 %v1789, %v1784
        %v1855 = vpack.c.b16 %v1790, %v1785
        %v1856 = vpack.c.b16 %v1796, %v1791
        %v1857 = vpack.c.b16 %v1797, %v1792
        %v1858 = vpack.c.b16 %v1798, %v1793
        %v1859 = vpack.c.b16 %v1799, %v1794
        %v1860 = vpack.c.b16 %v1800, %v1795
        %v1861 = vpack.c.b16 %v1806, %v1801
        %v1862 = vpack.c.b16 %v1807, %v1802
        %v1863 = vpack.c.b16 %v1808, %v1803
        %v1864 = vpack.c.b16 %v1809, %v1804
        %v1865 = vpack.c.b16 %v1810, %v1805
        %v1866 = vpack.c.b16 %v1816, %v1811
        %v1867 = vpack.c.b16 %v1817, %v1812
        %v1868 = vpack.c.b16 %v1818, %v1813
        %v1869 = vpack.c.b16 %v1819, %v1814
        %v1870 = vpack.c.b16 %v1820, %v1815
        %v1871 = vpack.c.b16 %v1821, %v1821
        %v1872 = vpack.c.b16 %v1822, %v1822
        %v1873 = vpack.c.b16 %v1823, %v1823
        %v1874 = vpack.c.b16 %v1824, %v1824
        %v1875 = vpack.c.b16 %v1825, %v1825
        %vm1916 = vcmask 318464
        %v1918 = vsel %vm1916, %v1830, 0
        %v1921 = vsel %vm1916, %v1835, 0
        %v1924 = vsel %vm1916, %v1840, 0
        %v1927 = vsel %vm1916, %v1845, 0
        %v1930 = vsel %vm1916, %v1850, 0
        %v1933 = vsel %vm1916, %v1855, 0
        %v1936 = vsel %vm1916, %v1860, 0
        %v1939 = vsel %vm1916, %v1865, 0
        %v1942 = vsel %vm1916, %v1870, 0
        %v1945 = vsel %vm1916, %v1875, 0
        %vm1947 = vcmask 1042432
        %v1948 = vsel %vm1947, 4294967295, 65535
        %v1949 = vsel %vm768, %v1948, 0
        %v1951 = vand.u32 %v1673, %v1949
        %1953 = vmatprep.subr.bf16.mxu0 0
        %1954 = vmatpush1.bf16.msra.mxu0 %v1646
        %1955 = vmatprep.subr.bf16.mxu0 0
        %1956 = vmatpush1.bf16.msra.mxu0 %v1645
        %1957 = vmatprep.subr.bf16.mxu0 0
        %1958 = vmatpush1.bf16.msra.mxu0 %v1644
        %1959 = vmatprep.subr.bf16.mxu0 0
        %1960 = vmatpush1.bf16.msra.mxu0 %v1643
        %1961 = vmatprep.subr.bf16.mxu0 0
        %1962 = vmatpush1.bf16.msra.mxu0 %v1642
        %1963 = vmatprep.subr.bf16.mxu0 0
        %1964 = vmatpush1.bf16.msra.mxu0 %v1641
        %1965 = vmatprep.subr.bf16.mxu0 0
        %1966 = vmatpush1.bf16.msra.mxu0 %v1640
        %1967 = vmatprep.subr.bf16.mxu0 0
        %1968 = vmatpush1.bf16.msra.mxu0 %v1639
        %1969 = vmatprep.subr.bf16.mxu0 0
        %1970 = vmatpush2.bf16.msra.mxu0 %v1654
        %1971 = vmatprep.subr.bf16.mxu0 0
        %1972 = vmatpush2.bf16.msra.mxu0 %v1653
        %1973 = vmatprep.subr.bf16.mxu0 0
        %1974 = vmatpush2.bf16.msra.mxu0 %v1652
        %1975 = vmatprep.subr.bf16.mxu0 0
        %1976 = vmatpush2.bf16.msra.mxu0 %v1651
        %1977 = vmatprep.subr.bf16.mxu0 0
        %1978 = vmatpush2.bf16.msra.mxu0 %v1650
        %1979 = vmatprep.subr.bf16.mxu0 0
        %1980 = vmatpush2.bf16.msra.mxu0 %v1649
        %1981 = vmatprep.subr.bf16.mxu0 0
        %1982 = vmatpush2.bf16.msra.mxu0 %v1648
        %1983 = vmatprep.subr.bf16.mxu0 0
        %1984 = vmatpush2.bf16.msra.mxu0 %v1647
        %1985 = vmatprep.mubr.bf16.mxu0 %v1827
        %1986 = vmatmul.mubr.bf16.gmra.mxu0 %v1826
        %v1987 = vpop.f32.mrf.mxu0
        %v1988 = vadd.f32 0.0, %v1987
        %v1989 = vpop.f32.mrf.mxu0
        %v1990 = vpop.f32.mrf.mxu0
        %v1991 = vadd.f32 0.0, %v1990
        %v1992 = vpop.f32.mrf.mxu0
        %1993 = vmatprep.mubr.bf16.mxu0 %v1832
        %1994 = vmatmul.mubr.bf16.gmra.mxu0 %v1831
        %v1995 = vpop.f32.mrf.mxu0
        %v1996 = vadd.f32 0.0, %v1995
        %v1997 = vpop.f32.mrf.mxu0
        %v1998 = vpop.f32.mrf.mxu0
        %v1999 = vadd.f32 0.0, %v1998
        %v2000 = vpop.f32.mrf.mxu0
        %2001 = vmatprep.mubr.bf16.mxu0 %v1837
        %2002 = vmatmul.mubr.bf16.gmra.mxu0 %v1836
        %v2003 = vpop.f32.mrf.mxu0
        %v2004 = vadd.f32 0.0, %v2003
        %v2005 = vpop.f32.mrf.mxu0
        %v2006 = vpop.f32.mrf.mxu0
        %v2007 = vadd.f32 0.0, %v2006
        %v2008 = vpop.f32.mrf.mxu0
        %2009 = vmatprep.mubr.bf16.mxu0 %v1842
        %2010 = vmatmul.mubr.bf16.gmra.mxu0 %v1841
        %v2011 = vpop.f32.mrf.mxu0
        %v2012 = vadd.f32 0.0, %v2011
        %v2013 = vpop.f32.mrf.mxu0
        %v2014 = vpop.f32.mrf.mxu0
        %v2015 = vadd.f32 0.0, %v2014
        %v2016 = vpop.f32.mrf.mxu0
        %2017 = vmatprep.mubr.bf16.mxu0 %v1847
        %2018 = vmatmul.mubr.bf16.gmra.mxu0 %v1846
        %v2019 = vpop.f32.mrf.mxu0
        %v2020 = vadd.f32 0.0, %v2019
        %v2021 = vpop.f32.mrf.mxu0
        %v2022 = vpop.f32.mrf.mxu0
        %v2023 = vadd.f32 0.0, %v2022
        %v2024 = vpop.f32.mrf.mxu0
        %2025 = vmatprep.mubr.bf16.mxu0 %v1852
        %2026 = vmatmul.mubr.bf16.gmra.mxu0 %v1851
        %v2027 = vpop.f32.mrf.mxu0
        %v2028 = vadd.f32 0.0, %v2027
        %v2029 = vpop.f32.mrf.mxu0
        %v2030 = vpop.f32.mrf.mxu0
        %v2031 = vadd.f32 0.0, %v2030
        %v2032 = vpop.f32.mrf.mxu0
        %2033 = vmatprep.mubr.bf16.mxu0 %v1857
        %2034 = vmatmul.mubr.bf16.gmra.mxu0 %v1856
        %v2035 = vpop.f32.mrf.mxu0
        %v2036 = vadd.f32 0.0, %v2035
        %v2037 = vpop.f32.mrf.mxu0
        %v2038 = vpop.f32.mrf.mxu0
        %v2039 = vadd.f32 0.0, %v2038
        %v2040 = vpop.f32.mrf.mxu0
        %2041 = vmatprep.mubr.bf16.mxu0 %v1862
        %2042 = vmatmul.mubr.bf16.gmra.mxu0 %v1861
        %v2043 = vpop.f32.mrf.mxu0
        %v2044 = vadd.f32 0.0, %v2043
        %v2045 = vpop.f32.mrf.mxu0
        %v2046 = vpop.f32.mrf.mxu0
        %v2047 = vadd.f32 0.0, %v2046
        %v2048 = vpop.f32.mrf.mxu0
        %2049 = vmatprep.mubr.bf16.mxu0 %v1867
        %2050 = vmatmul.mubr.bf16.gmra.mxu0 %v1866
        %v2051 = vpop.f32.mrf.mxu0
        %v2052 = vadd.f32 0.0, %v2051
        %v2053 = vpop.f32.mrf.mxu0
        %v2054 = vpop.f32.mrf.mxu0
        %v2055 = vadd.f32 0.0, %v2054
        %v2056 = vpop.f32.mrf.mxu0
        %2057 = vmatprep.mubr.bf16.mxu0 %v1872
        %2058 = vmatmul.mubr.bf16.gmra.mxu0 %v1871
        %v2059 = vpop.f32.mrf.mxu0
        %v2060 = vadd.f32 0.0, %v2059
        %v2061 = vpop.f32.mrf.mxu0
        %v2062 = vpop.f32.mrf.mxu0
        %v2063 = vpop.f32.mrf.mxu0
        %2064 = vdwg.mxu0
        %2065 = vmatprep.subr.bf16.mxu0 0
        %2066 = vmatpush1.bf16.msra.mxu0 %v1662
        %2067 = vmatprep.subr.bf16.mxu0 0
        %2068 = vmatpush1.bf16.msra.mxu0 %v1661
        %2069 = vmatprep.subr.bf16.mxu0 0
        %2070 = vmatpush1.bf16.msra.mxu0 %v1660
        %2071 = vmatprep.subr.bf16.mxu0 0
        %2072 = vmatpush1.bf16.msra.mxu0 %v1659
        %2073 = vmatprep.subr.bf16.mxu0 0
        %2074 = vmatpush1.bf16.msra.mxu0 %v1658
        %2075 = vmatprep.subr.bf16.mxu0 0
        %2076 = vmatpush1.bf16.msra.mxu0 %v1657
        %2077 = vmatprep.subr.bf16.mxu0 0
        %2078 = vmatpush1.bf16.msra.mxu0 %v1656
        %2079 = vmatprep.subr.bf16.mxu0 0
        %2080 = vmatpush1.bf16.msra.mxu0 %v1655
        %2081 = vmatprep.subr.bf16.mxu0 0
        %2082 = vmatpush2.bf16.msra.mxu0 %v1670
        %2083 = vmatprep.subr.bf16.mxu0 0
        %2084 = vmatpush2.bf16.msra.mxu0 %v1669
        %2085 = vmatprep.subr.bf16.mxu0 0
        %2086 = vmatpush2.bf16.msra.mxu0 %v1668
        %2087 = vmatprep.subr.bf16.mxu0 0
        %2088 = vmatpush2.bf16.msra.mxu0 %v1667
        %2089 = vmatprep.subr.bf16.mxu0 0
        %2090 = vmatpush2.bf16.msra.mxu0 %v1666
        %2091 = vmatprep.subr.bf16.mxu0 0
        %2092 = vmatpush2.bf16.msra.mxu0 %v1665
        %2093 = vmatprep.subr.bf16.mxu0 0
        %2094 = vmatpush2.bf16.msra.mxu0 %v1664
        %2095 = vmatprep.subr.bf16.mxu0 0
        %2096 = vmatpush2.bf16.msra.mxu0 %v1663
        %2097 = vmatprep.mubr.bf16.mxu0 %v1829
        %2098 = vmatmul.mubr.bf16.gmra.mxu0 %v1828
        %v2099 = vpop.f32.mrf.mxu0
        %v2100 = vadd.f32 %v1988, %v2099
        %v2101 = vpop.f32.mrf.mxu0
        %v2102 = vpop.f32.mrf.mxu0
        %v2103 = vadd.f32 %v1991, %v2102
        %v2104 = vpop.f32.mrf.mxu0
        %2105 = vmatprep.mubr.bf16.mxu0 %v1834
        %2106 = vmatmul.mubr.bf16.gmra.mxu0 %v1833
        %v2107 = vpop.f32.mrf.mxu0
        %v2108 = vadd.f32 %v1996, %v2107
        %v2109 = vpop.f32.mrf.mxu0
        %v2110 = vpop.f32.mrf.mxu0
        %v2111 = vadd.f32 %v1999, %v2110
        %v2112 = vpop.f32.mrf.mxu0
        %2113 = vmatprep.mubr.bf16.mxu0 %v1839
        %2114 = vmatmul.mubr.bf16.gmra.mxu0 %v1838
        %v2115 = vpop.f32.mrf.mxu0
        %v2116 = vadd.f32 %v2004, %v2115
        %v2117 = vpop.f32.mrf.mxu0
        %v2118 = vpop.f32.mrf.mxu0
        %v2119 = vadd.f32 %v2007, %v2118
        %v2120 = vpop.f32.mrf.mxu0
        %2121 = vmatprep.mubr.bf16.mxu0 %v1844
        %2122 = vmatmul.mubr.bf16.gmra.mxu0 %v1843
        %v2123 = vpop.f32.mrf.mxu0
        %v2124 = vadd.f32 %v2012, %v2123
        %v2125 = vpop.f32.mrf.mxu0
        %v2126 = vpop.f32.mrf.mxu0
        %v2127 = vadd.f32 %v2015, %v2126
        %v2128 = vpop.f32.mrf.mxu0
        %2129 = vmatprep.mubr.bf16.mxu0 %v1849
        %2130 = vmatmul.mubr.bf16.gmra.mxu0 %v1848
        %v2131 = vpop.f32.mrf.mxu0
        %v2132 = vadd.f32 %v2020, %v2131
        %v2133 = vpop.f32.mrf.mxu0
        %v2134 = vpop.f32.mrf.mxu0
        %v2135 = vadd.f32 %v2023, %v2134
        %v2136 = vpop.f32.mrf.mxu0
        %2137 = vmatprep.mubr.bf16.mxu0 %v1854
        %2138 = vmatmul.mubr.bf16.gmra.mxu0 %v1853
        %v2139 = vpop.f32.mrf.mxu0
        %v2140 = vadd.f32 %v2028, %v2139
        %v2141 = vpop.f32.mrf.mxu0
        %v2142 = vpop.f32.mrf.mxu0
        %v2143 = vadd.f32 %v2031, %v2142
        %v2144 = vpop.f32.mrf.mxu0
        %2145 = vmatprep.mubr.bf16.mxu0 %v1859
        %2146 = vmatmul.mubr.bf16.gmra.mxu0 %v1858
        %v2147 = vpop.f32.mrf.mxu0
        %v2148 = vadd.f32 %v2036, %v2147
        %v2149 = vpop.f32.mrf.mxu0
        %v2150 = vpop.f32.mrf.mxu0
        %v2151 = vadd.f32 %v2039, %v2150
        %v2152 = vpop.f32.mrf.mxu0
        %2153 = vmatprep.mubr.bf16.mxu0 %v1864
        %2154 = vmatmul.mubr.bf16.gmra.mxu0 %v1863
        %v2155 = vpop.f32.mrf.mxu0
        %v2156 = vadd.f32 %v2044, %v2155
        %v2157 = vpop.f32.mrf.mxu0
        %v2158 = vpop.f32.mrf.mxu0
        %v2159 = vadd.f32 %v2047, %v2158
        %v2160 = vpop.f32.mrf.mxu0
        %2161 = vmatprep.mubr.bf16.mxu0 %v1869
        %2162 = vmatmul.mubr.bf16.gmra.mxu0 %v1868
        %v2163 = vpop.f32.mrf.mxu0
        %v2164 = vadd.f32 %v2052, %v2163
        %v2165 = vpop.f32.mrf.mxu0
        %v2166 = vpop.f32.mrf.mxu0
        %v2167 = vadd.f32 %v2055, %v2166
        %v2168 = vpop.f32.mrf.mxu0
        %2169 = vmatprep.mubr.bf16.mxu0 %v1874
        %2170 = vmatmul.mubr.bf16.gmra.mxu0 %v1873
        %v2171 = vpop.f32.mrf.mxu0
        %v2172 = vadd.f32 %v2060, %v2171
        %v2173 = vpop.f32.mrf.mxu0
        %v2174 = vpop.f32.mrf.mxu0
        %v2175 = vpop.f32.mrf.mxu0
        %2176 = vdwg.mxu0
        %2177 = vmatprep.subr.bf16.mxu0 0
        %2178 = vmatpush1.bf16.msra.mxu0 0
        %2179 = vmatprep.subr.bf16.mxu0 0
        %2180 = vmatpush1.bf16.msra.mxu0 0
        %2181 = vmatprep.subr.bf16.mxu0 0
        %2182 = vmatpush1.bf16.msra.mxu0 0
        %2183 = vmatprep.subr.bf16.mxu0 0
        %2184 = vmatpush1.bf16.msra.mxu0 0
        %2185 = vmatprep.subr.bf16.mxu0 0
        %2186 = vmatpush1.bf16.msra.mxu0 0
        %2187 = vmatprep.subr.bf16.mxu0 0
        %2188 = vmatpush1.bf16.msra.mxu0 %v1951
        %2189 = vmatprep.subr.bf16.mxu0 0
        %2190 = vmatpush1.bf16.msra.mxu0 %v1672
        %2191 = vmatprep.subr.bf16.mxu0 0
        %2192 = vmatpush1.bf16.msra.mxu0 %v1671
        %2193 = vmatprep.subr.bf16.mxu0 0
        %2194 = vmatpush2.bf16.msra.mxu0 0
        %2195 = vmatprep.subr.bf16.mxu0 0
        %2196 = vmatpush2.bf16.msra.mxu0 0
        %2197 = vmatprep.subr.bf16.mxu0 0
        %2198 = vmatpush2.bf16.msra.mxu0 0
        %2199 = vmatprep.subr.bf16.mxu0 0
        %2200 = vmatpush2.bf16.msra.mxu0 0
        %2201 = vmatprep.subr.bf16.mxu0 0
        %2202 = vmatpush2.bf16.msra.mxu0 0
        %2203 = vmatprep.subr.bf16.mxu0 0
        %2204 = vmatpush2.bf16.msra.mxu0 0
        %2205 = vmatprep.subr.bf16.mxu0 0
        %2206 = vmatpush2.bf16.msra.mxu0 0
        %2207 = vmatprep.subr.bf16.mxu0 0
        %2208 = vmatpush2.bf16.msra.mxu0 0
        %2209 = vmatprep.mubr.bf16.mxu0 0
        %2210 = vmatmul.mubr.bf16.gmra.mxu0 %v1918
        %v2211 = vpop.f32.mrf.mxu0
        %v2212 = vadd.f32 %v2100, %v2211
        %v2213 = vpop.f32.mrf.mxu0
        %v2214 = vpop.f32.mrf.mxu0
        %v2215 = vadd.f32 %v2103, %v2214
        %v2216 = vpop.f32.mrf.mxu0
        %2217 = vmatprep.mubr.bf16.mxu0 0
        %2218 = vmatmul.mubr.bf16.gmra.mxu0 %v1921
        %v2219 = vpop.f32.mrf.mxu0
        %v2220 = vadd.f32 %v2108, %v2219
        %v2221 = vpop.f32.mrf.mxu0
        %v2222 = vpop.f32.mrf.mxu0
        %v2223 = vadd.f32 %v2111, %v2222
        %v2224 = vpop.f32.mrf.mxu0
        %2225 = vmatprep.mubr.bf16.mxu0 0
        %2226 = vmatmul.mubr.bf16.gmra.mxu0 %v1924
        %v2227 = vpop.f32.mrf.mxu0
        %v2228 = vadd.f32 %v2116, %v2227
        %v2229 = vpop.f32.mrf.mxu0
        %v2230 = vpop.f32.mrf.mxu0
        %v2231 = vadd.f32 %v2119, %v2230
        %v2232 = vpop.f32.mrf.mxu0
        %2233 = vmatprep.mubr.bf16.mxu0 0
        %2234 = vmatmul.mubr.bf16.gmra.mxu0 %v1927
        %v2235 = vpop.f32.mrf.mxu0
        %v2236 = vadd.f32 %v2124, %v2235
        %v2237 = vpop.f32.mrf.mxu0
        %v2238 = vpop.f32.mrf.mxu0
        %v2239 = vadd.f32 %v2127, %v2238
        %v2240 = vpop.f32.mrf.mxu0
        %2241 = vmatprep.mubr.bf16.mxu0 0
        %2242 = vmatmul.mubr.bf16.gmra.mxu0 %v1930
        %v2243 = vpop.f32.mrf.mxu0
        %v2244 = vadd.f32 %v2132, %v2243
        %v2245 = vpop.f32.mrf.mxu0
        %v2246 = vpop.f32.mrf.mxu0
        %v2247 = vadd.f32 %v2135, %v2246
        %v2248 = vpop.f32.mrf.mxu0
        %2249 = vmatprep.mubr.bf16.mxu0 0
        %2250 = vmatmul.mubr.bf16.gmra.mxu0 %v1933
        %v2251 = vpop.f32.mrf.mxu0
        %v2252 = vadd.f32 %v2140, %v2251
        %v2253 = vpop.f32.mrf.mxu0
        %v2254 = vpop.f32.mrf.mxu0
        %v2255 = vadd.f32 %v2143, %v2254
        %v2256 = vpop.f32.mrf.mxu0
        %2257 = vmatprep.mubr.bf16.mxu0 0
        %2258 = vmatmul.mubr.bf16.gmra.mxu0 %v1936
        %v2259 = vpop.f32.mrf.mxu0
        %v2260 = vadd.f32 %v2148, %v2259
        %v2261 = vpop.f32.mrf.mxu0
        %v2262 = vpop.f32.mrf.mxu0
        %v2263 = vadd.f32 %v2151, %v2262
        %v2264 = vpop.f32.mrf.mxu0
        %2265 = vmatprep.mubr.bf16.mxu0 0
        %2266 = vmatmul.mubr.bf16.gmra.mxu0 %v1939
        %v2267 = vpop.f32.mrf.mxu0
        %v2268 = vadd.f32 %v2156, %v2267
        %v2269 = vpop.f32.mrf.mxu0
        %v2270 = vpop.f32.mrf.mxu0
        %v2271 = vadd.f32 %v2159, %v2270
        %v2272 = vpop.f32.mrf.mxu0
        %2273 = vmatprep.mubr.bf16.mxu0 0
        %2274 = vmatmul.mubr.bf16.gmra.mxu0 %v1942
        %v2275 = vpop.f32.mrf.mxu0
        %v2276 = vadd.f32 %v2164, %v2275
        %v2277 = vpop.f32.mrf.mxu0
        %v2278 = vpop.f32.mrf.mxu0
        %v2279 = vadd.f32 %v2167, %v2278
        %v2280 = vpop.f32.mrf.mxu0
        %2281 = vmatprep.mubr.bf16.mxu0 0
        %2282 = vmatmul.mubr.bf16.gmra.mxu0 %v1945
        %v2283 = vpop.f32.mrf.mxu0
        %v2284 = vadd.f32 %v2172, %v2283
        %v2285 = vpop.f32.mrf.mxu0
        %v2286 = vpop.f32.mrf.mxu0
        %v2287 = vpop.f32.mrf.mxu0
        %2288 = vdwg.mxu0
        %v2289 = vpack.c.bf16 %v2215, %v2212
        %v2290 = vpack.c.bf16 %v2223, %v2220
        %v2291 = vpack.c.bf16 %v2231, %v2228
        %v2292 = vpack.c.bf16 %v2239, %v2236
        %v2293 = vpack.c.bf16 %v2247, %v2244
        %v2294 = vpack.c.bf16 %v2255, %v2252
        %v2295 = vpack.c.bf16 %v2263, %v2260
        %v2296 = vpack.c.bf16 %v2271, %v2268
        %v2297 = vpack.c.bf16 %v2279, %v2276
        %v2298 = vpack.c.bf16 %v2284, %v2284
        %v2299 = vld [vmem:[%s3] sm:$0xf]
        %v2300 = vld [vmem:[%s3 + $0x4] sm:$0xf]
        %v2301 = vld [vmem:[%s3 + $0x8] sm:$0x3]
        %v2302 = vld [vmem:[%s3 + $0x8] sm:$0xc]
        %v2303 = vld [vmem:[%s3 + $0xc] sm:$0xf]
        %v2304 = vld [vmem:[%s3 + $0x10] sm:$0xf]
        %vm2305 = vsmask.f32 7424
        %v2307 = vshrl.u32 %v2289, 16
        %v2309 = vshll.u32 %v2289, 16
        %v2311 = vrot.slane %v2309, 1
        %v2312 = vor.u32 %v2307, %v2311
        %v2314 = vshll.u32 %v2290, 16
        %v2316 = vrot.slane %v2314, 1
        %v2317 = vsel %vm2305, %v2312, %v2316
        %v2318 = vshrl.u32 %v2290, 16
        %v2320 = vor.u32 %v2318, %v2316
        %v2322 = vshll.u32 %v2291, 16
        %v2324 = vrot.slane %v2322, 1
        %v2325 = vsel %vm2305, %v2320, %v2324
        %v2326 = vshrl.u32 %v2291, 16
        %v2328 = vor.u32 %v2326, %v2324
        %v2330 = vshll.u32 %v2292, 16
        %v2332 = vrot.slane %v2330, 1
        %v2333 = vsel %vm2305, %v2328, %v2332
        %v2334 = vshrl.u32 %v2292, 16
        %v2336 = vor.u32 %v2334, %v2332
        %v2338 = vshll.u32 %v2293, 16
        %v2340 = vrot.slane %v2338, 1
        %v2341 = vsel %vm2305, %v2336, %v2340
        %v2342 = vshrl.u32 %v2293, 16
        %v2344 = vor.u32 %v2342, %v2340
        %v2346 = vshll.u32 %v2294, 16
        %v2348 = vrot.slane %v2346, 1
        %v2349 = vsel %vm2305, %v2344, %v2348
        %v2350 = vshrl.u32 %v2294, 16
        %v2352 = vor.u32 %v2350, %v2348
        %v2354 = vshll.u32 %v2295, 16
        %v2356 = vrot.slane %v2354, 1
        %v2357 = vsel %vm2305, %v2352, %v2356
        %v2361 = vunpack.c.l.b16 %v2302
        %v2362 = vunpack.c.l.b16 %v2303
        %v2363 = vunpack.c.l.b16 %v2304
        %v2364 = vpack.c.b16 %v2362, %v2361
        %v2365 = vpack.c.b16 %v2363, %v2363
        %vm2366 = vcmask 1045504
        %v2367 = vrot.slane %v2364, 2
        %v2368 = vrot.slane %v2365, 2
        %v2369 = vsel %vm2366, %v2367, %v2368
        %vm2371 = vcmask 162816
        %v2373 = vsel %vm2371, %v2317, 0
        %v2376 = vsel %vm2371, %v2325, 0
        %v2379 = vsel %vm2371, %v2333, 0
        %v2382 = vsel %vm2371, %v2341, 0
        %v2385 = vsel %vm2371, %v2349, 0
        %v2388 = vsel %vm2371, %v2357, 0
        %vm2390 = vcmask 1041408
        %v2392 = vsel %vm2390, %v2368, 0
        %2394 = vmatprep.subr.bf16.mxu0 0
        %2395 = vmatpush1.bf16.msra.mxu0 0
        %2396 = vmatprep.subr.bf16.mxu0 0
        %2397 = vmatpush1.bf16.msra.mxu0 0
        %2398 = vmatprep.subr.bf16.mxu0 0
        %2399 = vmatpush1.bf16.msra.mxu0 0
        %2400 = vmatprep.subr.bf16.mxu0 0
        %2401 = vmatpush1.bf16.msra.mxu0 0
        %2402 = vmatprep.subr.bf16.mxu0 0
        %2403 = vmatpush1.bf16.msra.mxu0 0
        %2404 = vmatprep.subr.bf16.mxu0 0
        %2405 = vmatpush1.bf16.msra.mxu0 0
        %2406 = vmatprep.subr.bf16.mxu0 0
        %2407 = vmatpush1.bf16.msra.mxu0 %v2392
        %2408 = vmatprep.subr.bf16.mxu0 0
        %2409 = vmatpush1.bf16.msra.mxu0 %v2369
        %2410 = vmatprep.subr.bf16.mxu0 0
        %2411 = vmatpush2.bf16.msra.mxu0 0
        %2412 = vmatprep.subr.bf16.mxu0 0
        %2413 = vmatpush2.bf16.msra.mxu0 0
        %2414 = vmatprep.subr.bf16.mxu0 0
        %2415 = vmatpush2.bf16.msra.mxu0 0
        %2416 = vmatprep.subr.bf16.mxu0 0
        %2417 = vmatpush2.bf16.msra.mxu0 0
        %2418 = vmatprep.subr.bf16.mxu0 0
        %2419 = vmatpush2.bf16.msra.mxu0 0
        %2420 = vmatprep.subr.bf16.mxu0 0
        %2421 = vmatpush2.bf16.msra.mxu0 0
        %2422 = vmatprep.subr.bf16.mxu0 0
        %2423 = vmatpush2.bf16.msra.mxu0 0
        %2424 = vmatprep.subr.bf16.mxu0 0
        %2425 = vmatpush2.bf16.msra.mxu0 0
        %2426 = vmatprep.mubr.bf16.mxu0 0
        %2427 = vmatmul.mubr.bf16.gmra.mxu0 %v2373
        %v2428 = vpop.f32.mrf.mxu0
        %v2429 = vadd.f32 0.0, %v2428
        %v2430 = vpop.f32.mrf.mxu0
        %v2431 = vpop.f32.mrf.mxu0
        %v2432 = vadd.f32 0.0, %v2431
        %v2433 = vpop.f32.mrf.mxu0
        %2434 = vmatprep.mubr.bf16.mxu0 0
        %2435 = vmatmul.mubr.bf16.gmra.mxu0 %v2376
        %v2436 = vpop.f32.mrf.mxu0
        %v2437 = vadd.f32 0.0, %v2436
        %v2438 = vpop.f32.mrf.mxu0
        %v2439 = vpop.f32.mrf.mxu0
        %v2440 = vadd.f32 0.0, %v2439
        %v2441 = vpop.f32.mrf.mxu0
        %2442 = vmatprep.mubr.bf16.mxu0 0
        %2443 = vmatmul.mubr.bf16.gmra.mxu0 %v2379
        %v2444 = vpop.f32.mrf.mxu0
        %v2445 = vadd.f32 0.0, %v2444
        %v2446 = vpop.f32.mrf.mxu0
        %v2447 = vpop.f32.mrf.mxu0
        %v2448 = vadd.f32 0.0, %v2447
        %v2449 = vpop.f32.mrf.mxu0
        %2450 = vmatprep.mubr.bf16.mxu0 0
        %2451 = vmatmul.mubr.bf16.gmra.mxu0 %v2382
        %v2452 = vpop.f32.mrf.mxu0
        %v2453 = vadd.f32 0.0, %v2452
        %v2454 = vpop.f32.mrf.mxu0
        %v2455 = vpop.f32.mrf.mxu0
        %v2456 = vadd.f32 0.0, %v2455
        %v2457 = vpop.f32.mrf.mxu0
        %2458 = vmatprep.mubr.bf16.mxu0 0
        %2459 = vmatmul.mubr.bf16.gmra.mxu0 %v2385
        %v2460 = vpop.f32.mrf.mxu0
        %v2461 = vadd.f32 0.0, %v2460
        %v2462 = vpop.f32.mrf.mxu0
        %v2463 = vpop.f32.mrf.mxu0
        %v2464 = vadd.f32 0.0, %v2463
        %v2465 = vpop.f32.mrf.mxu0
        %2466 = vmatprep.mubr.bf16.mxu0 0
        %2467 = vmatmul.mubr.bf16.gmra.mxu0 %v2388
        %v2468 = vpop.f32.mrf.mxu0
        %v2469 = vadd.f32 0.0, %v2468
        %v2470 = vpop.f32.mrf.mxu0
        %v2471 = vpop.f32.mrf.mxu0
        %v2472 = vadd.f32 0.0, %v2471
        %v2473 = vpop.f32.mrf.mxu0
        %2474 = vdwg.mxu0
        %v2478 = vunpack.c.l.b16 %v2299
        %v2479 = vunpack.c.l.b16 %v2300
        %v2480 = vunpack.c.l.b16 %v2301
        %v2481 = vpack.c.b16 %v2479, %v2478
        %v2482 = vpack.c.b16 %v2480, %v2480
        %v2484 = vsel %vm2371, %v2289, 0
        %v2486 = vsel %vm2371, %v2290, 0
        %v2488 = vsel %vm2371, %v2291, 0
        %v2490 = vsel %vm2371, %v2292, 0
        %v2492 = vsel %vm2371, %v2293, 0
        %v2494 = vsel %vm2371, %v2294, 0
        %v2497 = vsel %vm2390, %v2482, 0
        %2499 = vmatprep.subr.bf16.mxu0 0
        %2500 = vmatpush1.bf16.msra.mxu0 0
        %2501 = vmatprep.subr.bf16.mxu0 0
        %2502 = vmatpush1.bf16.msra.mxu0 0
        %2503 = vmatprep.subr.bf16.mxu0 0
        %2504 = vmatpush1.bf16.msra.mxu0 0
        %2505 = vmatprep.subr.bf16.mxu0 0
        %2506 = vmatpush1.bf16.msra.mxu0 0
        %2507 = vmatprep.subr.bf16.mxu0 0
        %2508 = vmatpush1.bf16.msra.mxu0 0
        %2509 = vmatprep.subr.bf16.mxu0 0
        %2510 = vmatpush1.bf16.msra.mxu0 0
        %2511 = vmatprep.subr.bf16.mxu0 0
        %2512 = vmatpush1.bf16.msra.mxu0 %v2497
        %2513 = vmatprep.subr.bf16.mxu0 0
        %2514 = vmatpush1.bf16.msra.mxu0 %v2481
        %2515 = vmatprep.subr.bf16.mxu0 0
        %2516 = vmatpush2.bf16.msra.mxu0 0
        %2517 = vmatprep.subr.bf16.mxu0 0
        %2518 = vmatpush2.bf16.msra.mxu0 0
        %2519 = vmatprep.subr.bf16.mxu0 0
        %2520 = vmatpush2.bf16.msra.mxu0 0
        %2521 = vmatprep.subr.bf16.mxu0 0
        %2522 = vmatpush2.bf16.msra.mxu0 0
        %2523 = vmatprep.subr.bf16.mxu0 0
        %2524 = vmatpush2.bf16.msra.mxu0 0
        %2525 = vmatprep.subr.bf16.mxu0 0
        %2526 = vmatpush2.bf16.msra.mxu0 0
        %2527 = vmatprep.subr.bf16.mxu0 0
        %2528 = vmatpush2.bf16.msra.mxu0 0
        %2529 = vmatprep.subr.bf16.mxu0 0
        %2530 = vmatpush2.bf16.msra.mxu0 0
        %2531 = vmatprep.mubr.bf16.mxu0 0
        %2532 = vmatmul.mubr.bf16.gmra.mxu0 %v2484
        %v2533 = vpop.f32.mrf.mxu0
        %v2534 = vadd.f32 %v2429, %v2533
        %v2535 = vpop.f32.mrf.mxu0
        %v2536 = vpop.f32.mrf.mxu0
        %v2537 = vadd.f32 %v2432, %v2536
        %v2538 = vpop.f32.mrf.mxu0
        %2539 = vmatprep.mubr.bf16.mxu0 0
        %2540 = vmatmul.mubr.bf16.gmra.mxu0 %v2486
        %v2541 = vpop.f32.mrf.mxu0
        %v2542 = vadd.f32 %v2437, %v2541
        %v2543 = vpop.f32.mrf.mxu0
        %v2544 = vpop.f32.mrf.mxu0
        %v2545 = vadd.f32 %v2440, %v2544
        %v2546 = vpop.f32.mrf.mxu0
        %2547 = vmatprep.mubr.bf16.mxu0 0
        %2548 = vmatmul.mubr.bf16.gmra.mxu0 %v2488
        %v2549 = vpop.f32.mrf.mxu0
        %v2550 = vadd.f32 %v2445, %v2549
        %v2551 = vpop.f32.mrf.mxu0
        %v2552 = vpop.f32.mrf.mxu0
        %v2553 = vadd.f32 %v2448, %v2552
        %v2554 = vpop.f32.mrf.mxu0
        %2555 = vmatprep.mubr.bf16.mxu0 0
        %2556 = vmatmul.mubr.bf16.gmra.mxu0 %v2490
        %v2557 = vpop.f32.mrf.mxu0
        %v2558 = vadd.f32 %v2453, %v2557
        %v2559 = vpop.f32.mrf.mxu0
        %v2560 = vpop.f32.mrf.mxu0
        %v2561 = vadd.f32 %v2456, %v2560
        %v2562 = vpop.f32.mrf.mxu0
        %2563 = vmatprep.mubr.bf16.mxu0 0
        %2564 = vmatmul.mubr.bf16.gmra.mxu0 %v2492
        %v2565 = vpop.f32.mrf.mxu0
        %v2566 = vadd.f32 %v2461, %v2565
        %v2567 = vpop.f32.mrf.mxu0
        %v2568 = vpop.f32.mrf.mxu0
        %v2569 = vadd.f32 %v2464, %v2568
        %v2570 = vpop.f32.mrf.mxu0
        %2571 = vmatprep.mubr.bf16.mxu0 0
        %2572 = vmatmul.mubr.bf16.gmra.mxu0 %v2494
        %v2573 = vpop.f32.mrf.mxu0
        %v2574 = vadd.f32 %v2469, %v2573
        %v2575 = vpop.f32.mrf.mxu0
        %v2576 = vpop.f32.mrf.mxu0
        %v2577 = vadd.f32 %v2472, %v2576
        %v2578 = vpop.f32.mrf.mxu0
        %2579 = vdwg.mxu0
        %v2580 = vld [vmem:[%s3 + $0x14] sm:$0xf]
        %v2581 = vld [vmem:[%s3 + $0x18] sm:$0xf]
        %v2582 = vld [vmem:[%s3 + $0x1c] sm:$0x3]
        %vm2590 = vcmask 1046528
        %v2591 = vrot.slane %v2289, 1
        %v2592 = vrot.slane %v2290, 1
        %v2593 = vsel %vm2590, %v2591, %v2592
        %v2594 = vrot.slane %v2291, 1
        %v2595 = vsel %vm2590, %v2592, %v2594
        %v2596 = vrot.slane %v2292, 1
        %v2597 = vsel %vm2590, %v2594, %v2596
        %v2598 = vrot.slane %v2293, 1
        %v2599 = vsel %vm2590, %v2596, %v2598
        %v2600 = vrot.slane %v2294, 1
        %v2601 = vsel %vm2590, %v2598, %v2600
        %v2602 = vrot.slane %v2295, 1
        %v2603 = vsel %vm2590, %v2600, %v2602
        %v2607 = vunpack.c.l.b16 %v2580
        %v2608 = vunpack.c.l.b16 %v2581
        %v2609 = vunpack.c.l.b16 %v2582
        %v2610 = vpack.c.b16 %v2608, %v2607
        %v2611 = vpack.c.b16 %v2609, %v2609
        %v2614 = vsel %vm2371, %v2593, 0
        %v2617 = vsel %vm2371, %v2595, 0
        %v2620 = vsel %vm2371, %v2597, 0
        %v2623 = vsel %vm2371, %v2599, 0
        %v2626 = vsel %vm2371, %v2601, 0
        %v2629 = vsel %vm2371, %v2603, 0
        %v2632 = vsel %vm2390, %v2611, 0
        %2634 = vmatprep.subr.bf16.mxu0 0
        %2635 = vmatpush1.bf16.msra.mxu0 0
        %2636 = vmatprep.subr.bf16.mxu0 0
        %2637 = vmatpush1.bf16.msra.mxu0 0
        %2638 = vmatprep.subr.bf16.mxu0 0
        %2639 = vmatpush1.bf16.msra.mxu0 0
        %2640 = vmatprep.subr.bf16.mxu0 0
        %2641 = vmatpush1.bf16.msra.mxu0 0
        %2642 = vmatprep.subr.bf16.mxu0 0
        %2643 = vmatpush1.bf16.msra.mxu0 0
        %2644 = vmatprep.subr.bf16.mxu0 0
        %2645 = vmatpush1.bf16.msra.mxu0 0
        %2646 = vmatprep.subr.bf16.mxu0 0
        %2647 = vmatpush1.bf16.msra.mxu0 %v2632
        %2648 = vmatprep.subr.bf16.mxu0 0
        %2649 = vmatpush1.bf16.msra.mxu0 %v2610
        %2650 = vmatprep.subr.bf16.mxu0 0
        %2651 = vmatpush2.bf16.msra.mxu0 0
        %2652 = vmatprep.subr.bf16.mxu0 0
        %2653 = vmatpush2.bf16.msra.mxu0 0
        %2654 = vmatprep.subr.bf16.mxu0 0
        %2655 = vmatpush2.bf16.msra.mxu0 0
        %2656 = vmatprep.subr.bf16.mxu0 0
        %2657 = vmatpush2.bf16.msra.mxu0 0
        %2658 = vmatprep.subr.bf16.mxu0 0
        %2659 = vmatpush2.bf16.msra.mxu0 0
        %2660 = vmatprep.subr.bf16.mxu0 0
        %2661 = vmatpush2.bf16.msra.mxu0 0
        %2662 = vmatprep.subr.bf16.mxu0 0
        %2663 = vmatpush2.bf16.msra.mxu0 0
        %2664 = vmatprep.subr.bf16.mxu0 0
        %2665 = vmatpush2.bf16.msra.mxu0 0
        %2666 = vmatprep.mubr.bf16.mxu0 0
        %2667 = vmatmul.mubr.bf16.gmra.mxu0 %v2614
        %v2668 = vpop.f32.mrf.mxu0
        %v2669 = vadd.f32 0.0, %v2668
        %v2670 = vpop.f32.mrf.mxu0
        %v2671 = vpop.f32.mrf.mxu0
        %v2672 = vadd.f32 0.0, %v2671
        %v2673 = vpop.f32.mrf.mxu0
        %2674 = vmatprep.mubr.bf16.mxu0 0
        %2675 = vmatmul.mubr.bf16.gmra.mxu0 %v2617
        %v2676 = vpop.f32.mrf.mxu0
        %v2677 = vadd.f32 0.0, %v2676
        %v2678 = vpop.f32.mrf.mxu0
        %v2679 = vpop.f32.mrf.mxu0
        %v2680 = vadd.f32 0.0, %v2679
        %v2681 = vpop.f32.mrf.mxu0
        %2682 = vmatprep.mubr.bf16.mxu0 0
        %2683 = vmatmul.mubr.bf16.gmra.mxu0 %v2620
        %v2684 = vpop.f32.mrf.mxu0
        %v2685 = vadd.f32 0.0, %v2684
        %v2686 = vpop.f32.mrf.mxu0
        %v2687 = vpop.f32.mrf.mxu0
        %v2688 = vadd.f32 0.0, %v2687
        %v2689 = vpop.f32.mrf.mxu0
        %2690 = vmatprep.mubr.bf16.mxu0 0
        %2691 = vmatmul.mubr.bf16.gmra.mxu0 %v2623
        %v2692 = vpop.f32.mrf.mxu0
        %v2693 = vadd.f32 0.0, %v2692
        %v2694 = vpop.f32.mrf.mxu0
        %v2695 = vpop.f32.mrf.mxu0
        %v2696 = vadd.f32 0.0, %v2695
        %v2697 = vpop.f32.mrf.mxu0
        %2698 = vmatprep.mubr.bf16.mxu0 0
        %2699 = vmatmul.mubr.bf16.gmra.mxu0 %v2626
        %v2700 = vpop.f32.mrf.mxu0
        %v2701 = vadd.f32 0.0, %v2700
        %v2702 = vpop.f32.mrf.mxu0
        %v2703 = vpop.f32.mrf.mxu0
        %v2704 = vadd.f32 0.0, %v2703
        %v2705 = vpop.f32.mrf.mxu0
        %2706 = vmatprep.mubr.bf16.mxu0 0
        %2707 = vmatmul.mubr.bf16.gmra.mxu0 %v2629
        %v2708 = vpop.f32.mrf.mxu0
        %v2709 = vadd.f32 0.0, %v2708
        %v2710 = vpop.f32.mrf.mxu0
        %v2711 = vpop.f32.mrf.mxu0
        %v2712 = vadd.f32 0.0, %v2711
        %v2713 = vpop.f32.mrf.mxu0
        %2714 = vdwg.mxu0
        %v2715 = vadd.f32 %v2534, %v2669
        %v2716 = vadd.f32 %v2537, %v2672
        %v2717 = vadd.f32 %v2542, %v2677
        %v2718 = vadd.f32 %v2545, %v2680
        %v2719 = vadd.f32 %v2550, %v2685
        %v2720 = vadd.f32 %v2553, %v2688
        %v2721 = vadd.f32 %v2558, %v2693
        %v2722 = vadd.f32 %v2561, %v2696
        %v2723 = vadd.f32 %v2566, %v2701
        %v2724 = vadd.f32 %v2569, %v2704
        %v2725 = vadd.f32 %v2574, %v2709
        %v2726 = vadd.f32 %v2577, %v2712
        %v2727 = vld [vmem:[%s3 + $0x1c] sm:$0xc]
        %v2728 = vld [vmem:[%s3 + $0x20] sm:$0xf]
        %v2729 = vld [vmem:[%s3 + $0x24] sm:$0xf]
        %vm2730 = vsmask.f32 6400
        %v2731 = vrot.slane %v2307, 1
        %v2732 = vrot.slane %v2309, 2
        %v2733 = vor.u32 %v2731, %v2732
        %v2734 = vrot.slane %v2318, 1
        %v2735 = vrot.slane %v2314, 2
        %v2736 = vor.u32 %v2734, %v2735
        %v2737 = vsel %vm2730, %v2733, %v2736
        %v2738 = vrot.slane %v2326, 1
        %v2739 = vrot.slane %v2322, 2
        %v2740 = vor.u32 %v2738, %v2739
        %v2741 = vsel %vm2730, %v2736, %v2740
        %v2742 = vrot.slane %v2334, 1
        %v2743 = vrot.slane %v2330, 2
        %v2744 = vor.u32 %v2742, %v2743
        %v2745 = vsel %vm2730, %v2740, %v2744
        %v2746 = vrot.slane %v2342, 1
        %v2747 = vrot.slane %v2338, 2
        %v2748 = vor.u32 %v2746, %v2747
        %v2749 = vsel %vm2730, %v2744, %v2748
        %v2750 = vrot.slane %v2350, 1
        %v2751 = vrot.slane %v2346, 2
        %v2752 = vor.u32 %v2750, %v2751
        %v2753 = vsel %vm2730, %v2748, %v2752
        %v2754 = vshrl.u32 %v2295, 16
        %v2756 = vrot.slane %v2754, 1
        %v2757 = vrot.slane %v2354, 2
        %v2758 = vor.u32 %v2756, %v2757
        %v2759 = vsel %vm2730, %v2752, %v2758
        %v2763 = vunpack.c.l.b16 %v2727
        %v2764 = vunpack.c.l.b16 %v2728
        %v2765 = vunpack.c.l.b16 %v2729
        %v2766 = vpack.c.b16 %v2764, %v2763
        %v2767 = vpack.c.b16 %v2765, %v2765
        %v2768 = vrot.slane %v2766, 2
        %v2769 = vrot.slane %v2767, 2
        %v2770 = vsel %vm2366, %v2768, %v2769
        %v2773 = vsel %vm2371, %v2737, 0
        %v2776 = vsel %vm2371, %v2741, 0
        %v2779 = vsel %vm2371, %v2745, 0
        %v2782 = vsel %vm2371, %v2749, 0
        %v2785 = vsel %vm2371, %v2753, 0
        %v2788 = vsel %vm2371, %v2759, 0
        %v2791 = vsel %vm2390, %v2769, 0
        %2793 = vmatprep.subr.bf16.mxu0 0
        %2794 = vmatpush1.bf16.msra.mxu0 0
        %2795 = vmatprep.subr.bf16.mxu0 0
        %2796 = vmatpush1.bf16.msra.mxu0 0
        %2797 = vmatprep.subr.bf16.mxu0 0
        %2798 = vmatpush1.bf16.msra.mxu0 0
        %2799 = vmatprep.subr.bf16.mxu0 0
        %2800 = vmatpush1.bf16.msra.mxu0 0
        %2801 = vmatprep.subr.bf16.mxu0 0
        %2802 = vmatpush1.bf16.msra.mxu0 0
        %2803 = vmatprep.subr.bf16.mxu0 0
        %2804 = vmatpush1.bf16.msra.mxu0 0
        %2805 = vmatprep.subr.bf16.mxu0 0
        %2806 = vmatpush1.bf16.msra.mxu0 %v2791
        %2807 = vmatprep.subr.bf16.mxu0 0
        %2808 = vmatpush1.bf16.msra.mxu0 %v2770
        %2809 = vmatprep.subr.bf16.mxu0 0
        %2810 = vmatpush2.bf16.msra.mxu0 0
        %2811 = vmatprep.subr.bf16.mxu0 0
        %2812 = vmatpush2.bf16.msra.mxu0 0
        %2813 = vmatprep.subr.bf16.mxu0 0
        %2814 = vmatpush2.bf16.msra.mxu0 0
        %2815 = vmatprep.subr.bf16.mxu0 0
        %2816 = vmatpush2.bf16.msra.mxu0 0
        %2817 = vmatprep.subr.bf16.mxu0 0
        %2818 = vmatpush2.bf16.msra.mxu0 0
        %2819 = vmatprep.subr.bf16.mxu0 0
        %2820 = vmatpush2.bf16.msra.mxu0 0
        %2821 = vmatprep.subr.bf16.mxu0 0
        %2822 = vmatpush2.bf16.msra.mxu0 0
        %2823 = vmatprep.subr.bf16.mxu0 0
        %2824 = vmatpush2.bf16.msra.mxu0 0
        %2825 = vmatprep.mubr.bf16.mxu0 0
        %2826 = vmatmul.mubr.bf16.gmra.mxu0 %v2773
        %v2827 = vpop.f32.mrf.mxu0
        %v2828 = vadd.f32 0.0, %v2827
        %v2829 = vpop.f32.mrf.mxu0
        %v2830 = vpop.f32.mrf.mxu0
        %v2831 = vadd.f32 0.0, %v2830
        %v2832 = vpop.f32.mrf.mxu0
        %2833 = vmatprep.mubr.bf16.mxu0 0
        %2834 = vmatmul.mubr.bf16.gmra.mxu0 %v2776
        %v2835 = vpop.f32.mrf.mxu0
        %v2836 = vadd.f32 0.0, %v2835
        %v2837 = vpop.f32.mrf.mxu0
        %v2838 = vpop.f32.mrf.mxu0
        %v2839 = vadd.f32 0.0, %v2838
        %v2840 = vpop.f32.mrf.mxu0
        %2841 = vmatprep.mubr.bf16.mxu0 0
        %2842 = vmatmul.mubr.bf16.gmra.mxu0 %v2779
        %v2843 = vpop.f32.mrf.mxu0
        %v2844 = vadd.f32 0.0, %v2843
        %v2845 = vpop.f32.mrf.mxu0
        %v2846 = vpop.f32.mrf.mxu0
        %v2847 = vadd.f32 0.0, %v2846
        %v2848 = vpop.f32.mrf.mxu0
        %2849 = vmatprep.mubr.bf16.mxu0 0
        %2850 = vmatmul.mubr.bf16.gmra.mxu0 %v2782
        %v2851 = vpop.f32.mrf.mxu0
        %v2852 = vadd.f32 0.0, %v2851
        %v2853 = vpop.f32.mrf.mxu0
        %v2854 = vpop.f32.mrf.mxu0
        %v2855 = vadd.f32 0.0, %v2854
        %v2856 = vpop.f32.mrf.mxu0
        %2857 = vmatprep.mubr.bf16.mxu0 0
        %2858 = vmatmul.mubr.bf16.gmra.mxu0 %v2785
        %v2859 = vpop.f32.mrf.mxu0
        %v2860 = vadd.f32 0.0, %v2859
        %v2861 = vpop.f32.mrf.mxu0
        %v2862 = vpop.f32.mrf.mxu0
        %v2863 = vadd.f32 0.0, %v2862
        %v2864 = vpop.f32.mrf.mxu0
        %2865 = vmatprep.mubr.bf16.mxu0 0
        %2866 = vmatmul.mubr.bf16.gmra.mxu0 %v2788
        %v2867 = vpop.f32.mrf.mxu0
        %v2868 = vadd.f32 0.0, %v2867
        %v2869 = vpop.f32.mrf.mxu0
        %v2870 = vpop.f32.mrf.mxu0
        %v2871 = vadd.f32 0.0, %v2870
        %v2872 = vpop.f32.mrf.mxu0
        %2873 = vdwg.mxu0
        %v2874 = vadd.f32 %v2715, %v2828
        %v2875 = vadd.f32 %v2716, %v2831
        %v2876 = vadd.f32 %v2717, %v2836
        %v2877 = vadd.f32 %v2718, %v2839
        %v2878 = vadd.f32 %v2719, %v2844
        %v2879 = vadd.f32 %v2720, %v2847
        %v2880 = vadd.f32 %v2721, %v2852
        %v2881 = vadd.f32 %v2722, %v2855
        %v2882 = vadd.f32 %v2723, %v2860
        %v2883 = vadd.f32 %v2724, %v2863
        %v2884 = vadd.f32 %v2725, %v2868
        %v2885 = vadd.f32 %v2726, %v2871
        %v2886 = vld [vmem:[%s3 + $0x28] sm:$0xf]
        %v2887 = vld [vmem:[%s3 + $0x2c] sm:$0xf]
        %v2888 = vld [vmem:[%s3 + $0x30] sm:$0x3]
        %v2889 = vrot.slane %v2289, 2
        %v2890 = vrot.slane %v2290, 2
        %v2891 = vsel %vm2366, %v2889, %v2890
        %v2892 = vrot.slane %v2291, 2
        %v2893 = vsel %vm2366, %v2890, %v2892
        %v2894 = vrot.slane %v2292, 2
        %v2895 = vsel %vm2366, %v2892, %v2894
        %v2896 = vrot.slane %v2293, 2
        %v2897 = vsel %vm2366, %v2894, %v2896
        %v2898 = vrot.slane %v2294, 2
        %v2899 = vsel %vm2366, %v2896, %v2898
        %v2900 = vrot.slane %v2295, 2
        %v2901 = vsel %vm2366, %v2898, %v2900
        %v2905 = vunpack.c.l.b16 %v2886
        %v2906 = vunpack.c.l.b16 %v2887
        %v2907 = vunpack.c.l.b16 %v2888
        %v2908 = vpack.c.b16 %v2906, %v2905
        %v2909 = vpack.c.b16 %v2907, %v2907
        %v2912 = vsel %vm2371, %v2891, 0
        %v2915 = vsel %vm2371, %v2893, 0
        %v2918 = vsel %vm2371, %v2895, 0
        %v2921 = vsel %vm2371, %v2897, 0
        %v2924 = vsel %vm2371, %v2899, 0
        %v2927 = vsel %vm2371, %v2901, 0
        %v2930 = vsel %vm2390, %v2909, 0
        %2932 = vmatprep.subr.bf16.mxu0 0
        %2933 = vmatpush1.bf16.msra.mxu0 0
        %2934 = vmatprep.subr.bf16.mxu0 0
        %2935 = vmatpush1.bf16.msra.mxu0 0
        %2936 = vmatprep.subr.bf16.mxu0 0
        %2937 = vmatpush1.bf16.msra.mxu0 0
        %2938 = vmatprep.subr.bf16.mxu0 0
        %2939 = vmatpush1.bf16.msra.mxu0 0
        %2940 = vmatprep.subr.bf16.mxu0 0
        %2941 = vmatpush1.bf16.msra.mxu0 0
        %2942 = vmatprep.subr.bf16.mxu0 0
        %2943 = vmatpush1.bf16.msra.mxu0 0
        %2944 = vmatprep.subr.bf16.mxu0 0
        %2945 = vmatpush1.bf16.msra.mxu0 %v2930
        %2946 = vmatprep.subr.bf16.mxu0 0
        %2947 = vmatpush1.bf16.msra.mxu0 %v2908
        %2948 = vmatprep.subr.bf16.mxu0 0
        %2949 = vmatpush2.bf16.msra.mxu0 0
        %2950 = vmatprep.subr.bf16.mxu0 0
        %2951 = vmatpush2.bf16.msra.mxu0 0
        %2952 = vmatprep.subr.bf16.mxu0 0
        %2953 = vmatpush2.bf16.msra.mxu0 0
        %2954 = vmatprep.subr.bf16.mxu0 0
        %2955 = vmatpush2.bf16.msra.mxu0 0
        %2956 = vmatprep.subr.bf16.mxu0 0
        %2957 = vmatpush2.bf16.msra.mxu0 0
        %2958 = vmatprep.subr.bf16.mxu0 0
        %2959 = vmatpush2.bf16.msra.mxu0 0
        %2960 = vmatprep.subr.bf16.mxu0 0
        %2961 = vmatpush2.bf16.msra.mxu0 0
        %2962 = vmatprep.subr.bf16.mxu0 0
        %2963 = vmatpush2.bf16.msra.mxu0 0
        %2964 = vmatprep.mubr.bf16.mxu0 0
        %2965 = vmatmul.mubr.bf16.gmra.mxu0 %v2912
        %v2966 = vpop.f32.mrf.mxu0
        %v2967 = vadd.f32 0.0, %v2966
        %v2968 = vpop.f32.mrf.mxu0
        %v2969 = vpop.f32.mrf.mxu0
        %v2970 = vadd.f32 0.0, %v2969
        %v2971 = vpop.f32.mrf.mxu0
        %2972 = vmatprep.mubr.bf16.mxu0 0
        %2973 = vmatmul.mubr.bf16.gmra.mxu0 %v2915
        %v2974 = vpop.f32.mrf.mxu0
        %v2975 = vadd.f32 0.0, %v2974
        %v2976 = vpop.f32.mrf.mxu0
        %v2977 = vpop.f32.mrf.mxu0
        %v2978 = vadd.f32 0.0, %v2977
        %v2979 = vpop.f32.mrf.mxu0
        %2980 = vmatprep.mubr.bf16.mxu0 0
        %2981 = vmatmul.mubr.bf16.gmra.mxu0 %v2918
        %v2982 = vpop.f32.mrf.mxu0
        %v2983 = vadd.f32 0.0, %v2982
        %v2984 = vpop.f32.mrf.mxu0
        %v2985 = vpop.f32.mrf.mxu0
        %v2986 = vadd.f32 0.0, %v2985
        %v2987 = vpop.f32.mrf.mxu0
        %2988 = vmatprep.mubr.bf16.mxu0 0
        %2989 = vmatmul.mubr.bf16.gmra.mxu0 %v2921
        %v2990 = vpop.f32.mrf.mxu0
        %v2991 = vadd.f32 0.0, %v2990
        %v2992 = vpop.f32.mrf.mxu0
        %v2993 = vpop.f32.mrf.mxu0
        %v2994 = vadd.f32 0.0, %v2993
        %v2995 = vpop.f32.mrf.mxu0
        %2996 = vmatprep.mubr.bf16.mxu0 0
        %2997 = vmatmul.mubr.bf16.gmra.mxu0 %v2924
        %v2998 = vpop.f32.mrf.mxu0
        %v2999 = vadd.f32 0.0, %v2998
        %v3000 = vpop.f32.mrf.mxu0
        %v3001 = vpop.f32.mrf.mxu0
        %v3002 = vadd.f32 0.0, %v3001
        %v3003 = vpop.f32.mrf.mxu0
        %3004 = vmatprep.mubr.bf16.mxu0 0
        %3005 = vmatmul.mubr.bf16.gmra.mxu0 %v2927
        %v3006 = vpop.f32.mrf.mxu0
        %v3007 = vadd.f32 0.0, %v3006
        %v3008 = vpop.f32.mrf.mxu0
        %v3009 = vpop.f32.mrf.mxu0
        %v3010 = vadd.f32 0.0, %v3009
        %v3011 = vpop.f32.mrf.mxu0
        %3012 = vdwg.mxu0
        %v3013 = vadd.f32 %v2874, %v2967
        %v3014 = vadd.f32 %v2875, %v2970
        %v3015 = vadd.f32 %v2876, %v2975
        %v3016 = vadd.f32 %v2877, %v2978
        %v3017 = vadd.f32 %v2878, %v2983
        %v3018 = vadd.f32 %v2879, %v2986
        %v3019 = vadd.f32 %v2880, %v2991
        %v3020 = vadd.f32 %v2881, %v2994
        %v3021 = vadd.f32 %v2882, %v2999
        %v3022 = vadd.f32 %v2883, %v3002
        %v3023 = vadd.f32 %v2884, %v3007
        %v3024 = vadd.f32 %v2885, %v3010
        %v3025 = vld [vmem:[%s3 + $0x30] sm:$0xc]
        %v3026 = vld [vmem:[%s3 + $0x34] sm:$0xf]
        %v3027 = vld [vmem:[%s3 + $0x38] sm:$0xf]
        %vm3028 = vcmask 1041408
        %v3029 = vrot.slane %v2289, 6
        %v3030 = vrot.slane %v2290, 6
        %v3031 = vsel %vm3028, %v3029, %v3030
        %v3032 = vrot.slane %v2291, 6
        %v3033 = vsel %vm3028, %v3030, %v3032
        %v3034 = vrot.slane %v2292, 6
        %v3035 = vsel %vm3028, %v3032, %v3034
        %v3036 = vrot.slane %v2293, 6
        %v3037 = vsel %vm3028, %v3034, %v3036
        %v3038 = vrot.slane %v2294, 6
        %v3039 = vsel %vm3028, %v3036, %v3038
        %v3040 = vrot.slane %v2295, 6
        %v3041 = vsel %vm3028, %v3038, %v3040
        %v3045 = vunpack.c.l.b16 %v3025
        %v3046 = vunpack.c.l.b16 %v3026
        %v3047 = vunpack.c.l.b16 %v3027
        %v3048 = vpack.c.b16 %v3046, %v3045
        %v3049 = vpack.c.b16 %v3047, %v3047
        %v3050 = vrot.slane %v3048, 2
        %v3051 = vrot.slane %v3049, 2
        %v3052 = vsel %vm2366, %v3050, %v3051
        %v3055 = vsel %vm2371, %v3031, 0
        %v3058 = vsel %vm2371, %v3033, 0
        %v3061 = vsel %vm2371, %v3035, 0
        %v3064 = vsel %vm2371, %v3037, 0
        %v3067 = vsel %vm2371, %v3039, 0
        %v3070 = vsel %vm2371, %v3041, 0
        %v3073 = vsel %vm2390, %v3051, 0
        %3075 = vmatprep.subr.bf16.mxu0 0
        %3076 = vmatpush1.bf16.msra.mxu0 0
        %3077 = vmatprep.subr.bf16.mxu0 0
        %3078 = vmatpush1.bf16.msra.mxu0 0
        %3079 = vmatprep.subr.bf16.mxu0 0
        %3080 = vmatpush1.bf16.msra.mxu0 0
        %3081 = vmatprep.subr.bf16.mxu0 0
        %3082 = vmatpush1.bf16.msra.mxu0 0
        %3083 = vmatprep.subr.bf16.mxu0 0
        %3084 = vmatpush1.bf16.msra.mxu0 0
        %3085 = vmatprep.subr.bf16.mxu0 0
        %3086 = vmatpush1.bf16.msra.mxu0 0
        %3087 = vmatprep.subr.bf16.mxu0 0
        %3088 = vmatpush1.bf16.msra.mxu0 %v3073
        %3089 = vmatprep.subr.bf16.mxu0 0
        %3090 = vmatpush1.bf16.msra.mxu0 %v3052
        %3091 = vmatprep.subr.bf16.mxu0 0
        %3092 = vmatpush2.bf16.msra.mxu0 0
        %3093 = vmatprep.subr.bf16.mxu0 0
        %3094 = vmatpush2.bf16.msra.mxu0 0
        %3095 = vmatprep.subr.bf16.mxu0 0
        %3096 = vmatpush2.bf16.msra.mxu0 0
        %3097 = vmatprep.subr.bf16.mxu0 0
        %3098 = vmatpush2.bf16.msra.mxu0 0
        %3099 = vmatprep.subr.bf16.mxu0 0
        %3100 = vmatpush2.bf16.msra.mxu0 0
        %3101 = vmatprep.subr.bf16.mxu0 0
        %3102 = vmatpush2.bf16.msra.mxu0 0
        %3103 = vmatprep.subr.bf16.mxu0 0
        %3104 = vmatpush2.bf16.msra.mxu0 0
        %3105 = vmatprep.subr.bf16.mxu0 0
        %3106 = vmatpush2.bf16.msra.mxu0 0
        %3107 = vmatprep.mubr.bf16.mxu0 0
        %3108 = vmatmul.mubr.bf16.gmra.mxu0 %v3055
        %v3109 = vpop.f32.mrf.mxu0
        %v3110 = vadd.f32 0.0, %v3109
        %v3111 = vpop.f32.mrf.mxu0
        %v3112 = vpop.f32.mrf.mxu0
        %v3113 = vadd.f32 0.0, %v3112
        %v3114 = vpop.f32.mrf.mxu0
        %3115 = vmatprep.mubr.bf16.mxu0 0
        %3116 = vmatmul.mubr.bf16.gmra.mxu0 %v3058
        %v3117 = vpop.f32.mrf.mxu0
        %v3118 = vadd.f32 0.0, %v3117
        %v3119 = vpop.f32.mrf.mxu0
        %v3120 = vpop.f32.mrf.mxu0
        %v3121 = vadd.f32 0.0, %v3120
        %v3122 = vpop.f32.mrf.mxu0
        %3123 = vmatprep.mubr.bf16.mxu0 0
        %3124 = vmatmul.mubr.bf16.gmra.mxu0 %v3061
        %v3125 = vpop.f32.mrf.mxu0
        %v3126 = vadd.f32 0.0, %v3125
        %v3127 = vpop.f32.mrf.mxu0
        %v3128 = vpop.f32.mrf.mxu0
        %v3129 = vadd.f32 0.0, %v3128
        %v3130 = vpop.f32.mrf.mxu0
        %3131 = vmatprep.mubr.bf16.mxu0 0
        %3132 = vmatmul.mubr.bf16.gmra.mxu0 %v3064
        %v3133 = vpop.f32.mrf.mxu0
        %v3134 = vadd.f32 0.0, %v3133
        %v3135 = vpop.f32.mrf.mxu0
        %v3136 = vpop.f32.mrf.mxu0
        %v3137 = vadd.f32 0.0, %v3136
        %v3138 = vpop.f32.mrf.mxu0
        %3139 = vmatprep.mubr.bf16.mxu0 0
        %3140 = vmatmul.mubr.bf16.gmra.mxu0 %v3067
        %v3141 = vpop.f32.mrf.mxu0
        %v3142 = vadd.f32 0.0, %v3141
        %v3143 = vpop.f32.mrf.mxu0
        %v3144 = vpop.f32.mrf.mxu0
        %v3145 = vadd.f32 0.0, %v3144
        %v3146 = vpop.f32.mrf.mxu0
        %3147 = vmatprep.mubr.bf16.mxu0 0
        %3148 = vmatmul.mubr.bf16.gmra.mxu0 %v3070
        %v3149 = vpop.f32.mrf.mxu0
        %v3150 = vadd.f32 0.0, %v3149
        %v3151 = vpop.f32.mrf.mxu0
        %v3152 = vpop.f32.mrf.mxu0
        %v3153 = vadd.f32 0.0, %v3152
        %v3154 = vpop.f32.mrf.mxu0
        %3155 = vdwg.mxu0
        %v3156 = vadd.f32 %v3013, %v3110
        %v3157 = vadd.f32 %v3014, %v3113
        %v3158 = vadd.f32 %v3015, %v3118
        %v3159 = vadd.f32 %v3016, %v3121
        %v3160 = vadd.f32 %v3017, %v3126
        %v3161 = vadd.f32 %v3018, %v3129
        %v3162 = vadd.f32 %v3019, %v3134
        %v3163 = vadd.f32 %v3020, %v3137
        %v3164 = vadd.f32 %v3021, %v3142
        %v3165 = vadd.f32 %v3022, %v3145
        %v3166 = vadd.f32 %v3023, %v3150
        %v3167 = vadd.f32 %v3024, %v3153
        %v3168 = vld [vmem:[%s3 + $0x3c] sm:$0xf]
        %v3169 = vld [vmem:[%s3 + $0x40] sm:$0xf]
        %v3170 = vld [vmem:[%s3 + $0x44] sm:$0x3]
        %vm3171 = vsmask.f32 1280
        %v3172 = vrot.slane %v2307, 6
        %v3173 = vrot.slane %v2309, 7
        %v3174 = vor.u32 %v3172, %v3173
        %v3175 = vrot.slane %v2318, 6
        %v3176 = vrot.slane %v2314, 7
        %v3177 = vor.u32 %v3175, %v3176
        %v3178 = vsel %vm3171, %v3174, %v3177
        %v3179 = vrot.slane %v2326, 6
        %v3180 = vrot.slane %v2322, 7
        %v3181 = vor.u32 %v3179, %v3180
        %v3182 = vsel %vm3171, %v3177, %v3181
        %v3183 = vrot.slane %v2334, 6
        %v3184 = vrot.slane %v2330, 7
        %v3185 = vor.u32 %v3183, %v3184
        %v3186 = vsel %vm3171, %v3181, %v3185
        %v3187 = vrot.slane %v2342, 6
        %v3188 = vrot.slane %v2338, 7
        %v3189 = vor.u32 %v3187, %v3188
        %v3190 = vsel %vm3171, %v3185, %v3189
        %v3191 = vrot.slane %v2350, 6
        %v3192 = vrot.slane %v2346, 7
        %v3193 = vor.u32 %v3191, %v3192
        %v3194 = vsel %vm3171, %v3189, %v3193
        %v3195 = vrot.slane %v2754, 6
        %v3196 = vrot.slane %v2354, 7
        %v3197 = vor.u32 %v3195, %v3196
        %v3198 = vsel %vm3171, %v3193, %v3197
        %v3202 = vunpack.c.l.b16 %v3168
        %v3203 = vunpack.c.l.b16 %v3169
        %v3204 = vunpack.c.l.b16 %v3170
        %v3205 = vpack.c.b16 %v3203, %v3202
        %v3206 = vpack.c.b16 %v3204, %v3204
        %v3209 = vsel %vm2371, %v3178, 0
        %v3212 = vsel %vm2371, %v3182, 0
        %v3215 = vsel %vm2371, %v3186, 0
        %v3218 = vsel %vm2371, %v3190, 0
        %v3221 = vsel %vm2371, %v3194, 0
        %v3224 = vsel %vm2371, %v3198, 0
        %v3227 = vsel %vm2390, %v3206, 0
        %3229 = vmatprep.subr.bf16.mxu0 0
        %3230 = vmatpush1.bf16.msra.mxu0 0
        %3231 = vmatprep.subr.bf16.mxu0 0
        %3232 = vmatpush1.bf16.msra.mxu0 0
        %3233 = vmatprep.subr.bf16.mxu0 0
        %3234 = vmatpush1.bf16.msra.mxu0 0
        %3235 = vmatprep.subr.bf16.mxu0 0
        %3236 = vmatpush1.bf16.msra.mxu0 0
        %3237 = vmatprep.subr.bf16.mxu0 0
        %3238 = vmatpush1.bf16.msra.mxu0 0
        %3239 = vmatprep.subr.bf16.mxu0 0
        %3240 = vmatpush1.bf16.msra.mxu0 0
        %3241 = vmatprep.subr.bf16.mxu0 0
        %3242 = vmatpush1.bf16.msra.mxu0 %v3227
        %3243 = vmatprep.subr.bf16.mxu0 0
        %3244 = vmatpush1.bf16.msra.mxu0 %v3205
        %3245 = vmatprep.subr.bf16.mxu0 0
        %3246 = vmatpush2.bf16.msra.mxu0 0
        %3247 = vmatprep.subr.bf16.mxu0 0
        %3248 = vmatpush2.bf16.msra.mxu0 0
        %3249 = vmatprep.subr.bf16.mxu0 0
        %3250 = vmatpush2.bf16.msra.mxu0 0
        %3251 = vmatprep.subr.bf16.mxu0 0
        %3252 = vmatpush2.bf16.msra.mxu0 0
        %3253 = vmatprep.subr.bf16.mxu0 0
        %3254 = vmatpush2.bf16.msra.mxu0 0
        %3255 = vmatprep.subr.bf16.mxu0 0
        %3256 = vmatpush2.bf16.msra.mxu0 0
        %3257 = vmatprep.subr.bf16.mxu0 0
        %3258 = vmatpush2.bf16.msra.mxu0 0
        %3259 = vmatprep.subr.bf16.mxu0 0
        %3260 = vmatpush2.bf16.msra.mxu0 0
        %3261 = vmatprep.mubr.bf16.mxu0 0
        %3262 = vmatmul.mubr.bf16.gmra.mxu0 %v3209
        %v3263 = vpop.f32.mrf.mxu0
        %v3264 = vadd.f32 0.0, %v3263
        %v3265 = vpop.f32.mrf.mxu0
        %v3266 = vpop.f32.mrf.mxu0
        %v3267 = vadd.f32 0.0, %v3266
        %v3268 = vpop.f32.mrf.mxu0
        %3269 = vmatprep.mubr.bf16.mxu0 0
        %3270 = vmatmul.mubr.bf16.gmra.mxu0 %v3212
        %v3271 = vpop.f32.mrf.mxu0
        %v3272 = vadd.f32 0.0, %v3271
        %v3273 = vpop.f32.mrf.mxu0
        %v3274 = vpop.f32.mrf.mxu0
        %v3275 = vadd.f32 0.0, %v3274
        %v3276 = vpop.f32.mrf.mxu0
        %3277 = vmatprep.mubr.bf16.mxu0 0
        %3278 = vmatmul.mubr.bf16.gmra.mxu0 %v3215
        %v3279 = vpop.f32.mrf.mxu0
        %v3280 = vadd.f32 0.0, %v3279
        %v3281 = vpop.f32.mrf.mxu0
        %v3282 = vpop.f32.mrf.mxu0
        %v3283 = vadd.f32 0.0, %v3282
        %v3284 = vpop.f32.mrf.mxu0
        %3285 = vmatprep.mubr.bf16.mxu0 0
        %3286 = vmatmul.mubr.bf16.gmra.mxu0 %v3218
        %v3287 = vpop.f32.mrf.mxu0
        %v3288 = vadd.f32 0.0, %v3287
        %v3289 = vpop.f32.mrf.mxu0
        %v3290 = vpop.f32.mrf.mxu0
        %v3291 = vadd.f32 0.0, %v3290
        %v3292 = vpop.f32.mrf.mxu0
        %3293 = vmatprep.mubr.bf16.mxu0 0
        %3294 = vmatmul.mubr.bf16.gmra.mxu0 %v3221
        %v3295 = vpop.f32.mrf.mxu0
        %v3296 = vadd.f32 0.0, %v3295
        %v3297 = vpop.f32.mrf.mxu0
        %v3298 = vpop.f32.mrf.mxu0
        %v3299 = vadd.f32 0.0, %v3298
        %v3300 = vpop.f32.mrf.mxu0
        %3301 = vmatprep.mubr.bf16.mxu0 0
        %3302 = vmatmul.mubr.bf16.gmra.mxu0 %v3224
        %v3303 = vpop.f32.mrf.mxu0
        %v3304 = vadd.f32 0.0, %v3303
        %v3305 = vpop.f32.mrf.mxu0
        %v3306 = vpop.f32.mrf.mxu0
        %v3307 = vadd.f32 0.0, %v3306
        %v3308 = vpop.f32.mrf.mxu0
        %3309 = vdwg.mxu0
        %v3310 = vadd.f32 %v3156, %v3264
        %v3311 = vadd.f32 %v3157, %v3267
        %v3312 = vadd.f32 %v3158, %v3272
        %v3313 = vadd.f32 %v3159, %v3275
        %v3314 = vadd.f32 %v3160, %v3280
        %v3315 = vadd.f32 %v3161, %v3283
        %v3316 = vadd.f32 %v3162, %v3288
        %v3317 = vadd.f32 %v3163, %v3291
        %v3318 = vadd.f32 %v3164, %v3296
        %v3319 = vadd.f32 %v3165, %v3299
        %v3320 = vadd.f32 %v3166, %v3304
        %v3321 = vadd.f32 %v3167, %v3307
        %v3322 = vld [vmem:[%s3 + $0x44] sm:$0xc]
        %v3323 = vld [vmem:[%s3 + $0x48] sm:$0xf]
        %v3324 = vld [vmem:[%s3 + $0x4c] sm:$0xf]
        %vm3325 = vcmask 1040384
        %v3326 = vrot.slane %v2289, 7
        %v3327 = vrot.slane %v2290, 7
        %v3328 = vsel %vm3325, %v3326, %v3327
        %v3329 = vrot.slane %v2291, 7
        %v3330 = vsel %vm3325, %v3327, %v3329
        %v3331 = vrot.slane %v2292, 7
        %v3332 = vsel %vm3325, %v3329, %v3331
        %v3333 = vrot.slane %v2293, 7
        %v3334 = vsel %vm3325, %v3331, %v3333
        %v3335 = vrot.slane %v2294, 7
        %v3336 = vsel %vm3325, %v3333, %v3335
        %v3337 = vrot.slane %v2295, 7
        %v3338 = vsel %vm3325, %v3335, %v3337
        %v3342 = vunpack.c.l.b16 %v3322
        %v3343 = vunpack.c.l.b16 %v3323
        %v3344 = vunpack.c.l.b16 %v3324
        %v3345 = vpack.c.b16 %v3343, %v3342
        %v3346 = vpack.c.b16 %v3344, %v3344
        %v3347 = vrot.slane %v3345, 2
        %v3348 = vrot.slane %v3346, 2
        %v3349 = vsel %vm2366, %v3347, %v3348
        %v3352 = vsel %vm2371, %v3328, 0
        %v3355 = vsel %vm2371, %v3330, 0
        %v3358 = vsel %vm2371, %v3332, 0
        %v3361 = vsel %vm2371, %v3334, 0
        %v3364 = vsel %vm2371, %v3336, 0
        %v3367 = vsel %vm2371, %v3338, 0
        %v3370 = vsel %vm2390, %v3348, 0
        %3372 = vmatprep.subr.bf16.mxu0 0
        %3373 = vmatpush1.bf16.msra.mxu0 0
        %3374 = vmatprep.subr.bf16.mxu0 0
        %3375 = vmatpush1.bf16.msra.mxu0 0
        %3376 = vmatprep.subr.bf16.mxu0 0
        %3377 = vmatpush1.bf16.msra.mxu0 0
        %3378 = vmatprep.subr.bf16.mxu0 0
        %3379 = vmatpush1.bf16.msra.mxu0 0
        %3380 = vmatprep.subr.bf16.mxu0 0
        %3381 = vmatpush1.bf16.msra.mxu0 0
        %3382 = vmatprep.subr.bf16.mxu0 0
        %3383 = vmatpush1.bf16.msra.mxu0 0
        %3384 = vmatprep.subr.bf16.mxu0 0
        %3385 = vmatpush1.bf16.msra.mxu0 %v3370
        %3386 = vmatprep.subr.bf16.mxu0 0
        %3387 = vmatpush1.bf16.msra.mxu0 %v3349
        %3388 = vmatprep.subr.bf16.mxu0 0
        %3389 = vmatpush2.bf16.msra.mxu0 0
        %3390 = vmatprep.subr.bf16.mxu0 0
        %3391 = vmatpush2.bf16.msra.mxu0 0
        %3392 = vmatprep.subr.bf16.mxu0 0
        %3393 = vmatpush2.bf16.msra.mxu0 0
        %3394 = vmatprep.subr.bf16.mxu0 0
        %3395 = vmatpush2.bf16.msra.mxu0 0
        %3396 = vmatprep.subr.bf16.mxu0 0
        %3397 = vmatpush2.bf16.msra.mxu0 0
        %3398 = vmatprep.subr.bf16.mxu0 0
        %3399 = vmatpush2.bf16.msra.mxu0 0
        %3400 = vmatprep.subr.bf16.mxu0 0
        %3401 = vmatpush2.bf16.msra.mxu0 0
        %3402 = vmatprep.subr.bf16.mxu0 0
        %3403 = vmatpush2.bf16.msra.mxu0 0
        %3404 = vmatprep.mubr.bf16.mxu0 0
        %3405 = vmatmul.mubr.bf16.gmra.mxu0 %v3352
        %v3406 = vpop.f32.mrf.mxu0
        %v3407 = vadd.f32 0.0, %v3406
        %v3408 = vpop.f32.mrf.mxu0
        %v3409 = vpop.f32.mrf.mxu0
        %v3410 = vadd.f32 0.0, %v3409
        %v3411 = vpop.f32.mrf.mxu0
        %3412 = vmatprep.mubr.bf16.mxu0 0
        %3413 = vmatmul.mubr.bf16.gmra.mxu0 %v3355
        %v3414 = vpop.f32.mrf.mxu0
        %v3415 = vadd.f32 0.0, %v3414
        %v3416 = vpop.f32.mrf.mxu0
        %v3417 = vpop.f32.mrf.mxu0
        %v3418 = vadd.f32 0.0, %v3417
        %v3419 = vpop.f32.mrf.mxu0
        %3420 = vmatprep.mubr.bf16.mxu0 0
        %3421 = vmatmul.mubr.bf16.gmra.mxu0 %v3358
        %v3422 = vpop.f32.mrf.mxu0
        %v3423 = vadd.f32 0.0, %v3422
        %v3424 = vpop.f32.mrf.mxu0
        %v3425 = vpop.f32.mrf.mxu0
        %v3426 = vadd.f32 0.0, %v3425
        %v3427 = vpop.f32.mrf.mxu0
        %3428 = vmatprep.mubr.bf16.mxu0 0
        %3429 = vmatmul.mubr.bf16.gmra.mxu0 %v3361
        %v3430 = vpop.f32.mrf.mxu0
        %v3431 = vadd.f32 0.0, %v3430
        %v3432 = vpop.f32.mrf.mxu0
        %v3433 = vpop.f32.mrf.mxu0
        %v3434 = vadd.f32 0.0, %v3433
        %v3435 = vpop.f32.mrf.mxu0
        %3436 = vmatprep.mubr.bf16.mxu0 0
        %3437 = vmatmul.mubr.bf16.gmra.mxu0 %v3364
        %v3438 = vpop.f32.mrf.mxu0
        %v3439 = vadd.f32 0.0, %v3438
        %v3440 = vpop.f32.mrf.mxu0
        %v3441 = vpop.f32.mrf.mxu0
        %v3442 = vadd.f32 0.0, %v3441
        %v3443 = vpop.f32.mrf.mxu0
        %3444 = vmatprep.mubr.bf16.mxu0 0
        %3445 = vmatmul.mubr.bf16.gmra.mxu0 %v3367
        %v3446 = vpop.f32.mrf.mxu0
        %v3447 = vadd.f32 0.0, %v3446
        %v3448 = vpop.f32.mrf.mxu0
        %v3449 = vpop.f32.mrf.mxu0
        %v3450 = vadd.f32 0.0, %v3449
        %v3451 = vpop.f32.mrf.mxu0
        %3452 = vdwg.mxu0
        %v3453 = vadd.f32 %v3310, %v3407
        %v3454 = vadd.f32 %v3311, %v3410
        %v3455 = vadd.f32 %v3312, %v3415
        %v3456 = vadd.f32 %v3313, %v3418
        %v3457 = vadd.f32 %v3314, %v3423
        %v3458 = vadd.f32 %v3315, %v3426
        %v3459 = vadd.f32 %v3316, %v3431
        %v3460 = vadd.f32 %v3317, %v3434
        %v3461 = vadd.f32 %v3318, %v3439
        %v3462 = vadd.f32 %v3319, %v3442
        %v3463 = vadd.f32 %v3320, %v3447
        %v3464 = vadd.f32 %v3321, %v3450
        %v3465 = vld [vmem:[%s3 + $0x50] sm:$0xf]
        %v3466 = vld [vmem:[%s3 + $0x54] sm:$0xf]
        %v3467 = vld [vmem:[%s3 + $0x58] sm:$0x3]
        %vm3468 = vsmask.f32 256
        %v3469 = vrot.slane %v2307, 7
        %v3470 = vrot.slane %v2318, 7
        %v3471 = vor.u32 %v3470, %v2314
        %v3472 = vsel %vm3468, %v3469, %v3471
        %v3473 = vrot.slane %v2326, 7
        %v3474 = vor.u32 %v3473, %v2322
        %v3475 = vsel %vm3468, %v3470, %v3474
        %v3476 = vrot.slane %v2334, 7
        %v3477 = vor.u32 %v3476, %v2330
        %v3478 = vsel %vm3468, %v3473, %v3477
        %v3479 = vrot.slane %v2342, 7
        %v3480 = vor.u32 %v3479, %v2338
        %v3481 = vsel %vm3468, %v3476, %v3480
        %v3482 = vrot.slane %v2350, 7
        %v3483 = vor.u32 %v3482, %v2346
        %v3484 = vsel %vm3468, %v3479, %v3483
        %v3485 = vrot.slane %v2754, 7
        %v3486 = vor.u32 %v3485, %v2354
        %v3487 = vsel %vm3468, %v3482, %v3486
        %v3491 = vunpack.c.l.b16 %v3465
        %v3492 = vunpack.c.l.b16 %v3466
        %v3493 = vunpack.c.l.b16 %v3467
        %v3494 = vpack.c.b16 %v3492, %v3491
        %v3495 = vpack.c.b16 %v3493, %v3493
        %v3498 = vsel %vm2371, %v3472, 0
        %v3501 = vsel %vm2371, %v3475, 0
        %v3504 = vsel %vm2371, %v3478, 0
        %v3507 = vsel %vm2371, %v3481, 0
        %v3510 = vsel %vm2371, %v3484, 0
        %v3513 = vsel %vm2371, %v3487, 0
        %v3516 = vsel %vm2390, %v3495, 0
        %3518 = vmatprep.subr.bf16.mxu0 0
        %3519 = vmatpush1.bf16.msra.mxu0 0
        %3520 = vmatprep.subr.bf16.mxu0 0
        %3521 = vmatpush1.bf16.msra.mxu0 0
        %3522 = vmatprep.subr.bf16.mxu0 0
        %3523 = vmatpush1.bf16.msra.mxu0 0
        %3524 = vmatprep.subr.bf16.mxu0 0
        %3525 = vmatpush1.bf16.msra.mxu0 0
        %3526 = vmatprep.subr.bf16.mxu0 0
        %3527 = vmatpush1.bf16.msra.mxu0 0
        %3528 = vmatprep.subr.bf16.mxu0 0
        %3529 = vmatpush1.bf16.msra.mxu0 0
        %3530 = vmatprep.subr.bf16.mxu0 0
        %3531 = vmatpush1.bf16.msra.mxu0 %v3516
        %3532 = vmatprep.subr.bf16.mxu0 0
        %3533 = vmatpush1.bf16.msra.mxu0 %v3494
        %3534 = vmatprep.subr.bf16.mxu0 0
        %3535 = vmatpush2.bf16.msra.mxu0 0
        %3536 = vmatprep.subr.bf16.mxu0 0
        %3537 = vmatpush2.bf16.msra.mxu0 0
        %3538 = vmatprep.subr.bf16.mxu0 0
        %3539 = vmatpush2.bf16.msra.mxu0 0
        %3540 = vmatprep.subr.bf16.mxu0 0
        %3541 = vmatpush2.bf16.msra.mxu0 0
        %3542 = vmatprep.subr.bf16.mxu0 0
        %3543 = vmatpush2.bf16.msra.mxu0 0
        %3544 = vmatprep.subr.bf16.mxu0 0
        %3545 = vmatpush2.bf16.msra.mxu0 0
        %3546 = vmatprep.subr.bf16.mxu0 0
        %3547 = vmatpush2.bf16.msra.mxu0 0
        %3548 = vmatprep.subr.bf16.mxu0 0
        %3549 = vmatpush2.bf16.msra.mxu0 0
        %3550 = vmatprep.mubr.bf16.mxu0 0
        %3551 = vmatmul.mubr.bf16.gmra.mxu0 %v3498
        %v3552 = vpop.f32.mrf.mxu0
        %v3553 = vadd.f32 0.0, %v3552
        %v3554 = vpop.f32.mrf.mxu0
        %v3555 = vpop.f32.mrf.mxu0
        %v3556 = vadd.f32 0.0, %v3555
        %v3557 = vpop.f32.mrf.mxu0
        %3558 = vmatprep.mubr.bf16.mxu0 0
        %3559 = vmatmul.mubr.bf16.gmra.mxu0 %v3501
        %v3560 = vpop.f32.mrf.mxu0
        %v3561 = vadd.f32 0.0, %v3560
        %v3562 = vpop.f32.mrf.mxu0
        %v3563 = vpop.f32.mrf.mxu0
        %v3564 = vadd.f32 0.0, %v3563
        %v3565 = vpop.f32.mrf.mxu0
        %3566 = vmatprep.mubr.bf16.mxu0 0
        %3567 = vmatmul.mubr.bf16.gmra.mxu0 %v3504
        %v3568 = vpop.f32.mrf.mxu0
        %v3569 = vadd.f32 0.0, %v3568
        %v3570 = vpop.f32.mrf.mxu0
        %v3571 = vpop.f32.mrf.mxu0
        %v3572 = vadd.f32 0.0, %v3571
        %v3573 = vpop.f32.mrf.mxu0
        %3574 = vmatprep.mubr.bf16.mxu0 0
        %3575 = vmatmul.mubr.bf16.gmra.mxu0 %v3507
        %v3576 = vpop.f32.mrf.mxu0
        %v3577 = vadd.f32 0.0, %v3576
        %v3578 = vpop.f32.mrf.mxu0
        %v3579 = vpop.f32.mrf.mxu0
        %v3580 = vadd.f32 0.0, %v3579
        %v3581 = vpop.f32.mrf.mxu0
        %3582 = vmatprep.mubr.bf16.mxu0 0
        %3583 = vmatmul.mubr.bf16.gmra.mxu0 %v3510
        %v3584 = vpop.f32.mrf.mxu0
        %v3585 = vadd.f32 0.0, %v3584
        %v3586 = vpop.f32.mrf.mxu0
        %v3587 = vpop.f32.mrf.mxu0
        %v3588 = vadd.f32 0.0, %v3587
        %v3589 = vpop.f32.mrf.mxu0
        %3590 = vmatprep.mubr.bf16.mxu0 0
        %3591 = vmatmul.mubr.bf16.gmra.mxu0 %v3513
        %v3592 = vpop.f32.mrf.mxu0
        %v3593 = vadd.f32 0.0, %v3592
        %v3594 = vpop.f32.mrf.mxu0
        %v3595 = vpop.f32.mrf.mxu0
        %v3596 = vadd.f32 0.0, %v3595
        %v3597 = vpop.f32.mrf.mxu0
        %3598 = vdwg.mxu0
        %v3599 = vadd.f32 %v3453, %v3553
        %v3600 = vadd.f32 %v3454, %v3556
        %v3601 = vadd.f32 %v3455, %v3561
        %v3602 = vadd.f32 %v3456, %v3564
        %v3603 = vadd.f32 %v3457, %v3569
        %v3604 = vadd.f32 %v3458, %v3572
        %v3605 = vadd.f32 %v3459, %v3577
        %v3606 = vadd.f32 %v3460, %v3580
        %v3607 = vadd.f32 %v3461, %v3585
        %v3608 = vadd.f32 %v3462, %v3588
        %v3609 = vadd.f32 %v3463, %v3593
        %v3610 = vadd.f32 %v3464, %v3596
        %v3611 = vld [vmem:[%s3 + $0x58] sm:$0xc]
        %v3612 = vld [vmem:[%s3 + $0x5c] sm:$0xf]
        %v3613 = vld [vmem:[%s3 + $0x60] sm:$0xf]
        %v3617 = vunpack.c.l.b16 %v3611
        %v3618 = vunpack.c.l.b16 %v3612
        %v3619 = vunpack.c.l.b16 %v3613
        %v3620 = vpack.c.b16 %v3618, %v3617
        %v3621 = vpack.c.b16 %v3619, %v3619
        %v3622 = vrot.slane %v3620, 2
        %v3623 = vrot.slane %v3621, 2
        %v3624 = vsel %vm2366, %v3622, %v3623
        %v3626 = vsel %vm2371, %v2295, 0
        %v3629 = vsel %vm2390, %v3623, 0
        %3631 = vmatprep.subr.bf16.mxu0 0
        %3632 = vmatpush1.bf16.msra.mxu0 0
        %3633 = vmatprep.subr.bf16.mxu0 0
        %3634 = vmatpush1.bf16.msra.mxu0 0
        %3635 = vmatprep.subr.bf16.mxu0 0
        %3636 = vmatpush1.bf16.msra.mxu0 0
        %3637 = vmatprep.subr.bf16.mxu0 0
        %3638 = vmatpush1.bf16.msra.mxu0 0
        %3639 = vmatprep.subr.bf16.mxu0 0
        %3640 = vmatpush1.bf16.msra.mxu0 0
        %3641 = vmatprep.subr.bf16.mxu0 0
        %3642 = vmatpush1.bf16.msra.mxu0 0
        %3643 = vmatprep.subr.bf16.mxu0 0
        %3644 = vmatpush1.bf16.msra.mxu0 %v3629
        %3645 = vmatprep.subr.bf16.mxu0 0
        %3646 = vmatpush1.bf16.msra.mxu0 %v3624
        %3647 = vmatprep.subr.bf16.mxu0 0
        %3648 = vmatpush2.bf16.msra.mxu0 0
        %3649 = vmatprep.subr.bf16.mxu0 0
        %3650 = vmatpush2.bf16.msra.mxu0 0
        %3651 = vmatprep.subr.bf16.mxu0 0
        %3652 = vmatpush2.bf16.msra.mxu0 0
        %3653 = vmatprep.subr.bf16.mxu0 0
        %3654 = vmatpush2.bf16.msra.mxu0 0
        %3655 = vmatprep.subr.bf16.mxu0 0
        %3656 = vmatpush2.bf16.msra.mxu0 0
        %3657 = vmatprep.subr.bf16.mxu0 0
        %3658 = vmatpush2.bf16.msra.mxu0 0
        %3659 = vmatprep.subr.bf16.mxu0 0
        %3660 = vmatpush2.bf16.msra.mxu0 0
        %3661 = vmatprep.subr.bf16.mxu0 0
        %3662 = vmatpush2.bf16.msra.mxu0 0
        %3663 = vmatprep.mubr.bf16.mxu0 0
        %3664 = vmatmul.mubr.bf16.gmra.mxu0 %v2486
        %v3665 = vpop.f32.mrf.mxu0
        %v3666 = vadd.f32 0.0, %v3665
        %v3667 = vpop.f32.mrf.mxu0
        %v3668 = vpop.f32.mrf.mxu0
        %v3669 = vadd.f32 0.0, %v3668
        %v3670 = vpop.f32.mrf.mxu0
        %3671 = vmatprep.mubr.bf16.mxu0 0
        %3672 = vmatmul.mubr.bf16.gmra.mxu0 %v2488
        %v3673 = vpop.f32.mrf.mxu0
        %v3674 = vadd.f32 0.0, %v3673
        %v3675 = vpop.f32.mrf.mxu0
        %v3676 = vpop.f32.mrf.mxu0
        %v3677 = vadd.f32 0.0, %v3676
        %v3678 = vpop.f32.mrf.mxu0
        %3679 = vmatprep.mubr.bf16.mxu0 0
        %3680 = vmatmul.mubr.bf16.gmra.mxu0 %v2490
        %v3681 = vpop.f32.mrf.mxu0
        %v3682 = vadd.f32 0.0, %v3681
        %v3683 = vpop.f32.mrf.mxu0
        %v3684 = vpop.f32.mrf.mxu0
        %v3685 = vadd.f32 0.0, %v3684
        %v3686 = vpop.f32.mrf.mxu0
        %3687 = vmatprep.mubr.bf16.mxu0 0
        %3688 = vmatmul.mubr.bf16.gmra.mxu0 %v2492
        %v3689 = vpop.f32.mrf.mxu0
        %v3690 = vadd.f32 0.0, %v3689
        %v3691 = vpop.f32.mrf.mxu0
        %v3692 = vpop.f32.mrf.mxu0
        %v3693 = vadd.f32 0.0, %v3692
        %v3694 = vpop.f32.mrf.mxu0
        %3695 = vmatprep.mubr.bf16.mxu0 0
        %3696 = vmatmul.mubr.bf16.gmra.mxu0 %v2494
        %v3697 = vpop.f32.mrf.mxu0
        %v3698 = vadd.f32 0.0, %v3697
        %v3699 = vpop.f32.mrf.mxu0
        %v3700 = vpop.f32.mrf.mxu0
        %v3701 = vadd.f32 0.0, %v3700
        %v3702 = vpop.f32.mrf.mxu0
        %3703 = vmatprep.mubr.bf16.mxu0 0
        %3704 = vmatmul.mubr.bf16.gmra.mxu0 %v3626
        %v3705 = vpop.f32.mrf.mxu0
        %v3706 = vadd.f32 0.0, %v3705
        %v3707 = vpop.f32.mrf.mxu0
        %v3708 = vpop.f32.mrf.mxu0
        %v3709 = vadd.f32 0.0, %v3708
        %v3710 = vpop.f32.mrf.mxu0
        %3711 = vdwg.mxu0
        %v3712 = vadd.f32 %v3599, %v3666
        %v3713 = vadd.f32 %v3600, %v3669
        %v3714 = vadd.f32 %v3601, %v3674
        %v3715 = vadd.f32 %v3602, %v3677
        %v3716 = vadd.f32 %v3603, %v3682
        %v3717 = vadd.f32 %v3604, %v3685
        %v3718 = vadd.f32 %v3605, %v3690
        %v3719 = vadd.f32 %v3606, %v3693
        %v3720 = vadd.f32 %v3607, %v3698
        %v3721 = vadd.f32 %v3608, %v3701
        %v3722 = vadd.f32 %v3609, %v3706
        %v3723 = vadd.f32 %v3610, %v3709
        %v3724 = vld [vmem:[%s3 + $0x64] sm:$0xf]
        %v3725 = vld [vmem:[%s3 + $0x68] sm:$0xf]
        %v3726 = vld [vmem:[%s3 + $0x6c] sm:$0x3]
        %vm3728 = vcmask 1043456
        %v3729 = vrot.slane %v2290, 4
        %v3730 = vrot.slane %v2291, 4
        %v3731 = vsel %vm3728, %v3729, %v3730
        %v3732 = vrot.slane %v2292, 4
        %v3733 = vsel %vm3728, %v3730, %v3732
        %v3734 = vrot.slane %v2293, 4
        %v3735 = vsel %vm3728, %v3732, %v3734
        %v3736 = vrot.slane %v2294, 4
        %v3737 = vsel %vm3728, %v3734, %v3736
        %v3738 = vrot.slane %v2295, 4
        %v3739 = vsel %vm3728, %v3736, %v3738
        %v3740 = vrot.slane %v2296, 4
        %v3741 = vsel %vm3728, %v3738, %v3740
        %v3745 = vunpack.c.l.b16 %v3724
        %v3746 = vunpack.c.l.b16 %v3725
        %v3747 = vunpack.c.l.b16 %v3726
        %v3748 = vpack.c.b16 %v3746, %v3745
        %v3749 = vpack.c.b16 %v3747, %v3747
        %v3752 = vsel %vm2371, %v3731, 0
        %v3755 = vsel %vm2371, %v3733, 0
        %v3758 = vsel %vm2371, %v3735, 0
        %v3761 = vsel %vm2371, %v3737, 0
        %v3764 = vsel %vm2371, %v3739, 0
        %v3767 = vsel %vm2371, %v3741, 0
        %v3770 = vsel %vm2390, %v3749, 0
        %3772 = vmatprep.subr.bf16.mxu0 0
        %3773 = vmatpush1.bf16.msra.mxu0 0
        %3774 = vmatprep.subr.bf16.mxu0 0
        %3775 = vmatpush1.bf16.msra.mxu0 0
        %3776 = vmatprep.subr.bf16.mxu0 0
        %3777 = vmatpush1.bf16.msra.mxu0 0
        %3778 = vmatprep.subr.bf16.mxu0 0
        %3779 = vmatpush1.bf16.msra.mxu0 0
        %3780 = vmatprep.subr.bf16.mxu0 0
        %3781 = vmatpush1.bf16.msra.mxu0 0
        %3782 = vmatprep.subr.bf16.mxu0 0
        %3783 = vmatpush1.bf16.msra.mxu0 0
        %3784 = vmatprep.subr.bf16.mxu0 0
        %3785 = vmatpush1.bf16.msra.mxu0 %v3770
        %3786 = vmatprep.subr.bf16.mxu0 0
        %3787 = vmatpush1.bf16.msra.mxu0 %v3748
        %3788 = vmatprep.subr.bf16.mxu0 0
        %3789 = vmatpush2.bf16.msra.mxu0 0
        %3790 = vmatprep.subr.bf16.mxu0 0
        %3791 = vmatpush2.bf16.msra.mxu0 0
        %3792 = vmatprep.subr.bf16.mxu0 0
        %3793 = vmatpush2.bf16.msra.mxu0 0
        %3794 = vmatprep.subr.bf16.mxu0 0
        %3795 = vmatpush2.bf16.msra.mxu0 0
        %3796 = vmatprep.subr.bf16.mxu0 0
        %3797 = vmatpush2.bf16.msra.mxu0 0
        %3798 = vmatprep.subr.bf16.mxu0 0
        %3799 = vmatpush2.bf16.msra.mxu0 0
        %3800 = vmatprep.subr.bf16.mxu0 0
        %3801 = vmatpush2.bf16.msra.mxu0 0
        %3802 = vmatprep.subr.bf16.mxu0 0
        %3803 = vmatpush2.bf16.msra.mxu0 0
        %3804 = vmatprep.mubr.bf16.mxu0 0
        %3805 = vmatmul.mubr.bf16.gmra.mxu0 %v3752
        %v3806 = vpop.f32.mrf.mxu0
        %v3807 = vadd.f32 0.0, %v3806
        %v3808 = vpop.f32.mrf.mxu0
        %v3809 = vpop.f32.mrf.mxu0
        %v3810 = vadd.f32 0.0, %v3809
        %v3811 = vpop.f32.mrf.mxu0
        %3812 = vmatprep.mubr.bf16.mxu0 0
        %3813 = vmatmul.mubr.bf16.gmra.mxu0 %v3755
        %v3814 = vpop.f32.mrf.mxu0
        %v3815 = vadd.f32 0.0, %v3814
        %v3816 = vpop.f32.mrf.mxu0
        %v3817 = vpop.f32.mrf.mxu0
        %v3818 = vadd.f32 0.0, %v3817
        %v3819 = vpop.f32.mrf.mxu0
        %3820 = vmatprep.mubr.bf16.mxu0 0
        %3821 = vmatmul.mubr.bf16.gmra.mxu0 %v3758
        %v3822 = vpop.f32.mrf.mxu0
        %v3823 = vadd.f32 0.0, %v3822
        %v3824 = vpop.f32.mrf.mxu0
        %v3825 = vpop.f32.mrf.mxu0
        %v3826 = vadd.f32 0.0, %v3825
        %v3827 = vpop.f32.mrf.mxu0
        %3828 = vmatprep.mubr.bf16.mxu0 0
        %3829 = vmatmul.mubr.bf16.gmra.mxu0 %v3761
        %v3830 = vpop.f32.mrf.mxu0
        %v3831 = vadd.f32 0.0, %v3830
        %v3832 = vpop.f32.mrf.mxu0
        %v3833 = vpop.f32.mrf.mxu0
        %v3834 = vadd.f32 0.0, %v3833
        %v3835 = vpop.f32.mrf.mxu0
        %3836 = vmatprep.mubr.bf16.mxu0 0
        %3837 = vmatmul.mubr.bf16.gmra.mxu0 %v3764
        %v3838 = vpop.f32.mrf.mxu0
        %v3839 = vadd.f32 0.0, %v3838
        %v3840 = vpop.f32.mrf.mxu0
        %v3841 = vpop.f32.mrf.mxu0
        %v3842 = vadd.f32 0.0, %v3841
        %v3843 = vpop.f32.mrf.mxu0
        %3844 = vmatprep.mubr.bf16.mxu0 0
        %3845 = vmatmul.mubr.bf16.gmra.mxu0 %v3767
        %v3846 = vpop.f32.mrf.mxu0
        %v3847 = vadd.f32 0.0, %v3846
        %v3848 = vpop.f32.mrf.mxu0
        %v3849 = vpop.f32.mrf.mxu0
        %v3850 = vadd.f32 0.0, %v3849
        %v3851 = vpop.f32.mrf.mxu0
        %3852 = vdwg.mxu0
        %v3853 = vadd.f32 %v3712, %v3807
        %v3854 = vadd.f32 %v3713, %v3810
        %v3855 = vadd.f32 %v3714, %v3815
        %v3856 = vadd.f32 %v3715, %v3818
        %v3857 = vadd.f32 %v3716, %v3823
        %v3858 = vadd.f32 %v3717, %v3826
        %v3859 = vadd.f32 %v3718, %v3831
        %v3860 = vadd.f32 %v3719, %v3834
        %v3861 = vadd.f32 %v3720, %v3839
        %v3862 = vadd.f32 %v3721, %v3842
        %v3863 = vadd.f32 %v3722, %v3847
        %v3864 = vadd.f32 %v3723, %v3850
        %v3865 = vld [vmem:[%s3 + $0x6c] sm:$0xc]
        %v3866 = vld [vmem:[%s3 + $0x70] sm:$0xf]
        %v3867 = vld [vmem:[%s3 + $0x74] sm:$0xf]
        %vm3868 = vsmask.f32 3328
        %v3869 = vrot.slane %v2318, 4
        %v3870 = vrot.slane %v2314, 5
        %v3871 = vor.u32 %v3869, %v3870
        %v3872 = vrot.slane %v2326, 4
        %v3873 = vrot.slane %v2322, 5
        %v3874 = vor.u32 %v3872, %v3873
        %v3875 = vsel %vm3868, %v3871, %v3874
        %v3876 = vrot.slane %v2334, 4
        %v3877 = vrot.slane %v2330, 5
        %v3878 = vor.u32 %v3876, %v3877
        %v3879 = vsel %vm3868, %v3874, %v3878
        %v3880 = vrot.slane %v2342, 4
        %v3881 = vrot.slane %v2338, 5
        %v3882 = vor.u32 %v3880, %v3881
        %v3883 = vsel %vm3868, %v3878, %v3882
        %v3884 = vrot.slane %v2350, 4
        %v3885 = vrot.slane %v2346, 5
        %v3886 = vor.u32 %v3884, %v3885
        %v3887 = vsel %vm3868, %v3882, %v3886
        %v3888 = vrot.slane %v2754, 4
        %v3889 = vrot.slane %v2354, 5
        %v3890 = vor.u32 %v3888, %v3889
        %v3891 = vsel %vm3868, %v3886, %v3890
        %v3893 = vshrl.u32 %v2296, 16
        %v3895 = vrot.slane %v3893, 4
        %v3896 = vshll.u32 %v2296, 16
        %v3898 = vrot.slane %v3896, 5
        %v3899 = vor.u32 %v3895, %v3898
        %v3900 = vsel %vm3868, %v3890, %v3899
        %v3904 = vunpack.c.l.b16 %v3865
        %v3905 = vunpack.c.l.b16 %v3866
        %v3906 = vunpack.c.l.b16 %v3867
        %v3907 = vpack.c.b16 %v3905, %v3904
        %v3908 = vpack.c.b16 %v3906, %v3906
        %v3909 = vrot.slane %v3907, 2
        %v3910 = vrot.slane %v3908, 2
        %v3911 = vsel %vm2366, %v3909, %v3910
        %v3914 = vsel %vm2371, %v3875, 0
        %v3917 = vsel %vm2371, %v3879, 0
        %v3920 = vsel %vm2371, %v3883, 0
        %v3923 = vsel %vm2371, %v3887, 0
        %v3926 = vsel %vm2371, %v3891, 0
        %v3929 = vsel %vm2371, %v3900, 0
        %v3932 = vsel %vm2390, %v3910, 0
        %3934 = vmatprep.subr.bf16.mxu0 0
        %3935 = vmatpush1.bf16.msra.mxu0 0
        %3936 = vmatprep.subr.bf16.mxu0 0
        %3937 = vmatpush1.bf16.msra.mxu0 0
        %3938 = vmatprep.subr.bf16.mxu0 0
        %3939 = vmatpush1.bf16.msra.mxu0 0
        %3940 = vmatprep.subr.bf16.mxu0 0
        %3941 = vmatpush1.bf16.msra.mxu0 0
        %3942 = vmatprep.subr.bf16.mxu0 0
        %3943 = vmatpush1.bf16.msra.mxu0 0
        %3944 = vmatprep.subr.bf16.mxu0 0
        %3945 = vmatpush1.bf16.msra.mxu0 0
        %3946 = vmatprep.subr.bf16.mxu0 0
        %3947 = vmatpush1.bf16.msra.mxu0 %v3932
        %3948 = vmatprep.subr.bf16.mxu0 0
        %3949 = vmatpush1.bf16.msra.mxu0 %v3911
        %3950 = vmatprep.subr.bf16.mxu0 0
        %3951 = vmatpush2.bf16.msra.mxu0 0
        %3952 = vmatprep.subr.bf16.mxu0 0
        %3953 = vmatpush2.bf16.msra.mxu0 0
        %3954 = vmatprep.subr.bf16.mxu0 0
        %3955 = vmatpush2.bf16.msra.mxu0 0
        %3956 = vmatprep.subr.bf16.mxu0 0
        %3957 = vmatpush2.bf16.msra.mxu0 0
        %3958 = vmatprep.subr.bf16.mxu0 0
        %3959 = vmatpush2.bf16.msra.mxu0 0
        %3960 = vmatprep.subr.bf16.mxu0 0
        %3961 = vmatpush2.bf16.msra.mxu0 0
        %3962 = vmatprep.subr.bf16.mxu0 0
        %3963 = vmatpush2.bf16.msra.mxu0 0
        %3964 = vmatprep.subr.bf16.mxu0 0
        %3965 = vmatpush2.bf16.msra.mxu0 0
        %3966 = vmatprep.mubr.bf16.mxu0 0
        %3967 = vmatmul.mubr.bf16.gmra.mxu0 %v3914
        %v3968 = vpop.f32.mrf.mxu0
        %v3969 = vadd.f32 0.0, %v3968
        %v3970 = vpop.f32.mrf.mxu0
        %v3971 = vpop.f32.mrf.mxu0
        %v3972 = vadd.f32 0.0, %v3971
        %v3973 = vpop.f32.mrf.mxu0
        %3974 = vmatprep.mubr.bf16.mxu0 0
        %3975 = vmatmul.mubr.bf16.gmra.mxu0 %v3917
        %v3976 = vpop.f32.mrf.mxu0
        %v3977 = vadd.f32 0.0, %v3976
        %v3978 = vpop.f32.mrf.mxu0
        %v3979 = vpop.f32.mrf.mxu0
        %v3980 = vadd.f32 0.0, %v3979
        %v3981 = vpop.f32.mrf.mxu0
        %3982 = vmatprep.mubr.bf16.mxu0 0
        %3983 = vmatmul.mubr.bf16.gmra.mxu0 %v3920
        %v3984 = vpop.f32.mrf.mxu0
        %v3985 = vadd.f32 0.0, %v3984
        %v3986 = vpop.f32.mrf.mxu0
        %v3987 = vpop.f32.mrf.mxu0
        %v3988 = vadd.f32 0.0, %v3987
        %v3989 = vpop.f32.mrf.mxu0
        %3990 = vmatprep.mubr.bf16.mxu0 0
        %3991 = vmatmul.mubr.bf16.gmra.mxu0 %v3923
        %v3992 = vpop.f32.mrf.mxu0
        %v3993 = vadd.f32 0.0, %v3992
        %v3994 = vpop.f32.mrf.mxu0
        %v3995 = vpop.f32.mrf.mxu0
        %v3996 = vadd.f32 0.0, %v3995
        %v3997 = vpop.f32.mrf.mxu0
        %3998 = vmatprep.mubr.bf16.mxu0 0
        %3999 = vmatmul.mubr.bf16.gmra.mxu0 %v3926
        %v4000 = vpop.f32.mrf.mxu0
        %v4001 = vadd.f32 0.0, %v4000
        %v4002 = vpop.f32.mrf.mxu0
        %v4003 = vpop.f32.mrf.mxu0
        %v4004 = vadd.f32 0.0, %v4003
        %v4005 = vpop.f32.mrf.mxu0
        %4006 = vmatprep.mubr.bf16.mxu0 0
        %4007 = vmatmul.mubr.bf16.gmra.mxu0 %v3929
        %v4008 = vpop.f32.mrf.mxu0
        %v4009 = vadd.f32 0.0, %v4008
        %v4010 = vpop.f32.mrf.mxu0
        %v4011 = vpop.f32.mrf.mxu0
        %v4012 = vadd.f32 0.0, %v4011
        %v4013 = vpop.f32.mrf.mxu0
        %4014 = vdwg.mxu0
        %v4015 = vadd.f32 %v3853, %v3969
        %v4016 = vadd.f32 %v3854, %v3972
        %v4017 = vadd.f32 %v3855, %v3977
        %v4018 = vadd.f32 %v3856, %v3980
        %v4019 = vadd.f32 %v3857, %v3985
        %v4020 = vadd.f32 %v3858, %v3988
        %v4021 = vadd.f32 %v3859, %v3993
        %v4022 = vadd.f32 %v3860, %v3996
        %v4023 = vadd.f32 %v3861, %v4001
        %v4024 = vadd.f32 %v3862, %v4004
        %v4025 = vadd.f32 %v3863, %v4009
        %v4026 = vadd.f32 %v3864, %v4012
        %v4027 = vld [vmem:[%s3 + $0x78] sm:$0xf]
        %v4028 = vld [vmem:[%s3 + $0x7c] sm:$0xf]
        %v4029 = vld [vmem:[%s3 + $0x80] sm:$0x3]
        %vm4030 = vcmask 1042432
        %v4031 = vrot.slane %v2290, 5
        %v4032 = vrot.slane %v2291, 5
        %v4033 = vsel %vm4030, %v4031, %v4032
        %v4034 = vrot.slane %v2292, 5
        %v4035 = vsel %vm4030, %v4032, %v4034
        %v4036 = vrot.slane %v2293, 5
        %v4037 = vsel %vm4030, %v4034, %v4036
        %v4038 = vrot.slane %v2294, 5
        %v4039 = vsel %vm4030, %v4036, %v4038
        %v4040 = vrot.slane %v2295, 5
        %v4041 = vsel %vm4030, %v4038, %v4040
        %v4042 = vrot.slane %v2296, 5
        %v4043 = vsel %vm4030, %v4040, %v4042
        %v4047 = vunpack.c.l.b16 %v4027
        %v4048 = vunpack.c.l.b16 %v4028
        %v4049 = vunpack.c.l.b16 %v4029
        %v4050 = vpack.c.b16 %v4048, %v4047
        %v4051 = vpack.c.b16 %v4049, %v4049
        %v4054 = vsel %vm2371, %v4033, 0
        %v4057 = vsel %vm2371, %v4035, 0
        %v4060 = vsel %vm2371, %v4037, 0
        %v4063 = vsel %vm2371, %v4039, 0
        %v4066 = vsel %vm2371, %v4041, 0
        %v4069 = vsel %vm2371, %v4043, 0
        %v4072 = vsel %vm2390, %v4051, 0
        %4074 = vmatprep.subr.bf16.mxu0 0
        %4075 = vmatpush1.bf16.msra.mxu0 0
        %4076 = vmatprep.subr.bf16.mxu0 0
        %4077 = vmatpush1.bf16.msra.mxu0 0
        %4078 = vmatprep.subr.bf16.mxu0 0
        %4079 = vmatpush1.bf16.msra.mxu0 0
        %4080 = vmatprep.subr.bf16.mxu0 0
        %4081 = vmatpush1.bf16.msra.mxu0 0
        %4082 = vmatprep.subr.bf16.mxu0 0
        %4083 = vmatpush1.bf16.msra.mxu0 0
        %4084 = vmatprep.subr.bf16.mxu0 0
        %4085 = vmatpush1.bf16.msra.mxu0 0
        %4086 = vmatprep.subr.bf16.mxu0 0
        %4087 = vmatpush1.bf16.msra.mxu0 %v4072
        %4088 = vmatprep.subr.bf16.mxu0 0
        %4089 = vmatpush1.bf16.msra.mxu0 %v4050
        %4090 = vmatprep.subr.bf16.mxu0 0
        %4091 = vmatpush2.bf16.msra.mxu0 0
        %4092 = vmatprep.subr.bf16.mxu0 0
        %4093 = vmatpush2.bf16.msra.mxu0 0
        %4094 = vmatprep.subr.bf16.mxu0 0
        %4095 = vmatpush2.bf16.msra.mxu0 0
        %4096 = vmatprep.subr.bf16.mxu0 0
        %4097 = vmatpush2.bf16.msra.mxu0 0
        %4098 = vmatprep.subr.bf16.mxu0 0
        %4099 = vmatpush2.bf16.msra.mxu0 0
        %4100 = vmatprep.subr.bf16.mxu0 0
        %4101 = vmatpush2.bf16.msra.mxu0 0
        %4102 = vmatprep.subr.bf16.mxu0 0
        %4103 = vmatpush2.bf16.msra.mxu0 0
        %4104 = vmatprep.subr.bf16.mxu0 0
        %4105 = vmatpush2.bf16.msra.mxu0 0
        %4106 = vmatprep.mubr.bf16.mxu0 0
        %4107 = vmatmul.mubr.bf16.gmra.mxu0 %v4054
        %v4108 = vpop.f32.mrf.mxu0
        %v4109 = vadd.f32 0.0, %v4108
        %v4110 = vpop.f32.mrf.mxu0
        %v4111 = vpop.f32.mrf.mxu0
        %v4112 = vadd.f32 0.0, %v4111
        %v4113 = vpop.f32.mrf.mxu0
        %4114 = vmatprep.mubr.bf16.mxu0 0
        %4115 = vmatmul.mubr.bf16.gmra.mxu0 %v4057
        %v4116 = vpop.f32.mrf.mxu0
        %v4117 = vadd.f32 0.0, %v4116
        %v4118 = vpop.f32.mrf.mxu0
        %v4119 = vpop.f32.mrf.mxu0
        %v4120 = vadd.f32 0.0, %v4119
        %v4121 = vpop.f32.mrf.mxu0
        %4122 = vmatprep.mubr.bf16.mxu0 0
        %4123 = vmatmul.mubr.bf16.gmra.mxu0 %v4060
        %v4124 = vpop.f32.mrf.mxu0
        %v4125 = vadd.f32 0.0, %v4124
        %v4126 = vpop.f32.mrf.mxu0
        %v4127 = vpop.f32.mrf.mxu0
        %v4128 = vadd.f32 0.0, %v4127
        %v4129 = vpop.f32.mrf.mxu0
        %4130 = vmatprep.mubr.bf16.mxu0 0
        %4131 = vmatmul.mubr.bf16.gmra.mxu0 %v4063
        %v4132 = vpop.f32.mrf.mxu0
        %v4133 = vadd.f32 0.0, %v4132
        %v4134 = vpop.f32.mrf.mxu0
        %v4135 = vpop.f32.mrf.mxu0
        %v4136 = vadd.f32 0.0, %v4135
        %v4137 = vpop.f32.mrf.mxu0
        %4138 = vmatprep.mubr.bf16.mxu0 0
        %4139 = vmatmul.mubr.bf16.gmra.mxu0 %v4066
        %v4140 = vpop.f32.mrf.mxu0
        %v4141 = vadd.f32 0.0, %v4140
        %v4142 = vpop.f32.mrf.mxu0
        %v4143 = vpop.f32.mrf.mxu0
        %v4144 = vadd.f32 0.0, %v4143
        %v4145 = vpop.f32.mrf.mxu0
        %4146 = vmatprep.mubr.bf16.mxu0 0
        %4147 = vmatmul.mubr.bf16.gmra.mxu0 %v4069
        %v4148 = vpop.f32.mrf.mxu0
        %v4149 = vadd.f32 0.0, %v4148
        %v4150 = vpop.f32.mrf.mxu0
        %v4151 = vpop.f32.mrf.mxu0
        %v4152 = vadd.f32 0.0, %v4151
        %v4153 = vpop.f32.mrf.mxu0
        %4154 = vdwg.mxu0
        %v4155 = vadd.f32 %v4015, %v4109
        %v4156 = vadd.f32 %v4016, %v4112
        %v4157 = vadd.f32 %v4017, %v4117
        %v4158 = vadd.f32 %v4018, %v4120
        %v4159 = vadd.f32 %v4019, %v4125
        %v4160 = vadd.f32 %v4020, %v4128
        %v4161 = vadd.f32 %v4021, %v4133
        %v4162 = vadd.f32 %v4022, %v4136
        %v4163 = vadd.f32 %v4023, %v4141
        %v4164 = vadd.f32 %v4024, %v4144
        %v4165 = vadd.f32 %v4025, %v4149
        %v4166 = vadd.f32 %v4026, %v4152
        %v4167 = vld [vmem:[%s3 + $0x80] sm:$0xc]
        %v4168 = vld [vmem:[%s3 + $0x84] sm:$0xf]
        %v4169 = vld [vmem:[%s3 + $0x88] sm:$0xf]
        %vm4170 = vsmask.f32 2304
        %v4171 = vrot.slane %v2318, 5
        %v4172 = vrot.slane %v2314, 6
        %v4173 = vor.u32 %v4171, %v4172
        %v4174 = vrot.slane %v2326, 5
        %v4175 = vrot.slane %v2322, 6
        %v4176 = vor.u32 %v4174, %v4175
        %v4177 = vsel %vm4170, %v4173, %v4176
        %v4178 = vrot.slane %v2334, 5
        %v4179 = vrot.slane %v2330, 6
        %v4180 = vor.u32 %v4178, %v4179
        %v4181 = vsel %vm4170, %v4176, %v4180
        %v4182 = vrot.slane %v2342, 5
        %v4183 = vrot.slane %v2338, 6
        %v4184 = vor.u32 %v4182, %v4183
        %v4185 = vsel %vm4170, %v4180, %v4184
        %v4186 = vrot.slane %v2350, 5
        %v4187 = vrot.slane %v2346, 6
        %v4188 = vor.u32 %v4186, %v4187
        %v4189 = vsel %vm4170, %v4184, %v4188
        %v4190 = vrot.slane %v2754, 5
        %v4191 = vrot.slane %v2354, 6
        %v4192 = vor.u32 %v4190, %v4191
        %v4193 = vsel %vm4170, %v4188, %v4192
        %v4194 = vrot.slane %v3893, 5
        %v4195 = vrot.slane %v3896, 6
        %v4196 = vor.u32 %v4194, %v4195
        %v4197 = vsel %vm4170, %v4192, %v4196
        %v4201 = vunpack.c.l.b16 %v4167
        %v4202 = vunpack.c.l.b16 %v4168
        %v4203 = vunpack.c.l.b16 %v4169
        %v4204 = vpack.c.b16 %v4202, %v4201
        %v4205 = vpack.c.b16 %v4203, %v4203
        %v4206 = vrot.slane %v4204, 2
        %v4207 = vrot.slane %v4205, 2
        %v4208 = vsel %vm2366, %v4206, %v4207
        %v4211 = vsel %vm2371, %v4177, 0
        %v4214 = vsel %vm2371, %v4181, 0
        %v4217 = vsel %vm2371, %v4185, 0
        %v4220 = vsel %vm2371, %v4189, 0
        %v4223 = vsel %vm2371, %v4193, 0
        %v4226 = vsel %vm2371, %v4197, 0
        %v4229 = vsel %vm2390, %v4207, 0
        %4231 = vmatprep.subr.bf16.mxu0 0
        %4232 = vmatpush1.bf16.msra.mxu0 0
        %4233 = vmatprep.subr.bf16.mxu0 0
        %4234 = vmatpush1.bf16.msra.mxu0 0
        %4235 = vmatprep.subr.bf16.mxu0 0
        %4236 = vmatpush1.bf16.msra.mxu0 0
        %4237 = vmatprep.subr.bf16.mxu0 0
        %4238 = vmatpush1.bf16.msra.mxu0 0
        %4239 = vmatprep.subr.bf16.mxu0 0
        %4240 = vmatpush1.bf16.msra.mxu0 0
        %4241 = vmatprep.subr.bf16.mxu0 0
        %4242 = vmatpush1.bf16.msra.mxu0 0
        %4243 = vmatprep.subr.bf16.mxu0 0
        %4244 = vmatpush1.bf16.msra.mxu0 %v4229
        %4245 = vmatprep.subr.bf16.mxu0 0
        %4246 = vmatpush1.bf16.msra.mxu0 %v4208
        %4247 = vmatprep.subr.bf16.mxu0 0
        %4248 = vmatpush2.bf16.msra.mxu0 0
        %4249 = vmatprep.subr.bf16.mxu0 0
        %4250 = vmatpush2.bf16.msra.mxu0 0
        %4251 = vmatprep.subr.bf16.mxu0 0
        %4252 = vmatpush2.bf16.msra.mxu0 0
        %4253 = vmatprep.subr.bf16.mxu0 0
        %4254 = vmatpush2.bf16.msra.mxu0 0
        %4255 = vmatprep.subr.bf16.mxu0 0
        %4256 = vmatpush2.bf16.msra.mxu0 0
        %4257 = vmatprep.subr.bf16.mxu0 0
        %4258 = vmatpush2.bf16.msra.mxu0 0
        %4259 = vmatprep.subr.bf16.mxu0 0
        %4260 = vmatpush2.bf16.msra.mxu0 0
        %4261 = vmatprep.subr.bf16.mxu0 0
        %4262 = vmatpush2.bf16.msra.mxu0 0
        %4263 = vmatprep.mubr.bf16.mxu0 0
        %4264 = vmatmul.mubr.bf16.gmra.mxu0 %v4211
        %v4265 = vpop.f32.mrf.mxu0
        %v4266 = vadd.f32 0.0, %v4265
        %v4267 = vpop.f32.mrf.mxu0
        %v4268 = vpop.f32.mrf.mxu0
        %v4269 = vadd.f32 0.0, %v4268
        %v4270 = vpop.f32.mrf.mxu0
        %4271 = vmatprep.mubr.bf16.mxu0 0
        %4272 = vmatmul.mubr.bf16.gmra.mxu0 %v4214
        %v4273 = vpop.f32.mrf.mxu0
        %v4274 = vadd.f32 0.0, %v4273
        %v4275 = vpop.f32.mrf.mxu0
        %v4276 = vpop.f32.mrf.mxu0
        %v4277 = vadd.f32 0.0, %v4276
        %v4278 = vpop.f32.mrf.mxu0
        %4279 = vmatprep.mubr.bf16.mxu0 0
        %4280 = vmatmul.mubr.bf16.gmra.mxu0 %v4217
        %v4281 = vpop.f32.mrf.mxu0
        %v4282 = vadd.f32 0.0, %v4281
        %v4283 = vpop.f32.mrf.mxu0
        %v4284 = vpop.f32.mrf.mxu0
        %v4285 = vadd.f32 0.0, %v4284
        %v4286 = vpop.f32.mrf.mxu0
        %4287 = vmatprep.mubr.bf16.mxu0 0
        %4288 = vmatmul.mubr.bf16.gmra.mxu0 %v4220
        %v4289 = vpop.f32.mrf.mxu0
        %v4290 = vadd.f32 0.0, %v4289
        %v4291 = vpop.f32.mrf.mxu0
        %v4292 = vpop.f32.mrf.mxu0
        %v4293 = vadd.f32 0.0, %v4292
        %v4294 = vpop.f32.mrf.mxu0
        %4295 = vmatprep.mubr.bf16.mxu0 0
        %4296 = vmatmul.mubr.bf16.gmra.mxu0 %v4223
        %v4297 = vpop.f32.mrf.mxu0
        %v4298 = vadd.f32 0.0, %v4297
        %v4299 = vpop.f32.mrf.mxu0
        %v4300 = vpop.f32.mrf.mxu0
        %v4301 = vadd.f32 0.0, %v4300
        %v4302 = vpop.f32.mrf.mxu0
        %4303 = vmatprep.mubr.bf16.mxu0 0
        %4304 = vmatmul.mubr.bf16.gmra.mxu0 %v4226
        %v4305 = vpop.f32.mrf.mxu0
        %v4306 = vadd.f32 0.0, %v4305
        %v4307 = vpop.f32.mrf.mxu0
        %v4308 = vpop.f32.mrf.mxu0
        %v4309 = vadd.f32 0.0, %v4308
        %v4310 = vpop.f32.mrf.mxu0
        %4311 = vdwg.mxu0
        %v4312 = vadd.f32 %v4155, %v4266
        %v4313 = vadd.f32 %v4156, %v4269
        %v4314 = vadd.f32 %v4157, %v4274
        %v4315 = vadd.f32 %v4158, %v4277
        %v4316 = vadd.f32 %v4159, %v4282
        %v4317 = vadd.f32 %v4160, %v4285
        %v4318 = vadd.f32 %v4161, %v4290
        %v4319 = vadd.f32 %v4162, %v4293
        %v4320 = vadd.f32 %v4163, %v4298
        %v4321 = vadd.f32 %v4164, %v4301
        %v4322 = vadd.f32 %v4165, %v4306
        %v4323 = vadd.f32 %v4166, %v4309
        %v4324 = vld [vmem:[%s3 + $0x8c] sm:$0xf]
        %v4325 = vld [vmem:[%s3 + $0x90] sm:$0xf]
        %v4326 = vld [vmem:[%s3 + $0x94] sm:$0x3]
        %v4327 = vrot.slane %v2296, 6
        %v4328 = vsel %vm3028, %v3040, %v4327
        %v4332 = vunpack.c.l.b16 %v4324
        %v4333 = vunpack.c.l.b16 %v4325
        %v4334 = vunpack.c.l.b16 %v4326
        %v4335 = vpack.c.b16 %v4333, %v4332
        %v4336 = vpack.c.b16 %v4334, %v4334
        %v4339 = vsel %vm2371, %v4328, 0
        %v4342 = vsel %vm2390, %v4336, 0
        %4344 = vmatprep.subr.bf16.mxu0 0
        %4345 = vmatpush1.bf16.msra.mxu0 0
        %4346 = vmatprep.subr.bf16.mxu0 0
        %4347 = vmatpush1.bf16.msra.mxu0 0
        %4348 = vmatprep.subr.bf16.mxu0 0
        %4349 = vmatpush1.bf16.msra.mxu0 0
        %4350 = vmatprep.subr.bf16.mxu0 0
        %4351 = vmatpush1.bf16.msra.mxu0 0
        %4352 = vmatprep.subr.bf16.mxu0 0
        %4353 = vmatpush1.bf16.msra.mxu0 0
        %4354 = vmatprep.subr.bf16.mxu0 0
        %4355 = vmatpush1.bf16.msra.mxu0 0
        %4356 = vmatprep.subr.bf16.mxu0 0
        %4357 = vmatpush1.bf16.msra.mxu0 %v4342
        %4358 = vmatprep.subr.bf16.mxu0 0
        %4359 = vmatpush1.bf16.msra.mxu0 %v4335
        %4360 = vmatprep.subr.bf16.mxu0 0
        %4361 = vmatpush2.bf16.msra.mxu0 0
        %4362 = vmatprep.subr.bf16.mxu0 0
        %4363 = vmatpush2.bf16.msra.mxu0 0
        %4364 = vmatprep.subr.bf16.mxu0 0
        %4365 = vmatpush2.bf16.msra.mxu0 0
        %4366 = vmatprep.subr.bf16.mxu0 0
        %4367 = vmatpush2.bf16.msra.mxu0 0
        %4368 = vmatprep.subr.bf16.mxu0 0
        %4369 = vmatpush2.bf16.msra.mxu0 0
        %4370 = vmatprep.subr.bf16.mxu0 0
        %4371 = vmatpush2.bf16.msra.mxu0 0
        %4372 = vmatprep.subr.bf16.mxu0 0
        %4373 = vmatpush2.bf16.msra.mxu0 0
        %4374 = vmatprep.subr.bf16.mxu0 0
        %4375 = vmatpush2.bf16.msra.mxu0 0
        %4376 = vmatprep.mubr.bf16.mxu0 0
        %4377 = vmatmul.mubr.bf16.gmra.mxu0 %v3058
        %v4378 = vpop.f32.mrf.mxu0
        %v4379 = vadd.f32 0.0, %v4378
        %v4380 = vpop.f32.mrf.mxu0
        %v4381 = vpop.f32.mrf.mxu0
        %v4382 = vadd.f32 0.0, %v4381
        %v4383 = vpop.f32.mrf.mxu0
        %4384 = vmatprep.mubr.bf16.mxu0 0
        %4385 = vmatmul.mubr.bf16.gmra.mxu0 %v3061
        %v4386 = vpop.f32.mrf.mxu0
        %v4387 = vadd.f32 0.0, %v4386
        %v4388 = vpop.f32.mrf.mxu0
        %v4389 = vpop.f32.mrf.mxu0
        %v4390 = vadd.f32 0.0, %v4389
        %v4391 = vpop.f32.mrf.mxu0
        %4392 = vmatprep.mubr.bf16.mxu0 0
        %4393 = vmatmul.mubr.bf16.gmra.mxu0 %v3064
        %v4394 = vpop.f32.mrf.mxu0
        %v4395 = vadd.f32 0.0, %v4394
        %v4396 = vpop.f32.mrf.mxu0
        %v4397 = vpop.f32.mrf.mxu0
        %v4398 = vadd.f32 0.0, %v4397
        %v4399 = vpop.f32.mrf.mxu0
        %4400 = vmatprep.mubr.bf16.mxu0 0
        %4401 = vmatmul.mubr.bf16.gmra.mxu0 %v3067
        %v4402 = vpop.f32.mrf.mxu0
        %v4403 = vadd.f32 0.0, %v4402
        %v4404 = vpop.f32.mrf.mxu0
        %v4405 = vpop.f32.mrf.mxu0
        %v4406 = vadd.f32 0.0, %v4405
        %v4407 = vpop.f32.mrf.mxu0
        %4408 = vmatprep.mubr.bf16.mxu0 0
        %4409 = vmatmul.mubr.bf16.gmra.mxu0 %v3070
        %v4410 = vpop.f32.mrf.mxu0
        %v4411 = vadd.f32 0.0, %v4410
        %v4412 = vpop.f32.mrf.mxu0
        %v4413 = vpop.f32.mrf.mxu0
        %v4414 = vadd.f32 0.0, %v4413
        %v4415 = vpop.f32.mrf.mxu0
        %4416 = vmatprep.mubr.bf16.mxu0 0
        %4417 = vmatmul.mubr.bf16.gmra.mxu0 %v4339
        %v4418 = vpop.f32.mrf.mxu0
        %v4419 = vadd.f32 0.0, %v4418
        %v4420 = vpop.f32.mrf.mxu0
        %v4421 = vpop.f32.mrf.mxu0
        %v4422 = vadd.f32 0.0, %v4421
        %v4423 = vpop.f32.mrf.mxu0
        %4424 = vdwg.mxu0
        %v4425 = vadd.f32 %v4312, %v4379
        %v4426 = vadd.f32 %v4313, %v4382
        %v4427 = vadd.f32 %v4314, %v4387
        %v4428 = vadd.f32 %v4315, %v4390
        %v4429 = vadd.f32 %v4316, %v4395
        %v4430 = vadd.f32 %v4317, %v4398
        %v4431 = vadd.f32 %v4318, %v4403
        %v4432 = vadd.f32 %v4319, %v4406
        %v4433 = vadd.f32 %v4320, %v4411
        %v4434 = vadd.f32 %v4321, %v4414
        %v4435 = vadd.f32 %v4322, %v4419
        %v4436 = vadd.f32 %v4323, %v4422
        %v4437 = vld [vmem:[%s3 + $0x94] sm:$0xc]
        %v4438 = vld [vmem:[%s3 + $0x98] sm:$0xf]
        %v4439 = vld [vmem:[%s3 + $0x9c] sm:$0xf]
        %v4441 = vrot.slane %v2296, 2
        %v4442 = vsel %vm2366, %v2900, %v4441
        %v4443 = vrot.slane %v2297, 2
        %v4444 = vsel %vm2366, %v4441, %v4443
        %v4448 = vunpack.c.l.b16 %v4437
        %v4449 = vunpack.c.l.b16 %v4438
        %v4450 = vunpack.c.l.b16 %v4439
        %v4451 = vpack.c.b16 %v4449, %v4448
        %v4452 = vpack.c.b16 %v4450, %v4450
        %v4453 = vrot.slane %v4451, 2
        %v4454 = vrot.slane %v4452, 2
        %v4455 = vsel %vm2366, %v4453, %v4454
        %v4458 = vsel %vm2371, %v4442, 0
        %v4461 = vsel %vm2371, %v4444, 0
        %v4464 = vsel %vm2390, %v4454, 0
        %4466 = vmatprep.subr.bf16.mxu0 0
        %4467 = vmatpush1.bf16.msra.mxu0 0
        %4468 = vmatprep.subr.bf16.mxu0 0
        %4469 = vmatpush1.bf16.msra.mxu0 0
        %4470 = vmatprep.subr.bf16.mxu0 0
        %4471 = vmatpush1.bf16.msra.mxu0 0
        %4472 = vmatprep.subr.bf16.mxu0 0
        %4473 = vmatpush1.bf16.msra.mxu0 0
        %4474 = vmatprep.subr.bf16.mxu0 0
        %4475 = vmatpush1.bf16.msra.mxu0 0
        %4476 = vmatprep.subr.bf16.mxu0 0
        %4477 = vmatpush1.bf16.msra.mxu0 0
        %4478 = vmatprep.subr.bf16.mxu0 0
        %4479 = vmatpush1.bf16.msra.mxu0 %v4464
        %4480 = vmatprep.subr.bf16.mxu0 0
        %4481 = vmatpush1.bf16.msra.mxu0 %v4455
        %4482 = vmatprep.subr.bf16.mxu0 0
        %4483 = vmatpush2.bf16.msra.mxu0 0
        %4484 = vmatprep.subr.bf16.mxu0 0
        %4485 = vmatpush2.bf16.msra.mxu0 0
        %4486 = vmatprep.subr.bf16.mxu0 0
        %4487 = vmatpush2.bf16.msra.mxu0 0
        %4488 = vmatprep.subr.bf16.mxu0 0
        %4489 = vmatpush2.bf16.msra.mxu0 0
        %4490 = vmatprep.subr.bf16.mxu0 0
        %4491 = vmatpush2.bf16.msra.mxu0 0
        %4492 = vmatprep.subr.bf16.mxu0 0
        %4493 = vmatpush2.bf16.msra.mxu0 0
        %4494 = vmatprep.subr.bf16.mxu0 0
        %4495 = vmatpush2.bf16.msra.mxu0 0
        %4496 = vmatprep.subr.bf16.mxu0 0
        %4497 = vmatpush2.bf16.msra.mxu0 0
        %4498 = vmatprep.mubr.bf16.mxu0 0
        %4499 = vmatmul.mubr.bf16.gmra.mxu0 %v2918
        %v4500 = vpop.f32.mrf.mxu0
        %v4501 = vadd.f32 0.0, %v4500
        %v4502 = vpop.f32.mrf.mxu0
        %v4503 = vpop.f32.mrf.mxu0
        %v4504 = vadd.f32 0.0, %v4503
        %v4505 = vpop.f32.mrf.mxu0
        %4506 = vmatprep.mubr.bf16.mxu0 0
        %4507 = vmatmul.mubr.bf16.gmra.mxu0 %v2921
        %v4508 = vpop.f32.mrf.mxu0
        %v4509 = vadd.f32 0.0, %v4508
        %v4510 = vpop.f32.mrf.mxu0
        %v4511 = vpop.f32.mrf.mxu0
        %v4512 = vadd.f32 0.0, %v4511
        %v4513 = vpop.f32.mrf.mxu0
        %4514 = vmatprep.mubr.bf16.mxu0 0
        %4515 = vmatmul.mubr.bf16.gmra.mxu0 %v2924
        %v4516 = vpop.f32.mrf.mxu0
        %v4517 = vadd.f32 0.0, %v4516
        %v4518 = vpop.f32.mrf.mxu0
        %v4519 = vpop.f32.mrf.mxu0
        %v4520 = vadd.f32 0.0, %v4519
        %v4521 = vpop.f32.mrf.mxu0
        %4522 = vmatprep.mubr.bf16.mxu0 0
        %4523 = vmatmul.mubr.bf16.gmra.mxu0 %v2927
        %v4524 = vpop.f32.mrf.mxu0
        %v4525 = vadd.f32 0.0, %v4524
        %v4526 = vpop.f32.mrf.mxu0
        %v4527 = vpop.f32.mrf.mxu0
        %v4528 = vadd.f32 0.0, %v4527
        %v4529 = vpop.f32.mrf.mxu0
        %4530 = vmatprep.mubr.bf16.mxu0 0
        %4531 = vmatmul.mubr.bf16.gmra.mxu0 %v4458
        %v4532 = vpop.f32.mrf.mxu0
        %v4533 = vadd.f32 0.0, %v4532
        %v4534 = vpop.f32.mrf.mxu0
        %v4535 = vpop.f32.mrf.mxu0
        %v4536 = vadd.f32 0.0, %v4535
        %v4537 = vpop.f32.mrf.mxu0
        %4538 = vmatprep.mubr.bf16.mxu0 0
        %4539 = vmatmul.mubr.bf16.gmra.mxu0 %v4461
        %v4540 = vpop.f32.mrf.mxu0
        %v4541 = vadd.f32 0.0, %v4540
        %v4542 = vpop.f32.mrf.mxu0
        %v4543 = vpop.f32.mrf.mxu0
        %v4544 = vadd.f32 0.0, %v4543
        %v4545 = vpop.f32.mrf.mxu0
        %4546 = vdwg.mxu0
        %v4547 = vadd.f32 %v4425, %v4501
        %v4548 = vadd.f32 %v4426, %v4504
        %v4549 = vadd.f32 %v4427, %v4509
        %v4550 = vadd.f32 %v4428, %v4512
        %v4551 = vadd.f32 %v4429, %v4517
        %v4552 = vadd.f32 %v4430, %v4520
        %v4553 = vadd.f32 %v4431, %v4525
        %v4554 = vadd.f32 %v4432, %v4528
        %v4555 = vadd.f32 %v4433, %v4533
        %v4556 = vadd.f32 %v4434, %v4536
        %v4557 = vadd.f32 %v4435, %v4541
        %v4558 = vadd.f32 %v4436, %v4544
        %v4559 = vld [vmem:[%s3 + $0xa0] sm:$0xf]
        %v4560 = vld [vmem:[%s3 + $0xa4] sm:$0xf]
        %v4561 = vld [vmem:[%s3 + $0xa8] sm:$0x3]
        %vm4562 = vsmask.f32 5376
        %v4563 = vrot.slane %v2326, 2
        %v4564 = vrot.slane %v2322, 3
        %v4565 = vor.u32 %v4563, %v4564
        %v4566 = vrot.slane %v2334, 2
        %v4567 = vrot.slane %v2330, 3
        %v4568 = vor.u32 %v4566, %v4567
        %v4569 = vsel %vm4562, %v4565, %v4568
        %v4570 = vrot.slane %v2342, 2
        %v4571 = vrot.slane %v2338, 3
        %v4572 = vor.u32 %v4570, %v4571
        %v4573 = vsel %vm4562, %v4568, %v4572
        %v4574 = vrot.slane %v2350, 2
        %v4575 = vrot.slane %v2346, 3
        %v4576 = vor.u32 %v4574, %v4575
        %v4577 = vsel %vm4562, %v4572, %v4576
        %v4578 = vrot.slane %v2754, 2
        %v4579 = vrot.slane %v2354, 3
        %v4580 = vor.u32 %v4578, %v4579
        %v4581 = vsel %vm4562, %v4576, %v4580
        %v4582 = vrot.slane %v3893, 2
        %v4583 = vrot.slane %v3896, 3
        %v4584 = vor.u32 %v4582, %v4583
        %v4585 = vsel %vm4562, %v4580, %v4584
        %v4587 = vshrl.u32 %v2297, 16
        %v4589 = vrot.slane %v4587, 2
        %v4590 = vshll.u32 %v2297, 16
        %v4592 = vrot.slane %v4590, 3
        %v4593 = vor.u32 %v4589, %v4592
        %v4594 = vsel %vm4562, %v4584, %v4593
        %v4598 = vunpack.c.l.b16 %v4559
        %v4599 = vunpack.c.l.b16 %v4560
        %v4600 = vunpack.c.l.b16 %v4561
        %v4601 = vpack.c.b16 %v4599, %v4598
        %v4602 = vpack.c.b16 %v4600, %v4600
        %v4605 = vsel %vm2371, %v4569, 0
        %v4608 = vsel %vm2371, %v4573, 0
        %v4611 = vsel %vm2371, %v4577, 0
        %v4614 = vsel %vm2371, %v4581, 0
        %v4617 = vsel %vm2371, %v4585, 0
        %v4620 = vsel %vm2371, %v4594, 0
        %v4623 = vsel %vm2390, %v4602, 0
        %4625 = vmatprep.subr.bf16.mxu0 0
        %4626 = vmatpush1.bf16.msra.mxu0 0
        %4627 = vmatprep.subr.bf16.mxu0 0
        %4628 = vmatpush1.bf16.msra.mxu0 0
        %4629 = vmatprep.subr.bf16.mxu0 0
        %4630 = vmatpush1.bf16.msra.mxu0 0
        %4631 = vmatprep.subr.bf16.mxu0 0
        %4632 = vmatpush1.bf16.msra.mxu0 0
        %4633 = vmatprep.subr.bf16.mxu0 0
        %4634 = vmatpush1.bf16.msra.mxu0 0
        %4635 = vmatprep.subr.bf16.mxu0 0
        %4636 = vmatpush1.bf16.msra.mxu0 0
        %4637 = vmatprep.subr.bf16.mxu0 0
        %4638 = vmatpush1.bf16.msra.mxu0 %v4623
        %4639 = vmatprep.subr.bf16.mxu0 0
        %4640 = vmatpush1.bf16.msra.mxu0 %v4601
        %4641 = vmatprep.subr.bf16.mxu0 0
        %4642 = vmatpush2.bf16.msra.mxu0 0
        %4643 = vmatprep.subr.bf16.mxu0 0
        %4644 = vmatpush2.bf16.msra.mxu0 0
        %4645 = vmatprep.subr.bf16.mxu0 0
        %4646 = vmatpush2.bf16.msra.mxu0 0
        %4647 = vmatprep.subr.bf16.mxu0 0
        %4648 = vmatpush2.bf16.msra.mxu0 0
        %4649 = vmatprep.subr.bf16.mxu0 0
        %4650 = vmatpush2.bf16.msra.mxu0 0
        %4651 = vmatprep.subr.bf16.mxu0 0
        %4652 = vmatpush2.bf16.msra.mxu0 0
        %4653 = vmatprep.subr.bf16.mxu0 0
        %4654 = vmatpush2.bf16.msra.mxu0 0
        %4655 = vmatprep.subr.bf16.mxu0 0
        %4656 = vmatpush2.bf16.msra.mxu0 0
        %4657 = vmatprep.mubr.bf16.mxu0 0
        %4658 = vmatmul.mubr.bf16.gmra.mxu0 %v4605
        %v4659 = vpop.f32.mrf.mxu0
        %v4660 = vadd.f32 0.0, %v4659
        %v4661 = vpop.f32.mrf.mxu0
        %v4662 = vpop.f32.mrf.mxu0
        %v4663 = vadd.f32 0.0, %v4662
        %v4664 = vpop.f32.mrf.mxu0
        %4665 = vmatprep.mubr.bf16.mxu0 0
        %4666 = vmatmul.mubr.bf16.gmra.mxu0 %v4608
        %v4667 = vpop.f32.mrf.mxu0
        %v4668 = vadd.f32 0.0, %v4667
        %v4669 = vpop.f32.mrf.mxu0
        %v4670 = vpop.f32.mrf.mxu0
        %v4671 = vadd.f32 0.0, %v4670
        %v4672 = vpop.f32.mrf.mxu0
        %4673 = vmatprep.mubr.bf16.mxu0 0
        %4674 = vmatmul.mubr.bf16.gmra.mxu0 %v4611
        %v4675 = vpop.f32.mrf.mxu0
        %v4676 = vadd.f32 0.0, %v4675
        %v4677 = vpop.f32.mrf.mxu0
        %v4678 = vpop.f32.mrf.mxu0
        %v4679 = vadd.f32 0.0, %v4678
        %v4680 = vpop.f32.mrf.mxu0
        %4681 = vmatprep.mubr.bf16.mxu0 0
        %4682 = vmatmul.mubr.bf16.gmra.mxu0 %v4614
        %v4683 = vpop.f32.mrf.mxu0
        %v4684 = vadd.f32 0.0, %v4683
        %v4685 = vpop.f32.mrf.mxu0
        %v4686 = vpop.f32.mrf.mxu0
        %v4687 = vadd.f32 0.0, %v4686
        %v4688 = vpop.f32.mrf.mxu0
        %4689 = vmatprep.mubr.bf16.mxu0 0
        %4690 = vmatmul.mubr.bf16.gmra.mxu0 %v4617
        %v4691 = vpop.f32.mrf.mxu0
        %v4692 = vadd.f32 0.0, %v4691
        %v4693 = vpop.f32.mrf.mxu0
        %v4694 = vpop.f32.mrf.mxu0
        %v4695 = vadd.f32 0.0, %v4694
        %v4696 = vpop.f32.mrf.mxu0
        %4697 = vmatprep.mubr.bf16.mxu0 0
        %4698 = vmatmul.mubr.bf16.gmra.mxu0 %v4620
        %v4699 = vpop.f32.mrf.mxu0
        %v4700 = vadd.f32 0.0, %v4699
        %v4701 = vpop.f32.mrf.mxu0
        %v4702 = vpop.f32.mrf.mxu0
        %v4703 = vadd.f32 0.0, %v4702
        %v4704 = vpop.f32.mrf.mxu0
        %4705 = vdwg.mxu0
        %v4706 = vadd.f32 %v4547, %v4660
        %v4707 = vadd.f32 %v4548, %v4663
        %v4708 = vadd.f32 %v4549, %v4668
        %v4709 = vadd.f32 %v4550, %v4671
        %v4710 = vadd.f32 %v4551, %v4676
        %v4711 = vadd.f32 %v4552, %v4679
        %v4712 = vadd.f32 %v4553, %v4684
        %v4713 = vadd.f32 %v4554, %v4687
        %v4714 = vadd.f32 %v4555, %v4692
        %v4715 = vadd.f32 %v4556, %v4695
        %v4716 = vadd.f32 %v4557, %v4700
        %v4717 = vadd.f32 %v4558, %v4703
        %v4718 = vld [vmem:[%s3 + $0xa8] sm:$0xc]
        %v4719 = vld [vmem:[%s3 + $0xac] sm:$0xf]
        %v4720 = vld [vmem:[%s3 + $0xb0] sm:$0xf]
        %vm4721 = vcmask 1044480
        %v4722 = vrot.slane %v2291, 3
        %v4723 = vrot.slane %v2292, 3
        %v4724 = vsel %vm4721, %v4722, %v4723
        %v4725 = vrot.slane %v2293, 3
        %v4726 = vsel %vm4721, %v4723, %v4725
        %v4727 = vrot.slane %v2294, 3
        %v4728 = vsel %vm4721, %v4725, %v4727
        %v4729 = vrot.slane %v2295, 3
        %v4730 = vsel %vm4721, %v4727, %v4729
        %v4731 = vrot.slane %v2296, 3
        %v4732 = vsel %vm4721, %v4729, %v4731
        %v4733 = vrot.slane %v2297, 3
        %v4734 = vsel %vm4721, %v4731, %v4733
        %v4738 = vunpack.c.l.b16 %v4718
        %v4739 = vunpack.c.l.b16 %v4719
        %v4740 = vunpack.c.l.b16 %v4720
        %v4741 = vpack.c.b16 %v4739, %v4738
        %v4742 = vpack.c.b16 %v4740, %v4740
        %v4743 = vrot.slane %v4741, 2
        %v4744 = vrot.slane %v4742, 2
        %v4745 = vsel %vm2366, %v4743, %v4744
        %v4748 = vsel %vm2371, %v4724, 0
        %v4751 = vsel %vm2371, %v4726, 0
        %v4754 = vsel %vm2371, %v4728, 0
        %v4757 = vsel %vm2371, %v4730, 0
        %v4760 = vsel %vm2371, %v4732, 0
        %v4763 = vsel %vm2371, %v4734, 0
        %v4766 = vsel %vm2390, %v4744, 0
        %4768 = vmatprep.subr.bf16.mxu0 0
        %4769 = vmatpush1.bf16.msra.mxu0 0
        %4770 = vmatprep.subr.bf16.mxu0 0
        %4771 = vmatpush1.bf16.msra.mxu0 0
        %4772 = vmatprep.subr.bf16.mxu0 0
        %4773 = vmatpush1.bf16.msra.mxu0 0
        %4774 = vmatprep.subr.bf16.mxu0 0
        %4775 = vmatpush1.bf16.msra.mxu0 0
        %4776 = vmatprep.subr.bf16.mxu0 0
        %4777 = vmatpush1.bf16.msra.mxu0 0
        %4778 = vmatprep.subr.bf16.mxu0 0
        %4779 = vmatpush1.bf16.msra.mxu0 0
        %4780 = vmatprep.subr.bf16.mxu0 0
        %4781 = vmatpush1.bf16.msra.mxu0 %v4766
        %4782 = vmatprep.subr.bf16.mxu0 0
        %4783 = vmatpush1.bf16.msra.mxu0 %v4745
        %4784 = vmatprep.subr.bf16.mxu0 0
        %4785 = vmatpush2.bf16.msra.mxu0 0
        %4786 = vmatprep.subr.bf16.mxu0 0
        %4787 = vmatpush2.bf16.msra.mxu0 0
        %4788 = vmatprep.subr.bf16.mxu0 0
        %4789 = vmatpush2.bf16.msra.mxu0 0
        %4790 = vmatprep.subr.bf16.mxu0 0
        %4791 = vmatpush2.bf16.msra.mxu0 0
        %4792 = vmatprep.subr.bf16.mxu0 0
        %4793 = vmatpush2.bf16.msra.mxu0 0
        %4794 = vmatprep.subr.bf16.mxu0 0
        %4795 = vmatpush2.bf16.msra.mxu0 0
        %4796 = vmatprep.subr.bf16.mxu0 0
        %4797 = vmatpush2.bf16.msra.mxu0 0
        %4798 = vmatprep.subr.bf16.mxu0 0
        %4799 = vmatpush2.bf16.msra.mxu0 0
        %4800 = vmatprep.mubr.bf16.mxu0 0
        %4801 = vmatmul.mubr.bf16.gmra.mxu0 %v4748
        %v4802 = vpop.f32.mrf.mxu0
        %v4803 = vadd.f32 0.0, %v4802
        %v4804 = vpop.f32.mrf.mxu0
        %v4805 = vpop.f32.mrf.mxu0
        %v4806 = vadd.f32 0.0, %v4805
        %v4807 = vpop.f32.mrf.mxu0
        %4808 = vmatprep.mubr.bf16.mxu0 0
        %4809 = vmatmul.mubr.bf16.gmra.mxu0 %v4751
        %v4810 = vpop.f32.mrf.mxu0
        %v4811 = vadd.f32 0.0, %v4810
        %v4812 = vpop.f32.mrf.mxu0
        %v4813 = vpop.f32.mrf.mxu0
        %v4814 = vadd.f32 0.0, %v4813
        %v4815 = vpop.f32.mrf.mxu0
        %4816 = vmatprep.mubr.bf16.mxu0 0
        %4817 = vmatmul.mubr.bf16.gmra.mxu0 %v4754
        %v4818 = vpop.f32.mrf.mxu0
        %v4819 = vadd.f32 0.0, %v4818
        %v4820 = vpop.f32.mrf.mxu0
        %v4821 = vpop.f32.mrf.mxu0
        %v4822 = vadd.f32 0.0, %v4821
        %v4823 = vpop.f32.mrf.mxu0
        %4824 = vmatprep.mubr.bf16.mxu0 0
        %4825 = vmatmul.mubr.bf16.gmra.mxu0 %v4757
        %v4826 = vpop.f32.mrf.mxu0
        %v4827 = vadd.f32 0.0, %v4826
        %v4828 = vpop.f32.mrf.mxu0
        %v4829 = vpop.f32.mrf.mxu0
        %v4830 = vadd.f32 0.0, %v4829
        %v4831 = vpop.f32.mrf.mxu0
        %4832 = vmatprep.mubr.bf16.mxu0 0
        %4833 = vmatmul.mubr.bf16.gmra.mxu0 %v4760
        %v4834 = vpop.f32.mrf.mxu0
        %v4835 = vadd.f32 0.0, %v4834
        %v4836 = vpop.f32.mrf.mxu0
        %v4837 = vpop.f32.mrf.mxu0
        %v4838 = vadd.f32 0.0, %v4837
        %v4839 = vpop.f32.mrf.mxu0
        %4840 = vmatprep.mubr.bf16.mxu0 0
        %4841 = vmatmul.mubr.bf16.gmra.mxu0 %v4763
        %v4842 = vpop.f32.mrf.mxu0
        %v4843 = vadd.f32 0.0, %v4842
        %v4844 = vpop.f32.mrf.mxu0
        %v4845 = vpop.f32.mrf.mxu0
        %v4846 = vadd.f32 0.0, %v4845
        %v4847 = vpop.f32.mrf.mxu0
        %4848 = vdwg.mxu0
        %v4849 = vadd.f32 %v4706, %v4803
        %v4850 = vadd.f32 %v4707, %v4806
        %v4851 = vadd.f32 %v4708, %v4811
        %v4852 = vadd.f32 %v4709, %v4814
        %v4853 = vadd.f32 %v4710, %v4819
        %v4854 = vadd.f32 %v4711, %v4822
        %v4855 = vadd.f32 %v4712, %v4827
        %v4856 = vadd.f32 %v4713, %v4830
        %v4857 = vadd.f32 %v4714, %v4835
        %v4858 = vadd.f32 %v4715, %v4838
        %v4859 = vadd.f32 %v4716, %v4843
        %v4860 = vadd.f32 %v4717, %v4846
        %v4861 = vld [vmem:[%s3 + $0xb4] sm:$0xf]
        %v4862 = vld [vmem:[%s3 + $0xb8] sm:$0xf]
        %v4863 = vld [vmem:[%s3 + $0xbc] sm:$0x3]
        %vm4864 = vsmask.f32 4352
        %v4865 = vrot.slane %v2326, 3
        %v4866 = vrot.slane %v2322, 4
        %v4867 = vor.u32 %v4865, %v4866
        %v4868 = vrot.slane %v2334, 3
        %v4869 = vrot.slane %v2330, 4
        %v4870 = vor.u32 %v4868, %v4869
        %v4871 = vsel %vm4864, %v4867, %v4870
        %v4872 = vrot.slane %v2342, 3
        %v4873 = vrot.slane %v2338, 4
        %v4874 = vor.u32 %v4872, %v4873
        %v4875 = vsel %vm4864, %v4870, %v4874
        %v4876 = vrot.slane %v2350, 3
        %v4877 = vrot.slane %v2346, 4
        %v4878 = vor.u32 %v4876, %v4877
        %v4879 = vsel %vm4864, %v4874, %v4878
        %v4880 = vrot.slane %v2754, 3
        %v4881 = vrot.slane %v2354, 4
        %v4882 = vor.u32 %v4880, %v4881
        %v4883 = vsel %vm4864, %v4878, %v4882
        %v4884 = vrot.slane %v3893, 3
        %v4885 = vrot.slane %v3896, 4
        %v4886 = vor.u32 %v4884, %v4885
        %v4887 = vsel %vm4864, %v4882, %v4886
        %v4888 = vrot.slane %v4587, 3
        %v4889 = vrot.slane %v4590, 4
        %v4890 = vor.u32 %v4888, %v4889
        %v4891 = vsel %vm4864, %v4886, %v4890
        %v4895 = vunpack.c.l.b16 %v4861
        %v4896 = vunpack.c.l.b16 %v4862
        %v4897 = vunpack.c.l.b16 %v4863
        %v4898 = vpack.c.b16 %v4896, %v4895
        %v4899 = vpack.c.b16 %v4897, %v4897
        %v4902 = vsel %vm2371, %v4871, 0
        %v4905 = vsel %vm2371, %v4875, 0
        %v4908 = vsel %vm2371, %v4879, 0
        %v4911 = vsel %vm2371, %v4883, 0
        %v4914 = vsel %vm2371, %v4887, 0
        %v4917 = vsel %vm2371, %v4891, 0
        %v4920 = vsel %vm2390, %v4899, 0
        %4922 = vmatprep.subr.bf16.mxu0 0
        %4923 = vmatpush1.bf16.msra.mxu0 0
        %4924 = vmatprep.subr.bf16.mxu0 0
        %4925 = vmatpush1.bf16.msra.mxu0 0
        %4926 = vmatprep.subr.bf16.mxu0 0
        %4927 = vmatpush1.bf16.msra.mxu0 0
        %4928 = vmatprep.subr.bf16.mxu0 0
        %4929 = vmatpush1.bf16.msra.mxu0 0
        %4930 = vmatprep.subr.bf16.mxu0 0
        %4931 = vmatpush1.bf16.msra.mxu0 0
        %4932 = vmatprep.subr.bf16.mxu0 0
        %4933 = vmatpush1.bf16.msra.mxu0 0
        %4934 = vmatprep.subr.bf16.mxu0 0
        %4935 = vmatpush1.bf16.msra.mxu0 %v4920
        %4936 = vmatprep.subr.bf16.mxu0 0
        %4937 = vmatpush1.bf16.msra.mxu0 %v4898
        %4938 = vmatprep.subr.bf16.mxu0 0
        %4939 = vmatpush2.bf16.msra.mxu0 0
        %4940 = vmatprep.subr.bf16.mxu0 0
        %4941 = vmatpush2.bf16.msra.mxu0 0
        %4942 = vmatprep.subr.bf16.mxu0 0
        %4943 = vmatpush2.bf16.msra.mxu0 0
        %4944 = vmatprep.subr.bf16.mxu0 0
        %4945 = vmatpush2.bf16.msra.mxu0 0
        %4946 = vmatprep.subr.bf16.mxu0 0
        %4947 = vmatpush2.bf16.msra.mxu0 0
        %4948 = vmatprep.subr.bf16.mxu0 0
        %4949 = vmatpush2.bf16.msra.mxu0 0
        %4950 = vmatprep.subr.bf16.mxu0 0
        %4951 = vmatpush2.bf16.msra.mxu0 0
        %4952 = vmatprep.subr.bf16.mxu0 0
        %4953 = vmatpush2.bf16.msra.mxu0 0
        %4954 = vmatprep.mubr.bf16.mxu0 0
        %4955 = vmatmul.mubr.bf16.gmra.mxu0 %v4902
        %v4956 = vpop.f32.mrf.mxu0
        %v4957 = vadd.f32 0.0, %v4956
        %v4958 = vpop.f32.mrf.mxu0
        %v4959 = vpop.f32.mrf.mxu0
        %v4960 = vadd.f32 0.0, %v4959
        %v4961 = vpop.f32.mrf.mxu0
        %4962 = vmatprep.mubr.bf16.mxu0 0
        %4963 = vmatmul.mubr.bf16.gmra.mxu0 %v4905
        %v4964 = vpop.f32.mrf.mxu0
        %v4965 = vadd.f32 0.0, %v4964
        %v4966 = vpop.f32.mrf.mxu0
        %v4967 = vpop.f32.mrf.mxu0
        %v4968 = vadd.f32 0.0, %v4967
        %v4969 = vpop.f32.mrf.mxu0
        %4970 = vmatprep.mubr.bf16.mxu0 0
        %4971 = vmatmul.mubr.bf16.gmra.mxu0 %v4908
        %v4972 = vpop.f32.mrf.mxu0
        %v4973 = vadd.f32 0.0, %v4972
        %v4974 = vpop.f32.mrf.mxu0
        %v4975 = vpop.f32.mrf.mxu0
        %v4976 = vadd.f32 0.0, %v4975
        %v4977 = vpop.f32.mrf.mxu0
        %4978 = vmatprep.mubr.bf16.mxu0 0
        %4979 = vmatmul.mubr.bf16.gmra.mxu0 %v4911
        %v4980 = vpop.f32.mrf.mxu0
        %v4981 = vadd.f32 0.0, %v4980
        %v4982 = vpop.f32.mrf.mxu0
        %v4983 = vpop.f32.mrf.mxu0
        %v4984 = vadd.f32 0.0, %v4983
        %v4985 = vpop.f32.mrf.mxu0
        %4986 = vmatprep.mubr.bf16.mxu0 0
        %4987 = vmatmul.mubr.bf16.gmra.mxu0 %v4914
        %v4988 = vpop.f32.mrf.mxu0
        %v4989 = vadd.f32 0.0, %v4988
        %v4990 = vpop.f32.mrf.mxu0
        %v4991 = vpop.f32.mrf.mxu0
        %v4992 = vadd.f32 0.0, %v4991
        %v4993 = vpop.f32.mrf.mxu0
        %4994 = vmatprep.mubr.bf16.mxu0 0
        %4995 = vmatmul.mubr.bf16.gmra.mxu0 %v4917
        %v4996 = vpop.f32.mrf.mxu0
        %v4997 = vadd.f32 0.0, %v4996
        %v4998 = vpop.f32.mrf.mxu0
        %v4999 = vpop.f32.mrf.mxu0
        %v5000 = vadd.f32 0.0, %v4999
        %v5001 = vpop.f32.mrf.mxu0
        %5002 = vdwg.mxu0
        %v5003 = vadd.f32 %v4849, %v4957
        %v5004 = vadd.f32 %v4850, %v4960
        %v5005 = vadd.f32 %v4851, %v4965
        %v5006 = vadd.f32 %v4852, %v4968
        %v5007 = vadd.f32 %v4853, %v4973
        %v5008 = vadd.f32 %v4854, %v4976
        %v5009 = vadd.f32 %v4855, %v4981
        %v5010 = vadd.f32 %v4856, %v4984
        %v5011 = vadd.f32 %v4857, %v4989
        %v5012 = vadd.f32 %v4858, %v4992
        %v5013 = vadd.f32 %v4859, %v4997
        %v5014 = vadd.f32 %v4860, %v5000
        %v5015 = vld [vmem:[%s3 + $0xbc] sm:$0xc]
        %v5016 = vld [vmem:[%s3 + $0xc0] sm:$0xf]
        %v5017 = vld [vmem:[%s3 + $0xc4] sm:$0xf]
        %v5018 = vrot.slane %v2297, 4
        %v5019 = vsel %vm3728, %v3740, %v5018
        %v5023 = vunpack.c.l.b16 %v5015
        %v5024 = vunpack.c.l.b16 %v5016
        %v5025 = vunpack.c.l.b16 %v5017
        %v5026 = vpack.c.b16 %v5024, %v5023
        %v5027 = vpack.c.b16 %v5025, %v5025
        %v5028 = vrot.slane %v5026, 2
        %v5029 = vrot.slane %v5027, 2
        %v5030 = vsel %vm2366, %v5028, %v5029
        %v5033 = vsel %vm2371, %v5019, 0
        %v5036 = vsel %vm2390, %v5029, 0
        %5038 = vmatprep.subr.bf16.mxu0 0
        %5039 = vmatpush1.bf16.msra.mxu0 0
        %5040 = vmatprep.subr.bf16.mxu0 0
        %5041 = vmatpush1.bf16.msra.mxu0 0
        %5042 = vmatprep.subr.bf16.mxu0 0
        %5043 = vmatpush1.bf16.msra.mxu0 0
        %5044 = vmatprep.subr.bf16.mxu0 0
        %5045 = vmatpush1.bf16.msra.mxu0 0
        %5046 = vmatprep.subr.bf16.mxu0 0
        %5047 = vmatpush1.bf16.msra.mxu0 0
        %5048 = vmatprep.subr.bf16.mxu0 0
        %5049 = vmatpush1.bf16.msra.mxu0 0
        %5050 = vmatprep.subr.bf16.mxu0 0
        %5051 = vmatpush1.bf16.msra.mxu0 %v5036
        %5052 = vmatprep.subr.bf16.mxu0 0
        %5053 = vmatpush1.bf16.msra.mxu0 %v5030
        %5054 = vmatprep.subr.bf16.mxu0 0
        %5055 = vmatpush2.bf16.msra.mxu0 0
        %5056 = vmatprep.subr.bf16.mxu0 0
        %5057 = vmatpush2.bf16.msra.mxu0 0
        %5058 = vmatprep.subr.bf16.mxu0 0
        %5059 = vmatpush2.bf16.msra.mxu0 0
        %5060 = vmatprep.subr.bf16.mxu0 0
        %5061 = vmatpush2.bf16.msra.mxu0 0
        %5062 = vmatprep.subr.bf16.mxu0 0
        %5063 = vmatpush2.bf16.msra.mxu0 0
        %5064 = vmatprep.subr.bf16.mxu0 0
        %5065 = vmatpush2.bf16.msra.mxu0 0
        %5066 = vmatprep.subr.bf16.mxu0 0
        %5067 = vmatpush2.bf16.msra.mxu0 0
        %5068 = vmatprep.subr.bf16.mxu0 0
        %5069 = vmatpush2.bf16.msra.mxu0 0
        %5070 = vmatprep.mubr.bf16.mxu0 0
        %5071 = vmatmul.mubr.bf16.gmra.mxu0 %v3755
        %v5072 = vpop.f32.mrf.mxu0
        %v5073 = vadd.f32 0.0, %v5072
        %v5074 = vpop.f32.mrf.mxu0
        %v5075 = vpop.f32.mrf.mxu0
        %v5076 = vadd.f32 0.0, %v5075
        %v5077 = vpop.f32.mrf.mxu0
        %5078 = vmatprep.mubr.bf16.mxu0 0
        %5079 = vmatmul.mubr.bf16.gmra.mxu0 %v3758
        %v5080 = vpop.f32.mrf.mxu0
        %v5081 = vadd.f32 0.0, %v5080
        %v5082 = vpop.f32.mrf.mxu0
        %v5083 = vpop.f32.mrf.mxu0
        %v5084 = vadd.f32 0.0, %v5083
        %v5085 = vpop.f32.mrf.mxu0
        %5086 = vmatprep.mubr.bf16.mxu0 0
        %5087 = vmatmul.mubr.bf16.gmra.mxu0 %v3761
        %v5088 = vpop.f32.mrf.mxu0
        %v5089 = vadd.f32 0.0, %v5088
        %v5090 = vpop.f32.mrf.mxu0
        %v5091 = vpop.f32.mrf.mxu0
        %v5092 = vadd.f32 0.0, %v5091
        %v5093 = vpop.f32.mrf.mxu0
        %5094 = vmatprep.mubr.bf16.mxu0 0
        %5095 = vmatmul.mubr.bf16.gmra.mxu0 %v3764
        %v5096 = vpop.f32.mrf.mxu0
        %v5097 = vadd.f32 0.0, %v5096
        %v5098 = vpop.f32.mrf.mxu0
        %v5099 = vpop.f32.mrf.mxu0
        %v5100 = vadd.f32 0.0, %v5099
        %v5101 = vpop.f32.mrf.mxu0
        %5102 = vmatprep.mubr.bf16.mxu0 0
        %5103 = vmatmul.mubr.bf16.gmra.mxu0 %v3767
        %v5104 = vpop.f32.mrf.mxu0
        %v5105 = vadd.f32 0.0, %v5104
        %v5106 = vpop.f32.mrf.mxu0
        %v5107 = vpop.f32.mrf.mxu0
        %v5108 = vadd.f32 0.0, %v5107
        %v5109 = vpop.f32.mrf.mxu0
        %5110 = vmatprep.mubr.bf16.mxu0 0
        %5111 = vmatmul.mubr.bf16.gmra.mxu0 %v5033
        %v5112 = vpop.f32.mrf.mxu0
        %v5113 = vadd.f32 0.0, %v5112
        %v5114 = vpop.f32.mrf.mxu0
        %v5115 = vpop.f32.mrf.mxu0
        %v5116 = vadd.f32 0.0, %v5115
        %v5117 = vpop.f32.mrf.mxu0
        %5118 = vdwg.mxu0
        %v5119 = vadd.f32 %v5003, %v5073
        %v5120 = vadd.f32 %v5004, %v5076
        %v5121 = vadd.f32 %v5005, %v5081
        %v5122 = vadd.f32 %v5006, %v5084
        %v5123 = vadd.f32 %v5007, %v5089
        %v5124 = vadd.f32 %v5008, %v5092
        %v5125 = vadd.f32 %v5009, %v5097
        %v5126 = vadd.f32 %v5010, %v5100
        %v5127 = vadd.f32 %v5011, %v5105
        %v5128 = vadd.f32 %v5012, %v5108
        %v5129 = vadd.f32 %v5013, %v5113
        %v5130 = vadd.f32 %v5014, %v5116
        %v5131 = vld [vmem:[%s3 + $0xc8] sm:$0xf]
        %v5132 = vld [vmem:[%s3 + $0xcc] sm:$0xf]
        %v5133 = vld [vmem:[%s3 + $0xd0] sm:$0x3]
        %v5137 = vunpack.c.l.b16 %v5131
        %v5138 = vunpack.c.l.b16 %v5132
        %v5139 = vunpack.c.l.b16 %v5133
        %v5140 = vpack.c.b16 %v5138, %v5137
        %v5141 = vpack.c.b16 %v5139, %v5139
        %v5143 = vsel %vm2371, %v2296, 0
        %v5145 = vsel %vm2371, %v2297, 0
        %v5148 = vsel %vm2390, %v5141, 0
        %5150 = vmatprep.subr.bf16.mxu0 0
        %5151 = vmatpush1.bf16.msra.mxu0 0
        %5152 = vmatprep.subr.bf16.mxu0 0
        %5153 = vmatpush1.bf16.msra.mxu0 0
        %5154 = vmatprep.subr.bf16.mxu0 0
        %5155 = vmatpush1.bf16.msra.mxu0 0
        %5156 = vmatprep.subr.bf16.mxu0 0
        %5157 = vmatpush1.bf16.msra.mxu0 0
        %5158 = vmatprep.subr.bf16.mxu0 0
        %5159 = vmatpush1.bf16.msra.mxu0 0
        %5160 = vmatprep.subr.bf16.mxu0 0
        %5161 = vmatpush1.bf16.msra.mxu0 0
        %5162 = vmatprep.subr.bf16.mxu0 0
        %5163 = vmatpush1.bf16.msra.mxu0 %v5148
        %5164 = vmatprep.subr.bf16.mxu0 0
        %5165 = vmatpush1.bf16.msra.mxu0 %v5140
        %5166 = vmatprep.subr.bf16.mxu0 0
        %5167 = vmatpush2.bf16.msra.mxu0 0
        %5168 = vmatprep.subr.bf16.mxu0 0
        %5169 = vmatpush2.bf16.msra.mxu0 0
        %5170 = vmatprep.subr.bf16.mxu0 0
        %5171 = vmatpush2.bf16.msra.mxu0 0
        %5172 = vmatprep.subr.bf16.mxu0 0
        %5173 = vmatpush2.bf16.msra.mxu0 0
        %5174 = vmatprep.subr.bf16.mxu0 0
        %5175 = vmatpush2.bf16.msra.mxu0 0
        %5176 = vmatprep.subr.bf16.mxu0 0
        %5177 = vmatpush2.bf16.msra.mxu0 0
        %5178 = vmatprep.subr.bf16.mxu0 0
        %5179 = vmatpush2.bf16.msra.mxu0 0
        %5180 = vmatprep.subr.bf16.mxu0 0
        %5181 = vmatpush2.bf16.msra.mxu0 0
        %5182 = vmatprep.mubr.bf16.mxu0 0
        %5183 = vmatmul.mubr.bf16.gmra.mxu0 %v2490
        %v5184 = vpop.f32.mrf.mxu0
        %v5185 = vadd.f32 0.0, %v5184
        %v5186 = vpop.f32.mrf.mxu0
        %v5187 = vpop.f32.mrf.mxu0
        %v5188 = vadd.f32 0.0, %v5187
        %v5189 = vpop.f32.mrf.mxu0
        %5190 = vmatprep.mubr.bf16.mxu0 0
        %5191 = vmatmul.mubr.bf16.gmra.mxu0 %v2492
        %v5192 = vpop.f32.mrf.mxu0
        %v5193 = vadd.f32 0.0, %v5192
        %v5194 = vpop.f32.mrf.mxu0
        %v5195 = vpop.f32.mrf.mxu0
        %v5196 = vadd.f32 0.0, %v5195
        %v5197 = vpop.f32.mrf.mxu0
        %5198 = vmatprep.mubr.bf16.mxu0 0
        %5199 = vmatmul.mubr.bf16.gmra.mxu0 %v2494
        %v5200 = vpop.f32.mrf.mxu0
        %v5201 = vadd.f32 0.0, %v5200
        %v5202 = vpop.f32.mrf.mxu0
        %v5203 = vpop.f32.mrf.mxu0
        %v5204 = vadd.f32 0.0, %v5203
        %v5205 = vpop.f32.mrf.mxu0
        %5206 = vmatprep.mubr.bf16.mxu0 0
        %5207 = vmatmul.mubr.bf16.gmra.mxu0 %v3626
        %v5208 = vpop.f32.mrf.mxu0
        %v5209 = vadd.f32 0.0, %v5208
        %v5210 = vpop.f32.mrf.mxu0
        %v5211 = vpop.f32.mrf.mxu0
        %v5212 = vadd.f32 0.0, %v5211
        %v5213 = vpop.f32.mrf.mxu0
        %5214 = vmatprep.mubr.bf16.mxu0 0
        %5215 = vmatmul.mubr.bf16.gmra.mxu0 %v5143
        %v5216 = vpop.f32.mrf.mxu0
        %v5217 = vadd.f32 0.0, %v5216
        %v5218 = vpop.f32.mrf.mxu0
        %v5219 = vpop.f32.mrf.mxu0
        %v5220 = vadd.f32 0.0, %v5219
        %v5221 = vpop.f32.mrf.mxu0
        %5222 = vmatprep.mubr.bf16.mxu0 0
        %5223 = vmatmul.mubr.bf16.gmra.mxu0 %v5145
        %v5224 = vpop.f32.mrf.mxu0
        %v5225 = vadd.f32 0.0, %v5224
        %v5226 = vpop.f32.mrf.mxu0
        %v5227 = vpop.f32.mrf.mxu0
        %v5228 = vadd.f32 0.0, %v5227
        %v5229 = vpop.f32.mrf.mxu0
        %5230 = vdwg.mxu0
        %v5231 = vadd.f32 %v5119, %v5185
        %v5232 = vadd.f32 %v5120, %v5188
        %v5233 = vadd.f32 %v5121, %v5193
        %v5234 = vadd.f32 %v5122, %v5196
        %v5235 = vadd.f32 %v5123, %v5201
        %v5236 = vadd.f32 %v5124, %v5204
        %v5237 = vadd.f32 %v5125, %v5209
        %v5238 = vadd.f32 %v5126, %v5212
        %v5239 = vadd.f32 %v5127, %v5217
        %v5240 = vadd.f32 %v5128, %v5220
        %v5241 = vadd.f32 %v5129, %v5225
        %v5242 = vadd.f32 %v5130, %v5228
        %v5243 = vld [vmem:[%s3 + $0xd0] sm:$0xc]
        %v5244 = vld [vmem:[%s3 + $0xd4] sm:$0xf]
        %v5245 = vld [vmem:[%s3 + $0xd8] sm:$0xf]
        %v5246 = vor.u32 %v2754, %v2356
        %v5247 = vrot.slane %v3896, 1
        %v5248 = vsel %vm2305, %v5246, %v5247
        %v5249 = vor.u32 %v3893, %v5247
        %v5250 = vrot.slane %v4590, 1
        %v5251 = vsel %vm2305, %v5249, %v5250
        %v5252 = vor.u32 %v4587, %v5250
        %v5254 = vshll.u32 %v2298, 16
        %v5256 = vrot.slane %v5254, 1
        %v5257 = vsel %vm2305, %v5252, %v5256
        %v5261 = vunpack.c.l.b16 %v5243
        %v5262 = vunpack.c.l.b16 %v5244
        %v5263 = vunpack.c.l.b16 %v5245
        %v5264 = vpack.c.b16 %v5262, %v5261
        %v5265 = vpack.c.b16 %v5263, %v5263
        %v5266 = vrot.slane %v5264, 2
        %v5267 = vrot.slane %v5265, 2
        %v5268 = vsel %vm2366, %v5266, %v5267
        %v5271 = vsel %vm2371, %v5248, 0
        %v5274 = vsel %vm2371, %v5251, 0
        %v5277 = vsel %vm2371, %v5257, 0
        %v5280 = vsel %vm2390, %v5267, 0
        %5282 = vmatprep.subr.bf16.mxu0 0
        %5283 = vmatpush1.bf16.msra.mxu0 0
        %5284 = vmatprep.subr.bf16.mxu0 0
        %5285 = vmatpush1.bf16.msra.mxu0 0
        %5286 = vmatprep.subr.bf16.mxu0 0
        %5287 = vmatpush1.bf16.msra.mxu0 0
        %5288 = vmatprep.subr.bf16.mxu0 0
        %5289 = vmatpush1.bf16.msra.mxu0 0
        %5290 = vmatprep.subr.bf16.mxu0 0
        %5291 = vmatpush1.bf16.msra.mxu0 0
        %5292 = vmatprep.subr.bf16.mxu0 0
        %5293 = vmatpush1.bf16.msra.mxu0 0
        %5294 = vmatprep.subr.bf16.mxu0 0
        %5295 = vmatpush1.bf16.msra.mxu0 %v5280
        %5296 = vmatprep.subr.bf16.mxu0 0
        %5297 = vmatpush1.bf16.msra.mxu0 %v5268
        %5298 = vmatprep.subr.bf16.mxu0 0
        %5299 = vmatpush2.bf16.msra.mxu0 0
        %5300 = vmatprep.subr.bf16.mxu0 0
        %5301 = vmatpush2.bf16.msra.mxu0 0
        %5302 = vmatprep.subr.bf16.mxu0 0
        %5303 = vmatpush2.bf16.msra.mxu0 0
        %5304 = vmatprep.subr.bf16.mxu0 0
        %5305 = vmatpush2.bf16.msra.mxu0 0
        %5306 = vmatprep.subr.bf16.mxu0 0
        %5307 = vmatpush2.bf16.msra.mxu0 0
        %5308 = vmatprep.subr.bf16.mxu0 0
        %5309 = vmatpush2.bf16.msra.mxu0 0
        %5310 = vmatprep.subr.bf16.mxu0 0
        %5311 = vmatpush2.bf16.msra.mxu0 0
        %5312 = vmatprep.subr.bf16.mxu0 0
        %5313 = vmatpush2.bf16.msra.mxu0 0
        %5314 = vmatprep.mubr.bf16.mxu0 0
        %5315 = vmatmul.mubr.bf16.gmra.mxu0 %v2382
        %v5316 = vpop.f32.mrf.mxu0
        %v5317 = vadd.f32 0.0, %v5316
        %v5318 = vpop.f32.mrf.mxu0
        %v5319 = vpop.f32.mrf.mxu0
        %v5320 = vadd.f32 0.0, %v5319
        %v5321 = vpop.f32.mrf.mxu0
        %5322 = vmatprep.mubr.bf16.mxu0 0
        %5323 = vmatmul.mubr.bf16.gmra.mxu0 %v2385
        %v5324 = vpop.f32.mrf.mxu0
        %v5325 = vadd.f32 0.0, %v5324
        %v5326 = vpop.f32.mrf.mxu0
        %v5327 = vpop.f32.mrf.mxu0
        %v5328 = vadd.f32 0.0, %v5327
        %v5329 = vpop.f32.mrf.mxu0
        %5330 = vmatprep.mubr.bf16.mxu0 0
        %5331 = vmatmul.mubr.bf16.gmra.mxu0 %v2388
        %v5332 = vpop.f32.mrf.mxu0
        %v5333 = vadd.f32 0.0, %v5332
        %v5334 = vpop.f32.mrf.mxu0
        %v5335 = vpop.f32.mrf.mxu0
        %v5336 = vadd.f32 0.0, %v5335
        %v5337 = vpop.f32.mrf.mxu0
        %5338 = vmatprep.mubr.bf16.mxu0 0
        %5339 = vmatmul.mubr.bf16.gmra.mxu0 %v5271
        %v5340 = vpop.f32.mrf.mxu0
        %v5341 = vadd.f32 0.0, %v5340
        %v5342 = vpop.f32.mrf.mxu0
        %v5343 = vpop.f32.mrf.mxu0
        %v5344 = vadd.f32 0.0, %v5343
        %v5345 = vpop.f32.mrf.mxu0
        %5346 = vmatprep.mubr.bf16.mxu0 0
        %5347 = vmatmul.mubr.bf16.gmra.mxu0 %v5274
        %v5348 = vpop.f32.mrf.mxu0
        %v5349 = vadd.f32 0.0, %v5348
        %v5350 = vpop.f32.mrf.mxu0
        %v5351 = vpop.f32.mrf.mxu0
        %v5352 = vadd.f32 0.0, %v5351
        %v5353 = vpop.f32.mrf.mxu0
        %5354 = vmatprep.mubr.bf16.mxu0 0
        %5355 = vmatmul.mubr.bf16.gmra.mxu0 %v5277
        %v5356 = vpop.f32.mrf.mxu0
        %v5357 = vadd.f32 0.0, %v5356
        %v5358 = vpop.f32.mrf.mxu0
        %v5359 = vpop.f32.mrf.mxu0
        %v5360 = vadd.f32 0.0, %v5359
        %v5361 = vpop.f32.mrf.mxu0
        %5362 = vdwg.mxu0
        %v5363 = vadd.f32 %v5231, %v5317
        %v5364 = vadd.f32 %v5232, %v5320
        %v5365 = vadd.f32 %v5233, %v5325
        %v5366 = vadd.f32 %v5234, %v5328
        %v5367 = vadd.f32 %v5235, %v5333
        %v5368 = vadd.f32 %v5236, %v5336
        %v5369 = vadd.f32 %v5237, %v5341
        %v5370 = vadd.f32 %v5238, %v5344
        %v5371 = vadd.f32 %v5239, %v5349
        %v5372 = vadd.f32 %v5240, %v5352
        %v5373 = vadd.f32 %v5241, %v5357
        %v5374 = vadd.f32 %v5242, %v5360
        %v5375 = vld [vmem:[%s3 + $0xdc] sm:$0xf]
        %v5376 = vld [vmem:[%s3 + $0xe0] sm:$0xf]
        %v5377 = vld [vmem:[%s3 + $0xe4] sm:$0x3]
        %v5379 = vrot.slane %v2296, 1
        %v5380 = vsel %vm2590, %v2602, %v5379
        %v5381 = vrot.slane %v2297, 1
        %v5382 = vsel %vm2590, %v5379, %v5381
        %v5383 = vrot.slane %v2298, 1
        %v5384 = vsel %vm2590, %v5381, %v5383
        %v5388 = vunpack.c.l.b16 %v5375
        %v5389 = vunpack.c.l.b16 %v5376
        %v5390 = vunpack.c.l.b16 %v5377
        %v5391 = vpack.c.b16 %v5389, %v5388
        %v5392 = vpack.c.b16 %v5390, %v5390
        %v5395 = vsel %vm2371, %v5380, 0
        %v5398 = vsel %vm2371, %v5382, 0
        %v5401 = vsel %vm2371, %v5384, 0
        %v5404 = vsel %vm2390, %v5392, 0
        %5406 = vmatprep.subr.bf16.mxu0 0
        %5407 = vmatpush1.bf16.msra.mxu0 0
        %5408 = vmatprep.subr.bf16.mxu0 0
        %5409 = vmatpush1.bf16.msra.mxu0 0
        %5410 = vmatprep.subr.bf16.mxu0 0
        %5411 = vmatpush1.bf16.msra.mxu0 0
        %5412 = vmatprep.subr.bf16.mxu0 0
        %5413 = vmatpush1.bf16.msra.mxu0 0
        %5414 = vmatprep.subr.bf16.mxu0 0
        %5415 = vmatpush1.bf16.msra.mxu0 0
        %5416 = vmatprep.subr.bf16.mxu0 0
        %5417 = vmatpush1.bf16.msra.mxu0 0
        %5418 = vmatprep.subr.bf16.mxu0 0
        %5419 = vmatpush1.bf16.msra.mxu0 %v5404
        %5420 = vmatprep.subr.bf16.mxu0 0
        %5421 = vmatpush1.bf16.msra.mxu0 %v5391
        %5422 = vmatprep.subr.bf16.mxu0 0
        %5423 = vmatpush2.bf16.msra.mxu0 0
        %5424 = vmatprep.subr.bf16.mxu0 0
        %5425 = vmatpush2.bf16.msra.mxu0 0
        %5426 = vmatprep.subr.bf16.mxu0 0
        %5427 = vmatpush2.bf16.msra.mxu0 0
        %5428 = vmatprep.subr.bf16.mxu0 0
        %5429 = vmatpush2.bf16.msra.mxu0 0
        %5430 = vmatprep.subr.bf16.mxu0 0
        %5431 = vmatpush2.bf16.msra.mxu0 0
        %5432 = vmatprep.subr.bf16.mxu0 0
        %5433 = vmatpush2.bf16.msra.mxu0 0
        %5434 = vmatprep.subr.bf16.mxu0 0
        %5435 = vmatpush2.bf16.msra.mxu0 0
        %5436 = vmatprep.subr.bf16.mxu0 0
        %5437 = vmatpush2.bf16.msra.mxu0 0
        %5438 = vmatprep.mubr.bf16.mxu0 0
        %5439 = vmatmul.mubr.bf16.gmra.mxu0 %v2623
        %v5440 = vpop.f32.mrf.mxu0
        %v5441 = vadd.f32 0.0, %v5440
        %v5442 = vpop.f32.mrf.mxu0
        %v5443 = vpop.f32.mrf.mxu0
        %v5444 = vadd.f32 0.0, %v5443
        %v5445 = vpop.f32.mrf.mxu0
        %5446 = vmatprep.mubr.bf16.mxu0 0
        %5447 = vmatmul.mubr.bf16.gmra.mxu0 %v2626
        %v5448 = vpop.f32.mrf.mxu0
        %v5449 = vadd.f32 0.0, %v5448
        %v5450 = vpop.f32.mrf.mxu0
        %v5451 = vpop.f32.mrf.mxu0
        %v5452 = vadd.f32 0.0, %v5451
        %v5453 = vpop.f32.mrf.mxu0
        %5454 = vmatprep.mubr.bf16.mxu0 0
        %5455 = vmatmul.mubr.bf16.gmra.mxu0 %v2629
        %v5456 = vpop.f32.mrf.mxu0
        %v5457 = vadd.f32 0.0, %v5456
        %v5458 = vpop.f32.mrf.mxu0
        %v5459 = vpop.f32.mrf.mxu0
        %v5460 = vadd.f32 0.0, %v5459
        %v5461 = vpop.f32.mrf.mxu0
        %5462 = vmatprep.mubr.bf16.mxu0 0
        %5463 = vmatmul.mubr.bf16.gmra.mxu0 %v5395
        %v5464 = vpop.f32.mrf.mxu0
        %v5465 = vadd.f32 0.0, %v5464
        %v5466 = vpop.f32.mrf.mxu0
        %v5467 = vpop.f32.mrf.mxu0
        %v5468 = vadd.f32 0.0, %v5467
        %v5469 = vpop.f32.mrf.mxu0
        %5470 = vmatprep.mubr.bf16.mxu0 0
        %5471 = vmatmul.mubr.bf16.gmra.mxu0 %v5398
        %v5472 = vpop.f32.mrf.mxu0
        %v5473 = vadd.f32 0.0, %v5472
        %v5474 = vpop.f32.mrf.mxu0
        %v5475 = vpop.f32.mrf.mxu0
        %v5476 = vadd.f32 0.0, %v5475
        %v5477 = vpop.f32.mrf.mxu0
        %5478 = vmatprep.mubr.bf16.mxu0 0
        %5479 = vmatmul.mubr.bf16.gmra.mxu0 %v5401
        %v5480 = vpop.f32.mrf.mxu0
        %v5481 = vadd.f32 0.0, %v5480
        %v5482 = vpop.f32.mrf.mxu0
        %v5483 = vpop.f32.mrf.mxu0
        %v5484 = vadd.f32 0.0, %v5483
        %v5485 = vpop.f32.mrf.mxu0
        %5486 = vdwg.mxu0
        %v5487 = vadd.f32 %v5363, %v5441
        %v5488 = vadd.f32 %v5364, %v5444
        %v5489 = vadd.f32 %v5365, %v5449
        %v5490 = vadd.f32 %v5366, %v5452
        %v5491 = vadd.f32 %v5367, %v5457
        %v5492 = vadd.f32 %v5368, %v5460
        %v5493 = vadd.f32 %v5369, %v5465
        %v5494 = vadd.f32 %v5370, %v5468
        %v5495 = vadd.f32 %v5371, %v5473
        %v5496 = vadd.f32 %v5372, %v5476
        %v5497 = vadd.f32 %v5373, %v5481
        %v5498 = vadd.f32 %v5374, %v5484
        %v5499 = vld [vmem:[%s3 + $0xe4] sm:$0xc]
        %v5500 = vld [vmem:[%s3 + $0xe8] sm:$0xf]
        %v5501 = vld [vmem:[%s3 + $0xec] sm:$0xf]
        %v5502 = vrot.slane %v3893, 1
        %v5503 = vrot.slane %v3896, 2
        %v5504 = vor.u32 %v5502, %v5503
        %v5505 = vsel %vm2730, %v2758, %v5504
        %v5506 = vrot.slane %v4587, 1
        %v5507 = vrot.slane %v4590, 2
        %v5508 = vor.u32 %v5506, %v5507
        %v5509 = vsel %vm2730, %v5504, %v5508
        %v5510 = vshrl.u32 %v2298, 16
        %v5512 = vrot.slane %v5510, 1
        %v5513 = vrot.slane %v5254, 2
        %v5514 = vor.u32 %v5512, %v5513
        %v5515 = vsel %vm2730, %v5508, %v5514
        %v5519 = vunpack.c.l.b16 %v5499
        %v5520 = vunpack.c.l.b16 %v5500
        %v5521 = vunpack.c.l.b16 %v5501
        %v5522 = vpack.c.b16 %v5520, %v5519
        %v5523 = vpack.c.b16 %v5521, %v5521
        %v5524 = vrot.slane %v5522, 2
        %v5525 = vrot.slane %v5523, 2
        %v5526 = vsel %vm2366, %v5524, %v5525
        %v5529 = vsel %vm2371, %v5505, 0
        %v5532 = vsel %vm2371, %v5509, 0
        %v5535 = vsel %vm2371, %v5515, 0
        %v5538 = vsel %vm2390, %v5525, 0
        %5540 = vmatprep.subr.bf16.mxu0 0
        %5541 = vmatpush1.bf16.msra.mxu0 0
        %5542 = vmatprep.subr.bf16.mxu0 0
        %5543 = vmatpush1.bf16.msra.mxu0 0
        %5544 = vmatprep.subr.bf16.mxu0 0
        %5545 = vmatpush1.bf16.msra.mxu0 0
        %5546 = vmatprep.subr.bf16.mxu0 0
        %5547 = vmatpush1.bf16.msra.mxu0 0
        %5548 = vmatprep.subr.bf16.mxu0 0
        %5549 = vmatpush1.bf16.msra.mxu0 0
        %5550 = vmatprep.subr.bf16.mxu0 0
        %5551 = vmatpush1.bf16.msra.mxu0 0
        %5552 = vmatprep.subr.bf16.mxu0 0
        %5553 = vmatpush1.bf16.msra.mxu0 %v5538
        %5554 = vmatprep.subr.bf16.mxu0 0
        %5555 = vmatpush1.bf16.msra.mxu0 %v5526
        %5556 = vmatprep.subr.bf16.mxu0 0
        %5557 = vmatpush2.bf16.msra.mxu0 0
        %5558 = vmatprep.subr.bf16.mxu0 0
        %5559 = vmatpush2.bf16.msra.mxu0 0
        %5560 = vmatprep.subr.bf16.mxu0 0
        %5561 = vmatpush2.bf16.msra.mxu0 0
        %5562 = vmatprep.subr.bf16.mxu0 0
        %5563 = vmatpush2.bf16.msra.mxu0 0
        %5564 = vmatprep.subr.bf16.mxu0 0
        %5565 = vmatpush2.bf16.msra.mxu0 0
        %5566 = vmatprep.subr.bf16.mxu0 0
        %5567 = vmatpush2.bf16.msra.mxu0 0
        %5568 = vmatprep.subr.bf16.mxu0 0
        %5569 = vmatpush2.bf16.msra.mxu0 0
        %5570 = vmatprep.subr.bf16.mxu0 0
        %5571 = vmatpush2.bf16.msra.mxu0 0
        %5572 = vmatprep.mubr.bf16.mxu0 0
        %5573 = vmatmul.mubr.bf16.gmra.mxu0 %v2782
        %v5574 = vpop.f32.mrf.mxu0
        %v5575 = vadd.f32 0.0, %v5574
        %v5576 = vpop.f32.mrf.mxu0
        %v5577 = vpop.f32.mrf.mxu0
        %v5578 = vadd.f32 0.0, %v5577
        %v5579 = vpop.f32.mrf.mxu0
        %5580 = vmatprep.mubr.bf16.mxu0 0
        %5581 = vmatmul.mubr.bf16.gmra.mxu0 %v2785
        %v5582 = vpop.f32.mrf.mxu0
        %v5583 = vadd.f32 0.0, %v5582
        %v5584 = vpop.f32.mrf.mxu0
        %v5585 = vpop.f32.mrf.mxu0
        %v5586 = vadd.f32 0.0, %v5585
        %v5587 = vpop.f32.mrf.mxu0
        %5588 = vmatprep.mubr.bf16.mxu0 0
        %5589 = vmatmul.mubr.bf16.gmra.mxu0 %v2788
        %v5590 = vpop.f32.mrf.mxu0
        %v5591 = vadd.f32 0.0, %v5590
        %v5592 = vpop.f32.mrf.mxu0
        %v5593 = vpop.f32.mrf.mxu0
        %v5594 = vadd.f32 0.0, %v5593
        %v5595 = vpop.f32.mrf.mxu0
        %5596 = vmatprep.mubr.bf16.mxu0 0
        %5597 = vmatmul.mubr.bf16.gmra.mxu0 %v5529
        %v5598 = vpop.f32.mrf.mxu0
        %v5599 = vadd.f32 0.0, %v5598
        %v5600 = vpop.f32.mrf.mxu0
        %v5601 = vpop.f32.mrf.mxu0
        %v5602 = vadd.f32 0.0, %v5601
        %v5603 = vpop.f32.mrf.mxu0
        %5604 = vmatprep.mubr.bf16.mxu0 0
        %5605 = vmatmul.mubr.bf16.gmra.mxu0 %v5532
        %v5606 = vpop.f32.mrf.mxu0
        %v5607 = vadd.f32 0.0, %v5606
        %v5608 = vpop.f32.mrf.mxu0
        %v5609 = vpop.f32.mrf.mxu0
        %v5610 = vadd.f32 0.0, %v5609
        %v5611 = vpop.f32.mrf.mxu0
        %5612 = vmatprep.mubr.bf16.mxu0 0
        %5613 = vmatmul.mubr.bf16.gmra.mxu0 %v5535
        %v5614 = vpop.f32.mrf.mxu0
        %v5615 = vadd.f32 0.0, %v5614
        %v5616 = vpop.f32.mrf.mxu0
        %v5617 = vpop.f32.mrf.mxu0
        %v5618 = vadd.f32 0.0, %v5617
        %v5619 = vpop.f32.mrf.mxu0
        %5620 = vdwg.mxu0
        %v5621 = vadd.f32 %v5487, %v5575
        %v5622 = vadd.f32 %v5488, %v5578
        %v5623 = vadd.f32 %v5489, %v5583
        %v5624 = vadd.f32 %v5490, %v5586
        %v5625 = vadd.f32 %v5491, %v5591
        %v5626 = vadd.f32 %v5492, %v5594
        %v5627 = vadd.f32 %v5493, %v5599
        %v5628 = vadd.f32 %v5494, %v5602
        %v5629 = vadd.f32 %v5495, %v5607
        %v5630 = vadd.f32 %v5496, %v5610
        %v5631 = vadd.f32 %v5497, %v5615
        %v5632 = vadd.f32 %v5498, %v5618
        %v5633 = vld [vmem:[%s3 + $0xf0] sm:$0xf]
        %v5634 = vld [vmem:[%s3 + $0xf4] sm:$0xf]
        %v5635 = vld [vmem:[%s3 + $0xf8] sm:$0x3]
        %v5636 = vrot.slane %v2298, 2
        %v5637 = vsel %vm2366, %v4443, %v5636
        %v5641 = vunpack.c.l.b16 %v5633
        %v5642 = vunpack.c.l.b16 %v5634
        %v5643 = vunpack.c.l.b16 %v5635
        %v5644 = vpack.c.b16 %v5642, %v5641
        %v5645 = vpack.c.b16 %v5643, %v5643
        %v5648 = vsel %vm2371, %v5637, 0
        %v5651 = vsel %vm2390, %v5645, 0
        %5653 = vmatprep.subr.bf16.mxu0 0
        %5654 = vmatpush1.bf16.msra.mxu0 0
        %5655 = vmatprep.subr.bf16.mxu0 0
        %5656 = vmatpush1.bf16.msra.mxu0 0
        %5657 = vmatprep.subr.bf16.mxu0 0
        %5658 = vmatpush1.bf16.msra.mxu0 0
        %5659 = vmatprep.subr.bf16.mxu0 0
        %5660 = vmatpush1.bf16.msra.mxu0 0
        %5661 = vmatprep.subr.bf16.mxu0 0
        %5662 = vmatpush1.bf16.msra.mxu0 0
        %5663 = vmatprep.subr.bf16.mxu0 0
        %5664 = vmatpush1.bf16.msra.mxu0 0
        %5665 = vmatprep.subr.bf16.mxu0 0
        %5666 = vmatpush1.bf16.msra.mxu0 %v5651
        %5667 = vmatprep.subr.bf16.mxu0 0
        %5668 = vmatpush1.bf16.msra.mxu0 %v5644
        %5669 = vmatprep.subr.bf16.mxu0 0
        %5670 = vmatpush2.bf16.msra.mxu0 0
        %5671 = vmatprep.subr.bf16.mxu0 0
        %5672 = vmatpush2.bf16.msra.mxu0 0
        %5673 = vmatprep.subr.bf16.mxu0 0
        %5674 = vmatpush2.bf16.msra.mxu0 0
        %5675 = vmatprep.subr.bf16.mxu0 0
        %5676 = vmatpush2.bf16.msra.mxu0 0
        %5677 = vmatprep.subr.bf16.mxu0 0
        %5678 = vmatpush2.bf16.msra.mxu0 0
        %5679 = vmatprep.subr.bf16.mxu0 0
        %5680 = vmatpush2.bf16.msra.mxu0 0
        %5681 = vmatprep.subr.bf16.mxu0 0
        %5682 = vmatpush2.bf16.msra.mxu0 0
        %5683 = vmatprep.subr.bf16.mxu0 0
        %5684 = vmatpush2.bf16.msra.mxu0 0
        %5685 = vmatprep.mubr.bf16.mxu0 0
        %5686 = vmatmul.mubr.bf16.gmra.mxu0 %v2921
        %v5687 = vpop.f32.mrf.mxu0
        %v5688 = vadd.f32 0.0, %v5687
        %v5689 = vpop.f32.mrf.mxu0
        %v5690 = vpop.f32.mrf.mxu0
        %v5691 = vadd.f32 0.0, %v5690
        %v5692 = vpop.f32.mrf.mxu0
        %5693 = vmatprep.mubr.bf16.mxu0 0
        %5694 = vmatmul.mubr.bf16.gmra.mxu0 %v2924
        %v5695 = vpop.f32.mrf.mxu0
        %v5696 = vadd.f32 0.0, %v5695
        %v5697 = vpop.f32.mrf.mxu0
        %v5698 = vpop.f32.mrf.mxu0
        %v5699 = vadd.f32 0.0, %v5698
        %v5700 = vpop.f32.mrf.mxu0
        %5701 = vmatprep.mubr.bf16.mxu0 0
        %5702 = vmatmul.mubr.bf16.gmra.mxu0 %v2927
        %v5703 = vpop.f32.mrf.mxu0
        %v5704 = vadd.f32 0.0, %v5703
        %v5705 = vpop.f32.mrf.mxu0
        %v5706 = vpop.f32.mrf.mxu0
        %v5707 = vadd.f32 0.0, %v5706
        %v5708 = vpop.f32.mrf.mxu0
        %5709 = vmatprep.mubr.bf16.mxu0 0
        %5710 = vmatmul.mubr.bf16.gmra.mxu0 %v4458
        %v5711 = vpop.f32.mrf.mxu0
        %v5712 = vadd.f32 0.0, %v5711
        %v5713 = vpop.f32.mrf.mxu0
        %v5714 = vpop.f32.mrf.mxu0
        %v5715 = vadd.f32 0.0, %v5714
        %v5716 = vpop.f32.mrf.mxu0
        %5717 = vmatprep.mubr.bf16.mxu0 0
        %5718 = vmatmul.mubr.bf16.gmra.mxu0 %v4461
        %v5719 = vpop.f32.mrf.mxu0
        %v5720 = vadd.f32 0.0, %v5719
        %v5721 = vpop.f32.mrf.mxu0
        %v5722 = vpop.f32.mrf.mxu0
        %v5723 = vadd.f32 0.0, %v5722
        %v5724 = vpop.f32.mrf.mxu0
        %5725 = vmatprep.mubr.bf16.mxu0 0
        %5726 = vmatmul.mubr.bf16.gmra.mxu0 %v5648
        %v5727 = vpop.f32.mrf.mxu0
        %v5728 = vadd.f32 0.0, %v5727
        %v5729 = vpop.f32.mrf.mxu0
        %v5730 = vpop.f32.mrf.mxu0
        %v5731 = vadd.f32 0.0, %v5730
        %v5732 = vpop.f32.mrf.mxu0
        %5733 = vdwg.mxu0
        %v5734 = vadd.f32 %v5621, %v5688
        %v5735 = vadd.f32 %v5622, %v5691
        %v5736 = vadd.f32 %v5623, %v5696
        %v5737 = vadd.f32 %v5624, %v5699
        %v5738 = vadd.f32 %v5625, %v5704
        %v5739 = vadd.f32 %v5626, %v5707
        %v5740 = vadd.f32 %v5627, %v5712
        %v5741 = vadd.f32 %v5628, %v5715
        %v5742 = vadd.f32 %v5629, %v5720
        %v5743 = vadd.f32 %v5630, %v5723
        %v5744 = vadd.f32 %v5631, %v5728
        %v5745 = vadd.f32 %v5632, %v5731
        %v5746 = vld [vmem:[%s4] sm:$0x1]
        %v5748 = vlaneseq
        %v5749 = vshrl.u32 %v5748, 7
        %v5750 = vsub.s32 0, %v5749
        %v5751 = vrot.slane %v5746, %v5750
        %v5753 = vadd.f32 %v5734, %v5751
        %v5754 = vadd.f32 %v5735, %v5751
        %v5755 = vadd.f32 %v5736, %v5751
        %v5756 = vadd.f32 %v5737, %v5751
        %v5757 = vadd.f32 %v5738, %v5751
        %v5758 = vadd.f32 %v5739, %v5751
        %v5759 = vadd.f32 %v5740, %v5751
        %v5760 = vadd.f32 %v5741, %v5751
        %v5761 = vadd.f32 %v5742, %v5751
        %v5762 = vadd.f32 %v5743, %v5751
        %v5763 = vadd.f32 %v5744, %v5751
        %v5764 = vadd.f32 %v5745, %v5751
        %v5765 = vmax.f32 %v5753, 0.0
        %v5766 = vmax.f32 %v5754, 0.0
        %v5767 = vmax.f32 %v5755, 0.0
        %v5768 = vmax.f32 %v5756, 0.0
        %v5769 = vmax.f32 %v5757, 0.0
        %v5770 = vmax.f32 %v5758, 0.0
        %v5771 = vmax.f32 %v5759, 0.0
        %v5772 = vmax.f32 %v5760, 0.0
        %v5773 = vmax.f32 %v5761, 0.0
        %v5774 = vmax.f32 %v5762, 0.0
        %v5775 = vmax.f32 %v5763, 0.0
        %v5776 = vmax.f32 %v5764, 0.0
        %v5788 = vrot.slane %v5766, 4
        %v5789 = vrot.slane %v5767, 4
        %v5790 = vsel %vm768, %v5788, %v5789
        %v5791 = vrot.slane %v5768, 4
        %v5792 = vsel %vm768, %v5789, %v5791
        %v5793 = vrot.slane %v5769, 4
        %v5794 = vsel %vm768, %v5791, %v5793
        %v5795 = vrot.slane %v5770, 4
        %v5796 = vsel %vm768, %v5793, %v5795
        %v5797 = vrot.slane %v5771, 4
        %v5798 = vsel %vm768, %v5795, %v5797
        %v5799 = vrot.slane %v5772, 4
        %v5800 = vsel %vm768, %v5797, %v5799
        %v5801 = vrot.slane %v5773, 4
        %v5802 = vsel %vm768, %v5799, %v5801
        %v5803 = vrot.slane %v5774, 4
        %v5804 = vsel %vm768, %v5801, %v5803
        %v5805 = vrot.slane %v5775, 4
        %v5806 = vsel %vm768, %v5803, %v5805
        %v5807 = vrot.slane %v5776, 4
        %v5808 = vsel %vm768, %v5805, %v5807
        %v5820 = vmax.f32 %v5765, %v5790
        %v5821 = vmax.f32 %v5766, %v5792
        %v5822 = vmax.f32 %v5767, %v5794
        %v5823 = vmax.f32 %v5768, %v5796
        %v5824 = vmax.f32 %v5769, %v5798
        %v5825 = vmax.f32 %v5770, %v5800
        %v5826 = vmax.f32 %v5771, %v5802
        %v5827 = vmax.f32 %v5772, %v5804
        %v5828 = vmax.f32 %v5773, %v5806
        %v5829 = vmax.f32 %v5774, %v5808
        %v5830 = vmax.f32 %v5775, %v5807
        %v5842 = vrot.slane %v5820, 1
        %v5843 = vrot.slane %v5821, 1
        %v5844 = vsel %vm1306, %v5842, %v5843
        %v5845 = vrot.slane %v5822, 1
        %v5846 = vsel %vm1306, %v5843, %v5845
        %v5847 = vrot.slane %v5823, 1
        %v5848 = vsel %vm1306, %v5845, %v5847
        %v5849 = vrot.slane %v5824, 1
        %v5850 = vsel %vm1306, %v5847, %v5849
        %v5851 = vrot.slane %v5825, 1
        %v5852 = vsel %vm1306, %v5849, %v5851
        %v5853 = vrot.slane %v5826, 1
        %v5854 = vsel %vm1306, %v5851, %v5853
        %v5855 = vrot.slane %v5827, 1
        %v5856 = vsel %vm1306, %v5853, %v5855
        %v5857 = vrot.slane %v5828, 1
        %v5858 = vsel %vm1306, %v5855, %v5857
        %v5859 = vrot.slane %v5829, 1
        %v5860 = vsel %vm1306, %v5857, %v5859
        %v5861 = vrot.slane %v5830, 1
        %v5862 = vsel %vm1306, %v5859, %v5861
        %v5874 = vmax.f32 %v5820, %v5844
        %v5875 = vmax.f32 %v5821, %v5846
        %v5876 = vmax.f32 %v5822, %v5848
        %v5877 = vmax.f32 %v5823, %v5850
        %v5878 = vmax.f32 %v5824, %v5852
        %v5879 = vmax.f32 %v5825, %v5854
        %v5880 = vmax.f32 %v5826, %v5856
        %v5881 = vmax.f32 %v5827, %v5858
        %v5882 = vmax.f32 %v5828, %v5860
        %v5883 = vmax.f32 %v5829, %v5862
        %v5884 = vmax.f32 %v5830, %v5861
        %v5885 = vld [vmem:[%s10] sm:$0xf]
        %v5886 = vld [vmem:[%s10 + $0x4] sm:$0xf]
        %v5887 = vpack.c.bf16 %v5875, %v5874
        %v5888 = vpack.c.bf16 %v5877, %v5876
        %v5889 = vpack.c.bf16 %v5879, %v5878
        %v5890 = vpack.c.bf16 %v5881, %v5880
        %v5891 = vpack.c.bf16 %v5883, %v5882
        %v5892 = vpack.c.bf16 %v5884, %v5884
        %v5895 = vunpack.c.l.b16 %v5885
        %v5896 = vunpack.c.l.b16 %v5886
        %v5897 = vpack.c.b16 %v5896, %v5895
        %vm5898 = vcmask 678912
        %v5900 = vsel %vm5898, %v5897, 0
        %vm5902 = vcmask 1040384
        %v5903 = vsel %vm5902, 4294967295, 65535
        %v5904 = vsel %vm2390, %v5903, 0
        %v5906 = vand.u32 %v5892, %v5904
        %5908 = vmatprep.subr.bf16.mxu0 0
        %5909 = vmatpush1.bf16.msra.mxu0 0
        %5910 = vmatprep.subr.bf16.mxu0 0
        %5911 = vmatpush1.bf16.msra.mxu0 0
        %5912 = vmatprep.subr.bf16.mxu0 0
        %5913 = vmatpush1.bf16.msra.mxu0 %v5906
        %5914 = vmatprep.subr.bf16.mxu0 0
        %5915 = vmatpush1.bf16.msra.mxu0 %v5891
        %5916 = vmatprep.subr.bf16.mxu0 0
        %5917 = vmatpush1.bf16.msra.mxu0 %v5890
        %5918 = vmatprep.subr.bf16.mxu0 0
        %5919 = vmatpush1.bf16.msra.mxu0 %v5889
        %5920 = vmatprep.subr.bf16.mxu0 0
        %5921 = vmatpush1.bf16.msra.mxu0 %v5888
        %5922 = vmatprep.subr.bf16.mxu0 0
        %5923 = vmatpush1.bf16.msra.mxu0 %v5887
        %5924 = vmatprep.subr.bf16.mxu0 0
        %5925 = vmatpush2.bf16.msra.mxu0 0
        %5926 = vmatprep.subr.bf16.mxu0 0
        %5927 = vmatpush2.bf16.msra.mxu0 0
        %5928 = vmatprep.subr.bf16.mxu0 0
        %5929 = vmatpush2.bf16.msra.mxu0 0
        %5930 = vmatprep.subr.bf16.mxu0 0
        %5931 = vmatpush2.bf16.msra.mxu0 0
        %5932 = vmatprep.subr.bf16.mxu0 0
        %5933 = vmatpush2.bf16.msra.mxu0 0
        %5934 = vmatprep.subr.bf16.mxu0 0
        %5935 = vmatpush2.bf16.msra.mxu0 0
        %5936 = vmatprep.subr.bf16.mxu0 0
        %5937 = vmatpush2.bf16.msra.mxu0 0
        %5938 = vmatprep.subr.bf16.mxu0 0
        %5939 = vmatpush2.bf16.msra.mxu0 0
        %5940 = vmatprep.mubr.bf16.mxu0 0
        %5941 = vmatmul.mubr.bf16.gmra.mxu0 %v5900
        %v5942 = vpop.f32.mrf.mxu0
        %v5943 = vadd.f32 0.0, %v5942
        %v5944 = vpop.f32.mrf.mxu0
        %v5945 = vpop.f32.mrf.mxu0
        %v5946 = vadd.f32 0.0, %v5945
        %v5947 = vpop.f32.mrf.mxu0
        %5948 = vdwg.mxu0
        %v5949 = vpack.c.bf16 %v5946, %v5943
        %v5950 = vld [vmem:[%s6] sm:$0xf]
        %v5951 = vld [vmem:[%s5] sm:$0xff]
        %v5952 = vld [vmem:[%s5 + $0x8] sm:$0xff]
        %v5953 = vld [vmem:[%s5 + $0x10] sm:$0xff]
        %v5954 = vld [vmem:[%s5 + $0x18] sm:$0xff]
        %v5955 = vld [vmem:[%s5 + $0x20] sm:$0xff]
        %v5956 = vld [vmem:[%s5 + $0x28] sm:$0xff]
        %v5957 = vld [vmem:[%s5 + $0x30] sm:$0xff]
        %v5958 = vld [vmem:[%s5 + $0x38] sm:$0xff]
        %v5959 = vld [vmem:[%s5 + $0x40] sm:$0xff]
        %v5960 = vld [vmem:[%s5 + $0x48] sm:$0xff]
        %v5961 = vld [vmem:[%s5 + $0x50] sm:$0xff]
        %v5962 = vld [vmem:[%s5 + $0x58] sm:$0xff]
        %v5963 = vld [vmem:[%s5 + $0x60] sm:$0x11]
        %v5964 = vld [vmem:[%s5 + $0x68] sm:$0x11]
        %v5979 = vunpack.c.l.b16 %v5951
        %v5980 = vunpack.c.h.b16 %v5951
        %v5981 = vunpack.c.l.b16 %v5952
        %v5982 = vunpack.c.h.b16 %v5952
        %v5983 = vunpack.c.l.b16 %v5953
        %v5984 = vunpack.c.h.b16 %v5953
        %v5985 = vunpack.c.l.b16 %v5954
        %v5986 = vunpack.c.h.b16 %v5954
        %v5987 = vunpack.c.l.b16 %v5955
        %v5988 = vunpack.c.h.b16 %v5955
        %v5989 = vunpack.c.l.b16 %v5956
        %v5990 = vunpack.c.h.b16 %v5956
        %v5991 = vunpack.c.l.b16 %v5957
        %v5992 = vunpack.c.h.b16 %v5957
        %v5993 = vunpack.c.l.b16 %v5958
        %v5994 = vunpack.c.h.b16 %v5958
        %v5995 = vunpack.c.l.b16 %v5959
        %v5996 = vunpack.c.h.b16 %v5959
        %v5997 = vunpack.c.l.b16 %v5960
        %v5998 = vunpack.c.h.b16 %v5960
        %v5999 = vunpack.c.l.b16 %v5961
        %v6000 = vunpack.c.h.b16 %v5961
        %v6001 = vunpack.c.l.b16 %v5962
        %v6002 = vunpack.c.h.b16 %v5962
        %v6003 = vunpack.c.l.b16 %v5963
        %v6004 = vunpack.c.h.b16 %v5963
        %v6005 = vunpack.c.l.b16 %v5964
        %v6006 = vunpack.c.h.b16 %v5964
        %v6007 = vpack.c.b16 %v5983, %v5979
        %v6008 = vpack.c.b16 %v5984, %v5980
        %v6009 = vpack.c.b16 %v5985, %v5981
        %v6010 = vpack.c.b16 %v5986, %v5982
        %v6011 = vpack.c.b16 %v5991, %v5987
        %v6012 = vpack.c.b16 %v5992, %v5988
        %v6013 = vpack.c.b16 %v5993, %v5989
        %v6014 = vpack.c.b16 %v5994, %v5990
        %v6015 = vpack.c.b16 %v5999, %v5995
        %v6016 = vpack.c.b16 %v6000, %v5996
        %v6017 = vpack.c.b16 %v6001, %v5997
        %v6018 = vpack.c.b16 %v6002, %v5998
        %v6019 = vpack.c.b16 %v6003, %v6003
        %v6020 = vpack.c.b16 %v6004, %v6004
        %v6021 = vpack.c.b16 %v6005, %v6005
        %v6022 = vpack.c.b16 %v6006, %v6006
        %vm6035 = vcmask 408576
        %v6037 = vsel %vm6035, %v5949, 0
        %v6040 = vsel %vm5902, %v6019, 0
        %v6043 = vsel %vm5902, %v6020, 0
        %v6046 = vsel %vm5902, %v6021, 0
        %v6049 = vsel %vm5902, %v6022, 0
        %6051 = vmatprep.subr.bf16.mxu0 0
        %6052 = vmatpush1.bf16.msra.mxu0 0
        %6053 = vmatprep.subr.bf16.mxu0 0
        %6054 = vmatpush1.bf16.msra.mxu0 0
        %6055 = vmatprep.subr.bf16.mxu0 0
        %6056 = vmatpush1.bf16.msra.mxu0 0
        %6057 = vmatprep.subr.bf16.mxu0 0
        %6058 = vmatpush1.bf16.msra.mxu0 0
        %6059 = vmatprep.subr.bf16.mxu0 %v6043
        %6060 = vmatpush1.bf16.msra.mxu0 %v6040
        %6061 = vmatprep.subr.bf16.mxu0 %v6016
        %6062 = vmatpush1.bf16.msra.mxu0 %v6015
        %6063 = vmatprep.subr.bf16.mxu0 %v6012
        %6064 = vmatpush1.bf16.msra.mxu0 %v6011
        %6065 = vmatprep.subr.bf16.mxu0 %v6008
        %6066 = vmatpush1.bf16.msra.mxu0 %v6007
        %6067 = vmatprep.subr.bf16.mxu0 0
        %6068 = vmatpush2.bf16.msra.mxu0 0
        %6069 = vmatprep.subr.bf16.mxu0 0
        %6070 = vmatpush2.bf16.msra.mxu0 0
        %6071 = vmatprep.subr.bf16.mxu0 0
        %6072 = vmatpush2.bf16.msra.mxu0 0
        %6073 = vmatprep.subr.bf16.mxu0 0
        %6074 = vmatpush2.bf16.msra.mxu0 0
        %6075 = vmatprep.subr.bf16.mxu0 0
        %6076 = vmatpush2.bf16.msra.mxu0 0
        %6077 = vmatprep.subr.bf16.mxu0 0
        %6078 = vmatpush2.bf16.msra.mxu0 0
        %6079 = vmatprep.subr.bf16.mxu0 0
        %6080 = vmatpush2.bf16.msra.mxu0 0
        %6081 = vmatprep.subr.bf16.mxu0 0
        %6082 = vmatpush2.bf16.msra.mxu0 0
        %6083 = vmatprep.mubr.bf16.mxu0 0
        %6084 = vmatmul.mubr.bf16.gmra.mxu0 %v6037
        %v6085 = vpop.f32.mrf.mxu0
        %v6086 = vadd.f32 0.0, %v6085
        %v6087 = vpop.f32.mrf.mxu0
        %v6088 = vadd.f32 0.0, %v6087
        %v6089 = vpop.f32.mrf.mxu0
        %v6090 = vpop.f32.mrf.mxu0
        %6091 = vdwg.mxu0
        %6092 = vmatprep.subr.bf16.mxu0 0
        %6093 = vmatpush1.bf16.msra.mxu0 0
        %6094 = vmatprep.subr.bf16.mxu0 0
        %6095 = vmatpush1.bf16.msra.mxu0 0
        %6096 = vmatprep.subr.bf16.mxu0 0
        %6097 = vmatpush1.bf16.msra.mxu0 0
        %6098 = vmatprep.subr.bf16.mxu0 0
        %6099 = vmatpush1.bf16.msra.mxu0 0
        %6100 = vmatprep.subr.bf16.mxu0 %v6049
        %6101 = vmatpush1.bf16.msra.mxu0 %v6046
        %6102 = vmatprep.subr.bf16.mxu0 %v6018
        %6103 = vmatpush1.bf16.msra.mxu0 %v6017
        %6104 = vmatprep.subr.bf16.mxu0 %v6014
        %6105 = vmatpush1.bf16.msra.mxu0 %v6013
        %6106 = vmatprep.subr.bf16.mxu0 %v6010
        %6107 = vmatpush1.bf16.msra.mxu0 %v6009
        %6108 = vmatprep.subr.bf16.mxu0 0
        %6109 = vmatpush2.bf16.msra.mxu0 0
        %6110 = vmatprep.subr.bf16.mxu0 0
        %6111 = vmatpush2.bf16.msra.mxu0 0
        %6112 = vmatprep.subr.bf16.mxu0 0
        %6113 = vmatpush2.bf16.msra.mxu0 0
        %6114 = vmatprep.subr.bf16.mxu0 0
        %6115 = vmatpush2.bf16.msra.mxu0 0
        %6116 = vmatprep.subr.bf16.mxu0 0
        %6117 = vmatpush2.bf16.msra.mxu0 0
        %6118 = vmatprep.subr.bf16.mxu0 0
        %6119 = vmatpush2.bf16.msra.mxu0 0
        %6120 = vmatprep.subr.bf16.mxu0 0
        %6121 = vmatpush2.bf16.msra.mxu0 0
        %6122 = vmatprep.subr.bf16.mxu0 0
        %6123 = vmatpush2.bf16.msra.mxu0 0
        %6124 = vmatprep.mubr.bf16.mxu0 0
        %6125 = vmatmul.mubr.bf16.gmra.mxu0 %v6037
        %v6126 = vpop.f32.mrf.mxu0
        %v6127 = vadd.f32 0.0, %v6126
        %v6128 = vpop.f32.mrf.mxu0
        %v6129 = vadd.f32 0.0, %v6128
        %v6130 = vpop.f32.mrf.mxu0
        %v6131 = vpop.f32.mrf.mxu0
        %6132 = vdwg.mxu0
        %v6137 = vcombine.low %v6086, %v6088
        %v6138 = vcombine.low %v6127, %v6129
        %v6140 = vunpack.c.l.s4 1966171168
        %v6141 = vunpack.c.0.s8 %v6140
        %v6142 = vlaneseq
        %v6143 = vshrl.u32 %v6142, 7
        %v6144 = vsub.s32 %v6141, %v6143
        %v6145 = vrot.slane %v6137, %v6144
        %v6147 = vunpack.c.l.s4 1966171168
        %v6148 = vunpack.c.0.s8 %v6147
        %v6149 = vlaneseq
        %v6150 = vshrl.u32 %v6149, 7
        %v6151 = vsub.s32 %v6148, %v6150
        %v6152 = vrot.slane %v6138, %v6151
        %v6153 = vcombine.low %v6145, %v6152
        %v6155 = vunpack.c.l.s4 1966171168
        %v6156 = vunpack.c.0.s8 %v6155
        %v6157 = vlaneseq
        %v6158 = vshrl.u32 %v6157, 7
        %v6159 = vsub.s32 %v6156, %v6158
        %v6160 = vrot.slane %v6153, %v6159
        %v6162 = vadd.f32 %v5950, %v6160
        %v6163 = vld [vmem:[%s5 + $0x60] sm:$0xee]
        %v6164 = vld [vmem:[%s5 + $0x68] sm:$0xee]
        %v6165 = vld [vmem:[%s5 + $0x70] sm:$0xff]
        %v6166 = vld [vmem:[%s5 + $0x78] sm:$0xff]
        %v6167 = vld [vmem:[%s5 + $0x80] sm:$0xff]
        %v6168 = vld [vmem:[%s5 + $0x88] sm:$0xff]
        %v6169 = vld [vmem:[%s5 + $0x90] sm:$0xff]
        %v6170 = vld [vmem:[%s5 + $0x98] sm:$0xff]
        %v6171 = vld [vmem:[%s5 + $0xa0] sm:$0xff]
        %v6172 = vld [vmem:[%s5 + $0xa8] sm:$0xff]
        %v6173 = vld [vmem:[%s5 + $0xb0] sm:$0xff]
        %v6174 = vld [vmem:[%s5 + $0xb8] sm:$0xff]
        %v6175 = vld [vmem:[%s5 + $0xc0] sm:$0x33]
        %v6176 = vld [vmem:[%s5 + $0xc8] sm:$0x33]
        %v6177 = vshrl.u32 %v5949, 16
        %v6193 = vunpack.c.l.b16 %v6163
        %v6194 = vunpack.c.h.b16 %v6163
        %v6195 = vunpack.c.l.b16 %v6164
        %v6196 = vunpack.c.h.b16 %v6164
        %v6197 = vunpack.c.l.b16 %v6165
        %v6198 = vunpack.c.h.b16 %v6165
        %v6199 = vunpack.c.l.b16 %v6166
        %v6200 = vunpack.c.h.b16 %v6166
        %v6201 = vunpack.c.l.b16 %v6167
        %v6202 = vunpack.c.h.b16 %v6167
        %v6203 = vunpack.c.l.b16 %v6168
        %v6204 = vunpack.c.h.b16 %v6168
        %v6205 = vunpack.c.l.b16 %v6169
        %v6206 = vunpack.c.h.b16 %v6169
        %v6207 = vunpack.c.l.b16 %v6170
        %v6208 = vunpack.c.h.b16 %v6170
        %v6209 = vunpack.c.l.b16 %v6171
        %v6210 = vunpack.c.h.b16 %v6171
        %v6211 = vunpack.c.l.b16 %v6172
        %v6212 = vunpack.c.h.b16 %v6172
        %v6213 = vunpack.c.l.b16 %v6173
        %v6214 = vunpack.c.h.b16 %v6173
        %v6215 = vunpack.c.l.b16 %v6174
        %v6216 = vunpack.c.h.b16 %v6174
        %v6217 = vunpack.c.l.b16 %v6175
        %v6218 = vunpack.c.h.b16 %v6175
        %v6219 = vunpack.c.l.b16 %v6176
        %v6220 = vunpack.c.h.b16 %v6176
        %v6221 = vpack.c.b16 %v6197, %v6193
        %v6222 = vpack.c.b16 %v6198, %v6194
        %v6223 = vpack.c.b16 %v6199, %v6195
        %v6224 = vpack.c.b16 %v6200, %v6196
        %v6225 = vpack.c.b16 %v6205, %v6201
        %v6226 = vpack.c.b16 %v6206, %v6202
        %v6227 = vpack.c.b16 %v6207, %v6203
        %v6228 = vpack.c.b16 %v6208, %v6204
        %v6229 = vpack.c.b16 %v6213, %v6209
        %v6230 = vpack.c.b16 %v6214, %v6210
        %v6231 = vpack.c.b16 %v6215, %v6211
        %v6232 = vpack.c.b16 %v6216, %v6212
        %v6233 = vpack.c.b16 %v6217, %v6217
        %v6234 = vpack.c.b16 %v6218, %v6218
        %v6235 = vpack.c.b16 %v6219, %v6219
        %v6236 = vpack.c.b16 %v6220, %v6220
        %v6237 = vrot.slane %v6221, 1
        %v6238 = vrot.slane %v6225, 1
        %v6239 = vsel %vm2590, %v6237, %v6238
        %v6240 = vrot.slane %v6222, 1
        %v6241 = vrot.slane %v6226, 1
        %v6242 = vsel %vm2590, %v6240, %v6241
        %v6243 = vrot.slane %v6223, 1
        %v6244 = vrot.slane %v6227, 1
        %v6245 = vsel %vm2590, %v6243, %v6244
        %v6246 = vrot.slane %v6224, 1
        %v6247 = vrot.slane %v6228, 1
        %v6248 = vsel %vm2590, %v6246, %v6247
        %v6249 = vrot.slane %v6229, 1
        %v6250 = vsel %vm2590, %v6238, %v6249
        %v6251 = vrot.slane %v6230, 1
        %v6252 = vsel %vm2590, %v6241, %v6251
        %v6253 = vrot.slane %v6231, 1
        %v6254 = vsel %vm2590, %v6244, %v6253
        %v6255 = vrot.slane %v6232, 1
        %v6256 = vsel %vm2590, %v6247, %v6255
        %v6257 = vrot.slane %v6233, 1
        %v6258 = vsel %vm2590, %v6249, %v6257
        %v6259 = vrot.slane %v6234, 1
        %v6260 = vsel %vm2590, %v6251, %v6259
        %v6261 = vrot.slane %v6235, 1
        %v6262 = vsel %vm2590, %v6253, %v6261
        %v6263 = vrot.slane %v6236, 1
        %v6264 = vsel %vm2590, %v6255, %v6263
        %v6278 = vsel %vm6035, %v6177, 0
        %v6281 = vsel %vm5902, %v6257, 0
        %v6284 = vsel %vm5902, %v6259, 0
        %v6287 = vsel %vm5902, %v6261, 0
        %v6290 = vsel %vm5902, %v6263, 0
        %6292 = vmatprep.subr.bf16.mxu0 0
        %6293 = vmatpush1.bf16.msra.mxu0 0
        %6294 = vmatprep.subr.bf16.mxu0 0
        %6295 = vmatpush1.bf16.msra.mxu0 0
        %6296 = vmatprep.subr.bf16.mxu0 0
        %6297 = vmatpush1.bf16.msra.mxu0 0
        %6298 = vmatprep.subr.bf16.mxu0 0
        %6299 = vmatpush1.bf16.msra.mxu0 0
        %6300 = vmatprep.subr.bf16.mxu0 %v6284
        %6301 = vmatpush1.bf16.msra.mxu0 %v6281
        %6302 = vmatprep.subr.bf16.mxu0 %v6260
        %6303 = vmatpush1.bf16.msra.mxu0 %v6258
        %6304 = vmatprep.subr.bf16.mxu0 %v6252
        %6305 = vmatpush1.bf16.msra.mxu0 %v6250
        %6306 = vmatprep.subr.bf16.mxu0 %v6242
        %6307 = vmatpush1.bf16.msra.mxu0 %v6239
        %6308 = vmatprep.subr.bf16.mxu0 0
        %6309 = vmatpush2.bf16.msra.mxu0 0
        %6310 = vmatprep.subr.bf16.mxu0 0
        %6311 = vmatpush2.bf16.msra.mxu0 0
        %6312 = vmatprep.subr.bf16.mxu0 0
        %6313 = vmatpush2.bf16.msra.mxu0 0
        %6314 = vmatprep.subr.bf16.mxu0 0
        %6315 = vmatpush2.bf16.msra.mxu0 0
        %6316 = vmatprep.subr.bf16.mxu0 0
        %6317 = vmatpush2.bf16.msra.mxu0 0
        %6318 = vmatprep.subr.bf16.mxu0 0
        %6319 = vmatpush2.bf16.msra.mxu0 0
        %6320 = vmatprep.subr.bf16.mxu0 0
        %6321 = vmatpush2.bf16.msra.mxu0 0
        %6322 = vmatprep.subr.bf16.mxu0 0
        %6323 = vmatpush2.bf16.msra.mxu0 0
        %6324 = vmatprep.mubr.bf16.mxu0 0
        %6325 = vmatmul.mubr.bf16.gmra.mxu0 %v6278
        %v6326 = vpop.f32.mrf.mxu0
        %v6327 = vadd.f32 0.0, %v6326
        %v6328 = vpop.f32.mrf.mxu0
        %v6329 = vadd.f32 0.0, %v6328
        %v6330 = vpop.f32.mrf.mxu0
        %v6331 = vpop.f32.mrf.mxu0
        %6332 = vdwg.mxu0
        %6333 = vmatprep.subr.bf16.mxu0 0
        %6334 = vmatpush1.bf16.msra.mxu0 0
        %6335 = vmatprep.subr.bf16.mxu0 0
        %6336 = vmatpush1.bf16.msra.mxu0 0
        %6337 = vmatprep.subr.bf16.mxu0 0
        %6338 = vmatpush1.bf16.msra.mxu0 0
        %6339 = vmatprep.subr.bf16.mxu0 0
        %6340 = vmatpush1.bf16.msra.mxu0 0
        %6341 = vmatprep.subr.bf16.mxu0 %v6290
        %6342 = vmatpush1.bf16.msra.mxu0 %v6287
        %6343 = vmatprep.subr.bf16.mxu0 %v6264
        %6344 = vmatpush1.bf16.msra.mxu0 %v6262
        %6345 = vmatprep.subr.bf16.mxu0 %v6256
        %6346 = vmatpush1.bf16.msra.mxu0 %v6254
        %6347 = vmatprep.subr.bf16.mxu0 %v6248
        %6348 = vmatpush1.bf16.msra.mxu0 %v6245
        %6349 = vmatprep.subr.bf16.mxu0 0
        %6350 = vmatpush2.bf16.msra.mxu0 0
        %6351 = vmatprep.subr.bf16.mxu0 0
        %6352 = vmatpush2.bf16.msra.mxu0 0
        %6353 = vmatprep.subr.bf16.mxu0 0
        %6354 = vmatpush2.bf16.msra.mxu0 0
        %6355 = vmatprep.subr.bf16.mxu0 0
        %6356 = vmatpush2.bf16.msra.mxu0 0
        %6357 = vmatprep.subr.bf16.mxu0 0
        %6358 = vmatpush2.bf16.msra.mxu0 0
        %6359 = vmatprep.subr.bf16.mxu0 0
        %6360 = vmatpush2.bf16.msra.mxu0 0
        %6361 = vmatprep.subr.bf16.mxu0 0
        %6362 = vmatpush2.bf16.msra.mxu0 0
        %6363 = vmatprep.subr.bf16.mxu0 0
        %6364 = vmatpush2.bf16.msra.mxu0 0
        %6365 = vmatprep.mubr.bf16.mxu0 0
        %6366 = vmatmul.mubr.bf16.gmra.mxu0 %v6278
        %v6367 = vpop.f32.mrf.mxu0
        %v6368 = vadd.f32 0.0, %v6367
        %v6369 = vpop.f32.mrf.mxu0
        %v6370 = vadd.f32 0.0, %v6369
        %v6371 = vpop.f32.mrf.mxu0
        %v6372 = vpop.f32.mrf.mxu0
        %6373 = vdwg.mxu0
        %v6378 = vcombine.low %v6327, %v6329
        %v6379 = vcombine.low %v6368, %v6370
        %v6381 = vunpack.c.l.s4 1966171168
        %v6382 = vunpack.c.0.s8 %v6381
        %v6383 = vlaneseq
        %v6384 = vshrl.u32 %v6383, 7
        %v6385 = vsub.s32 %v6382, %v6384
        %v6386 = vrot.slane %v6378, %v6385
        %v6388 = vunpack.c.l.s4 1966171168
        %v6389 = vunpack.c.0.s8 %v6388
        %v6390 = vlaneseq
        %v6391 = vshrl.u32 %v6390, 7
        %v6392 = vsub.s32 %v6389, %v6391
        %v6393 = vrot.slane %v6379, %v6392
        %v6394 = vcombine.low %v6386, %v6393
        %v6396 = vunpack.c.l.s4 1966171168
        %v6397 = vunpack.c.0.s8 %v6396
        %v6398 = vlaneseq
        %v6399 = vshrl.u32 %v6398, 7
        %v6400 = vsub.s32 %v6397, %v6399
        %v6401 = vrot.slane %v6394, %v6400
        %v6403 = vadd.f32 %v6162, %v6401
        %v6404 = vld [vmem:[%s5 + $0xc0] sm:$0xcc]
        %v6405 = vld [vmem:[%s5 + $0xc8] sm:$0xcc]
        %v6406 = vld [vmem:[%s5 + $0xd0] sm:$0xff]
        %v6407 = vld [vmem:[%s5 + $0xd8] sm:$0xff]
        %v6408 = vld [vmem:[%s5 + $0xe0] sm:$0xff]
        %v6409 = vld [vmem:[%s5 + $0xe8] sm:$0xff]
        %v6410 = vld [vmem:[%s5 + $0xf0] sm:$0xff]
        %v6411 = vld [vmem:[%s5 + $0xf8] sm:$0xff]
        %v6412 = vld [vmem:[%s5 + $0x100] sm:$0xff]
        %v6413 = vld [vmem:[%s5 + $0x108] sm:$0xff]
        %v6414 = vld [vmem:[%s5 + $0x110] sm:$0xff]
        %v6415 = vld [vmem:[%s5 + $0x118] sm:$0xff]
        %v6416 = vld [vmem:[%s5 + $0x120] sm:$0x77]
        %v6417 = vld [vmem:[%s5 + $0x128] sm:$0x77]
        %v6419 = vrot.slane %v5949, 1
        %v6434 = vunpack.c.l.b16 %v6404
        %v6435 = vunpack.c.h.b16 %v6404
        %v6436 = vunpack.c.l.b16 %v6405
        %v6437 = vunpack.c.h.b16 %v6405
        %v6438 = vunpack.c.l.b16 %v6406
        %v6439 = vunpack.c.h.b16 %v6406
        %v6440 = vunpack.c.l.b16 %v6407
        %v6441 = vunpack.c.h.b16 %v6407
        %v6442 = vunpack.c.l.b16 %v6408
        %v6443 = vunpack.c.h.b16 %v6408
        %v6444 = vunpack.c.l.b16 %v6409
        %v6445 = vunpack.c.h.b16 %v6409
        %v6446 = vunpack.c.l.b16 %v6410
        %v6447 = vunpack.c.h.b16 %v6410
        %v6448 = vunpack.c.l.b16 %v6411
        %v6449 = vunpack.c.h.b16 %v6411
        %v6450 = vunpack.c.l.b16 %v6412
        %v6451 = vunpack.c.h.b16 %v6412
        %v6452 = vunpack.c.l.b16 %v6413
        %v6453 = vunpack.c.h.b16 %v6413
        %v6454 = vunpack.c.l.b16 %v6414
        %v6455 = vunpack.c.h.b16 %v6414
        %v6456 = vunpack.c.l.b16 %v6415
        %v6457 = vunpack.c.h.b16 %v6415
        %v6458 = vunpack.c.l.b16 %v6416
        %v6459 = vunpack.c.h.b16 %v6416
        %v6460 = vunpack.c.l.b16 %v6417
        %v6461 = vunpack.c.h.b16 %v6417
        %v6462 = vpack.c.b16 %v6438, %v6434
        %v6463 = vpack.c.b16 %v6439, %v6435
        %v6464 = vpack.c.b16 %v6440, %v6436
        %v6465 = vpack.c.b16 %v6441, %v6437
        %v6466 = vpack.c.b16 %v6446, %v6442
        %v6467 = vpack.c.b16 %v6447, %v6443
        %v6468 = vpack.c.b16 %v6448, %v6444
        %v6469 = vpack.c.b16 %v6449, %v6445
        %v6470 = vpack.c.b16 %v6454, %v6450
        %v6471 = vpack.c.b16 %v6455, %v6451
        %v6472 = vpack.c.b16 %v6456, %v6452
        %v6473 = vpack.c.b16 %v6457, %v6453
        %v6474 = vpack.c.b16 %v6458, %v6458
        %v6475 = vpack.c.b16 %v6459, %v6459
        %v6476 = vpack.c.b16 %v6460, %v6460
        %v6477 = vpack.c.b16 %v6461, %v6461
        %v6478 = vrot.slane %v6462, 2
        %v6479 = vrot.slane %v6466, 2
        %v6480 = vsel %vm2366, %v6478, %v6479
        %v6481 = vrot.slane %v6463, 2
        %v6482 = vrot.slane %v6467, 2
        %v6483 = vsel %vm2366, %v6481, %v6482
        %v6484 = vrot.slane %v6464, 2
        %v6485 = vrot.slane %v6468, 2
        %v6486 = vsel %vm2366, %v6484, %v6485
        %v6487 = vrot.slane %v6465, 2
        %v6488 = vrot.slane %v6469, 2
        %v6489 = vsel %vm2366, %v6487, %v6488
        %v6490 = vrot.slane %v6470, 2
        %v6491 = vsel %vm2366, %v6479, %v6490
        %v6492 = vrot.slane %v6471, 2
        %v6493 = vsel %vm2366, %v6482, %v6492
        %v6494 = vrot.slane %v6472, 2
        %v6495 = vsel %vm2366, %v6485, %v6494
        %v6496 = vrot.slane %v6473, 2
        %v6497 = vsel %vm2366, %v6488, %v6496
        %v6498 = vrot.slane %v6474, 2
        %v6499 = vsel %vm2366, %v6490, %v6498
        %v6500 = vrot.slane %v6475, 2
        %v6501 = vsel %vm2366, %v6492, %v6500
        %v6502 = vrot.slane %v6476, 2
        %v6503 = vsel %vm2366, %v6494, %v6502
        %v6504 = vrot.slane %v6477, 2
        %v6505 = vsel %vm2366, %v6496, %v6504
        %v6519 = vsel %vm6035, %v6419, 0
        %v6522 = vsel %vm5902, %v6498, 0
        %v6525 = vsel %vm5902, %v6500, 0
        %v6528 = vsel %vm5902, %v6502, 0
        %v6531 = vsel %vm5902, %v6504, 0
        %6533 = vmatprep.subr.bf16.mxu0 0
        %6534 = vmatpush1.bf16.msra.mxu0 0
        %6535 = vmatprep.subr.bf16.mxu0 0
        %6536 = vmatpush1.bf16.msra.mxu0 0
        %6537 = vmatprep.subr.bf16.mxu0 0
        %6538 = vmatpush1.bf16.msra.mxu0 0
        %6539 = vmatprep.subr.bf16.mxu0 0
        %6540 = vmatpush1.bf16.msra.mxu0 0
        %6541 = vmatprep.subr.bf16.mxu0 %v6525
        %6542 = vmatpush1.bf16.msra.mxu0 %v6522
        %6543 = vmatprep.subr.bf16.mxu0 %v6501
        %6544 = vmatpush1.bf16.msra.mxu0 %v6499
        %6545 = vmatprep.subr.bf16.mxu0 %v6493
        %6546 = vmatpush1.bf16.msra.mxu0 %v6491
        %6547 = vmatprep.subr.bf16.mxu0 %v6483
        %6548 = vmatpush1.bf16.msra.mxu0 %v6480
        %6549 = vmatprep.subr.bf16.mxu0 0
        %6550 = vmatpush2.bf16.msra.mxu0 0
        %6551 = vmatprep.subr.bf16.mxu0 0
        %6552 = vmatpush2.bf16.msra.mxu0 0
        %6553 = vmatprep.subr.bf16.mxu0 0
        %6554 = vmatpush2.bf16.msra.mxu0 0
        %6555 = vmatprep.subr.bf16.mxu0 0
        %6556 = vmatpush2.bf16.msra.mxu0 0
        %6557 = vmatprep.subr.bf16.mxu0 0
        %6558 = vmatpush2.bf16.msra.mxu0 0
        %6559 = vmatprep.subr.bf16.mxu0 0
        %6560 = vmatpush2.bf16.msra.mxu0 0
        %6561 = vmatprep.subr.bf16.mxu0 0
        %6562 = vmatpush2.bf16.msra.mxu0 0
        %6563 = vmatprep.subr.bf16.mxu0 0
        %6564 = vmatpush2.bf16.msra.mxu0 0
        %6565 = vmatprep.mubr.bf16.mxu0 0
        %6566 = vmatmul.mubr.bf16.gmra.mxu0 %v6519
        %v6567 = vpop.f32.mrf.mxu0
        %v6568 = vadd.f32 0.0, %v6567
        %v6569 = vpop.f32.mrf.mxu0
        %v6570 = vadd.f32 0.0, %v6569
        %v6571 = vpop.f32.mrf.mxu0
        %v6572 = vpop.f32.mrf.mxu0
        %6573 = vdwg.mxu0
        %6574 = vmatprep.subr.bf16.mxu0 0
        %6575 = vmatpush1.bf16.msra.mxu0 0
        %6576 = vmatprep.subr.bf16.mxu0 0
        %6577 = vmatpush1.bf16.msra.mxu0 0
        %6578 = vmatprep.subr.bf16.mxu0 0
        %6579 = vmatpush1.bf16.msra.mxu0 0
        %6580 = vmatprep.subr.bf16.mxu0 0
        %6581 = vmatpush1.bf16.msra.mxu0 0
        %6582 = vmatprep.subr.bf16.mxu0 %v6531
        %6583 = vmatpush1.bf16.msra.mxu0 %v6528
        %6584 = vmatprep.subr.bf16.mxu0 %v6505
        %6585 = vmatpush1.bf16.msra.mxu0 %v6503
        %6586 = vmatprep.subr.bf16.mxu0 %v6497
        %6587 = vmatpush1.bf16.msra.mxu0 %v6495
        %6588 = vmatprep.subr.bf16.mxu0 %v6489
        %6589 = vmatpush1.bf16.msra.mxu0 %v6486
        %6590 = vmatprep.subr.bf16.mxu0 0
        %6591 = vmatpush2.bf16.msra.mxu0 0
        %6592 = vmatprep.subr.bf16.mxu0 0
        %6593 = vmatpush2.bf16.msra.mxu0 0
        %6594 = vmatprep.subr.bf16.mxu0 0
        %6595 = vmatpush2.bf16.msra.mxu0 0
        %6596 = vmatprep.subr.bf16.mxu0 0
        %6597 = vmatpush2.bf16.msra.mxu0 0
        %6598 = vmatprep.subr.bf16.mxu0 0
        %6599 = vmatpush2.bf16.msra.mxu0 0
        %6600 = vmatprep.subr.bf16.mxu0 0
        %6601 = vmatpush2.bf16.msra.mxu0 0
        %6602 = vmatprep.subr.bf16.mxu0 0
        %6603 = vmatpush2.bf16.msra.mxu0 0
        %6604 = vmatprep.subr.bf16.mxu0 0
        %6605 = vmatpush2.bf16.msra.mxu0 0
        %6606 = vmatprep.mubr.bf16.mxu0 0
        %6607 = vmatmul.mubr.bf16.gmra.mxu0 %v6519
        %v6608 = vpop.f32.mrf.mxu0
        %v6609 = vadd.f32 0.0, %v6608
        %v6610 = vpop.f32.mrf.mxu0
        %v6611 = vadd.f32 0.0, %v6610
        %v6612 = vpop.f32.mrf.mxu0
        %v6613 = vpop.f32.mrf.mxu0
        %6614 = vdwg.mxu0
        %v6619 = vcombine.low %v6568, %v6570
        %v6620 = vcombine.low %v6609, %v6611
        %v6622 = vunpack.c.l.s4 1966171168
        %v6623 = vunpack.c.0.s8 %v6622
        %v6624 = vlaneseq
        %v6625 = vshrl.u32 %v6624, 7
        %v6626 = vsub.s32 %v6623, %v6625
        %v6627 = vrot.slane %v6619, %v6626
        %v6629 = vunpack.c.l.s4 1966171168
        %v6630 = vunpack.c.0.s8 %v6629
        %v6631 = vlaneseq
        %v6632 = vshrl.u32 %v6631, 7
        %v6633 = vsub.s32 %v6630, %v6632
        %v6634 = vrot.slane %v6620, %v6633
        %v6635 = vcombine.low %v6627, %v6634
        %v6637 = vunpack.c.l.s4 1966171168
        %v6638 = vunpack.c.0.s8 %v6637
        %v6639 = vlaneseq
        %v6640 = vshrl.u32 %v6639, 7
        %v6641 = vsub.s32 %v6638, %v6640
        %v6642 = vrot.slane %v6635, %v6641
        %v6644 = vadd.f32 %v6403, %v6642
        %v6645 = vld [vmem:[%s5 + $0x120] sm:$0x88]
        %v6646 = vld [vmem:[%s5 + $0x128] sm:$0x88]
        %v6647 = vld [vmem:[%s5 + $0x130] sm:$0xff]
        %v6648 = vld [vmem:[%s5 + $0x138] sm:$0xff]
        %v6649 = vld [vmem:[%s5 + $0x140] sm:$0xff]
        %v6650 = vld [vmem:[%s5 + $0x148] sm:$0xff]
        %v6651 = vld [vmem:[%s5 + $0x150] sm:$0xff]
        %v6652 = vld [vmem:[%s5 + $0x158] sm:$0xff]
        %v6653 = vld [vmem:[%s5 + $0x160] sm:$0xff]
        %v6654 = vld [vmem:[%s5 + $0x168] sm:$0xff]
        %v6655 = vld [vmem:[%s5 + $0x170] sm:$0xff]
        %v6656 = vld [vmem:[%s5 + $0x178] sm:$0xff]
        %v6657 = vld [vmem:[%s5 + $0x180] sm:$0xff]
        %v6658 = vld [vmem:[%s5 + $0x188] sm:$0xff]
        %v6659 = vrot.slane %v6177, 1
        %v6674 = vunpack.c.l.b16 %v6645
        %v6675 = vunpack.c.h.b16 %v6645
        %v6676 = vunpack.c.l.b16 %v6646
        %v6677 = vunpack.c.h.b16 %v6646
        %v6678 = vunpack.c.l.b16 %v6647
        %v6679 = vunpack.c.h.b16 %v6647
        %v6680 = vunpack.c.l.b16 %v6648
        %v6681 = vunpack.c.h.b16 %v6648
        %v6682 = vunpack.c.l.b16 %v6649
        %v6683 = vunpack.c.h.b16 %v6649
        %v6684 = vunpack.c.l.b16 %v6650
        %v6685 = vunpack.c.h.b16 %v6650
        %v6686 = vunpack.c.l.b16 %v6651
        %v6687 = vunpack.c.h.b16 %v6651
        %v6688 = vunpack.c.l.b16 %v6652
        %v6689 = vunpack.c.h.b16 %v6652
        %v6690 = vunpack.c.l.b16 %v6653
        %v6691 = vunpack.c.h.b16 %v6653
        %v6692 = vunpack.c.l.b16 %v6654
        %v6693 = vunpack.c.h.b16 %v6654
        %v6694 = vunpack.c.l.b16 %v6655
        %v6695 = vunpack.c.h.b16 %v6655
        %v6696 = vunpack.c.l.b16 %v6656
        %v6697 = vunpack.c.h.b16 %v6656
        %v6698 = vunpack.c.l.b16 %v6657
        %v6699 = vunpack.c.h.b16 %v6657
        %v6700 = vunpack.c.l.b16 %v6658
        %v6701 = vunpack.c.h.b16 %v6658
        %v6702 = vpack.c.b16 %v6678, %v6674
        %v6703 = vpack.c.b16 %v6679, %v6675
        %v6704 = vpack.c.b16 %v6680, %v6676
        %v6705 = vpack.c.b16 %v6681, %v6677
        %v6706 = vpack.c.b16 %v6686, %v6682
        %v6707 = vpack.c.b16 %v6687, %v6683
        %v6708 = vpack.c.b16 %v6688, %v6684
        %v6709 = vpack.c.b16 %v6689, %v6685
        %v6710 = vpack.c.b16 %v6694, %v6690
        %v6711 = vpack.c.b16 %v6695, %v6691
        %v6712 = vpack.c.b16 %v6696, %v6692
        %v6713 = vpack.c.b16 %v6697, %v6693
        %v6714 = vpack.c.b16 %v6698, %v6698
        %v6715 = vpack.c.b16 %v6699, %v6699
        %v6716 = vpack.c.b16 %v6700, %v6700
        %v6717 = vpack.c.b16 %v6701, %v6701
        %v6718 = vrot.slane %v6702, 3
        %v6719 = vrot.slane %v6706, 3
        %v6720 = vsel %vm4721, %v6718, %v6719
        %v6721 = vrot.slane %v6703, 3
        %v6722 = vrot.slane %v6707, 3
        %v6723 = vsel %vm4721, %v6721, %v6722
        %v6724 = vrot.slane %v6704, 3
        %v6725 = vrot.slane %v6708, 3
        %v6726 = vsel %vm4721, %v6724, %v6725
        %v6727 = vrot.slane %v6705, 3
        %v6728 = vrot.slane %v6709, 3
        %v6729 = vsel %vm4721, %v6727, %v6728
        %v6730 = vrot.slane %v6710, 3
        %v6731 = vsel %vm4721, %v6719, %v6730
        %v6732 = vrot.slane %v6711, 3
        %v6733 = vsel %vm4721, %v6722, %v6732
        %v6734 = vrot.slane %v6712, 3
        %v6735 = vsel %vm4721, %v6725, %v6734
        %v6736 = vrot.slane %v6713, 3
        %v6737 = vsel %vm4721, %v6728, %v6736
        %v6738 = vrot.slane %v6714, 3
        %v6739 = vsel %vm4721, %v6730, %v6738
        %v6740 = vrot.slane %v6715, 3
        %v6741 = vsel %vm4721, %v6732, %v6740
        %v6742 = vrot.slane %v6716, 3
        %v6743 = vsel %vm4721, %v6734, %v6742
        %v6744 = vrot.slane %v6717, 3
        %v6745 = vsel %vm4721, %v6736, %v6744
        %v6759 = vsel %vm6035, %v6659, 0
        %v6762 = vsel %vm5902, %v6738, 0
        %v6765 = vsel %vm5902, %v6740, 0
        %v6768 = vsel %vm5902, %v6742, 0
        %v6771 = vsel %vm5902, %v6744, 0
        %6773 = vmatprep.subr.bf16.mxu0 0
        %6774 = vmatpush1.bf16.msra.mxu0 0
        %6775 = vmatprep.subr.bf16.mxu0 0
        %6776 = vmatpush1.bf16.msra.mxu0 0
        %6777 = vmatprep.subr.bf16.mxu0 0
        %6778 = vmatpush1.bf16.msra.mxu0 0
        %6779 = vmatprep.subr.bf16.mxu0 0
        %6780 = vmatpush1.bf16.msra.mxu0 0
        %6781 = vmatprep.subr.bf16.mxu0 %v6765
        %6782 = vmatpush1.bf16.msra.mxu0 %v6762
        %6783 = vmatprep.subr.bf16.mxu0 %v6741
        %6784 = vmatpush1.bf16.msra.mxu0 %v6739
        %6785 = vmatprep.subr.bf16.mxu0 %v6733
        %6786 = vmatpush1.bf16.msra.mxu0 %v6731
        %6787 = vmatprep.subr.bf16.mxu0 %v6723
        %6788 = vmatpush1.bf16.msra.mxu0 %v6720
        %6789 = vmatprep.subr.bf16.mxu0 0
        %6790 = vmatpush2.bf16.msra.mxu0 0
        %6791 = vmatprep.subr.bf16.mxu0 0
        %6792 = vmatpush2.bf16.msra.mxu0 0
        %6793 = vmatprep.subr.bf16.mxu0 0
        %6794 = vmatpush2.bf16.msra.mxu0 0
        %6795 = vmatprep.subr.bf16.mxu0 0
        %6796 = vmatpush2.bf16.msra.mxu0 0
        %6797 = vmatprep.subr.bf16.mxu0 0
        %6798 = vmatpush2.bf16.msra.mxu0 0
        %6799 = vmatprep.subr.bf16.mxu0 0
        %6800 = vmatpush2.bf16.msra.mxu0 0
        %6801 = vmatprep.subr.bf16.mxu0 0
        %6802 = vmatpush2.bf16.msra.mxu0 0
        %6803 = vmatprep.subr.bf16.mxu0 0
        %6804 = vmatpush2.bf16.msra.mxu0 0
        %6805 = vmatprep.mubr.bf16.mxu0 0
        %6806 = vmatmul.mubr.bf16.gmra.mxu0 %v6759
        %v6807 = vpop.f32.mrf.mxu0
        %v6808 = vadd.f32 0.0, %v6807
        %v6809 = vpop.f32.mrf.mxu0
        %v6810 = vadd.f32 0.0, %v6809
        %v6811 = vpop.f32.mrf.mxu0
        %v6812 = vpop.f32.mrf.mxu0
        %6813 = vdwg.mxu0
        %6814 = vmatprep.subr.bf16.mxu0 0
        %6815 = vmatpush1.bf16.msra.mxu0 0
        %6816 = vmatprep.subr.bf16.mxu0 0
        %6817 = vmatpush1.bf16.msra.mxu0 0
        %6818 = vmatprep.subr.bf16.mxu0 0
        %6819 = vmatpush1.bf16.msra.mxu0 0
        %6820 = vmatprep.subr.bf16.mxu0 0
        %6821 = vmatpush1.bf16.msra.mxu0 0
        %6822 = vmatprep.subr.bf16.mxu0 %v6771
        %6823 = vmatpush1.bf16.msra.mxu0 %v6768
        %6824 = vmatprep.subr.bf16.mxu0 %v6745
        %6825 = vmatpush1.bf16.msra.mxu0 %v6743
        %6826 = vmatprep.subr.bf16.mxu0 %v6737
        %6827 = vmatpush1.bf16.msra.mxu0 %v6735
        %6828 = vmatprep.subr.bf16.mxu0 %v6729
        %6829 = vmatpush1.bf16.msra.mxu0 %v6726
        %6830 = vmatprep.subr.bf16.mxu0 0
        %6831 = vmatpush2.bf16.msra.mxu0 0
        %6832 = vmatprep.subr.bf16.mxu0 0
        %6833 = vmatpush2.bf16.msra.mxu0 0
        %6834 = vmatprep.subr.bf16.mxu0 0
        %6835 = vmatpush2.bf16.msra.mxu0 0
        %6836 = vmatprep.subr.bf16.mxu0 0
        %6837 = vmatpush2.bf16.msra.mxu0 0
        %6838 = vmatprep.subr.bf16.mxu0 0
        %6839 = vmatpush2.bf16.msra.mxu0 0
        %6840 = vmatprep.subr.bf16.mxu0 0
        %6841 = vmatpush2.bf16.msra.mxu0 0
        %6842 = vmatprep.subr.bf16.mxu0 0
        %6843 = vmatpush2.bf16.msra.mxu0 0
        %6844 = vmatprep.subr.bf16.mxu0 0
        %6845 = vmatpush2.bf16.msra.mxu0 0
        %6846 = vmatprep.mubr.bf16.mxu0 0
        %6847 = vmatmul.mubr.bf16.gmra.mxu0 %v6759
        %v6848 = vpop.f32.mrf.mxu0
        %v6849 = vadd.f32 0.0, %v6848
        %v6850 = vpop.f32.mrf.mxu0
        %v6851 = vadd.f32 0.0, %v6850
        %v6852 = vpop.f32.mrf.mxu0
        %v6853 = vpop.f32.mrf.mxu0
        %6854 = vdwg.mxu0
        %v6859 = vcombine.low %v6808, %v6810
        %v6860 = vcombine.low %v6849, %v6851
        %v6862 = vunpack.c.l.s4 1966171168
        %v6863 = vunpack.c.0.s8 %v6862
        %v6864 = vlaneseq
        %v6865 = vshrl.u32 %v6864, 7
        %v6866 = vsub.s32 %v6863, %v6865
        %v6867 = vrot.slane %v6859, %v6866
        %v6869 = vunpack.c.l.s4 1966171168
        %v6870 = vunpack.c.0.s8 %v6869
        %v6871 = vlaneseq
        %v6872 = vshrl.u32 %v6871, 7
        %v6873 = vsub.s32 %v6870, %v6872
        %v6874 = vrot.slane %v6860, %v6873
        %v6875 = vcombine.low %v6867, %v6874
        %v6877 = vunpack.c.l.s4 1966171168
        %v6878 = vunpack.c.0.s8 %v6877
        %v6879 = vlaneseq
        %v6880 = vshrl.u32 %v6879, 7
        %v6881 = vsub.s32 %v6878, %v6880
        %v6882 = vrot.slane %v6875, %v6881
        %v6884 = vadd.f32 %v6644, %v6882
        %v6885 = vld [vmem:[%s5 + $0x190] sm:$0xff]
        %v6886 = vld [vmem:[%s5 + $0x198] sm:$0xff]
        %v6887 = vld [vmem:[%s5 + $0x1a0] sm:$0xff]
        %v6888 = vld [vmem:[%s5 + $0x1a8] sm:$0xff]
        %v6889 = vld [vmem:[%s5 + $0x1b0] sm:$0xff]
        %v6890 = vld [vmem:[%s5 + $0x1b8] sm:$0xff]
        %v6891 = vld [vmem:[%s5 + $0x1c0] sm:$0xff]
        %v6892 = vld [vmem:[%s5 + $0x1c8] sm:$0xff]
        %v6893 = vld [vmem:[%s5 + $0x1d0] sm:$0xff]
        %v6894 = vld [vmem:[%s5 + $0x1d8] sm:$0xff]
        %v6895 = vld [vmem:[%s5 + $0x1e0] sm:$0xff]
        %v6896 = vld [vmem:[%s5 + $0x1e8] sm:$0xff]
        %v6897 = vld [vmem:[%s5 + $0x1f0] sm:$0x11]
        %v6898 = vld [vmem:[%s5 + $0x1f8] sm:$0x11]
        %v6899 = vrot.slane %v5949, 2
        %v6914 = vunpack.c.l.b16 %v6885
        %v6915 = vunpack.c.h.b16 %v6885
        %v6916 = vunpack.c.l.b16 %v6886
        %v6917 = vunpack.c.h.b16 %v6886
        %v6918 = vunpack.c.l.b16 %v6887
        %v6919 = vunpack.c.h.b16 %v6887
        %v6920 = vunpack.c.l.b16 %v6888
        %v6921 = vunpack.c.h.b16 %v6888
        %v6922 = vunpack.c.l.b16 %v6889
        %v6923 = vunpack.c.h.b16 %v6889
        %v6924 = vunpack.c.l.b16 %v6890
        %v6925 = vunpack.c.h.b16 %v6890
        %v6926 = vunpack.c.l.b16 %v6891
        %v6927 = vunpack.c.h.b16 %v6891
        %v6928 = vunpack.c.l.b16 %v6892
        %v6929 = vunpack.c.h.b16 %v6892
        %v6930 = vunpack.c.l.b16 %v6893
        %v6931 = vunpack.c.h.b16 %v6893
        %v6932 = vunpack.c.l.b16 %v6894
        %v6933 = vunpack.c.h.b16 %v6894
        %v6934 = vunpack.c.l.b16 %v6895
        %v6935 = vunpack.c.h.b16 %v6895
        %v6936 = vunpack.c.l.b16 %v6896
        %v6937 = vunpack.c.h.b16 %v6896
        %v6938 = vunpack.c.l.b16 %v6897
        %v6939 = vunpack.c.h.b16 %v6897
        %v6940 = vunpack.c.l.b16 %v6898
        %v6941 = vunpack.c.h.b16 %v6898
        %v6942 = vpack.c.b16 %v6918, %v6914
        %v6943 = vpack.c.b16 %v6919, %v6915
        %v6944 = vpack.c.b16 %v6920, %v6916
        %v6945 = vpack.c.b16 %v6921, %v6917
        %v6946 = vpack.c.b16 %v6926, %v6922
        %v6947 = vpack.c.b16 %v6927, %v6923
        %v6948 = vpack.c.b16 %v6928, %v6924
        %v6949 = vpack.c.b16 %v6929, %v6925
        %v6950 = vpack.c.b16 %v6934, %v6930
        %v6951 = vpack.c.b16 %v6935, %v6931
        %v6952 = vpack.c.b16 %v6936, %v6932
        %v6953 = vpack.c.b16 %v6937, %v6933
        %v6954 = vpack.c.b16 %v6938, %v6938
        %v6955 = vpack.c.b16 %v6939, %v6939
        %v6956 = vpack.c.b16 %v6940, %v6940
        %v6957 = vpack.c.b16 %v6941, %v6941
        %v6971 = vsel %vm6035, %v6899, 0
        %v6974 = vsel %vm5902, %v6954, 0
        %v6977 = vsel %vm5902, %v6955, 0
        %v6980 = vsel %vm5902, %v6956, 0
        %v6983 = vsel %vm5902, %v6957, 0
        %6985 = vmatprep.subr.bf16.mxu0 0
        %6986 = vmatpush1.bf16.msra.mxu0 0
        %6987 = vmatprep.subr.bf16.mxu0 0
        %6988 = vmatpush1.bf16.msra.mxu0 0
        %6989 = vmatprep.subr.bf16.mxu0 0
        %6990 = vmatpush1.bf16.msra.mxu0 0
        %6991 = vmatprep.subr.bf16.mxu0 0
        %6992 = vmatpush1.bf16.msra.mxu0 0
        %6993 = vmatprep.subr.bf16.mxu0 %v6977
        %6994 = vmatpush1.bf16.msra.mxu0 %v6974
        %6995 = vmatprep.subr.bf16.mxu0 %v6951
        %6996 = vmatpush1.bf16.msra.mxu0 %v6950
        %6997 = vmatprep.subr.bf16.mxu0 %v6947
        %6998 = vmatpush1.bf16.msra.mxu0 %v6946
        %6999 = vmatprep.subr.bf16.mxu0 %v6943
        %7000 = vmatpush1.bf16.msra.mxu0 %v6942
        %7001 = vmatprep.subr.bf16.mxu0 0
        %7002 = vmatpush2.bf16.msra.mxu0 0
        %7003 = vmatprep.subr.bf16.mxu0 0
        %7004 = vmatpush2.bf16.msra.mxu0 0
        %7005 = vmatprep.subr.bf16.mxu0 0
        %7006 = vmatpush2.bf16.msra.mxu0 0
        %7007 = vmatprep.subr.bf16.mxu0 0
        %7008 = vmatpush2.bf16.msra.mxu0 0
        %7009 = vmatprep.subr.bf16.mxu0 0
        %7010 = vmatpush2.bf16.msra.mxu0 0
        %7011 = vmatprep.subr.bf16.mxu0 0
        %7012 = vmatpush2.bf16.msra.mxu0 0
        %7013 = vmatprep.subr.bf16.mxu0 0
        %7014 = vmatpush2.bf16.msra.mxu0 0
        %7015 = vmatprep.subr.bf16.mxu0 0
        %7016 = vmatpush2.bf16.msra.mxu0 0
        %7017 = vmatprep.mubr.bf16.mxu0 0
        %7018 = vmatmul.mubr.bf16.gmra.mxu0 %v6971
        %v7019 = vpop.f32.mrf.mxu0
        %v7020 = vadd.f32 0.0, %v7019
        %v7021 = vpop.f32.mrf.mxu0
        %v7022 = vadd.f32 0.0, %v7021
        %v7023 = vpop.f32.mrf.mxu0
        %v7024 = vpop.f32.mrf.mxu0
        %7025 = vdwg.mxu0
        %7026 = vmatprep.subr.bf16.mxu0 0
        %7027 = vmatpush1.bf16.msra.mxu0 0
        %7028 = vmatprep.subr.bf16.mxu0 0
        %7029 = vmatpush1.bf16.msra.mxu0 0
        %7030 = vmatprep.subr.bf16.mxu0 0
        %7031 = vmatpush1.bf16.msra.mxu0 0
        %7032 = vmatprep.subr.bf16.mxu0 0
        %7033 = vmatpush1.bf16.msra.mxu0 0
        %7034 = vmatprep.subr.bf16.mxu0 %v6983
        %7035 = vmatpush1.bf16.msra.mxu0 %v6980
        %7036 = vmatprep.subr.bf16.mxu0 %v6953
        %7037 = vmatpush1.bf16.msra.mxu0 %v6952
        %7038 = vmatprep.subr.bf16.mxu0 %v6949
        %7039 = vmatpush1.bf16.msra.mxu0 %v6948
        %7040 = vmatprep.subr.bf16.mxu0 %v6945
        %7041 = vmatpush1.bf16.msra.mxu0 %v6944
        %7042 = vmatprep.subr.bf16.mxu0 0
        %7043 = vmatpush2.bf16.msra.mxu0 0
        %7044 = vmatprep.subr.bf16.mxu0 0
        %7045 = vmatpush2.bf16.msra.mxu0 0
        %7046 = vmatprep.subr.bf16.mxu0 0
        %7047 = vmatpush2.bf16.msra.mxu0 0
        %7048 = vmatprep.subr.bf16.mxu0 0
        %7049 = vmatpush2.bf16.msra.mxu0 0
        %7050 = vmatprep.subr.bf16.mxu0 0
        %7051 = vmatpush2.bf16.msra.mxu0 0
        %7052 = vmatprep.subr.bf16.mxu0 0
        %7053 = vmatpush2.bf16.msra.mxu0 0
        %7054 = vmatprep.subr.bf16.mxu0 0
        %7055 = vmatpush2.bf16.msra.mxu0 0
        %7056 = vmatprep.subr.bf16.mxu0 0
        %7057 = vmatpush2.bf16.msra.mxu0 0
        %7058 = vmatprep.mubr.bf16.mxu0 0
        %7059 = vmatmul.mubr.bf16.gmra.mxu0 %v6971
        %v7060 = vpop.f32.mrf.mxu0
        %v7061 = vadd.f32 0.0, %v7060
        %v7062 = vpop.f32.mrf.mxu0
        %v7063 = vadd.f32 0.0, %v7062
        %v7064 = vpop.f32.mrf.mxu0
        %v7065 = vpop.f32.mrf.mxu0
        %7066 = vdwg.mxu0
        %v7071 = vcombine.low %v7020, %v7022
        %v7072 = vcombine.low %v7061, %v7063
        %v7074 = vunpack.c.l.s4 1966171168
        %v7075 = vunpack.c.0.s8 %v7074
        %v7076 = vlaneseq
        %v7077 = vshrl.u32 %v7076, 7
        %v7078 = vsub.s32 %v7075, %v7077
        %v7079 = vrot.slane %v7071, %v7078
        %v7081 = vunpack.c.l.s4 1966171168
        %v7082 = vunpack.c.0.s8 %v7081
        %v7083 = vlaneseq
        %v7084 = vshrl.u32 %v7083, 7
        %v7085 = vsub.s32 %v7082, %v7084
        %v7086 = vrot.slane %v7072, %v7085
        %v7087 = vcombine.low %v7079, %v7086
        %v7089 = vunpack.c.l.s4 1966171168
        %v7090 = vunpack.c.0.s8 %v7089
        %v7091 = vlaneseq
        %v7092 = vshrl.u32 %v7091, 7
        %v7093 = vsub.s32 %v7090, %v7092
        %v7094 = vrot.slane %v7087, %v7093
        %v7096 = vadd.f32 %v6884, %v7094
        %v7097 = vld [vmem:[%s5 + $0x1f0] sm:$0xee]
        %v7098 = vld [vmem:[%s5 + $0x1f8] sm:$0xee]
        %v7099 = vld [vmem:[%s5 + $0x200] sm:$0xff]
        %v7100 = vld [vmem:[%s5 + $0x208] sm:$0xff]
        %v7101 = vld [vmem:[%s5 + $0x210] sm:$0xff]
        %v7102 = vld [vmem:[%s5 + $0x218] sm:$0xff]
        %v7103 = vld [vmem:[%s5 + $0x220] sm:$0xff]
        %v7104 = vld [vmem:[%s5 + $0x228] sm:$0xff]
        %v7105 = vld [vmem:[%s5 + $0x230] sm:$0xff]
        %v7106 = vld [vmem:[%s5 + $0x238] sm:$0xff]
        %v7107 = vld [vmem:[%s5 + $0x240] sm:$0xff]
        %v7108 = vld [vmem:[%s5 + $0x248] sm:$0xff]
        %v7109 = vld [vmem:[%s5 + $0x250] sm:$0x33]
        %v7110 = vld [vmem:[%s5 + $0x258] sm:$0x33]
        %v7111 = vrot.slane %v6177, 2
        %v7126 = vunpack.c.l.b16 %v7097
        %v7127 = vunpack.c.h.b16 %v7097
        %v7128 = vunpack.c.l.b16 %v7098
        %v7129 = vunpack.c.h.b16 %v7098
        %v7130 = vunpack.c.l.b16 %v7099
        %v7131 = vunpack.c.h.b16 %v7099
        %v7132 = vunpack.c.l.b16 %v7100
        %v7133 = vunpack.c.h.b16 %v7100
        %v7134 = vunpack.c.l.b16 %v7101
        %v7135 = vunpack.c.h.b16 %v7101
        %v7136 = vunpack.c.l.b16 %v7102
        %v7137 = vunpack.c.h.b16 %v7102
        %v7138 = vunpack.c.l.b16 %v7103
        %v7139 = vunpack.c.h.b16 %v7103
        %v7140 = vunpack.c.l.b16 %v7104
        %v7141 = vunpack.c.h.b16 %v7104
        %v7142 = vunpack.c.l.b16 %v7105
        %v7143 = vunpack.c.h.b16 %v7105
        %v7144 = vunpack.c.l.b16 %v7106
        %v7145 = vunpack.c.h.b16 %v7106
        %v7146 = vunpack.c.l.b16 %v7107
        %v7147 = vunpack.c.h.b16 %v7107
        %v7148 = vunpack.c.l.b16 %v7108
        %v7149 = vunpack.c.h.b16 %v7108
        %v7150 = vunpack.c.l.b16 %v7109
        %v7151 = vunpack.c.h.b16 %v7109
        %v7152 = vunpack.c.l.b16 %v7110
        %v7153 = vunpack.c.h.b16 %v7110
        %v7154 = vpack.c.b16 %v7130, %v7126
        %v7155 = vpack.c.b16 %v7131, %v7127
        %v7156 = vpack.c.b16 %v7132, %v7128
        %v7157 = vpack.c.b16 %v7133, %v7129
        %v7158 = vpack.c.b16 %v7138, %v7134
        %v7159 = vpack.c.b16 %v7139, %v7135
        %v7160 = vpack.c.b16 %v7140, %v7136
        %v7161 = vpack.c.b16 %v7141, %v7137
        %v7162 = vpack.c.b16 %v7146, %v7142
        %v7163 = vpack.c.b16 %v7147, %v7143
        %v7164 = vpack.c.b16 %v7148, %v7144
        %v7165 = vpack.c.b16 %v7149, %v7145
        %v7166 = vpack.c.b16 %v7150, %v7150
        %v7167 = vpack.c.b16 %v7151, %v7151
        %v7168 = vpack.c.b16 %v7152, %v7152
        %v7169 = vpack.c.b16 %v7153, %v7153
        %v7170 = vrot.slane %v7154, 1
        %v7171 = vrot.slane %v7158, 1
        %v7172 = vsel %vm2590, %v7170, %v7171
        %v7173 = vrot.slane %v7155, 1
        %v7174 = vrot.slane %v7159, 1
        %v7175 = vsel %vm2590, %v7173, %v7174
        %v7176 = vrot.slane %v7156, 1
        %v7177 = vrot.slane %v7160, 1
        %v7178 = vsel %vm2590, %v7176, %v7177
        %v7179 = vrot.slane %v7157, 1
        %v7180 = vrot.slane %v7161, 1
        %v7181 = vsel %vm2590, %v7179, %v7180
        %v7182 = vrot.slane %v7162, 1
        %v7183 = vsel %vm2590, %v7171, %v7182
        %v7184 = vrot.slane %v7163, 1
        %v7185 = vsel %vm2590, %v7174, %v7184
        %v7186 = vrot.slane %v7164, 1
        %v7187 = vsel %vm2590, %v7177, %v7186
        %v7188 = vrot.slane %v7165, 1
        %v7189 = vsel %vm2590, %v7180, %v7188
        %v7190 = vrot.slane %v7166, 1
        %v7191 = vsel %vm2590, %v7182, %v7190
        %v7192 = vrot.slane %v7167, 1
        %v7193 = vsel %vm2590, %v7184, %v7192
        %v7194 = vrot.slane %v7168, 1
        %v7195 = vsel %vm2590, %v7186, %v7194
        %v7196 = vrot.slane %v7169, 1
        %v7197 = vsel %vm2590, %v7188, %v7196
        %v7211 = vsel %vm6035, %v7111, 0
        %v7214 = vsel %vm5902, %v7190, 0
        %v7217 = vsel %vm5902, %v7192, 0
        %v7220 = vsel %vm5902, %v7194, 0
        %v7223 = vsel %vm5902, %v7196, 0
        %7225 = vmatprep.subr.bf16.mxu0 0
        %7226 = vmatpush1.bf16.msra.mxu0 0
        %7227 = vmatprep.subr.bf16.mxu0 0
        %7228 = vmatpush1.bf16.msra.mxu0 0
        %7229 = vmatprep.subr.bf16.mxu0 0
        %7230 = vmatpush1.bf16.msra.mxu0 0
        %7231 = vmatprep.subr.bf16.mxu0 0
        %7232 = vmatpush1.bf16.msra.mxu0 0
        %7233 = vmatprep.subr.bf16.mxu0 %v7217
        %7234 = vmatpush1.bf16.msra.mxu0 %v7214
        %7235 = vmatprep.subr.bf16.mxu0 %v7193
        %7236 = vmatpush1.bf16.msra.mxu0 %v7191
        %7237 = vmatprep.subr.bf16.mxu0 %v7185
        %7238 = vmatpush1.bf16.msra.mxu0 %v7183
        %7239 = vmatprep.subr.bf16.mxu0 %v7175
        %7240 = vmatpush1.bf16.msra.mxu0 %v7172
        %7241 = vmatprep.subr.bf16.mxu0 0
        %7242 = vmatpush2.bf16.msra.mxu0 0
        %7243 = vmatprep.subr.bf16.mxu0 0
        %7244 = vmatpush2.bf16.msra.mxu0 0
        %7245 = vmatprep.subr.bf16.mxu0 0
        %7246 = vmatpush2.bf16.msra.mxu0 0
        %7247 = vmatprep.subr.bf16.mxu0 0
        %7248 = vmatpush2.bf16.msra.mxu0 0
        %7249 = vmatprep.subr.bf16.mxu0 0
        %7250 = vmatpush2.bf16.msra.mxu0 0
        %7251 = vmatprep.subr.bf16.mxu0 0
        %7252 = vmatpush2.bf16.msra.mxu0 0
        %7253 = vmatprep.subr.bf16.mxu0 0
        %7254 = vmatpush2.bf16.msra.mxu0 0
        %7255 = vmatprep.subr.bf16.mxu0 0
        %7256 = vmatpush2.bf16.msra.mxu0 0
        %7257 = vmatprep.mubr.bf16.mxu0 0
        %7258 = vmatmul.mubr.bf16.gmra.mxu0 %v7211
        %v7259 = vpop.f32.mrf.mxu0
        %v7260 = vadd.f32 0.0, %v7259
        %v7261 = vpop.f32.mrf.mxu0
        %v7262 = vadd.f32 0.0, %v7261
        %v7263 = vpop.f32.mrf.mxu0
        %v7264 = vpop.f32.mrf.mxu0
        %7265 = vdwg.mxu0
        %7266 = vmatprep.subr.bf16.mxu0 0
        %7267 = vmatpush1.bf16.msra.mxu0 0
        %7268 = vmatprep.subr.bf16.mxu0 0
        %7269 = vmatpush1.bf16.msra.mxu0 0
        %7270 = vmatprep.subr.bf16.mxu0 0
        %7271 = vmatpush1.bf16.msra.mxu0 0
        %7272 = vmatprep.subr.bf16.mxu0 0
        %7273 = vmatpush1.bf16.msra.mxu0 0
        %7274 = vmatprep.subr.bf16.mxu0 %v7223
        %7275 = vmatpush1.bf16.msra.mxu0 %v7220
        %7276 = vmatprep.subr.bf16.mxu0 %v7197
        %7277 = vmatpush1.bf16.msra.mxu0 %v7195
        %7278 = vmatprep.subr.bf16.mxu0 %v7189
        %7279 = vmatpush1.bf16.msra.mxu0 %v7187
        %7280 = vmatprep.subr.bf16.mxu0 %v7181
        %7281 = vmatpush1.bf16.msra.mxu0 %v7178
        %7282 = vmatprep.subr.bf16.mxu0 0
        %7283 = vmatpush2.bf16.msra.mxu0 0
        %7284 = vmatprep.subr.bf16.mxu0 0
        %7285 = vmatpush2.bf16.msra.mxu0 0
        %7286 = vmatprep.subr.bf16.mxu0 0
        %7287 = vmatpush2.bf16.msra.mxu0 0
        %7288 = vmatprep.subr.bf16.mxu0 0
        %7289 = vmatpush2.bf16.msra.mxu0 0
        %7290 = vmatprep.subr.bf16.mxu0 0
        %7291 = vmatpush2.bf16.msra.mxu0 0
        %7292 = vmatprep.subr.bf16.mxu0 0
        %7293 = vmatpush2.bf16.msra.mxu0 0
        %7294 = vmatprep.subr.bf16.mxu0 0
        %7295 = vmatpush2.bf16.msra.mxu0 0
        %7296 = vmatprep.subr.bf16.mxu0 0
        %7297 = vmatpush2.bf16.msra.mxu0 0
        %7298 = vmatprep.mubr.bf16.mxu0 0
        %7299 = vmatmul.mubr.bf16.gmra.mxu0 %v7211
        %v7300 = vpop.f32.mrf.mxu0
        %v7301 = vadd.f32 0.0, %v7300
        %v7302 = vpop.f32.mrf.mxu0
        %v7303 = vadd.f32 0.0, %v7302
        %v7304 = vpop.f32.mrf.mxu0
        %v7305 = vpop.f32.mrf.mxu0
        %7306 = vdwg.mxu0
        %v7311 = vcombine.low %v7260, %v7262
        %v7312 = vcombine.low %v7301, %v7303
        %v7314 = vunpack.c.l.s4 1966171168
        %v7315 = vunpack.c.0.s8 %v7314
        %v7316 = vlaneseq
        %v7317 = vshrl.u32 %v7316, 7
        %v7318 = vsub.s32 %v7315, %v7317
        %v7319 = vrot.slane %v7311, %v7318
        %v7321 = vunpack.c.l.s4 1966171168
        %v7322 = vunpack.c.0.s8 %v7321
        %v7323 = vlaneseq
        %v7324 = vshrl.u32 %v7323, 7
        %v7325 = vsub.s32 %v7322, %v7324
        %v7326 = vrot.slane %v7312, %v7325
        %v7327 = vcombine.low %v7319, %v7326
        %v7329 = vunpack.c.l.s4 1966171168
        %v7330 = vunpack.c.0.s8 %v7329
        %v7331 = vlaneseq
        %v7332 = vshrl.u32 %v7331, 7
        %v7333 = vsub.s32 %v7330, %v7332
        %v7334 = vrot.slane %v7327, %v7333
        %v7336 = vadd.f32 %v7096, %v7334
        %v7337 = vld [vmem:[%s5 + $0x250] sm:$0xcc]
        %v7338 = vld [vmem:[%s5 + $0x258] sm:$0xcc]
        %v7339 = vld [vmem:[%s5 + $0x260] sm:$0xff]
        %v7340 = vld [vmem:[%s5 + $0x268] sm:$0xff]
        %v7341 = vld [vmem:[%s5 + $0x270] sm:$0xff]
        %v7342 = vld [vmem:[%s5 + $0x278] sm:$0xff]
        %v7343 = vld [vmem:[%s5 + $0x280] sm:$0xff]
        %v7344 = vld [vmem:[%s5 + $0x288] sm:$0xff]
        %v7345 = vld [vmem:[%s5 + $0x290] sm:$0xff]
        %v7346 = vld [vmem:[%s5 + $0x298] sm:$0xff]
        %v7347 = vld [vmem:[%s5 + $0x2a0] sm:$0xff]
        %v7348 = vld [vmem:[%s5 + $0x2a8] sm:$0xff]
        %v7349 = vld [vmem:[%s5 + $0x2b0] sm:$0x77]
        %v7350 = vld [vmem:[%s5 + $0x2b8] sm:$0x77]
        %v7351 = vrot.slane %v5949, 3
        %v7366 = vunpack.c.l.b16 %v7337
        %v7367 = vunpack.c.h.b16 %v7337
        %v7368 = vunpack.c.l.b16 %v7338
        %v7369 = vunpack.c.h.b16 %v7338
        %v7370 = vunpack.c.l.b16 %v7339
        %v7371 = vunpack.c.h.b16 %v7339
        %v7372 = vunpack.c.l.b16 %v7340
        %v7373 = vunpack.c.h.b16 %v7340
        %v7374 = vunpack.c.l.b16 %v7341
        %v7375 = vunpack.c.h.b16 %v7341
        %v7376 = vunpack.c.l.b16 %v7342
        %v7377 = vunpack.c.h.b16 %v7342
        %v7378 = vunpack.c.l.b16 %v7343
        %v7379 = vunpack.c.h.b16 %v7343
        %v7380 = vunpack.c.l.b16 %v7344
        %v7381 = vunpack.c.h.b16 %v7344
        %v7382 = vunpack.c.l.b16 %v7345
        %v7383 = vunpack.c.h.b16 %v7345
        %v7384 = vunpack.c.l.b16 %v7346
        %v7385 = vunpack.c.h.b16 %v7346
        %v7386 = vunpack.c.l.b16 %v7347
        %v7387 = vunpack.c.h.b16 %v7347
        %v7388 = vunpack.c.l.b16 %v7348
        %v7389 = vunpack.c.h.b16 %v7348
        %v7390 = vunpack.c.l.b16 %v7349
        %v7391 = vunpack.c.h.b16 %v7349
        %v7392 = vunpack.c.l.b16 %v7350
        %v7393 = vunpack.c.h.b16 %v7350
        %v7394 = vpack.c.b16 %v7370, %v7366
        %v7395 = vpack.c.b16 %v7371, %v7367
        %v7396 = vpack.c.b16 %v7372, %v7368
        %v7397 = vpack.c.b16 %v7373, %v7369
        %v7398 = vpack.c.b16 %v7378, %v7374
        %v7399 = vpack.c.b16 %v7379, %v7375
        %v7400 = vpack.c.b16 %v7380, %v7376
        %v7401 = vpack.c.b16 %v7381, %v7377
        %v7402 = vpack.c.b16 %v7386, %v7382
        %v7403 = vpack.c.b16 %v7387, %v7383
        %v7404 = vpack.c.b16 %v7388, %v7384
        %v7405 = vpack.c.b16 %v7389, %v7385
        %v7406 = vpack.c.b16 %v7390, %v7390
        %v7407 = vpack.c.b16 %v7391, %v7391
        %v7408 = vpack.c.b16 %v7392, %v7392
        %v7409 = vpack.c.b16 %v7393, %v7393
        %v7410 = vrot.slane %v7394, 2
        %v7411 = vrot.slane %v7398, 2
        %v7412 = vsel %vm2366, %v7410, %v7411
        %v7413 = vrot.slane %v7395, 2
        %v7414 = vrot.slane %v7399, 2
        %v7415 = vsel %vm2366, %v7413, %v7414
        %v7416 = vrot.slane %v7396, 2
        %v7417 = vrot.slane %v7400, 2
        %v7418 = vsel %vm2366, %v7416, %v7417
        %v7419 = vrot.slane %v7397, 2
        %v7420 = vrot.slane %v7401, 2
        %v7421 = vsel %vm2366, %v7419, %v7420
        %v7422 = vrot.slane %v7402, 2
        %v7423 = vsel %vm2366, %v7411, %v7422
        %v7424 = vrot.slane %v7403, 2
        %v7425 = vsel %vm2366, %v7414, %v7424
        %v7426 = vrot.slane %v7404, 2
        %v7427 = vsel %vm2366, %v7417, %v7426
        %v7428 = vrot.slane %v7405, 2
        %v7429 = vsel %vm2366, %v7420, %v7428
        %v7430 = vrot.slane %v7406, 2
        %v7431 = vsel %vm2366, %v7422, %v7430
        %v7432 = vrot.slane %v7407, 2
        %v7433 = vsel %vm2366, %v7424, %v7432
        %v7434 = vrot.slane %v7408, 2
        %v7435 = vsel %vm2366, %v7426, %v7434
        %v7436 = vrot.slane %v7409, 2
        %v7437 = vsel %vm2366, %v7428, %v7436
        %v7451 = vsel %vm6035, %v7351, 0
        %v7454 = vsel %vm5902, %v7430, 0
        %v7457 = vsel %vm5902, %v7432, 0
        %v7460 = vsel %vm5902, %v7434, 0
        %v7463 = vsel %vm5902, %v7436, 0
        %7465 = vmatprep.subr.bf16.mxu0 0
        %7466 = vmatpush1.bf16.msra.mxu0 0
        %7467 = vmatprep.subr.bf16.mxu0 0
        %7468 = vmatpush1.bf16.msra.mxu0 0
        %7469 = vmatprep.subr.bf16.mxu0 0
        %7470 = vmatpush1.bf16.msra.mxu0 0
        %7471 = vmatprep.subr.bf16.mxu0 0
        %7472 = vmatpush1.bf16.msra.mxu0 0
        %7473 = vmatprep.subr.bf16.mxu0 %v7457
        %7474 = vmatpush1.bf16.msra.mxu0 %v7454
        %7475 = vmatprep.subr.bf16.mxu0 %v7433
        %7476 = vmatpush1.bf16.msra.mxu0 %v7431
        %7477 = vmatprep.subr.bf16.mxu0 %v7425
        %7478 = vmatpush1.bf16.msra.mxu0 %v7423
        %7479 = vmatprep.subr.bf16.mxu0 %v7415
        %7480 = vmatpush1.bf16.msra.mxu0 %v7412
        %7481 = vmatprep.subr.bf16.mxu0 0
        %7482 = vmatpush2.bf16.msra.mxu0 0
        %7483 = vmatprep.subr.bf16.mxu0 0
        %7484 = vmatpush2.bf16.msra.mxu0 0
        %7485 = vmatprep.subr.bf16.mxu0 0
        %7486 = vmatpush2.bf16.msra.mxu0 0
        %7487 = vmatprep.subr.bf16.mxu0 0
        %7488 = vmatpush2.bf16.msra.mxu0 0
        %7489 = vmatprep.subr.bf16.mxu0 0
        %7490 = vmatpush2.bf16.msra.mxu0 0
        %7491 = vmatprep.subr.bf16.mxu0 0
        %7492 = vmatpush2.bf16.msra.mxu0 0
        %7493 = vmatprep.subr.bf16.mxu0 0
        %7494 = vmatpush2.bf16.msra.mxu0 0
        %7495 = vmatprep.subr.bf16.mxu0 0
        %7496 = vmatpush2.bf16.msra.mxu0 0
        %7497 = vmatprep.mubr.bf16.mxu0 0
        %7498 = vmatmul.mubr.bf16.gmra.mxu0 %v7451
        %v7499 = vpop.f32.mrf.mxu0
        %v7500 = vadd.f32 0.0, %v7499
        %v7501 = vpop.f32.mrf.mxu0
        %v7502 = vadd.f32 0.0, %v7501
        %v7503 = vpop.f32.mrf.mxu0
        %v7504 = vpop.f32.mrf.mxu0
        %7505 = vdwg.mxu0
        %7506 = vmatprep.subr.bf16.mxu0 0
        %7507 = vmatpush1.bf16.msra.mxu0 0
        %7508 = vmatprep.subr.bf16.mxu0 0
        %7509 = vmatpush1.bf16.msra.mxu0 0
        %7510 = vmatprep.subr.bf16.mxu0 0
        %7511 = vmatpush1.bf16.msra.mxu0 0
        %7512 = vmatprep.subr.bf16.mxu0 0
        %7513 = vmatpush1.bf16.msra.mxu0 0
        %7514 = vmatprep.subr.bf16.mxu0 %v7463
        %7515 = vmatpush1.bf16.msra.mxu0 %v7460
        %7516 = vmatprep.subr.bf16.mxu0 %v7437
        %7517 = vmatpush1.bf16.msra.mxu0 %v7435
        %7518 = vmatprep.subr.bf16.mxu0 %v7429
        %7519 = vmatpush1.bf16.msra.mxu0 %v7427
        %7520 = vmatprep.subr.bf16.mxu0 %v7421
        %7521 = vmatpush1.bf16.msra.mxu0 %v7418
        %7522 = vmatprep.subr.bf16.mxu0 0
        %7523 = vmatpush2.bf16.msra.mxu0 0
        %7524 = vmatprep.subr.bf16.mxu0 0
        %7525 = vmatpush2.bf16.msra.mxu0 0
        %7526 = vmatprep.subr.bf16.mxu0 0
        %7527 = vmatpush2.bf16.msra.mxu0 0
        %7528 = vmatprep.subr.bf16.mxu0 0
        %7529 = vmatpush2.bf16.msra.mxu0 0
        %7530 = vmatprep.subr.bf16.mxu0 0
        %7531 = vmatpush2.bf16.msra.mxu0 0
        %7532 = vmatprep.subr.bf16.mxu0 0
        %7533 = vmatpush2.bf16.msra.mxu0 0
        %7534 = vmatprep.subr.bf16.mxu0 0
        %7535 = vmatpush2.bf16.msra.mxu0 0
        %7536 = vmatprep.subr.bf16.mxu0 0
        %7537 = vmatpush2.bf16.msra.mxu0 0
        %7538 = vmatprep.mubr.bf16.mxu0 0
        %7539 = vmatmul.mubr.bf16.gmra.mxu0 %v7451
        %v7540 = vpop.f32.mrf.mxu0
        %v7541 = vadd.f32 0.0, %v7540
        %v7542 = vpop.f32.mrf.mxu0
        %v7543 = vadd.f32 0.0, %v7542
        %v7544 = vpop.f32.mrf.mxu0
        %v7545 = vpop.f32.mrf.mxu0
        %7546 = vdwg.mxu0
        %v7551 = vcombine.low %v7500, %v7502
        %v7552 = vcombine.low %v7541, %v7543
        %v7554 = vunpack.c.l.s4 1966171168
        %v7555 = vunpack.c.0.s8 %v7554
        %v7556 = vlaneseq
        %v7557 = vshrl.u32 %v7556, 7
        %v7558 = vsub.s32 %v7555, %v7557
        %v7559 = vrot.slane %v7551, %v7558
        %v7561 = vunpack.c.l.s4 1966171168
        %v7562 = vunpack.c.0.s8 %v7561
        %v7563 = vlaneseq
        %v7564 = vshrl.u32 %v7563, 7
        %v7565 = vsub.s32 %v7562, %v7564
        %v7566 = vrot.slane %v7552, %v7565
        %v7567 = vcombine.low %v7559, %v7566
        %v7569 = vunpack.c.l.s4 1966171168
        %v7570 = vunpack.c.0.s8 %v7569
        %v7571 = vlaneseq
        %v7572 = vshrl.u32 %v7571, 7
        %v7573 = vsub.s32 %v7570, %v7572
        %v7574 = vrot.slane %v7567, %v7573
        %v7576 = vadd.f32 %v7336, %v7574
        %v7577 = vld [vmem:[%s5 + $0x2b0] sm:$0x88]
        %v7578 = vld [vmem:[%s5 + $0x2b8] sm:$0x88]
        %v7579 = vld [vmem:[%s5 + $0x2c0] sm:$0xff]
        %v7580 = vld [vmem:[%s5 + $0x2c8] sm:$0xff]
        %v7581 = vld [vmem:[%s5 + $0x2d0] sm:$0xff]
        %v7582 = vld [vmem:[%s5 + $0x2d8] sm:$0xff]
        %v7583 = vld [vmem:[%s5 + $0x2e0] sm:$0xff]
        %v7584 = vld [vmem:[%s5 + $0x2e8] sm:$0xff]
        %v7585 = vld [vmem:[%s5 + $0x2f0] sm:$0xff]
        %v7586 = vld [vmem:[%s5 + $0x2f8] sm:$0xff]
        %v7587 = vld [vmem:[%s5 + $0x300] sm:$0xff]
        %v7588 = vld [vmem:[%s5 + $0x308] sm:$0xff]
        %v7589 = vld [vmem:[%s5 + $0x310] sm:$0xff]
        %v7590 = vld [vmem:[%s5 + $0x318] sm:$0xff]
        %v7591 = vrot.slane %v6177, 3
        %v7606 = vunpack.c.l.b16 %v7577
        %v7607 = vunpack.c.h.b16 %v7577
        %v7608 = vunpack.c.l.b16 %v7578
        %v7609 = vunpack.c.h.b16 %v7578
        %v7610 = vunpack.c.l.b16 %v7579
        %v7611 = vunpack.c.h.b16 %v7579
        %v7612 = vunpack.c.l.b16 %v7580
        %v7613 = vunpack.c.h.b16 %v7580
        %v7614 = vunpack.c.l.b16 %v7581
        %v7615 = vunpack.c.h.b16 %v7581
        %v7616 = vunpack.c.l.b16 %v7582
        %v7617 = vunpack.c.h.b16 %v7582
        %v7618 = vunpack.c.l.b16 %v7583
        %v7619 = vunpack.c.h.b16 %v7583
        %v7620 = vunpack.c.l.b16 %v7584
        %v7621 = vunpack.c.h.b16 %v7584
        %v7622 = vunpack.c.l.b16 %v7585
        %v7623 = vunpack.c.h.b16 %v7585
        %v7624 = vunpack.c.l.b16 %v7586
        %v7625 = vunpack.c.h.b16 %v7586
        %v7626 = vunpack.c.l.b16 %v7587
        %v7627 = vunpack.c.h.b16 %v7587
        %v7628 = vunpack.c.l.b16 %v7588
        %v7629 = vunpack.c.h.b16 %v7588
        %v7630 = vunpack.c.l.b16 %v7589
        %v7631 = vunpack.c.h.b16 %v7589
        %v7632 = vunpack.c.l.b16 %v7590
        %v7633 = vunpack.c.h.b16 %v7590
        %v7634 = vpack.c.b16 %v7610, %v7606
        %v7635 = vpack.c.b16 %v7611, %v7607
        %v7636 = vpack.c.b16 %v7612, %v7608
        %v7637 = vpack.c.b16 %v7613, %v7609
        %v7638 = vpack.c.b16 %v7618, %v7614
        %v7639 = vpack.c.b16 %v7619, %v7615
        %v7640 = vpack.c.b16 %v7620, %v7616
        %v7641 = vpack.c.b16 %v7621, %v7617
        %v7642 = vpack.c.b16 %v7626, %v7622
        %v7643 = vpack.c.b16 %v7627, %v7623
        %v7644 = vpack.c.b16 %v7628, %v7624
        %v7645 = vpack.c.b16 %v7629, %v7625
        %v7646 = vpack.c.b16 %v7630, %v7630
        %v7647 = vpack.c.b16 %v7631, %v7631
        %v7648 = vpack.c.b16 %v7632, %v7632
        %v7649 = vpack.c.b16 %v7633, %v7633
        %v7650 = vrot.slane %v7634, 3
        %v7651 = vrot.slane %v7638, 3
        %v7652 = vsel %vm4721, %v7650, %v7651
        %v7653 = vrot.slane %v7635, 3
        %v7654 = vrot.slane %v7639, 3
        %v7655 = vsel %vm4721, %v7653, %v7654
        %v7656 = vrot.slane %v7636, 3
        %v7657 = vrot.slane %v7640, 3
        %v7658 = vsel %vm4721, %v7656, %v7657
        %v7659 = vrot.slane %v7637, 3
        %v7660 = vrot.slane %v7641, 3
        %v7661 = vsel %vm4721, %v7659, %v7660
        %v7662 = vrot.slane %v7642, 3
        %v7663 = vsel %vm4721, %v7651, %v7662
        %v7664 = vrot.slane %v7643, 3
        %v7665 = vsel %vm4721, %v7654, %v7664
        %v7666 = vrot.slane %v7644, 3
        %v7667 = vsel %vm4721, %v7657, %v7666
        %v7668 = vrot.slane %v7645, 3
        %v7669 = vsel %vm4721, %v7660, %v7668
        %v7670 = vrot.slane %v7646, 3
        %v7671 = vsel %vm4721, %v7662, %v7670
        %v7672 = vrot.slane %v7647, 3
        %v7673 = vsel %vm4721, %v7664, %v7672
        %v7674 = vrot.slane %v7648, 3
        %v7675 = vsel %vm4721, %v7666, %v7674
        %v7676 = vrot.slane %v7649, 3
        %v7677 = vsel %vm4721, %v7668, %v7676
        %v7691 = vsel %vm6035, %v7591, 0
        %v7694 = vsel %vm5902, %v7670, 0
        %v7697 = vsel %vm5902, %v7672, 0
        %v7700 = vsel %vm5902, %v7674, 0
        %v7703 = vsel %vm5902, %v7676, 0
        %7705 = vmatprep.subr.bf16.mxu0 0
        %7706 = vmatpush1.bf16.msra.mxu0 0
        %7707 = vmatprep.subr.bf16.mxu0 0
        %7708 = vmatpush1.bf16.msra.mxu0 0
        %7709 = vmatprep.subr.bf16.mxu0 0
        %7710 = vmatpush1.bf16.msra.mxu0 0
        %7711 = vmatprep.subr.bf16.mxu0 0
        %7712 = vmatpush1.bf16.msra.mxu0 0
        %7713 = vmatprep.subr.bf16.mxu0 %v7697
        %7714 = vmatpush1.bf16.msra.mxu0 %v7694
        %7715 = vmatprep.subr.bf16.mxu0 %v7673
        %7716 = vmatpush1.bf16.msra.mxu0 %v7671
        %7717 = vmatprep.subr.bf16.mxu0 %v7665
        %7718 = vmatpush1.bf16.msra.mxu0 %v7663
        %7719 = vmatprep.subr.bf16.mxu0 %v7655
        %7720 = vmatpush1.bf16.msra.mxu0 %v7652
        %7721 = vmatprep.subr.bf16.mxu0 0
        %7722 = vmatpush2.bf16.msra.mxu0 0
        %7723 = vmatprep.subr.bf16.mxu0 0
        %7724 = vmatpush2.bf16.msra.mxu0 0
        %7725 = vmatprep.subr.bf16.mxu0 0
        %7726 = vmatpush2.bf16.msra.mxu0 0
        %7727 = vmatprep.subr.bf16.mxu0 0
        %7728 = vmatpush2.bf16.msra.mxu0 0
        %7729 = vmatprep.subr.bf16.mxu0 0
        %7730 = vmatpush2.bf16.msra.mxu0 0
        %7731 = vmatprep.subr.bf16.mxu0 0
        %7732 = vmatpush2.bf16.msra.mxu0 0
        %7733 = vmatprep.subr.bf16.mxu0 0
        %7734 = vmatpush2.bf16.msra.mxu0 0
        %7735 = vmatprep.subr.bf16.mxu0 0
        %7736 = vmatpush2.bf16.msra.mxu0 0
        %7737 = vmatprep.mubr.bf16.mxu0 0
        %7738 = vmatmul.mubr.bf16.gmra.mxu0 %v7691
        %v7739 = vpop.f32.mrf.mxu0
        %v7740 = vadd.f32 0.0, %v7739
        %v7741 = vpop.f32.mrf.mxu0
        %v7742 = vadd.f32 0.0, %v7741
        %v7743 = vpop.f32.mrf.mxu0
        %v7744 = vpop.f32.mrf.mxu0
        %7745 = vdwg.mxu0
        %7746 = vmatprep.subr.bf16.mxu0 0
        %7747 = vmatpush1.bf16.msra.mxu0 0
        %7748 = vmatprep.subr.bf16.mxu0 0
        %7749 = vmatpush1.bf16.msra.mxu0 0
        %7750 = vmatprep.subr.bf16.mxu0 0
        %7751 = vmatpush1.bf16.msra.mxu0 0
        %7752 = vmatprep.subr.bf16.mxu0 0
        %7753 = vmatpush1.bf16.msra.mxu0 0
        %7754 = vmatprep.subr.bf16.mxu0 %v7703
        %7755 = vmatpush1.bf16.msra.mxu0 %v7700
        %7756 = vmatprep.subr.bf16.mxu0 %v7677
        %7757 = vmatpush1.bf16.msra.mxu0 %v7675
        %7758 = vmatprep.subr.bf16.mxu0 %v7669
        %7759 = vmatpush1.bf16.msra.mxu0 %v7667
        %7760 = vmatprep.subr.bf16.mxu0 %v7661
        %7761 = vmatpush1.bf16.msra.mxu0 %v7658
        %7762 = vmatprep.subr.bf16.mxu0 0
        %7763 = vmatpush2.bf16.msra.mxu0 0
        %7764 = vmatprep.subr.bf16.mxu0 0
        %7765 = vmatpush2.bf16.msra.mxu0 0
        %7766 = vmatprep.subr.bf16.mxu0 0
        %7767 = vmatpush2.bf16.msra.mxu0 0
        %7768 = vmatprep.subr.bf16.mxu0 0
        %7769 = vmatpush2.bf16.msra.mxu0 0
        %7770 = vmatprep.subr.bf16.mxu0 0
        %7771 = vmatpush2.bf16.msra.mxu0 0
        %7772 = vmatprep.subr.bf16.mxu0 0
        %7773 = vmatpush2.bf16.msra.mxu0 0
        %7774 = vmatprep.subr.bf16.mxu0 0
        %7775 = vmatpush2.bf16.msra.mxu0 0
        %7776 = vmatprep.subr.bf16.mxu0 0
        %7777 = vmatpush2.bf16.msra.mxu0 0
        %7778 = vmatprep.mubr.bf16.mxu0 0
        %7779 = vmatmul.mubr.bf16.gmra.mxu0 %v7691
        %v7780 = vpop.f32.mrf.mxu0
        %v7781 = vadd.f32 0.0, %v7780
        %v7782 = vpop.f32.mrf.mxu0
        %v7783 = vadd.f32 0.0, %v7782
        %v7784 = vpop.f32.mrf.mxu0
        %v7785 = vpop.f32.mrf.mxu0
        %7786 = vdwg.mxu0
        %v7791 = vcombine.low %v7740, %v7742
        %v7792 = vcombine.low %v7781, %v7783
        %v7794 = vunpack.c.l.s4 1966171168
        %v7795 = vunpack.c.0.s8 %v7794
        %v7796 = vlaneseq
        %v7797 = vshrl.u32 %v7796, 7
        %v7798 = vsub.s32 %v7795, %v7797
        %v7799 = vrot.slane %v7791, %v7798
        %v7801 = vunpack.c.l.s4 1966171168
        %v7802 = vunpack.c.0.s8 %v7801
        %v7803 = vlaneseq
        %v7804 = vshrl.u32 %v7803, 7
        %v7805 = vsub.s32 %v7802, %v7804
        %v7806 = vrot.slane %v7792, %v7805
        %v7807 = vcombine.low %v7799, %v7806
        %v7809 = vunpack.c.l.s4 1966171168
        %v7810 = vunpack.c.0.s8 %v7809
        %v7811 = vlaneseq
        %v7812 = vshrl.u32 %v7811, 7
        %v7813 = vsub.s32 %v7810, %v7812
        %v7814 = vrot.slane %v7807, %v7813
        %v7816 = vadd.f32 %v7576, %v7814
        %v7817 = vld [vmem:[%s5 + $0x320] sm:$0xff]
        %v7818 = vld [vmem:[%s5 + $0x328] sm:$0xff]
        %v7819 = vld [vmem:[%s5 + $0x330] sm:$0xff]
        %v7820 = vld [vmem:[%s5 + $0x338] sm:$0xff]
        %v7821 = vld [vmem:[%s5 + $0x340] sm:$0xff]
        %v7822 = vld [vmem:[%s5 + $0x348] sm:$0xff]
        %v7823 = vld [vmem:[%s5 + $0x350] sm:$0xff]
        %v7824 = vld [vmem:[%s5 + $0x358] sm:$0xff]
        %v7825 = vld [vmem:[%s5 + $0x360] sm:$0xff]
        %v7826 = vld [vmem:[%s5 + $0x368] sm:$0xff]
        %v7827 = vld [vmem:[%s5 + $0x370] sm:$0xff]
        %v7828 = vld [vmem:[%s5 + $0x378] sm:$0xff]
        %v7829 = vld [vmem:[%s5 + $0x380] sm:$0x11]
        %v7830 = vld [vmem:[%s5 + $0x388] sm:$0x11]
        %v7831 = vrot.slane %v5949, 4
        %v7846 = vunpack.c.l.b16 %v7817
        %v7847 = vunpack.c.h.b16 %v7817
        %v7848 = vunpack.c.l.b16 %v7818
        %v7849 = vunpack.c.h.b16 %v7818
        %v7850 = vunpack.c.l.b16 %v7819
        %v7851 = vunpack.c.h.b16 %v7819
        %v7852 = vunpack.c.l.b16 %v7820
        %v7853 = vunpack.c.h.b16 %v7820
        %v7854 = vunpack.c.l.b16 %v7821
        %v7855 = vunpack.c.h.b16 %v7821
        %v7856 = vunpack.c.l.b16 %v7822
        %v7857 = vunpack.c.h.b16 %v7822
        %v7858 = vunpack.c.l.b16 %v7823
        %v7859 = vunpack.c.h.b16 %v7823
        %v7860 = vunpack.c.l.b16 %v7824
        %v7861 = vunpack.c.h.b16 %v7824
        %v7862 = vunpack.c.l.b16 %v7825
        %v7863 = vunpack.c.h.b16 %v7825
        %v7864 = vunpack.c.l.b16 %v7826
        %v7865 = vunpack.c.h.b16 %v7826
        %v7866 = vunpack.c.l.b16 %v7827
        %v7867 = vunpack.c.h.b16 %v7827
        %v7868 = vunpack.c.l.b16 %v7828
        %v7869 = vunpack.c.h.b16 %v7828
        %v7870 = vunpack.c.l.b16 %v7829
        %v7871 = vunpack.c.h.b16 %v7829
        %v7872 = vunpack.c.l.b16 %v7830
        %v7873 = vunpack.c.h.b16 %v7830
        %v7874 = vpack.c.b16 %v7850, %v7846
        %v7875 = vpack.c.b16 %v7851, %v7847
        %v7876 = vpack.c.b16 %v7852, %v7848
        %v7877 = vpack.c.b16 %v7853, %v7849
        %v7878 = vpack.c.b16 %v7858, %v7854
        %v7879 = vpack.c.b16 %v7859, %v7855
        %v7880 = vpack.c.b16 %v7860, %v7856
        %v7881 = vpack.c.b16 %v7861, %v7857
        %v7882 = vpack.c.b16 %v7866, %v7862
        %v7883 = vpack.c.b16 %v7867, %v7863
        %v7884 = vpack.c.b16 %v7868, %v7864
        %v7885 = vpack.c.b16 %v7869, %v7865
        %v7886 = vpack.c.b16 %v7870, %v7870
        %v7887 = vpack.c.b16 %v7871, %v7871
        %v7888 = vpack.c.b16 %v7872, %v7872
        %v7889 = vpack.c.b16 %v7873, %v7873
        %v7903 = vsel %vm6035, %v7831, 0
        %v7906 = vsel %vm5902, %v7886, 0
        %v7909 = vsel %vm5902, %v7887, 0
        %v7912 = vsel %vm5902, %v7888, 0
        %v7915 = vsel %vm5902, %v7889, 0
        %7917 = vmatprep.subr.bf16.mxu0 0
        %7918 = vmatpush1.bf16.msra.mxu0 0
        %7919 = vmatprep.subr.bf16.mxu0 0
        %7920 = vmatpush1.bf16.msra.mxu0 0
        %7921 = vmatprep.subr.bf16.mxu0 0
        %7922 = vmatpush1.bf16.msra.mxu0 0
        %7923 = vmatprep.subr.bf16.mxu0 0
        %7924 = vmatpush1.bf16.msra.mxu0 0
        %7925 = vmatprep.subr.bf16.mxu0 %v7909
        %7926 = vmatpush1.bf16.msra.mxu0 %v7906
        %7927 = vmatprep.subr.bf16.mxu0 %v7883
        %7928 = vmatpush1.bf16.msra.mxu0 %v7882
        %7929 = vmatprep.subr.bf16.mxu0 %v7879
        %7930 = vmatpush1.bf16.msra.mxu0 %v7878
        %7931 = vmatprep.subr.bf16.mxu0 %v7875
        %7932 = vmatpush1.bf16.msra.mxu0 %v7874
        %7933 = vmatprep.subr.bf16.mxu0 0
        %7934 = vmatpush2.bf16.msra.mxu0 0
        %7935 = vmatprep.subr.bf16.mxu0 0
        %7936 = vmatpush2.bf16.msra.mxu0 0
        %7937 = vmatprep.subr.bf16.mxu0 0
        %7938 = vmatpush2.bf16.msra.mxu0 0
        %7939 = vmatprep.subr.bf16.mxu0 0
        %7940 = vmatpush2.bf16.msra.mxu0 0
        %7941 = vmatprep.subr.bf16.mxu0 0
        %7942 = vmatpush2.bf16.msra.mxu0 0
        %7943 = vmatprep.subr.bf16.mxu0 0
        %7944 = vmatpush2.bf16.msra.mxu0 0
        %7945 = vmatprep.subr.bf16.mxu0 0
        %7946 = vmatpush2.bf16.msra.mxu0 0
        %7947 = vmatprep.subr.bf16.mxu0 0
        %7948 = vmatpush2.bf16.msra.mxu0 0
        %7949 = vmatprep.mubr.bf16.mxu0 0
        %7950 = vmatmul.mubr.bf16.gmra.mxu0 %v7903
        %v7951 = vpop.f32.mrf.mxu0
        %v7952 = vadd.f32 0.0, %v7951
        %v7953 = vpop.f32.mrf.mxu0
        %v7954 = vadd.f32 0.0, %v7953
        %v7955 = vpop.f32.mrf.mxu0
        %v7956 = vpop.f32.mrf.mxu0
        %7957 = vdwg.mxu0
        %7958 = vmatprep.subr.bf16.mxu0 0
        %7959 = vmatpush1.bf16.msra.mxu0 0
        %7960 = vmatprep.subr.bf16.mxu0 0
        %7961 = vmatpush1.bf16.msra.mxu0 0
        %7962 = vmatprep.subr.bf16.mxu0 0
        %7963 = vmatpush1.bf16.msra.mxu0 0
        %7964 = vmatprep.subr.bf16.mxu0 0
        %7965 = vmatpush1.bf16.msra.mxu0 0
        %7966 = vmatprep.subr.bf16.mxu0 %v7915
        %7967 = vmatpush1.bf16.msra.mxu0 %v7912
        %7968 = vmatprep.subr.bf16.mxu0 %v7885
        %7969 = vmatpush1.bf16.msra.mxu0 %v7884
        %7970 = vmatprep.subr.bf16.mxu0 %v7881
        %7971 = vmatpush1.bf16.msra.mxu0 %v7880
        %7972 = vmatprep.subr.bf16.mxu0 %v7877
        %7973 = vmatpush1.bf16.msra.mxu0 %v7876
        %7974 = vmatprep.subr.bf16.mxu0 0
        %7975 = vmatpush2.bf16.msra.mxu0 0
        %7976 = vmatprep.subr.bf16.mxu0 0
        %7977 = vmatpush2.bf16.msra.mxu0 0
        %7978 = vmatprep.subr.bf16.mxu0 0
        %7979 = vmatpush2.bf16.msra.mxu0 0
        %7980 = vmatprep.subr.bf16.mxu0 0
        %7981 = vmatpush2.bf16.msra.mxu0 0
        %7982 = vmatprep.subr.bf16.mxu0 0
        %7983 = vmatpush2.bf16.msra.mxu0 0
        %7984 = vmatprep.subr.bf16.mxu0 0
        %7985 = vmatpush2.bf16.msra.mxu0 0
        %7986 = vmatprep.subr.bf16.mxu0 0
        %7987 = vmatpush2.bf16.msra.mxu0 0
        %7988 = vmatprep.subr.bf16.mxu0 0
        %7989 = vmatpush2.bf16.msra.mxu0 0
        %7990 = vmatprep.mubr.bf16.mxu0 0
        %7991 = vmatmul.mubr.bf16.gmra.mxu0 %v7903
        %v7992 = vpop.f32.mrf.mxu0
        %v7993 = vadd.f32 0.0, %v7992
        %v7994 = vpop.f32.mrf.mxu0
        %v7995 = vadd.f32 0.0, %v7994
        %v7996 = vpop.f32.mrf.mxu0
        %v7997 = vpop.f32.mrf.mxu0
        %7998 = vdwg.mxu0
        %v8003 = vcombine.low %v7952, %v7954
        %v8004 = vcombine.low %v7993, %v7995
        %v8006 = vunpack.c.l.s4 1966171168
        %v8007 = vunpack.c.0.s8 %v8006
        %v8008 = vlaneseq
        %v8009 = vshrl.u32 %v8008, 7
        %v8010 = vsub.s32 %v8007, %v8009
        %v8011 = vrot.slane %v8003, %v8010
        %v8013 = vunpack.c.l.s4 1966171168
        %v8014 = vunpack.c.0.s8 %v8013
        %v8015 = vlaneseq
        %v8016 = vshrl.u32 %v8015, 7
        %v8017 = vsub.s32 %v8014, %v8016
        %v8018 = vrot.slane %v8004, %v8017
        %v8019 = vcombine.low %v8011, %v8018
        %v8021 = vunpack.c.l.s4 1966171168
        %v8022 = vunpack.c.0.s8 %v8021
        %v8023 = vlaneseq
        %v8024 = vshrl.u32 %v8023, 7
        %v8025 = vsub.s32 %v8022, %v8024
        %v8026 = vrot.slane %v8019, %v8025
        %v8028 = vadd.f32 %v7816, %v8026
        %v8029 = vld [vmem:[%s5 + $0x380] sm:$0xee]
        %v8030 = vld [vmem:[%s5 + $0x388] sm:$0xee]
        %v8031 = vld [vmem:[%s5 + $0x390] sm:$0xff]
        %v8032 = vld [vmem:[%s5 + $0x398] sm:$0xff]
        %v8033 = vld [vmem:[%s5 + $0x3a0] sm:$0xff]
        %v8034 = vld [vmem:[%s5 + $0x3a8] sm:$0xff]
        %v8035 = vld [vmem:[%s5 + $0x3b0] sm:$0xff]
        %v8036 = vld [vmem:[%s5 + $0x3b8] sm:$0xff]
        %v8037 = vld [vmem:[%s5 + $0x3c0] sm:$0xff]
        %v8038 = vld [vmem:[%s5 + $0x3c8] sm:$0xff]
        %v8039 = vld [vmem:[%s5 + $0x3d0] sm:$0xff]
        %v8040 = vld [vmem:[%s5 + $0x3d8] sm:$0xff]
        %v8041 = vld [vmem:[%s5 + $0x3e0] sm:$0x33]
        %v8042 = vld [vmem:[%s5 + $0x3e8] sm:$0x33]
        %v8043 = vrot.slane %v6177, 4
        %v8058 = vunpack.c.l.b16 %v8029
        %v8059 = vunpack.c.h.b16 %v8029
        %v8060 = vunpack.c.l.b16 %v8030
        %v8061 = vunpack.c.h.b16 %v8030
        %v8062 = vunpack.c.l.b16 %v8031
        %v8063 = vunpack.c.h.b16 %v8031
        %v8064 = vunpack.c.l.b16 %v8032
        %v8065 = vunpack.c.h.b16 %v8032
        %v8066 = vunpack.c.l.b16 %v8033
        %v8067 = vunpack.c.h.b16 %v8033
        %v8068 = vunpack.c.l.b16 %v8034
        %v8069 = vunpack.c.h.b16 %v8034
        %v8070 = vunpack.c.l.b16 %v8035
        %v8071 = vunpack.c.h.b16 %v8035
        %v8072 = vunpack.c.l.b16 %v8036
        %v8073 = vunpack.c.h.b16 %v8036
        %v8074 = vunpack.c.l.b16 %v8037
        %v8075 = vunpack.c.h.b16 %v8037
        %v8076 = vunpack.c.l.b16 %v8038
        %v8077 = vunpack.c.h.b16 %v8038
        %v8078 = vunpack.c.l.b16 %v8039
        %v8079 = vunpack.c.h.b16 %v8039
        %v8080 = vunpack.c.l.b16 %v8040
        %v8081 = vunpack.c.h.b16 %v8040
        %v8082 = vunpack.c.l.b16 %v8041
        %v8083 = vunpack.c.h.b16 %v8041
        %v8084 = vunpack.c.l.b16 %v8042
        %v8085 = vunpack.c.h.b16 %v8042
        %v8086 = vpack.c.b16 %v8062, %v8058
        %v8087 = vpack.c.b16 %v8063, %v8059
        %v8088 = vpack.c.b16 %v8064, %v8060
        %v8089 = vpack.c.b16 %v8065, %v8061
        %v8090 = vpack.c.b16 %v8070, %v8066
        %v8091 = vpack.c.b16 %v8071, %v8067
        %v8092 = vpack.c.b16 %v8072, %v8068
        %v8093 = vpack.c.b16 %v8073, %v8069
        %v8094 = vpack.c.b16 %v8078, %v8074
        %v8095 = vpack.c.b16 %v8079, %v8075
        %v8096 = vpack.c.b16 %v8080, %v8076
        %v8097 = vpack.c.b16 %v8081, %v8077
        %v8098 = vpack.c.b16 %v8082, %v8082
        %v8099 = vpack.c.b16 %v8083, %v8083
        %v8100 = vpack.c.b16 %v8084, %v8084
        %v8101 = vpack.c.b16 %v8085, %v8085
        %v8102 = vrot.slane %v8086, 1
        %v8103 = vrot.slane %v8090, 1
        %v8104 = vsel %vm2590, %v8102, %v8103
        %v8105 = vrot.slane %v8087, 1
        %v8106 = vrot.slane %v8091, 1
        %v8107 = vsel %vm2590, %v8105, %v8106
        %v8108 = vrot.slane %v8088, 1
        %v8109 = vrot.slane %v8092, 1
        %v8110 = vsel %vm2590, %v8108, %v8109
        %v8111 = vrot.slane %v8089, 1
        %v8112 = vrot.slane %v8093, 1
        %v8113 = vsel %vm2590, %v8111, %v8112
        %v8114 = vrot.slane %v8094, 1
        %v8115 = vsel %vm2590, %v8103, %v8114
        %v8116 = vrot.slane %v8095, 1
        %v8117 = vsel %vm2590, %v8106, %v8116
        %v8118 = vrot.slane %v8096, 1
        %v8119 = vsel %vm2590, %v8109, %v8118
        %v8120 = vrot.slane %v8097, 1
        %v8121 = vsel %vm2590, %v8112, %v8120
        %v8122 = vrot.slane %v8098, 1
        %v8123 = vsel %vm2590, %v8114, %v8122
        %v8124 = vrot.slane %v8099, 1
        %v8125 = vsel %vm2590, %v8116, %v8124
        %v8126 = vrot.slane %v8100, 1
        %v8127 = vsel %vm2590, %v8118, %v8126
        %v8128 = vrot.slane %v8101, 1
        %v8129 = vsel %vm2590, %v8120, %v8128
        %v8143 = vsel %vm6035, %v8043, 0
        %v8146 = vsel %vm5902, %v8122, 0
        %v8149 = vsel %vm5902, %v8124, 0
        %v8152 = vsel %vm5902, %v8126, 0
        %v8155 = vsel %vm5902, %v8128, 0
        %8157 = vmatprep.subr.bf16.mxu0 0
        %8158 = vmatpush1.bf16.msra.mxu0 0
        %8159 = vmatprep.subr.bf16.mxu0 0
        %8160 = vmatpush1.bf16.msra.mxu0 0
        %8161 = vmatprep.subr.bf16.mxu0 0
        %8162 = vmatpush1.bf16.msra.mxu0 0
        %8163 = vmatprep.subr.bf16.mxu0 0
        %8164 = vmatpush1.bf16.msra.mxu0 0
        %8165 = vmatprep.subr.bf16.mxu0 %v8149
        %8166 = vmatpush1.bf16.msra.mxu0 %v8146
        %8167 = vmatprep.subr.bf16.mxu0 %v8125
        %8168 = vmatpush1.bf16.msra.mxu0 %v8123
        %8169 = vmatprep.subr.bf16.mxu0 %v8117
        %8170 = vmatpush1.bf16.msra.mxu0 %v8115
        %8171 = vmatprep.subr.bf16.mxu0 %v8107
        %8172 = vmatpush1.bf16.msra.mxu0 %v8104
        %8173 = vmatprep.subr.bf16.mxu0 0
        %8174 = vmatpush2.bf16.msra.mxu0 0
        %8175 = vmatprep.subr.bf16.mxu0 0
        %8176 = vmatpush2.bf16.msra.mxu0 0
        %8177 = vmatprep.subr.bf16.mxu0 0
        %8178 = vmatpush2.bf16.msra.mxu0 0
        %8179 = vmatprep.subr.bf16.mxu0 0
        %8180 = vmatpush2.bf16.msra.mxu0 0
        %8181 = vmatprep.subr.bf16.mxu0 0
        %8182 = vmatpush2.bf16.msra.mxu0 0
        %8183 = vmatprep.subr.bf16.mxu0 0
        %8184 = vmatpush2.bf16.msra.mxu0 0
        %8185 = vmatprep.subr.bf16.mxu0 0
        %8186 = vmatpush2.bf16.msra.mxu0 0
        %8187 = vmatprep.subr.bf16.mxu0 0
        %8188 = vmatpush2.bf16.msra.mxu0 0
        %8189 = vmatprep.mubr.bf16.mxu0 0
        %8190 = vmatmul.mubr.bf16.gmra.mxu0 %v8143
        %v8191 = vpop.f32.mrf.mxu0
        %v8192 = vadd.f32 0.0, %v8191
        %v8193 = vpop.f32.mrf.mxu0
        %v8194 = vadd.f32 0.0, %v8193
        %v8195 = vpop.f32.mrf.mxu0
        %v8196 = vpop.f32.mrf.mxu0
        %8197 = vdwg.mxu0
        %8198 = vmatprep.subr.bf16.mxu0 0
        %8199 = vmatpush1.bf16.msra.mxu0 0
        %8200 = vmatprep.subr.bf16.mxu0 0
        %8201 = vmatpush1.bf16.msra.mxu0 0
        %8202 = vmatprep.subr.bf16.mxu0 0
        %8203 = vmatpush1.bf16.msra.mxu0 0
        %8204 = vmatprep.subr.bf16.mxu0 0
        %8205 = vmatpush1.bf16.msra.mxu0 0
        %8206 = vmatprep.subr.bf16.mxu0 %v8155
        %8207 = vmatpush1.bf16.msra.mxu0 %v8152
        %8208 = vmatprep.subr.bf16.mxu0 %v8129
        %8209 = vmatpush1.bf16.msra.mxu0 %v8127
        %8210 = vmatprep.subr.bf16.mxu0 %v8121
        %8211 = vmatpush1.bf16.msra.mxu0 %v8119
        %8212 = vmatprep.subr.bf16.mxu0 %v8113
        %8213 = vmatpush1.bf16.msra.mxu0 %v8110
        %8214 = vmatprep.subr.bf16.mxu0 0
        %8215 = vmatpush2.bf16.msra.mxu0 0
        %8216 = vmatprep.subr.bf16.mxu0 0
        %8217 = vmatpush2.bf16.msra.mxu0 0
        %8218 = vmatprep.subr.bf16.mxu0 0
        %8219 = vmatpush2.bf16.msra.mxu0 0
        %8220 = vmatprep.subr.bf16.mxu0 0
        %8221 = vmatpush2.bf16.msra.mxu0 0
        %8222 = vmatprep.subr.bf16.mxu0 0
        %8223 = vmatpush2.bf16.msra.mxu0 0
        %8224 = vmatprep.subr.bf16.mxu0 0
        %8225 = vmatpush2.bf16.msra.mxu0 0
        %8226 = vmatprep.subr.bf16.mxu0 0
        %8227 = vmatpush2.bf16.msra.mxu0 0
        %8228 = vmatprep.subr.bf16.mxu0 0
        %8229 = vmatpush2.bf16.msra.mxu0 0
        %8230 = vmatprep.mubr.bf16.mxu0 0
        %8231 = vmatmul.mubr.bf16.gmra.mxu0 %v8143
        %v8232 = vpop.f32.mrf.mxu0
        %v8233 = vadd.f32 0.0, %v8232
        %v8234 = vpop.f32.mrf.mxu0
        %v8235 = vadd.f32 0.0, %v8234
        %v8236 = vpop.f32.mrf.mxu0
        %v8237 = vpop.f32.mrf.mxu0
        %8238 = vdwg.mxu0
        %v8243 = vcombine.low %v8192, %v8194
        %v8244 = vcombine.low %v8233, %v8235
        %v8246 = vunpack.c.l.s4 1966171168
        %v8247 = vunpack.c.0.s8 %v8246
        %v8248 = vlaneseq
        %v8249 = vshrl.u32 %v8248, 7
        %v8250 = vsub.s32 %v8247, %v8249
        %v8251 = vrot.slane %v8243, %v8250
        %v8253 = vunpack.c.l.s4 1966171168
        %v8254 = vunpack.c.0.s8 %v8253
        %v8255 = vlaneseq
        %v8256 = vshrl.u32 %v8255, 7
        %v8257 = vsub.s32 %v8254, %v8256
        %v8258 = vrot.slane %v8244, %v8257
        %v8259 = vcombine.low %v8251, %v8258
        %v8261 = vunpack.c.l.s4 1966171168
        %v8262 = vunpack.c.0.s8 %v8261
        %v8263 = vlaneseq
        %v8264 = vshrl.u32 %v8263, 7
        %v8265 = vsub.s32 %v8262, %v8264
        %v8266 = vrot.slane %v8259, %v8265
        %v8268 = vadd.f32 %v8028, %v8266
        %v8269 = vld [vmem:[%s5 + $0x3e0] sm:$0xcc]
        %v8270 = vld [vmem:[%s5 + $0x3e8] sm:$0xcc]
        %v8271 = vld [vmem:[%s5 + $0x3f0] sm:$0xff]
        %v8272 = vld [vmem:[%s5 + $0x3f8] sm:$0xff]
        %v8273 = vld [vmem:[%s5 + $0x400] sm:$0xff]
        %v8274 = vld [vmem:[%s5 + $0x408] sm:$0xff]
        %v8275 = vld [vmem:[%s5 + $0x410] sm:$0xff]
        %v8276 = vld [vmem:[%s5 + $0x418] sm:$0xff]
        %v8277 = vld [vmem:[%s5 + $0x420] sm:$0xff]
        %v8278 = vld [vmem:[%s5 + $0x428] sm:$0xff]
        %v8279 = vld [vmem:[%s5 + $0x430] sm:$0xff]
        %v8280 = vld [vmem:[%s5 + $0x438] sm:$0xff]
        %v8281 = vld [vmem:[%s5 + $0x440] sm:$0x77]
        %v8282 = vld [vmem:[%s5 + $0x448] sm:$0x77]
        %v8283 = vrot.slane %v5949, 5
        %v8298 = vunpack.c.l.b16 %v8269
        %v8299 = vunpack.c.h.b16 %v8269
        %v8300 = vunpack.c.l.b16 %v8270
        %v8301 = vunpack.c.h.b16 %v8270
        %v8302 = vunpack.c.l.b16 %v8271
        %v8303 = vunpack.c.h.b16 %v8271
        %v8304 = vunpack.c.l.b16 %v8272
        %v8305 = vunpack.c.h.b16 %v8272
        %v8306 = vunpack.c.l.b16 %v8273
        %v8307 = vunpack.c.h.b16 %v8273
        %v8308 = vunpack.c.l.b16 %v8274
        %v8309 = vunpack.c.h.b16 %v8274
        %v8310 = vunpack.c.l.b16 %v8275
        %v8311 = vunpack.c.h.b16 %v8275
        %v8312 = vunpack.c.l.b16 %v8276
        %v8313 = vunpack.c.h.b16 %v8276
        %v8314 = vunpack.c.l.b16 %v8277
        %v8315 = vunpack.c.h.b16 %v8277
        %v8316 = vunpack.c.l.b16 %v8278
        %v8317 = vunpack.c.h.b16 %v8278
        %v8318 = vunpack.c.l.b16 %v8279
        %v8319 = vunpack.c.h.b16 %v8279
        %v8320 = vunpack.c.l.b16 %v8280
        %v8321 = vunpack.c.h.b16 %v8280
        %v8322 = vunpack.c.l.b16 %v8281
        %v8323 = vunpack.c.h.b16 %v8281
        %v8324 = vunpack.c.l.b16 %v8282
        %v8325 = vunpack.c.h.b16 %v8282
        %v8326 = vpack.c.b16 %v8302, %v8298
        %v8327 = vpack.c.b16 %v8303, %v8299
        %v8328 = vpack.c.b16 %v8304, %v8300
        %v8329 = vpack.c.b16 %v8305, %v8301
        %v8330 = vpack.c.b16 %v8310, %v8306
        %v8331 = vpack.c.b16 %v8311, %v8307
        %v8332 = vpack.c.b16 %v8312, %v8308
        %v8333 = vpack.c.b16 %v8313, %v8309
        %v8334 = vpack.c.b16 %v8318, %v8314
        %v8335 = vpack.c.b16 %v8319, %v8315
        %v8336 = vpack.c.b16 %v8320, %v8316
        %v8337 = vpack.c.b16 %v8321, %v8317
        %v8338 = vpack.c.b16 %v8322, %v8322
        %v8339 = vpack.c.b16 %v8323, %v8323
        %v8340 = vpack.c.b16 %v8324, %v8324
        %v8341 = vpack.c.b16 %v8325, %v8325
        %v8342 = vrot.slane %v8326, 2
        %v8343 = vrot.slane %v8330, 2
        %v8344 = vsel %vm2366, %v8342, %v8343
        %v8345 = vrot.slane %v8327, 2
        %v8346 = vrot.slane %v8331, 2
        %v8347 = vsel %vm2366, %v8345, %v8346
        %v8348 = vrot.slane %v8328, 2
        %v8349 = vrot.slane %v8332, 2
        %v8350 = vsel %vm2366, %v8348, %v8349
        %v8351 = vrot.slane %v8329, 2
        %v8352 = vrot.slane %v8333, 2
        %v8353 = vsel %vm2366, %v8351, %v8352
        %v8354 = vrot.slane %v8334, 2
        %v8355 = vsel %vm2366, %v8343, %v8354
        %v8356 = vrot.slane %v8335, 2
        %v8357 = vsel %vm2366, %v8346, %v8356
        %v8358 = vrot.slane %v8336, 2
        %v8359 = vsel %vm2366, %v8349, %v8358
        %v8360 = vrot.slane %v8337, 2
        %v8361 = vsel %vm2366, %v8352, %v8360
        %v8362 = vrot.slane %v8338, 2
        %v8363 = vsel %vm2366, %v8354, %v8362
        %v8364 = vrot.slane %v8339, 2
        %v8365 = vsel %vm2366, %v8356, %v8364
        %v8366 = vrot.slane %v8340, 2
        %v8367 = vsel %vm2366, %v8358, %v8366
        %v8368 = vrot.slane %v8341, 2
        %v8369 = vsel %vm2366, %v8360, %v8368
        %v8383 = vsel %vm6035, %v8283, 0
        %v8386 = vsel %vm5902, %v8362, 0
        %v8389 = vsel %vm5902, %v8364, 0
        %v8392 = vsel %vm5902, %v8366, 0
        %v8395 = vsel %vm5902, %v8368, 0
        %8397 = vmatprep.subr.bf16.mxu0 0
        %8398 = vmatpush1.bf16.msra.mxu0 0
        %8399 = vmatprep.subr.bf16.mxu0 0
        %8400 = vmatpush1.bf16.msra.mxu0 0
        %8401 = vmatprep.subr.bf16.mxu0 0
        %8402 = vmatpush1.bf16.msra.mxu0 0
        %8403 = vmatprep.subr.bf16.mxu0 0
        %8404 = vmatpush1.bf16.msra.mxu0 0
        %8405 = vmatprep.subr.bf16.mxu0 %v8389
        %8406 = vmatpush1.bf16.msra.mxu0 %v8386
        %8407 = vmatprep.subr.bf16.mxu0 %v8365
        %8408 = vmatpush1.bf16.msra.mxu0 %v8363
        %8409 = vmatprep.subr.bf16.mxu0 %v8357
        %8410 = vmatpush1.bf16.msra.mxu0 %v8355
        %8411 = vmatprep.subr.bf16.mxu0 %v8347
        %8412 = vmatpush1.bf16.msra.mxu0 %v8344
        %8413 = vmatprep.subr.bf16.mxu0 0
        %8414 = vmatpush2.bf16.msra.mxu0 0
        %8415 = vmatprep.subr.bf16.mxu0 0
        %8416 = vmatpush2.bf16.msra.mxu0 0
        %8417 = vmatprep.subr.bf16.mxu0 0
        %8418 = vmatpush2.bf16.msra.mxu0 0
        %8419 = vmatprep.subr.bf16.mxu0 0
        %8420 = vmatpush2.bf16.msra.mxu0 0
        %8421 = vmatprep.subr.bf16.mxu0 0
        %8422 = vmatpush2.bf16.msra.mxu0 0
        %8423 = vmatprep.subr.bf16.mxu0 0
        %8424 = vmatpush2.bf16.msra.mxu0 0
        %8425 = vmatprep.subr.bf16.mxu0 0
        %8426 = vmatpush2.bf16.msra.mxu0 0
        %8427 = vmatprep.subr.bf16.mxu0 0
        %8428 = vmatpush2.bf16.msra.mxu0 0
        %8429 = vmatprep.mubr.bf16.mxu0 0
        %8430 = vmatmul.mubr.bf16.gmra.mxu0 %v8383
        %v8431 = vpop.f32.mrf.mxu0
        %v8432 = vadd.f32 0.0, %v8431
        %v8433 = vpop.f32.mrf.mxu0
        %v8434 = vadd.f32 0.0, %v8433
        %v8435 = vpop.f32.mrf.mxu0
        %v8436 = vpop.f32.mrf.mxu0
        %8437 = vdwg.mxu0
        %8438 = vmatprep.subr.bf16.mxu0 0
        %8439 = vmatpush1.bf16.msra.mxu0 0
        %8440 = vmatprep.subr.bf16.mxu0 0
        %8441 = vmatpush1.bf16.msra.mxu0 0
        %8442 = vmatprep.subr.bf16.mxu0 0
        %8443 = vmatpush1.bf16.msra.mxu0 0
        %8444 = vmatprep.subr.bf16.mxu0 0
        %8445 = vmatpush1.bf16.msra.mxu0 0
        %8446 = vmatprep.subr.bf16.mxu0 %v8395
        %8447 = vmatpush1.bf16.msra.mxu0 %v8392
        %8448 = vmatprep.subr.bf16.mxu0 %v8369
        %8449 = vmatpush1.bf16.msra.mxu0 %v8367
        %8450 = vmatprep.subr.bf16.mxu0 %v8361
        %8451 = vmatpush1.bf16.msra.mxu0 %v8359
        %8452 = vmatprep.subr.bf16.mxu0 %v8353
        %8453 = vmatpush1.bf16.msra.mxu0 %v8350
        %8454 = vmatprep.subr.bf16.mxu0 0
        %8455 = vmatpush2.bf16.msra.mxu0 0
        %8456 = vmatprep.subr.bf16.mxu0 0
        %8457 = vmatpush2.bf16.msra.mxu0 0
        %8458 = vmatprep.subr.bf16.mxu0 0
        %8459 = vmatpush2.bf16.msra.mxu0 0
        %8460 = vmatprep.subr.bf16.mxu0 0
        %8461 = vmatpush2.bf16.msra.mxu0 0
        %8462 = vmatprep.subr.bf16.mxu0 0
        %8463 = vmatpush2.bf16.msra.mxu0 0
        %8464 = vmatprep.subr.bf16.mxu0 0
        %8465 = vmatpush2.bf16.msra.mxu0 0
        %8466 = vmatprep.subr.bf16.mxu0 0
        %8467 = vmatpush2.bf16.msra.mxu0 0
        %8468 = vmatprep.subr.bf16.mxu0 0
        %8469 = vmatpush2.bf16.msra.mxu0 0
        %8470 = vmatprep.mubr.bf16.mxu0 0
        %8471 = vmatmul.mubr.bf16.gmra.mxu0 %v8383
        %v8472 = vpop.f32.mrf.mxu0
        %v8473 = vadd.f32 0.0, %v8472
        %v8474 = vpop.f32.mrf.mxu0
        %v8475 = vadd.f32 0.0, %v8474
        %v8476 = vpop.f32.mrf.mxu0
        %v8477 = vpop.f32.mrf.mxu0
        %8478 = vdwg.mxu0
        %v8483 = vcombine.low %v8432, %v8434
        %v8484 = vcombine.low %v8473, %v8475
        %v8486 = vunpack.c.l.s4 1966171168
        %v8487 = vunpack.c.0.s8 %v8486
        %v8488 = vlaneseq
        %v8489 = vshrl.u32 %v8488, 7
        %v8490 = vsub.s32 %v8487, %v8489
        %v8491 = vrot.slane %v8483, %v8490
        %v8493 = vunpack.c.l.s4 1966171168
        %v8494 = vunpack.c.0.s8 %v8493
        %v8495 = vlaneseq
        %v8496 = vshrl.u32 %v8495, 7
        %v8497 = vsub.s32 %v8494, %v8496
        %v8498 = vrot.slane %v8484, %v8497
        %v8499 = vcombine.low %v8491, %v8498
        %v8501 = vunpack.c.l.s4 1966171168
        %v8502 = vunpack.c.0.s8 %v8501
        %v8503 = vlaneseq
        %v8504 = vshrl.u32 %v8503, 7
        %v8505 = vsub.s32 %v8502, %v8504
        %v8506 = vrot.slane %v8499, %v8505
        %v8508 = vadd.f32 %v8268, %v8506
        %v8509 = vld [vmem:[%s5 + $0x440] sm:$0x88]
        %v8510 = vld [vmem:[%s5 + $0x448] sm:$0x88]
        %v8511 = vld [vmem:[%s5 + $0x450] sm:$0xff]
        %v8512 = vld [vmem:[%s5 + $0x458] sm:$0xff]
        %v8513 = vld [vmem:[%s5 + $0x460] sm:$0xff]
        %v8514 = vld [vmem:[%s5 + $0x468] sm:$0xff]
        %v8515 = vld [vmem:[%s5 + $0x470] sm:$0xff]
        %v8516 = vld [vmem:[%s5 + $0x478] sm:$0xff]
        %v8517 = vld [vmem:[%s5 + $0x480] sm:$0xff]
        %v8518 = vld [vmem:[%s5 + $0x488] sm:$0xff]
        %v8519 = vld [vmem:[%s5 + $0x490] sm:$0xff]
        %v8520 = vld [vmem:[%s5 + $0x498] sm:$0xff]
        %v8521 = vld [vmem:[%s5 + $0x4a0] sm:$0xff]
        %v8522 = vld [vmem:[%s5 + $0x4a8] sm:$0xff]
        %v8523 = vrot.slane %v6177, 5
        %v8538 = vunpack.c.l.b16 %v8509
        %v8539 = vunpack.c.h.b16 %v8509
        %v8540 = vunpack.c.l.b16 %v8510
        %v8541 = vunpack.c.h.b16 %v8510
        %v8542 = vunpack.c.l.b16 %v8511
        %v8543 = vunpack.c.h.b16 %v8511
        %v8544 = vunpack.c.l.b16 %v8512
        %v8545 = vunpack.c.h.b16 %v8512
        %v8546 = vunpack.c.l.b16 %v8513
        %v8547 = vunpack.c.h.b16 %v8513
        %v8548 = vunpack.c.l.b16 %v8514
        %v8549 = vunpack.c.h.b16 %v8514
        %v8550 = vunpack.c.l.b16 %v8515
        %v8551 = vunpack.c.h.b16 %v8515
        %v8552 = vunpack.c.l.b16 %v8516
        %v8553 = vunpack.c.h.b16 %v8516
        %v8554 = vunpack.c.l.b16 %v8517
        %v8555 = vunpack.c.h.b16 %v8517
        %v8556 = vunpack.c.l.b16 %v8518
        %v8557 = vunpack.c.h.b16 %v8518
        %v8558 = vunpack.c.l.b16 %v8519
        %v8559 = vunpack.c.h.b16 %v8519
        %v8560 = vunpack.c.l.b16 %v8520
        %v8561 = vunpack.c.h.b16 %v8520
        %v8562 = vunpack.c.l.b16 %v8521
        %v8563 = vunpack.c.h.b16 %v8521
        %v8564 = vunpack.c.l.b16 %v8522
        %v8565 = vunpack.c.h.b16 %v8522
        %v8566 = vpack.c.b16 %v8542, %v8538
        %v8567 = vpack.c.b16 %v8543, %v8539
        %v8568 = vpack.c.b16 %v8544, %v8540
        %v8569 = vpack.c.b16 %v8545, %v8541
        %v8570 = vpack.c.b16 %v8550, %v8546
        %v8571 = vpack.c.b16 %v8551, %v8547
        %v8572 = vpack.c.b16 %v8552, %v8548
        %v8573 = vpack.c.b16 %v8553, %v8549
        %v8574 = vpack.c.b16 %v8558, %v8554
        %v8575 = vpack.c.b16 %v8559, %v8555
        %v8576 = vpack.c.b16 %v8560, %v8556
        %v8577 = vpack.c.b16 %v8561, %v8557
        %v8578 = vpack.c.b16 %v8562, %v8562
        %v8579 = vpack.c.b16 %v8563, %v8563
        %v8580 = vpack.c.b16 %v8564, %v8564
        %v8581 = vpack.c.b16 %v8565, %v8565
        %v8582 = vrot.slane %v8566, 3
        %v8583 = vrot.slane %v8570, 3
        %v8584 = vsel %vm4721, %v8582, %v8583
        %v8585 = vrot.slane %v8567, 3
        %v8586 = vrot.slane %v8571, 3
        %v8587 = vsel %vm4721, %v8585, %v8586
        %v8588 = vrot.slane %v8568, 3
        %v8589 = vrot.slane %v8572, 3
        %v8590 = vsel %vm4721, %v8588, %v8589
        %v8591 = vrot.slane %v8569, 3
        %v8592 = vrot.slane %v8573, 3
        %v8593 = vsel %vm4721, %v8591, %v8592
        %v8594 = vrot.slane %v8574, 3
        %v8595 = vsel %vm4721, %v8583, %v8594
        %v8596 = vrot.slane %v8575, 3
        %v8597 = vsel %vm4721, %v8586, %v8596
        %v8598 = vrot.slane %v8576, 3
        %v8599 = vsel %vm4721, %v8589, %v8598
        %v8600 = vrot.slane %v8577, 3
        %v8601 = vsel %vm4721, %v8592, %v8600
        %v8602 = vrot.slane %v8578, 3
        %v8603 = vsel %vm4721, %v8594, %v8602
        %v8604 = vrot.slane %v8579, 3
        %v8605 = vsel %vm4721, %v8596, %v8604
        %v8606 = vrot.slane %v8580, 3
        %v8607 = vsel %vm4721, %v8598, %v8606
        %v8608 = vrot.slane %v8581, 3
        %v8609 = vsel %vm4721, %v8600, %v8608
        %v8623 = vsel %vm6035, %v8523, 0
        %v8626 = vsel %vm5902, %v8602, 0
        %v8629 = vsel %vm5902, %v8604, 0
        %v8632 = vsel %vm5902, %v8606, 0
        %v8635 = vsel %vm5902, %v8608, 0
        %8637 = vmatprep.subr.bf16.mxu0 0
        %8638 = vmatpush1.bf16.msra.mxu0 0
        %8639 = vmatprep.subr.bf16.mxu0 0
        %8640 = vmatpush1.bf16.msra.mxu0 0
        %8641 = vmatprep.subr.bf16.mxu0 0
        %8642 = vmatpush1.bf16.msra.mxu0 0
        %8643 = vmatprep.subr.bf16.mxu0 0
        %8644 = vmatpush1.bf16.msra.mxu0 0
        %8645 = vmatprep.subr.bf16.mxu0 %v8629
        %8646 = vmatpush1.bf16.msra.mxu0 %v8626
        %8647 = vmatprep.subr.bf16.mxu0 %v8605
        %8648 = vmatpush1.bf16.msra.mxu0 %v8603
        %8649 = vmatprep.subr.bf16.mxu0 %v8597
        %8650 = vmatpush1.bf16.msra.mxu0 %v8595
        %8651 = vmatprep.subr.bf16.mxu0 %v8587
        %8652 = vmatpush1.bf16.msra.mxu0 %v8584
        %8653 = vmatprep.subr.bf16.mxu0 0
        %8654 = vmatpush2.bf16.msra.mxu0 0
        %8655 = vmatprep.subr.bf16.mxu0 0
        %8656 = vmatpush2.bf16.msra.mxu0 0
        %8657 = vmatprep.subr.bf16.mxu0 0
        %8658 = vmatpush2.bf16.msra.mxu0 0
        %8659 = vmatprep.subr.bf16.mxu0 0
        %8660 = vmatpush2.bf16.msra.mxu0 0
        %8661 = vmatprep.subr.bf16.mxu0 0
        %8662 = vmatpush2.bf16.msra.mxu0 0
        %8663 = vmatprep.subr.bf16.mxu0 0
        %8664 = vmatpush2.bf16.msra.mxu0 0
        %8665 = vmatprep.subr.bf16.mxu0 0
        %8666 = vmatpush2.bf16.msra.mxu0 0
        %8667 = vmatprep.subr.bf16.mxu0 0
        %8668 = vmatpush2.bf16.msra.mxu0 0
        %8669 = vmatprep.mubr.bf16.mxu0 0
        %8670 = vmatmul.mubr.bf16.gmra.mxu0 %v8623
        %v8671 = vpop.f32.mrf.mxu0
        %v8672 = vadd.f32 0.0, %v8671
        %v8673 = vpop.f32.mrf.mxu0
        %v8674 = vadd.f32 0.0, %v8673
        %v8675 = vpop.f32.mrf.mxu0
        %v8676 = vpop.f32.mrf.mxu0
        %8677 = vdwg.mxu0
        %8678 = vmatprep.subr.bf16.mxu0 0
        %8679 = vmatpush1.bf16.msra.mxu0 0
        %8680 = vmatprep.subr.bf16.mxu0 0
        %8681 = vmatpush1.bf16.msra.mxu0 0
        %8682 = vmatprep.subr.bf16.mxu0 0
        %8683 = vmatpush1.bf16.msra.mxu0 0
        %8684 = vmatprep.subr.bf16.mxu0 0
        %8685 = vmatpush1.bf16.msra.mxu0 0
        %8686 = vmatprep.subr.bf16.mxu0 %v8635
        %8687 = vmatpush1.bf16.msra.mxu0 %v8632
        %8688 = vmatprep.subr.bf16.mxu0 %v8609
        %8689 = vmatpush1.bf16.msra.mxu0 %v8607
        %8690 = vmatprep.subr.bf16.mxu0 %v8601
        %8691 = vmatpush1.bf16.msra.mxu0 %v8599
        %8692 = vmatprep.subr.bf16.mxu0 %v8593
        %8693 = vmatpush1.bf16.msra.mxu0 %v8590
        %8694 = vmatprep.subr.bf16.mxu0 0
        %8695 = vmatpush2.bf16.msra.mxu0 0
        %8696 = vmatprep.subr.bf16.mxu0 0
        %8697 = vmatpush2.bf16.msra.mxu0 0
        %8698 = vmatprep.subr.bf16.mxu0 0
        %8699 = vmatpush2.bf16.msra.mxu0 0
        %8700 = vmatprep.subr.bf16.mxu0 0
        %8701 = vmatpush2.bf16.msra.mxu0 0
        %8702 = vmatprep.subr.bf16.mxu0 0
        %8703 = vmatpush2.bf16.msra.mxu0 0
        %8704 = vmatprep.subr.bf16.mxu0 0
        %8705 = vmatpush2.bf16.msra.mxu0 0
        %8706 = vmatprep.subr.bf16.mxu0 0
        %8707 = vmatpush2.bf16.msra.mxu0 0
        %8708 = vmatprep.subr.bf16.mxu0 0
        %8709 = vmatpush2.bf16.msra.mxu0 0
        %8710 = vmatprep.mubr.bf16.mxu0 0
        %8711 = vmatmul.mubr.bf16.gmra.mxu0 %v8623
        %v8712 = vpop.f32.mrf.mxu0
        %v8713 = vadd.f32 0.0, %v8712
        %v8714 = vpop.f32.mrf.mxu0
        %v8715 = vadd.f32 0.0, %v8714
        %v8716 = vpop.f32.mrf.mxu0
        %v8717 = vpop.f32.mrf.mxu0
        %8718 = vdwg.mxu0
        %v8723 = vcombine.low %v8672, %v8674
        %v8724 = vcombine.low %v8713, %v8715
        %v8726 = vunpack.c.l.s4 1966171168
        %v8727 = vunpack.c.0.s8 %v8726
        %v8728 = vlaneseq
        %v8729 = vshrl.u32 %v8728, 7
        %v8730 = vsub.s32 %v8727, %v8729
        %v8731 = vrot.slane %v8723, %v8730
        %v8733 = vunpack.c.l.s4 1966171168
        %v8734 = vunpack.c.0.s8 %v8733
        %v8735 = vlaneseq
        %v8736 = vshrl.u32 %v8735, 7
        %v8737 = vsub.s32 %v8734, %v8736
        %v8738 = vrot.slane %v8724, %v8737
        %v8739 = vcombine.low %v8731, %v8738
        %v8741 = vunpack.c.l.s4 1966171168
        %v8742 = vunpack.c.0.s8 %v8741
        %v8743 = vlaneseq
        %v8744 = vshrl.u32 %v8743, 7
        %v8745 = vsub.s32 %v8742, %v8744
        %v8746 = vrot.slane %v8739, %v8745
        %v8748 = vadd.f32 %v8508, %v8746
        %v8749 = vld [vmem:[%s5 + $0x4b0] sm:$0xff]
        %v8750 = vld [vmem:[%s5 + $0x4b8] sm:$0xff]
        %v8751 = vld [vmem:[%s5 + $0x4c0] sm:$0xff]
        %v8752 = vld [vmem:[%s5 + $0x4c8] sm:$0xff]
        %v8753 = vld [vmem:[%s5 + $0x4d0] sm:$0xff]
        %v8754 = vld [vmem:[%s5 + $0x4d8] sm:$0xff]
        %v8755 = vld [vmem:[%s5 + $0x4e0] sm:$0xff]
        %v8756 = vld [vmem:[%s5 + $0x4e8] sm:$0xff]
        %v8757 = vld [vmem:[%s5 + $0x4f0] sm:$0xff]
        %v8758 = vld [vmem:[%s5 + $0x4f8] sm:$0xff]
        %v8759 = vld [vmem:[%s5 + $0x500] sm:$0xff]
        %v8760 = vld [vmem:[%s5 + $0x508] sm:$0xff]
        %v8761 = vld [vmem:[%s5 + $0x510] sm:$0x11]
        %v8762 = vld [vmem:[%s5 + $0x518] sm:$0x11]
        %v8763 = vrot.slane %v5949, 6
        %v8778 = vunpack.c.l.b16 %v8749
        %v8779 = vunpack.c.h.b16 %v8749
        %v8780 = vunpack.c.l.b16 %v8750
        %v8781 = vunpack.c.h.b16 %v8750
        %v8782 = vunpack.c.l.b16 %v8751
        %v8783 = vunpack.c.h.b16 %v8751
        %v8784 = vunpack.c.l.b16 %v8752
        %v8785 = vunpack.c.h.b16 %v8752
        %v8786 = vunpack.c.l.b16 %v8753
        %v8787 = vunpack.c.h.b16 %v8753
        %v8788 = vunpack.c.l.b16 %v8754
        %v8789 = vunpack.c.h.b16 %v8754
        %v8790 = vunpack.c.l.b16 %v8755
        %v8791 = vunpack.c.h.b16 %v8755
        %v8792 = vunpack.c.l.b16 %v8756
        %v8793 = vunpack.c.h.b16 %v8756
        %v8794 = vunpack.c.l.b16 %v8757
        %v8795 = vunpack.c.h.b16 %v8757
        %v8796 = vunpack.c.l.b16 %v8758
        %v8797 = vunpack.c.h.b16 %v8758
        %v8798 = vunpack.c.l.b16 %v8759
        %v8799 = vunpack.c.h.b16 %v8759
        %v8800 = vunpack.c.l.b16 %v8760
        %v8801 = vunpack.c.h.b16 %v8760
        %v8802 = vunpack.c.l.b16 %v8761
        %v8803 = vunpack.c.h.b16 %v8761
        %v8804 = vunpack.c.l.b16 %v8762
        %v8805 = vunpack.c.h.b16 %v8762
        %v8806 = vpack.c.b16 %v8782, %v8778
        %v8807 = vpack.c.b16 %v8783, %v8779
        %v8808 = vpack.c.b16 %v8784, %v8780
        %v8809 = vpack.c.b16 %v8785, %v8781
        %v8810 = vpack.c.b16 %v8790, %v8786
        %v8811 = vpack.c.b16 %v8791, %v8787
        %v8812 = vpack.c.b16 %v8792, %v8788
        %v8813 = vpack.c.b16 %v8793, %v8789
        %v8814 = vpack.c.b16 %v8798, %v8794
        %v8815 = vpack.c.b16 %v8799, %v8795
        %v8816 = vpack.c.b16 %v8800, %v8796
        %v8817 = vpack.c.b16 %v8801, %v8797
        %v8818 = vpack.c.b16 %v8802, %v8802
        %v8819 = vpack.c.b16 %v8803, %v8803
        %v8820 = vpack.c.b16 %v8804, %v8804
        %v8821 = vpack.c.b16 %v8805, %v8805
        %v8835 = vsel %vm6035, %v8763, 0
        %v8838 = vsel %vm5902, %v8818, 0
        %v8841 = vsel %vm5902, %v8819, 0
        %v8844 = vsel %vm5902, %v8820, 0
        %v8847 = vsel %vm5902, %v8821, 0
        %8849 = vmatprep.subr.bf16.mxu0 0
        %8850 = vmatpush1.bf16.msra.mxu0 0
        %8851 = vmatprep.subr.bf16.mxu0 0
        %8852 = vmatpush1.bf16.msra.mxu0 0
        %8853 = vmatprep.subr.bf16.mxu0 0
        %8854 = vmatpush1.bf16.msra.mxu0 0
        %8855 = vmatprep.subr.bf16.mxu0 0
        %8856 = vmatpush1.bf16.msra.mxu0 0
        %8857 = vmatprep.subr.bf16.mxu0 %v8841
        %8858 = vmatpush1.bf16.msra.mxu0 %v8838
        %8859 = vmatprep.subr.bf16.mxu0 %v8815
        %8860 = vmatpush1.bf16.msra.mxu0 %v8814
        %8861 = vmatprep.subr.bf16.mxu0 %v8811
        %8862 = vmatpush1.bf16.msra.mxu0 %v8810
        %8863 = vmatprep.subr.bf16.mxu0 %v8807
        %8864 = vmatpush1.bf16.msra.mxu0 %v8806
        %8865 = vmatprep.subr.bf16.mxu0 0
        %8866 = vmatpush2.bf16.msra.mxu0 0
        %8867 = vmatprep.subr.bf16.mxu0 0
        %8868 = vmatpush2.bf16.msra.mxu0 0
        %8869 = vmatprep.subr.bf16.mxu0 0
        %8870 = vmatpush2.bf16.msra.mxu0 0
        %8871 = vmatprep.subr.bf16.mxu0 0
        %8872 = vmatpush2.bf16.msra.mxu0 0
        %8873 = vmatprep.subr.bf16.mxu0 0
        %8874 = vmatpush2.bf16.msra.mxu0 0
        %8875 = vmatprep.subr.bf16.mxu0 0
        %8876 = vmatpush2.bf16.msra.mxu0 0
        %8877 = vmatprep.subr.bf16.mxu0 0
        %8878 = vmatpush2.bf16.msra.mxu0 0
        %8879 = vmatprep.subr.bf16.mxu0 0
        %8880 = vmatpush2.bf16.msra.mxu0 0
        %8881 = vmatprep.mubr.bf16.mxu0 0
        %8882 = vmatmul.mubr.bf16.gmra.mxu0 %v8835
        %v8883 = vpop.f32.mrf.mxu0
        %v8884 = vadd.f32 0.0, %v8883
        %v8885 = vpop.f32.mrf.mxu0
        %v8886 = vadd.f32 0.0, %v8885
        %v8887 = vpop.f32.mrf.mxu0
        %v8888 = vpop.f32.mrf.mxu0
        %8889 = vdwg.mxu0
        %8890 = vmatprep.subr.bf16.mxu0 0
        %8891 = vmatpush1.bf16.msra.mxu0 0
        %8892 = vmatprep.subr.bf16.mxu0 0
        %8893 = vmatpush1.bf16.msra.mxu0 0
        %8894 = vmatprep.subr.bf16.mxu0 0
        %8895 = vmatpush1.bf16.msra.mxu0 0
        %8896 = vmatprep.subr.bf16.mxu0 0
        %8897 = vmatpush1.bf16.msra.mxu0 0
        %8898 = vmatprep.subr.bf16.mxu0 %v8847
        %8899 = vmatpush1.bf16.msra.mxu0 %v8844
        %8900 = vmatprep.subr.bf16.mxu0 %v8817
        %8901 = vmatpush1.bf16.msra.mxu0 %v8816
        %8902 = vmatprep.subr.bf16.mxu0 %v8813
        %8903 = vmatpush1.bf16.msra.mxu0 %v8812
        %8904 = vmatprep.subr.bf16.mxu0 %v8809
        %8905 = vmatpush1.bf16.msra.mxu0 %v8808
        %8906 = vmatprep.subr.bf16.mxu0 0
        %8907 = vmatpush2.bf16.msra.mxu0 0
        %8908 = vmatprep.subr.bf16.mxu0 0
        %8909 = vmatpush2.bf16.msra.mxu0 0
        %8910 = vmatprep.subr.bf16.mxu0 0
        %8911 = vmatpush2.bf16.msra.mxu0 0
        %8912 = vmatprep.subr.bf16.mxu0 0
        %8913 = vmatpush2.bf16.msra.mxu0 0
        %8914 = vmatprep.subr.bf16.mxu0 0
        %8915 = vmatpush2.bf16.msra.mxu0 0
        %8916 = vmatprep.subr.bf16.mxu0 0
        %8917 = vmatpush2.bf16.msra.mxu0 0
        %8918 = vmatprep.subr.bf16.mxu0 0
        %8919 = vmatpush2.bf16.msra.mxu0 0
        %8920 = vmatprep.subr.bf16.mxu0 0
        %8921 = vmatpush2.bf16.msra.mxu0 0
        %8922 = vmatprep.mubr.bf16.mxu0 0
        %8923 = vmatmul.mubr.bf16.gmra.mxu0 %v8835
        %v8924 = vpop.f32.mrf.mxu0
        %v8925 = vadd.f32 0.0, %v8924
        %v8926 = vpop.f32.mrf.mxu0
        %v8927 = vadd.f32 0.0, %v8926
        %v8928 = vpop.f32.mrf.mxu0
        %v8929 = vpop.f32.mrf.mxu0
        %8930 = vdwg.mxu0
        %v8935 = vcombine.low %v8884, %v8886
        %v8936 = vcombine.low %v8925, %v8927
        %v8938 = vunpack.c.l.s4 1966171168
        %v8939 = vunpack.c.0.s8 %v8938
        %v8940 = vlaneseq
        %v8941 = vshrl.u32 %v8940, 7
        %v8942 = vsub.s32 %v8939, %v8941
        %v8943 = vrot.slane %v8935, %v8942
        %v8945 = vunpack.c.l.s4 1966171168
        %v8946 = vunpack.c.0.s8 %v8945
        %v8947 = vlaneseq
        %v8948 = vshrl.u32 %v8947, 7
        %v8949 = vsub.s32 %v8946, %v8948
        %v8950 = vrot.slane %v8936, %v8949
        %v8951 = vcombine.low %v8943, %v8950
        %v8953 = vunpack.c.l.s4 1966171168
        %v8954 = vunpack.c.0.s8 %v8953
        %v8955 = vlaneseq
        %v8956 = vshrl.u32 %v8955, 7
        %v8957 = vsub.s32 %v8954, %v8956
        %v8958 = vrot.slane %v8951, %v8957
        %v8960 = vadd.f32 %v8748, %v8958
        %v8961 = vld [vmem:[%s5 + $0x510] sm:$0xee]
        %v8962 = vld [vmem:[%s5 + $0x518] sm:$0xee]
        %v8963 = vld [vmem:[%s5 + $0x520] sm:$0xff]
        %v8964 = vld [vmem:[%s5 + $0x528] sm:$0xff]
        %v8965 = vld [vmem:[%s5 + $0x530] sm:$0xff]
        %v8966 = vld [vmem:[%s5 + $0x538] sm:$0xff]
        %v8967 = vld [vmem:[%s5 + $0x540] sm:$0xff]
        %v8968 = vld [vmem:[%s5 + $0x548] sm:$0xff]
        %v8969 = vld [vmem:[%s5 + $0x550] sm:$0xff]
        %v8970 = vld [vmem:[%s5 + $0x558] sm:$0xff]
        %v8971 = vld [vmem:[%s5 + $0x560] sm:$0xff]
        %v8972 = vld [vmem:[%s5 + $0x568] sm:$0xff]
        %v8973 = vld [vmem:[%s5 + $0x570] sm:$0x33]
        %v8974 = vld [vmem:[%s5 + $0x578] sm:$0x33]
        %v8975 = vrot.slane %v6177, 6
        %v8990 = vunpack.c.l.b16 %v8961
        %v8991 = vunpack.c.h.b16 %v8961
        %v8992 = vunpack.c.l.b16 %v8962
        %v8993 = vunpack.c.h.b16 %v8962
        %v8994 = vunpack.c.l.b16 %v8963
        %v8995 = vunpack.c.h.b16 %v8963
        %v8996 = vunpack.c.l.b16 %v8964
        %v8997 = vunpack.c.h.b16 %v8964
        %v8998 = vunpack.c.l.b16 %v8965
        %v8999 = vunpack.c.h.b16 %v8965
        %v9000 = vunpack.c.l.b16 %v8966
        %v9001 = vunpack.c.h.b16 %v8966
        %v9002 = vunpack.c.l.b16 %v8967
        %v9003 = vunpack.c.h.b16 %v8967
        %v9004 = vunpack.c.l.b16 %v8968
        %v9005 = vunpack.c.h.b16 %v8968
        %v9006 = vunpack.c.l.b16 %v8969
        %v9007 = vunpack.c.h.b16 %v8969
        %v9008 = vunpack.c.l.b16 %v8970
        %v9009 = vunpack.c.h.b16 %v8970
        %v9010 = vunpack.c.l.b16 %v8971
        %v9011 = vunpack.c.h.b16 %v8971
        %v9012 = vunpack.c.l.b16 %v8972
        %v9013 = vunpack.c.h.b16 %v8972
        %v9014 = vunpack.c.l.b16 %v8973
        %v9015 = vunpack.c.h.b16 %v8973
        %v9016 = vunpack.c.l.b16 %v8974
        %v9017 = vunpack.c.h.b16 %v8974
        %v9018 = vpack.c.b16 %v8994, %v8990
        %v9019 = vpack.c.b16 %v8995, %v8991
        %v9020 = vpack.c.b16 %v8996, %v8992
        %v9021 = vpack.c.b16 %v8997, %v8993
        %v9022 = vpack.c.b16 %v9002, %v8998
        %v9023 = vpack.c.b16 %v9003, %v8999
        %v9024 = vpack.c.b16 %v9004, %v9000
        %v9025 = vpack.c.b16 %v9005, %v9001
        %v9026 = vpack.c.b16 %v9010, %v9006
        %v9027 = vpack.c.b16 %v9011, %v9007
        %v9028 = vpack.c.b16 %v9012, %v9008
        %v9029 = vpack.c.b16 %v9013, %v9009
        %v9030 = vpack.c.b16 %v9014, %v9014
        %v9031 = vpack.c.b16 %v9015, %v9015
        %v9032 = vpack.c.b16 %v9016, %v9016
        %v9033 = vpack.c.b16 %v9017, %v9017
        %v9034 = vrot.slane %v9018, 1
        %v9035 = vrot.slane %v9022, 1
        %v9036 = vsel %vm2590, %v9034, %v9035
        %v9037 = vrot.slane %v9019, 1
        %v9038 = vrot.slane %v9023, 1
        %v9039 = vsel %vm2590, %v9037, %v9038
        %v9040 = vrot.slane %v9020, 1
        %v9041 = vrot.slane %v9024, 1
        %v9042 = vsel %vm2590, %v9040, %v9041
        %v9043 = vrot.slane %v9021, 1
        %v9044 = vrot.slane %v9025, 1
        %v9045 = vsel %vm2590, %v9043, %v9044
        %v9046 = vrot.slane %v9026, 1
        %v9047 = vsel %vm2590, %v9035, %v9046
        %v9048 = vrot.slane %v9027, 1
        %v9049 = vsel %vm2590, %v9038, %v9048
        %v9050 = vrot.slane %v9028, 1
        %v9051 = vsel %vm2590, %v9041, %v9050
        %v9052 = vrot.slane %v9029, 1
        %v9053 = vsel %vm2590, %v9044, %v9052
        %v9054 = vrot.slane %v9030, 1
        %v9055 = vsel %vm2590, %v9046, %v9054
        %v9056 = vrot.slane %v9031, 1
        %v9057 = vsel %vm2590, %v9048, %v9056
        %v9058 = vrot.slane %v9032, 1
        %v9059 = vsel %vm2590, %v9050, %v9058
        %v9060 = vrot.slane %v9033, 1
        %v9061 = vsel %vm2590, %v9052, %v9060
        %v9075 = vsel %vm6035, %v8975, 0
        %v9078 = vsel %vm5902, %v9054, 0
        %v9081 = vsel %vm5902, %v9056, 0
        %v9084 = vsel %vm5902, %v9058, 0
        %v9087 = vsel %vm5902, %v9060, 0
        %9089 = vmatprep.subr.bf16.mxu0 0
        %9090 = vmatpush1.bf16.msra.mxu0 0
        %9091 = vmatprep.subr.bf16.mxu0 0
        %9092 = vmatpush1.bf16.msra.mxu0 0
        %9093 = vmatprep.subr.bf16.mxu0 0
        %9094 = vmatpush1.bf16.msra.mxu0 0
        %9095 = vmatprep.subr.bf16.mxu0 0
        %9096 = vmatpush1.bf16.msra.mxu0 0
        %9097 = vmatprep.subr.bf16.mxu0 %v9081
        %9098 = vmatpush1.bf16.msra.mxu0 %v9078
        %9099 = vmatprep.subr.bf16.mxu0 %v9057
        %9100 = vmatpush1.bf16.msra.mxu0 %v9055
        %9101 = vmatprep.subr.bf16.mxu0 %v9049
        %9102 = vmatpush1.bf16.msra.mxu0 %v9047
        %9103 = vmatprep.subr.bf16.mxu0 %v9039
        %9104 = vmatpush1.bf16.msra.mxu0 %v9036
        %9105 = vmatprep.subr.bf16.mxu0 0
        %9106 = vmatpush2.bf16.msra.mxu0 0
        %9107 = vmatprep.subr.bf16.mxu0 0
        %9108 = vmatpush2.bf16.msra.mxu0 0
        %9109 = vmatprep.subr.bf16.mxu0 0
        %9110 = vmatpush2.bf16.msra.mxu0 0
        %9111 = vmatprep.subr.bf16.mxu0 0
        %9112 = vmatpush2.bf16.msra.mxu0 0
        %9113 = vmatprep.subr.bf16.mxu0 0
        %9114 = vmatpush2.bf16.msra.mxu0 0
        %9115 = vmatprep.subr.bf16.mxu0 0
        %9116 = vmatpush2.bf16.msra.mxu0 0
        %9117 = vmatprep.subr.bf16.mxu0 0
        %9118 = vmatpush2.bf16.msra.mxu0 0
        %9119 = vmatprep.subr.bf16.mxu0 0
        %9120 = vmatpush2.bf16.msra.mxu0 0
        %9121 = vmatprep.mubr.bf16.mxu0 0
        %9122 = vmatmul.mubr.bf16.gmra.mxu0 %v9075
        %v9123 = vpop.f32.mrf.mxu0
        %v9124 = vadd.f32 0.0, %v9123
        %v9125 = vpop.f32.mrf.mxu0
        %v9126 = vadd.f32 0.0, %v9125
        %v9127 = vpop.f32.mrf.mxu0
        %v9128 = vpop.f32.mrf.mxu0
        %9129 = vdwg.mxu0
        %9130 = vmatprep.subr.bf16.mxu0 0
        %9131 = vmatpush1.bf16.msra.mxu0 0
        %9132 = vmatprep.subr.bf16.mxu0 0
        %9133 = vmatpush1.bf16.msra.mxu0 0
        %9134 = vmatprep.subr.bf16.mxu0 0
        %9135 = vmatpush1.bf16.msra.mxu0 0
        %9136 = vmatprep.subr.bf16.mxu0 0
        %9137 = vmatpush1.bf16.msra.mxu0 0
        %9138 = vmatprep.subr.bf16.mxu0 %v9087
        %9139 = vmatpush1.bf16.msra.mxu0 %v9084
        %9140 = vmatprep.subr.bf16.mxu0 %v9061
        %9141 = vmatpush1.bf16.msra.mxu0 %v9059
        %9142 = vmatprep.subr.bf16.mxu0 %v9053
        %9143 = vmatpush1.bf16.msra.mxu0 %v9051
        %9144 = vmatprep.subr.bf16.mxu0 %v9045
        %9145 = vmatpush1.bf16.msra.mxu0 %v9042
        %9146 = vmatprep.subr.bf16.mxu0 0
        %9147 = vmatpush2.bf16.msra.mxu0 0
        %9148 = vmatprep.subr.bf16.mxu0 0
        %9149 = vmatpush2.bf16.msra.mxu0 0
        %9150 = vmatprep.subr.bf16.mxu0 0
        %9151 = vmatpush2.bf16.msra.mxu0 0
        %9152 = vmatprep.subr.bf16.mxu0 0
        %9153 = vmatpush2.bf16.msra.mxu0 0
        %9154 = vmatprep.subr.bf16.mxu0 0
        %9155 = vmatpush2.bf16.msra.mxu0 0
        %9156 = vmatprep.subr.bf16.mxu0 0
        %9157 = vmatpush2.bf16.msra.mxu0 0
        %9158 = vmatprep.subr.bf16.mxu0 0
        %9159 = vmatpush2.bf16.msra.mxu0 0
        %9160 = vmatprep.subr.bf16.mxu0 0
        %9161 = vmatpush2.bf16.msra.mxu0 0
        %9162 = vmatprep.mubr.bf16.mxu0 0
        %9163 = vmatmul.mubr.bf16.gmra.mxu0 %v9075
        %v9164 = vpop.f32.mrf.mxu0
        %v9165 = vadd.f32 0.0, %v9164
        %v9166 = vpop.f32.mrf.mxu0
        %v9167 = vadd.f32 0.0, %v9166
        %v9168 = vpop.f32.mrf.mxu0
        %v9169 = vpop.f32.mrf.mxu0
        %9170 = vdwg.mxu0
        %v9175 = vcombine.low %v9124, %v9126
        %v9176 = vcombine.low %v9165, %v9167
        %v9178 = vunpack.c.l.s4 1966171168
        %v9179 = vunpack.c.0.s8 %v9178
        %v9180 = vlaneseq
        %v9181 = vshrl.u32 %v9180, 7
        %v9182 = vsub.s32 %v9179, %v9181
        %v9183 = vrot.slane %v9175, %v9182
        %v9185 = vunpack.c.l.s4 1966171168
        %v9186 = vunpack.c.0.s8 %v9185
        %v9187 = vlaneseq
        %v9188 = vshrl.u32 %v9187, 7
        %v9189 = vsub.s32 %v9186, %v9188
        %v9190 = vrot.slane %v9176, %v9189
        %v9191 = vcombine.low %v9183, %v9190
        %v9193 = vunpack.c.l.s4 1966171168
        %v9194 = vunpack.c.0.s8 %v9193
        %v9195 = vlaneseq
        %v9196 = vshrl.u32 %v9195, 7
        %v9197 = vsub.s32 %v9194, %v9196
        %v9198 = vrot.slane %v9191, %v9197
        %v9200 = vadd.f32 %v8960, %v9198
        %v9201 = vld [vmem:[%s5 + $0x570] sm:$0xcc]
        %v9202 = vld [vmem:[%s5 + $0x578] sm:$0xcc]
        %v9203 = vld [vmem:[%s5 + $0x580] sm:$0xff]
        %v9204 = vld [vmem:[%s5 + $0x588] sm:$0xff]
        %v9205 = vld [vmem:[%s5 + $0x590] sm:$0xff]
        %v9206 = vld [vmem:[%s5 + $0x598] sm:$0xff]
        %v9207 = vld [vmem:[%s5 + $0x5a0] sm:$0xff]
        %v9208 = vld [vmem:[%s5 + $0x5a8] sm:$0xff]
        %v9209 = vld [vmem:[%s5 + $0x5b0] sm:$0xff]
        %v9210 = vld [vmem:[%s5 + $0x5b8] sm:$0xff]
        %v9211 = vld [vmem:[%s5 + $0x5c0] sm:$0xff]
        %v9212 = vld [vmem:[%s5 + $0x5c8] sm:$0xff]
        %v9213 = vld [vmem:[%s5 + $0x5d0] sm:$0x77]
        %v9214 = vld [vmem:[%s5 + $0x5d8] sm:$0x77]
        %v9215 = vrot.slane %v5949, 7
        %v9230 = vunpack.c.l.b16 %v9201
        %v9231 = vunpack.c.h.b16 %v9201
        %v9232 = vunpack.c.l.b16 %v9202
        %v9233 = vunpack.c.h.b16 %v9202
        %v9234 = vunpack.c.l.b16 %v9203
        %v9235 = vunpack.c.h.b16 %v9203
        %v9236 = vunpack.c.l.b16 %v9204
        %v9237 = vunpack.c.h.b16 %v9204
        %v9238 = vunpack.c.l.b16 %v9205
        %v9239 = vunpack.c.h.b16 %v9205
        %v9240 = vunpack.c.l.b16 %v9206
        %v9241 = vunpack.c.h.b16 %v9206
        %v9242 = vunpack.c.l.b16 %v9207
        %v9243 = vunpack.c.h.b16 %v9207
        %v9244 = vunpack.c.l.b16 %v9208
        %v9245 = vunpack.c.h.b16 %v9208
        %v9246 = vunpack.c.l.b16 %v9209
        %v9247 = vunpack.c.h.b16 %v9209
        %v9248 = vunpack.c.l.b16 %v9210
        %v9249 = vunpack.c.h.b16 %v9210
        %v9250 = vunpack.c.l.b16 %v9211
        %v9251 = vunpack.c.h.b16 %v9211
        %v9252 = vunpack.c.l.b16 %v9212
        %v9253 = vunpack.c.h.b16 %v9212
        %v9254 = vunpack.c.l.b16 %v9213
        %v9255 = vunpack.c.h.b16 %v9213
        %v9256 = vunpack.c.l.b16 %v9214
        %v9257 = vunpack.c.h.b16 %v9214
        %v9258 = vpack.c.b16 %v9234, %v9230
        %v9259 = vpack.c.b16 %v9235, %v9231
        %v9260 = vpack.c.b16 %v9236, %v9232
        %v9261 = vpack.c.b16 %v9237, %v9233
        %v9262 = vpack.c.b16 %v9242, %v9238
        %v9263 = vpack.c.b16 %v9243, %v9239
        %v9264 = vpack.c.b16 %v9244, %v9240
        %v9265 = vpack.c.b16 %v9245, %v9241
        %v9266 = vpack.c.b16 %v9250, %v9246
        %v9267 = vpack.c.b16 %v9251, %v9247
        %v9268 = vpack.c.b16 %v9252, %v9248
        %v9269 = vpack.c.b16 %v9253, %v9249
        %v9270 = vpack.c.b16 %v9254, %v9254
        %v9271 = vpack.c.b16 %v9255, %v9255
        %v9272 = vpack.c.b16 %v9256, %v9256
        %v9273 = vpack.c.b16 %v9257, %v9257
        %v9274 = vrot.slane %v9258, 2
        %v9275 = vrot.slane %v9262, 2
        %v9276 = vsel %vm2366, %v9274, %v9275
        %v9277 = vrot.slane %v9259, 2
        %v9278 = vrot.slane %v9263, 2
        %v9279 = vsel %vm2366, %v9277, %v9278
        %v9280 = vrot.slane %v9260, 2
        %v9281 = vrot.slane %v9264, 2
        %v9282 = vsel %vm2366, %v9280, %v9281
        %v9283 = vrot.slane %v9261, 2
        %v9284 = vrot.slane %v9265, 2
        %v9285 = vsel %vm2366, %v9283, %v9284
        %v9286 = vrot.slane %v9266, 2
        %v9287 = vsel %vm2366, %v9275, %v9286
        %v9288 = vrot.slane %v9267, 2
        %v9289 = vsel %vm2366, %v9278, %v9288
        %v9290 = vrot.slane %v9268, 2
        %v9291 = vsel %vm2366, %v9281, %v9290
        %v9292 = vrot.slane %v9269, 2
        %v9293 = vsel %vm2366, %v9284, %v9292
        %v9294 = vrot.slane %v9270, 2
        %v9295 = vsel %vm2366, %v9286, %v9294
        %v9296 = vrot.slane %v9271, 2
        %v9297 = vsel %vm2366, %v9288, %v9296
        %v9298 = vrot.slane %v9272, 2
        %v9299 = vsel %vm2366, %v9290, %v9298
        %v9300 = vrot.slane %v9273, 2
        %v9301 = vsel %vm2366, %v9292, %v9300
        %v9315 = vsel %vm6035, %v9215, 0
        %v9318 = vsel %vm5902, %v9294, 0
        %v9321 = vsel %vm5902, %v9296, 0
        %v9324 = vsel %vm5902, %v9298, 0
        %v9327 = vsel %vm5902, %v9300, 0
        %9329 = vmatprep.subr.bf16.mxu0 0
        %9330 = vmatpush1.bf16.msra.mxu0 0
        %9331 = vmatprep.subr.bf16.mxu0 0
        %9332 = vmatpush1.bf16.msra.mxu0 0
        %9333 = vmatprep.subr.bf16.mxu0 0
        %9334 = vmatpush1.bf16.msra.mxu0 0
        %9335 = vmatprep.subr.bf16.mxu0 0
        %9336 = vmatpush1.bf16.msra.mxu0 0
        %9337 = vmatprep.subr.bf16.mxu0 %v9321
        %9338 = vmatpush1.bf16.msra.mxu0 %v9318
        %9339 = vmatprep.subr.bf16.mxu0 %v9297
        %9340 = vmatpush1.bf16.msra.mxu0 %v9295
        %9341 = vmatprep.subr.bf16.mxu0 %v9289
        %9342 = vmatpush1.bf16.msra.mxu0 %v9287
        %9343 = vmatprep.subr.bf16.mxu0 %v9279
        %9344 = vmatpush1.bf16.msra.mxu0 %v9276
        %9345 = vmatprep.subr.bf16.mxu0 0
        %9346 = vmatpush2.bf16.msra.mxu0 0
        %9347 = vmatprep.subr.bf16.mxu0 0
        %9348 = vmatpush2.bf16.msra.mxu0 0
        %9349 = vmatprep.subr.bf16.mxu0 0
        %9350 = vmatpush2.bf16.msra.mxu0 0
        %9351 = vmatprep.subr.bf16.mxu0 0
        %9352 = vmatpush2.bf16.msra.mxu0 0
        %9353 = vmatprep.subr.bf16.mxu0 0
        %9354 = vmatpush2.bf16.msra.mxu0 0
        %9355 = vmatprep.subr.bf16.mxu0 0
        %9356 = vmatpush2.bf16.msra.mxu0 0
        %9357 = vmatprep.subr.bf16.mxu0 0
        %9358 = vmatpush2.bf16.msra.mxu0 0
        %9359 = vmatprep.subr.bf16.mxu0 0
        %9360 = vmatpush2.bf16.msra.mxu0 0
        %9361 = vmatprep.mubr.bf16.mxu0 0
        %9362 = vmatmul.mubr.bf16.gmra.mxu0 %v9315
        %v9363 = vpop.f32.mrf.mxu0
        %v9364 = vadd.f32 0.0, %v9363
        %v9365 = vpop.f32.mrf.mxu0
        %v9366 = vadd.f32 0.0, %v9365
        %v9367 = vpop.f32.mrf.mxu0
        %v9368 = vpop.f32.mrf.mxu0
        %9369 = vdwg.mxu0
        %9370 = vmatprep.subr.bf16.mxu0 0
        %9371 = vmatpush1.bf16.msra.mxu0 0
        %9372 = vmatprep.subr.bf16.mxu0 0
        %9373 = vmatpush1.bf16.msra.mxu0 0
        %9374 = vmatprep.subr.bf16.mxu0 0
        %9375 = vmatpush1.bf16.msra.mxu0 0
        %9376 = vmatprep.subr.bf16.mxu0 0
        %9377 = vmatpush1.bf16.msra.mxu0 0
        %9378 = vmatprep.subr.bf16.mxu0 %v9327
        %9379 = vmatpush1.bf16.msra.mxu0 %v9324
        %9380 = vmatprep.subr.bf16.mxu0 %v9301
        %9381 = vmatpush1.bf16.msra.mxu0 %v9299
        %9382 = vmatprep.subr.bf16.mxu0 %v9293
        %9383 = vmatpush1.bf16.msra.mxu0 %v9291
        %9384 = vmatprep.subr.bf16.mxu0 %v9285
        %9385 = vmatpush1.bf16.msra.mxu0 %v9282
        %9386 = vmatprep.subr.bf16.mxu0 0
        %9387 = vmatpush2.bf16.msra.mxu0 0
        %9388 = vmatprep.subr.bf16.mxu0 0
        %9389 = vmatpush2.bf16.msra.mxu0 0
        %9390 = vmatprep.subr.bf16.mxu0 0
        %9391 = vmatpush2.bf16.msra.mxu0 0
        %9392 = vmatprep.subr.bf16.mxu0 0
        %9393 = vmatpush2.bf16.msra.mxu0 0
        %9394 = vmatprep.subr.bf16.mxu0 0
        %9395 = vmatpush2.bf16.msra.mxu0 0
        %9396 = vmatprep.subr.bf16.mxu0 0
        %9397 = vmatpush2.bf16.msra.mxu0 0
        %9398 = vmatprep.subr.bf16.mxu0 0
        %9399 = vmatpush2.bf16.msra.mxu0 0
        %9400 = vmatprep.subr.bf16.mxu0 0
        %9401 = vmatpush2.bf16.msra.mxu0 0
        %9402 = vmatprep.mubr.bf16.mxu0 0
        %9403 = vmatmul.mubr.bf16.gmra.mxu0 %v9315
        %v9404 = vpop.f32.mrf.mxu0
        %v9405 = vadd.f32 0.0, %v9404
        %v9406 = vpop.f32.mrf.mxu0
        %v9407 = vadd.f32 0.0, %v9406
        %v9408 = vpop.f32.mrf.mxu0
        %v9409 = vpop.f32.mrf.mxu0
        %9410 = vdwg.mxu0
        %v9415 = vcombine.low %v9364, %v9366
        %v9416 = vcombine.low %v9405, %v9407
        %v9418 = vunpack.c.l.s4 1966171168
        %v9419 = vunpack.c.0.s8 %v9418
        %v9420 = vlaneseq
        %v9421 = vshrl.u32 %v9420, 7
        %v9422 = vsub.s32 %v9419, %v9421
        %v9423 = vrot.slane %v9415, %v9422
        %v9425 = vunpack.c.l.s4 1966171168
        %v9426 = vunpack.c.0.s8 %v9425
        %v9427 = vlaneseq
        %v9428 = vshrl.u32 %v9427, 7
        %v9429 = vsub.s32 %v9426, %v9428
        %v9430 = vrot.slane %v9416, %v9429
        %v9431 = vcombine.low %v9423, %v9430
        %v9433 = vunpack.c.l.s4 1966171168
        %v9434 = vunpack.c.0.s8 %v9433
        %v9435 = vlaneseq
        %v9436 = vshrl.u32 %v9435, 7
        %v9437 = vsub.s32 %v9434, %v9436
        %v9438 = vrot.slane %v9431, %v9437
        %v9440 = vadd.f32 %v9200, %v9438
        %v9441 = vld [vmem:[%s5 + $0x5d0] sm:$0x88]
        %v9442 = vld [vmem:[%s5 + $0x5d8] sm:$0x88]
        %v9443 = vld [vmem:[%s5 + $0x5e0] sm:$0xff]
        %v9444 = vld [vmem:[%s5 + $0x5e8] sm:$0xff]
        %v9445 = vld [vmem:[%s5 + $0x5f0] sm:$0xff]
        %v9446 = vld [vmem:[%s5 + $0x5f8] sm:$0xff]
        %v9447 = vld [vmem:[%s5 + $0x600] sm:$0xff]
        %v9448 = vld [vmem:[%s5 + $0x608] sm:$0xff]
        %v9449 = vld [vmem:[%s5 + $0x610] sm:$0xff]
        %v9450 = vld [vmem:[%s5 + $0x618] sm:$0xff]
        %v9451 = vld [vmem:[%s5 + $0x620] sm:$0xff]
        %v9452 = vld [vmem:[%s5 + $0x628] sm:$0xff]
        %v9453 = vld [vmem:[%s5 + $0x630] sm:$0xff]
        %v9454 = vld [vmem:[%s5 + $0x638] sm:$0xff]
        %v9455 = vrot.slane %v6177, 7
        %v9470 = vunpack.c.l.b16 %v9441
        %v9471 = vunpack.c.h.b16 %v9441
        %v9472 = vunpack.c.l.b16 %v9442
        %v9473 = vunpack.c.h.b16 %v9442
        %v9474 = vunpack.c.l.b16 %v9443
        %v9475 = vunpack.c.h.b16 %v9443
        %v9476 = vunpack.c.l.b16 %v9444
        %v9477 = vunpack.c.h.b16 %v9444
        %v9478 = vunpack.c.l.b16 %v9445
        %v9479 = vunpack.c.h.b16 %v9445
        %v9480 = vunpack.c.l.b16 %v9446
        %v9481 = vunpack.c.h.b16 %v9446
        %v9482 = vunpack.c.l.b16 %v9447
        %v9483 = vunpack.c.h.b16 %v9447
        %v9484 = vunpack.c.l.b16 %v9448
        %v9485 = vunpack.c.h.b16 %v9448
        %v9486 = vunpack.c.l.b16 %v9449
        %v9487 = vunpack.c.h.b16 %v9449
        %v9488 = vunpack.c.l.b16 %v9450
        %v9489 = vunpack.c.h.b16 %v9450
        %v9490 = vunpack.c.l.b16 %v9451
        %v9491 = vunpack.c.h.b16 %v9451
        %v9492 = vunpack.c.l.b16 %v9452
        %v9493 = vunpack.c.h.b16 %v9452
        %v9494 = vunpack.c.l.b16 %v9453
        %v9495 = vunpack.c.h.b16 %v9453
        %v9496 = vunpack.c.l.b16 %v9454
        %v9497 = vunpack.c.h.b16 %v9454
        %v9498 = vpack.c.b16 %v9474, %v9470
        %v9499 = vpack.c.b16 %v9475, %v9471
        %v9500 = vpack.c.b16 %v9476, %v9472
        %v9501 = vpack.c.b16 %v9477, %v9473
        %v9502 = vpack.c.b16 %v9482, %v9478
        %v9503 = vpack.c.b16 %v9483, %v9479
        %v9504 = vpack.c.b16 %v9484, %v9480
        %v9505 = vpack.c.b16 %v9485, %v9481
        %v9506 = vpack.c.b16 %v9490, %v9486
        %v9507 = vpack.c.b16 %v9491, %v9487
        %v9508 = vpack.c.b16 %v9492, %v9488
        %v9509 = vpack.c.b16 %v9493, %v9489
        %v9510 = vpack.c.b16 %v9494, %v9494
        %v9511 = vpack.c.b16 %v9495, %v9495
        %v9512 = vpack.c.b16 %v9496, %v9496
        %v9513 = vpack.c.b16 %v9497, %v9497
        %v9514 = vrot.slane %v9498, 3
        %v9515 = vrot.slane %v9502, 3
        %v9516 = vsel %vm4721, %v9514, %v9515
        %v9517 = vrot.slane %v9499, 3
        %v9518 = vrot.slane %v9503, 3
        %v9519 = vsel %vm4721, %v9517, %v9518
        %v9520 = vrot.slane %v9500, 3
        %v9521 = vrot.slane %v9504, 3
        %v9522 = vsel %vm4721, %v9520, %v9521
        %v9523 = vrot.slane %v9501, 3
        %v9524 = vrot.slane %v9505, 3
        %v9525 = vsel %vm4721, %v9523, %v9524
        %v9526 = vrot.slane %v9506, 3
        %v9527 = vsel %vm4721, %v9515, %v9526
        %v9528 = vrot.slane %v9507, 3
        %v9529 = vsel %vm4721, %v9518, %v9528
        %v9530 = vrot.slane %v9508, 3
        %v9531 = vsel %vm4721, %v9521, %v9530
        %v9532 = vrot.slane %v9509, 3
        %v9533 = vsel %vm4721, %v9524, %v9532
        %v9534 = vrot.slane %v9510, 3
        %v9535 = vsel %vm4721, %v9526, %v9534
        %v9536 = vrot.slane %v9511, 3
        %v9537 = vsel %vm4721, %v9528, %v9536
        %v9538 = vrot.slane %v9512, 3
        %v9539 = vsel %vm4721, %v9530, %v9538
        %v9540 = vrot.slane %v9513, 3
        %v9541 = vsel %vm4721, %v9532, %v9540
        %v9555 = vsel %vm6035, %v9455, 0
        %v9558 = vsel %vm5902, %v9534, 0
        %v9561 = vsel %vm5902, %v9536, 0
        %v9564 = vsel %vm5902, %v9538, 0
        %v9567 = vsel %vm5902, %v9540, 0
        %9569 = vmatprep.subr.bf16.mxu0 0
        %9570 = vmatpush1.bf16.msra.mxu0 0
        %9571 = vmatprep.subr.bf16.mxu0 0
        %9572 = vmatpush1.bf16.msra.mxu0 0
        %9573 = vmatprep.subr.bf16.mxu0 0
        %9574 = vmatpush1.bf16.msra.mxu0 0
        %9575 = vmatprep.subr.bf16.mxu0 0
        %9576 = vmatpush1.bf16.msra.mxu0 0
        %9577 = vmatprep.subr.bf16.mxu0 %v9561
        %9578 = vmatpush1.bf16.msra.mxu0 %v9558
        %9579 = vmatprep.subr.bf16.mxu0 %v9537
        %9580 = vmatpush1.bf16.msra.mxu0 %v9535
        %9581 = vmatprep.subr.bf16.mxu0 %v9529
        %9582 = vmatpush1.bf16.msra.mxu0 %v9527
        %9583 = vmatprep.subr.bf16.mxu0 %v9519
        %9584 = vmatpush1.bf16.msra.mxu0 %v9516
        %9585 = vmatprep.subr.bf16.mxu0 0
        %9586 = vmatpush2.bf16.msra.mxu0 0
        %9587 = vmatprep.subr.bf16.mxu0 0
        %9588 = vmatpush2.bf16.msra.mxu0 0
        %9589 = vmatprep.subr.bf16.mxu0 0
        %9590 = vmatpush2.bf16.msra.mxu0 0
        %9591 = vmatprep.subr.bf16.mxu0 0
        %9592 = vmatpush2.bf16.msra.mxu0 0
        %9593 = vmatprep.subr.bf16.mxu0 0
        %9594 = vmatpush2.bf16.msra.mxu0 0
        %9595 = vmatprep.subr.bf16.mxu0 0
        %9596 = vmatpush2.bf16.msra.mxu0 0
        %9597 = vmatprep.subr.bf16.mxu0 0
        %9598 = vmatpush2.bf16.msra.mxu0 0
        %9599 = vmatprep.subr.bf16.mxu0 0
        %9600 = vmatpush2.bf16.msra.mxu0 0
        %9601 = vmatprep.mubr.bf16.mxu0 0
        %9602 = vmatmul.mubr.bf16.gmra.mxu0 %v9555
        %v9603 = vpop.f32.mrf.mxu0
        %v9604 = vadd.f32 0.0, %v9603
        %v9605 = vpop.f32.mrf.mxu0
        %v9606 = vadd.f32 0.0, %v9605
        %v9607 = vpop.f32.mrf.mxu0
        %v9608 = vpop.f32.mrf.mxu0
        %9609 = vdwg.mxu0
        %9610 = vmatprep.subr.bf16.mxu0 0
        %9611 = vmatpush1.bf16.msra.mxu0 0
        %9612 = vmatprep.subr.bf16.mxu0 0
        %9613 = vmatpush1.bf16.msra.mxu0 0
        %9614 = vmatprep.subr.bf16.mxu0 0
        %9615 = vmatpush1.bf16.msra.mxu0 0
        %9616 = vmatprep.subr.bf16.mxu0 0
        %9617 = vmatpush1.bf16.msra.mxu0 0
        %9618 = vmatprep.subr.bf16.mxu0 %v9567
        %9619 = vmatpush1.bf16.msra.mxu0 %v9564
        %9620 = vmatprep.subr.bf16.mxu0 %v9541
        %9621 = vmatpush1.bf16.msra.mxu0 %v9539
        %9622 = vmatprep.subr.bf16.mxu0 %v9533
        %9623 = vmatpush1.bf16.msra.mxu0 %v9531
        %9624 = vmatprep.subr.bf16.mxu0 %v9525
        %9625 = vmatpush1.bf16.msra.mxu0 %v9522
        %9626 = vmatprep.subr.bf16.mxu0 0
        %9627 = vmatpush2.bf16.msra.mxu0 0
        %9628 = vmatprep.subr.bf16.mxu0 0
        %9629 = vmatpush2.bf16.msra.mxu0 0
        %9630 = vmatprep.subr.bf16.mxu0 0
        %9631 = vmatpush2.bf16.msra.mxu0 0
        %9632 = vmatprep.subr.bf16.mxu0 0
        %9633 = vmatpush2.bf16.msra.mxu0 0
        %9634 = vmatprep.subr.bf16.mxu0 0
        %9635 = vmatpush2.bf16.msra.mxu0 0
        %9636 = vmatprep.subr.bf16.mxu0 0
        %9637 = vmatpush2.bf16.msra.mxu0 0
        %9638 = vmatprep.subr.bf16.mxu0 0
        %9639 = vmatpush2.bf16.msra.mxu0 0
        %9640 = vmatprep.subr.bf16.mxu0 0
        %9641 = vmatpush2.bf16.msra.mxu0 0
        %9642 = vmatprep.mubr.bf16.mxu0 0
        %9643 = vmatmul.mubr.bf16.gmra.mxu0 %v9555
        %v9644 = vpop.f32.mrf.mxu0
        %v9645 = vadd.f32 0.0, %v9644
        %v9646 = vpop.f32.mrf.mxu0
        %v9647 = vadd.f32 0.0, %v9646
        %v9648 = vpop.f32.mrf.mxu0
        %v9649 = vpop.f32.mrf.mxu0
        %9650 = vdwg.mxu0
        %v9655 = vcombine.low %v9604, %v9606
        %v9656 = vcombine.low %v9645, %v9647
        %v9658 = vunpack.c.l.s4 1966171168
        %v9659 = vunpack.c.0.s8 %v9658
        %v9660 = vlaneseq
        %v9661 = vshrl.u32 %v9660, 7
        %v9662 = vsub.s32 %v9659, %v9661
        %v9663 = vrot.slane %v9655, %v9662
        %v9665 = vunpack.c.l.s4 1966171168
        %v9666 = vunpack.c.0.s8 %v9665
        %v9667 = vlaneseq
        %v9668 = vshrl.u32 %v9667, 7
        %v9669 = vsub.s32 %v9666, %v9668
        %v9670 = vrot.slane %v9656, %v9669
        %v9671 = vcombine.low %v9663, %v9670
        %v9673 = vunpack.c.l.s4 1966171168
        %v9674 = vunpack.c.0.s8 %v9673
        %v9675 = vlaneseq
        %v9676 = vshrl.u32 %v9675, 7
        %v9677 = vsub.s32 %v9674, %v9676
        %v9678 = vrot.slane %v9671, %v9677
        %v9680 = vadd.f32 %v9440, %v9678
        %v9681 = vmax.f32 %v9680, 0.0
        %v9683 = vlaneseq
        %v9684 = vshrl.u32 %v9683, 7
        %v9685 = vsub.s32 0, %v9684
        %v9686 = vrot.slane %v9681, %v9685
        %v9687 = vlaneseq
        %v9688 = vshrl.u32 %v9687, 7
        %v9689 = vsub.s32 1, %v9688
        %v9690 = vrot.slane %v9681, %v9689
        %v9691 = vlaneseq
        %v9692 = vshrl.u32 %v9691, 7
        %v9693 = vsub.s32 2, %v9692
        %v9694 = vrot.slane %v9681, %v9693
        %v9695 = vlaneseq
        %v9696 = vshrl.u32 %v9695, 7
        %v9697 = vsub.s32 3, %v9696
        %v9698 = vrot.slane %v9681, %v9697
        %v9703 = vpack.c.bf16 %v9686, %v9686
        %v9704 = vpack.c.bf16 %v9690, %v9690
        %v9705 = vpack.c.bf16 %v9694, %v9694
        %v9706 = vpack.c.bf16 %v9698, %v9698
        %v9707 = vld [vmem:[%s7] sm:$0xf]
        %v9708 = vld [vmem:[%s7 + $0x4] sm:$0xf]
        %v9709 = vld [vmem:[%s7 + $0x8] sm:$0xf]
        %v9710 = vld [vmem:[%s7 + $0xc] sm:$0xf]
        %v9711 = vld [vmem:[%s7 + $0x10] sm:$0xf]
        %v9712 = vld [vmem:[%s7 + $0x14] sm:$0xf]
        %v9713 = vld [vmem:[%s7 + $0x18] sm:$0xf]
        %v9714 = vld [vmem:[%s7 + $0x1c] sm:$0xf]
        %v9715 = vld [vmem:[%s7 + $0x20] sm:$0xf]
        %v9716 = vld [vmem:[%s7 + $0x24] sm:$0xf]
        %v9717 = vld [vmem:[%s7 + $0x28] sm:$0xf]
        %v9718 = vld [vmem:[%s7 + $0x2c] sm:$0xf]
        %v9719 = vld [vmem:[%s7 + $0x30] sm:$0xf]
        %v9720 = vld [vmem:[%s7 + $0x34] sm:$0xf]
        %v9721 = vld [vmem:[%s7 + $0x38] sm:$0xf]
        %v9722 = vld [vmem:[%s7 + $0x3c] sm:$0xf]
        %v9723 = vld [vmem:[%s7 + $0x40] sm:$0xf]
        %v9724 = vld [vmem:[%s7 + $0x44] sm:$0xf]
        %v9725 = vld [vmem:[%s7 + $0x48] sm:$0xf]
        %v9726 = vld [vmem:[%s7 + $0x4c] sm:$0xf]
        %v9727 = vld [vmem:[%s7 + $0x50] sm:$0xf]
        %v9728 = vld [vmem:[%s7 + $0x54] sm:$0xf]
        %v9729 = vld [vmem:[%s7 + $0x58] sm:$0xf]
        %v9730 = vld [vmem:[%s7 + $0x5c] sm:$0xf]
        %v9731 = vld [vmem:[%s7 + $0x60] sm:$0xf]
        %v9732 = vld [vmem:[%s7 + $0x64] sm:$0xf]
        %v9733 = vld [vmem:[%s7 + $0x68] sm:$0xf]
        %v9734 = vld [vmem:[%s7 + $0x6c] sm:$0xf]
        %v9735 = vld [vmem:[%s7 + $0x70] sm:$0xf]
        %v9736 = vld [vmem:[%s7 + $0x74] sm:$0xf]
        %v9737 = vld [vmem:[%s7 + $0x78] sm:$0xf]
        %v9738 = vld [vmem:[%s7 + $0x7c] sm:$0xf]
        %v9739 = vld [vmem:[%s7 + $0x80] sm:$0xf]
        %v9740 = vld [vmem:[%s7 + $0x84] sm:$0xf]
        %v9741 = vld [vmem:[%s7 + $0x88] sm:$0xf]
        %v9742 = vld [vmem:[%s7 + $0x8c] sm:$0xf]
        %v9743 = vld [vmem:[%s7 + $0x90] sm:$0xf]
        %v9744 = vld [vmem:[%s7 + $0x94] sm:$0xf]
        %v9745 = vld [vmem:[%s7 + $0x98] sm:$0xf]
        %v9746 = vld [vmem:[%s7 + $0x9c] sm:$0xf]
        %v9747 = vld [vmem:[%s7 + $0xa0] sm:$0xf]
        %v9748 = vld [vmem:[%s7 + $0xa4] sm:$0xf]
        %v9749 = vld [vmem:[%s7 + $0xa8] sm:$0xf]
        %v9750 = vld [vmem:[%s7 + $0xac] sm:$0xf]
        %v9751 = vld [vmem:[%s7 + $0xb0] sm:$0xf]
        %v9752 = vld [vmem:[%s7 + $0xb4] sm:$0xf]
        %v9753 = vld [vmem:[%s7 + $0xb8] sm:$0xf]
        %v9754 = vld [vmem:[%s7 + $0xbc] sm:$0xf]
        %v9755 = vld [vmem:[%s7 + $0xc0] sm:$0xf]
        %v9756 = vld [vmem:[%s7 + $0xc4] sm:$0xf]
        %v9757 = vld [vmem:[%s7 + $0xc8] sm:$0xf]
        %v9758 = vld [vmem:[%s7 + $0xcc] sm:$0xf]
        %v9759 = vld [vmem:[%s7 + $0xd0] sm:$0xf]
        %v9760 = vld [vmem:[%s7 + $0xd4] sm:$0xf]
        %v9761 = vld [vmem:[%s7 + $0xd8] sm:$0xf]
        %v9762 = vld [vmem:[%s7 + $0xdc] sm:$0xf]
        %v9763 = vld [vmem:[%s7 + $0xe0] sm:$0xf]
        %v9764 = vld [vmem:[%s7 + $0xe4] sm:$0xf]
        %v9765 = vld [vmem:[%s7 + $0xe8] sm:$0xf]
        %v9766 = vld [vmem:[%s7 + $0xec] sm:$0xf]
        %v9767 = vld [vmem:[%s7 + $0xf0] sm:$0xf]
        %v9768 = vld [vmem:[%s7 + $0xf4] sm:$0xf]
        %v9769 = vld [vmem:[%s7 + $0xf8] sm:$0x3]
        %v9770 = vld [vmem:[%s8] sm:$0x1]
        %v9834 = vunpack.c.l.b16 %v9707
        %v9835 = vunpack.c.l.b16 %v9708
        %v9836 = vunpack.c.l.b16 %v9709
        %v9837 = vunpack.c.l.b16 %v9710
        %v9838 = vunpack.c.l.b16 %v9711
        %v9839 = vunpack.c.l.b16 %v9712
        %v9840 = vunpack.c.l.b16 %v9713
        %v9841 = vunpack.c.l.b16 %v9714
        %v9842 = vunpack.c.l.b16 %v9715
        %v9843 = vunpack.c.l.b16 %v9716
        %v9844 = vunpack.c.l.b16 %v9717
        %v9845 = vunpack.c.l.b16 %v9718
        %v9846 = vunpack.c.l.b16 %v9719
        %v9847 = vunpack.c.l.b16 %v9720
        %v9848 = vunpack.c.l.b16 %v9721
        %v9849 = vunpack.c.l.b16 %v9722
        %v9850 = vunpack.c.l.b16 %v9723
        %v9851 = vunpack.c.l.b16 %v9724
        %v9852 = vunpack.c.l.b16 %v9725
        %v9853 = vunpack.c.l.b16 %v9726
        %v9854 = vunpack.c.l.b16 %v9727
        %v9855 = vunpack.c.l.b16 %v9728
        %v9856 = vunpack.c.l.b16 %v9729
        %v9857 = vunpack.c.l.b16 %v9730
        %v9858 = vunpack.c.l.b16 %v9731
        %v9859 = vunpack.c.l.b16 %v9732
        %v9860 = vunpack.c.l.b16 %v9733
        %v9861 = vunpack.c.l.b16 %v9734
        %v9862 = vunpack.c.l.b16 %v9735
        %v9863 = vunpack.c.l.b16 %v9736
        %v9864 = vunpack.c.l.b16 %v9737
        %v9865 = vunpack.c.l.b16 %v9738
        %v9866 = vunpack.c.l.b16 %v9739
        %v9867 = vunpack.c.l.b16 %v9740
        %v9868 = vunpack.c.l.b16 %v9741
        %v9869 = vunpack.c.l.b16 %v9742
        %v9870 = vunpack.c.l.b16 %v9743
        %v9871 = vunpack.c.l.b16 %v9744
        %v9872 = vunpack.c.l.b16 %v9745
        %v9873 = vunpack.c.l.b16 %v9746
        %v9874 = vunpack.c.l.b16 %v9747
        %v9875 = vunpack.c.l.b16 %v9748
        %v9876 = vunpack.c.l.b16 %v9749
        %v9877 = vunpack.c.l.b16 %v9750
        %v9878 = vunpack.c.l.b16 %v9751
        %v9879 = vunpack.c.l.b16 %v9752
        %v9880 = vunpack.c.l.b16 %v9753
        %v9881 = vunpack.c.l.b16 %v9754
        %v9882 = vunpack.c.l.b16 %v9755
        %v9883 = vunpack.c.l.b16 %v9756
        %v9884 = vunpack.c.l.b16 %v9757
        %v9885 = vunpack.c.l.b16 %v9758
        %v9886 = vunpack.c.l.b16 %v9759
        %v9887 = vunpack.c.l.b16 %v9760
        %v9888 = vunpack.c.l.b16 %v9761
        %v9889 = vunpack.c.l.b16 %v9762
        %v9890 = vunpack.c.l.b16 %v9763
        %v9891 = vunpack.c.l.b16 %v9764
        %v9892 = vunpack.c.l.b16 %v9765
        %v9893 = vunpack.c.l.b16 %v9766
        %v9894 = vunpack.c.l.b16 %v9767
        %v9895 = vunpack.c.l.b16 %v9768
        %v9896 = vunpack.c.l.b16 %v9769
        %v9897 = vpack.c.b16 %v9835, %v9834
        %v9898 = vpack.c.b16 %v9837, %v9836
        %v9899 = vpack.c.b16 %v9839, %v9838
        %v9900 = vpack.c.b16 %v9841, %v9840
        %v9901 = vpack.c.b16 %v9843, %v9842
        %v9902 = vpack.c.b16 %v9845, %v9844
        %v9903 = vpack.c.b16 %v9847, %v9846
        %v9904 = vpack.c.b16 %v9849, %v9848
        %v9905 = vpack.c.b16 %v9851, %v9850
        %v9906 = vpack.c.b16 %v9853, %v9852
        %v9907 = vpack.c.b16 %v9855, %v9854
        %v9908 = vpack.c.b16 %v9857, %v9856
        %v9909 = vpack.c.b16 %v9859, %v9858
        %v9910 = vpack.c.b16 %v9861, %v9860
        %v9911 = vpack.c.b16 %v9863, %v9862
        %v9912 = vpack.c.b16 %v9865, %v9864
        %v9913 = vpack.c.b16 %v9867, %v9866
        %v9914 = vpack.c.b16 %v9869, %v9868
        %v9915 = vpack.c.b16 %v9871, %v9870
        %v9916 = vpack.c.b16 %v9873, %v9872
        %v9917 = vpack.c.b16 %v9875, %v9874
        %v9918 = vpack.c.b16 %v9877, %v9876
        %v9919 = vpack.c.b16 %v9879, %v9878
        %v9920 = vpack.c.b16 %v9881, %v9880
        %v9921 = vpack.c.b16 %v9883, %v9882
        %v9922 = vpack.c.b16 %v9885, %v9884
        %v9923 = vpack.c.b16 %v9887, %v9886
        %v9924 = vpack.c.b16 %v9889, %v9888
        %v9925 = vpack.c.b16 %v9891, %v9890
        %v9926 = vpack.c.b16 %v9893, %v9892
        %v9927 = vpack.c.b16 %v9895, %v9894
        %v9928 = vpack.c.b16 %v9896, %v9896
        %vm9960 = vcmask 949248
        %v9962 = vsel %vm9960, %v9706, 0
        %v9965 = vsel %vm2390, %v9928, 0
        %9967 = vmatprep.subr.bf16.mxu0 0
        %9968 = vmatpush1.bf16.msra.mxu0 %v9904
        %9969 = vmatprep.subr.bf16.mxu0 0
        %9970 = vmatpush1.bf16.msra.mxu0 %v9903
        %9971 = vmatprep.subr.bf16.mxu0 0
        %9972 = vmatpush1.bf16.msra.mxu0 %v9902
        %9973 = vmatprep.subr.bf16.mxu0 0
        %9974 = vmatpush1.bf16.msra.mxu0 %v9901
        %9975 = vmatprep.subr.bf16.mxu0 0
        %9976 = vmatpush1.bf16.msra.mxu0 %v9900
        %9977 = vmatprep.subr.bf16.mxu0 0
        %9978 = vmatpush1.bf16.msra.mxu0 %v9899
        %9979 = vmatprep.subr.bf16.mxu0 0
        %9980 = vmatpush1.bf16.msra.mxu0 %v9898
        %9981 = vmatprep.subr.bf16.mxu0 0
        %9982 = vmatpush1.bf16.msra.mxu0 %v9897
        %9983 = vmatprep.subr.bf16.mxu0 0
        %9984 = vmatpush2.bf16.msra.mxu0 %v9912
        %9985 = vmatprep.subr.bf16.mxu0 0
        %9986 = vmatpush2.bf16.msra.mxu0 %v9911
        %9987 = vmatprep.subr.bf16.mxu0 0
        %9988 = vmatpush2.bf16.msra.mxu0 %v9910
        %9989 = vmatprep.subr.bf16.mxu0 0
        %9990 = vmatpush2.bf16.msra.mxu0 %v9909
        %9991 = vmatprep.subr.bf16.mxu0 0
        %9992 = vmatpush2.bf16.msra.mxu0 %v9908
        %9993 = vmatprep.subr.bf16.mxu0 0
        %9994 = vmatpush2.bf16.msra.mxu0 %v9907
        %9995 = vmatprep.subr.bf16.mxu0 0
        %9996 = vmatpush2.bf16.msra.mxu0 %v9906
        %9997 = vmatprep.subr.bf16.mxu0 0
        %9998 = vmatpush2.bf16.msra.mxu0 %v9905
        %9999 = vmatprep.mubr.bf16.mxu0 %v9704
        %10000 = vmatmul.mubr.bf16.gmra.mxu0 %v9703
        %v10001 = vpop.f32.mrf.mxu0
        %v10002 = vadd.f32 %v9770, %v10001
        %v10003 = vpop.f32.mrf.mxu0
        %v10004 = vpop.f32.mrf.mxu0
        %v10005 = vpop.f32.mrf.mxu0
        %10006 = vdwg.mxu0
        %10007 = vmatprep.subr.bf16.mxu0 0
        %10008 = vmatpush1.bf16.msra.mxu0 %v9920
        %10009 = vmatprep.subr.bf16.mxu0 0
        %10010 = vmatpush1.bf16.msra.mxu0 %v9919
        %10011 = vmatprep.subr.bf16.mxu0 0
        %10012 = vmatpush1.bf16.msra.mxu0 %v9918
        %10013 = vmatprep.subr.bf16.mxu0 0
        %10014 = vmatpush1.bf16.msra.mxu0 %v9917
        %10015 = vmatprep.subr.bf16.mxu0 0
        %10016 = vmatpush1.bf16.msra.mxu0 %v9916
        %10017 = vmatprep.subr.bf16.mxu0 0
        %10018 = vmatpush1.bf16.msra.mxu0 %v9915
        %10019 = vmatprep.subr.bf16.mxu0 0
        %10020 = vmatpush1.bf16.msra.mxu0 %v9914
        %10021 = vmatprep.subr.bf16.mxu0 0
        %10022 = vmatpush1.bf16.msra.mxu0 %v9913
        %10023 = vmatprep.subr.bf16.mxu0 0
        %10024 = vmatpush2.bf16.msra.mxu0 %v9965
        %10025 = vmatprep.subr.bf16.mxu0 0
        %10026 = vmatpush2.bf16.msra.mxu0 %v9927
        %10027 = vmatprep.subr.bf16.mxu0 0
        %10028 = vmatpush2.bf16.msra.mxu0 %v9926
        %10029 = vmatprep.subr.bf16.mxu0 0
        %10030 = vmatpush2.bf16.msra.mxu0 %v9925
        %10031 = vmatprep.subr.bf16.mxu0 0
        %10032 = vmatpush2.bf16.msra.mxu0 %v9924
        %10033 = vmatprep.subr.bf16.mxu0 0
        %10034 = vmatpush2.bf16.msra.mxu0 %v9923
        %10035 = vmatprep.subr.bf16.mxu0 0
        %10036 = vmatpush2.bf16.msra.mxu0 %v9922
        %10037 = vmatprep.subr.bf16.mxu0 0
        %10038 = vmatpush2.bf16.msra.mxu0 %v9921
        %10039 = vmatprep.mubr.bf16.mxu0 %v9962
        %10040 = vmatmul.mubr.bf16.gmra.mxu0 %v9705
        %v10041 = vpop.f32.mrf.mxu0
        %v10042 = vadd.f32 %v10002, %v10041
        %v10043 = vpop.f32.mrf.mxu0
        %v10044 = vpop.f32.mrf.mxu0
        %v10045 = vpop.f32.mrf.mxu0
        %10046 = vdwg.mxu0
        %vm10047 = vcmask 73728
        %10048 = vst.msk [vmem:[%s378] sm:$0x1] %vm10047, %v10042
        %s10049 = sand.u32 %s269, 1
        %s10050 = scalar_lea.sflag [#allocation3], %s10049
        %s10051 = sand.u32 %s269, 1
        %s10052 = scalar_lea.vmem [#allocation2], %s10051
        // Predicated region
        $region65: #{net_forward.1} parent=63 // pred_check
          %p10053 = pneg %p279
        $region66: #{net_forward.1} parent=63 // pred_check_branch
          %10055 = sbr.rel (%p10053) target = $region68
        $region67: #{net_forward.1} parent=63 // pred_region
          %s10057 = ssub.s32 16, 16
          %10058 = vsyncadd %s10050, %s10057
          %s10059 = smul.addr %s25, 16
          %s10060 = scalar_lea.hbm %s11, %s10059
          %s10062 = sshll.u32 %s10052, 4
          %s10063 = int_to_ptr.vmem [resolvable:$true] %s10062
          %10065 = dma.vmem_to_hbm [thread:$0]  %s10063, 16, %s10060, %s10050
        $region68: #{net_forward.1} parent=63 // pred_fallthru
          _
      $region64: #{net_forward.1} parent=5 // pred_fallthru
        _
      %p10066 = scmp.le.s32.totalorder 2, %s20
      // Predicated region
      $region69: #{net_forward.1} parent=5 // pred_check
        %p10067 = pneg %p10066
      $region70: #{net_forward.1} parent=5 // pred_check_branch
        %10069 = sbr.rel (%p10067) target = $region72
      $region71: #{net_forward.1} parent=5 // pred_region
        %s10070 = ssub.s32 %s20, 2
        // Predicated region
        $region73: #{net_forward.1} parent=71 // pred_check
          %p10071 = pneg %p285
        $region74: #{net_forward.1} parent=71 // pred_check_branch
          %10073 = sbr.rel (%p10071) target = $region76
        $region75: #{net_forward.1} parent=71 // pred_region
          %s10074 = sand.u32 %s270, 1
          %s10075 = scalar_lea.sflag [#allocation3], %s10074
          %s10076 = sand.u32 %s270, 1
          %s10077 = scalar_lea.vmem [#allocation2], %s10076
          %10078 = dma.done %s10075, 16
        $region76: #{net_forward.1} parent=71 // pred_fallthru
          _
      $region72: #{net_forward.1} parent=5 // pred_fallthru
        _
    $region6: #{net_forward.1} parent=1 // loop_footer
      %s24 = sadd.s32 1, %s20
    $region7: #{net_forward.1} parent=1 // loop_footer_branch
      %19 = sbr.rel target = $region3
    $region8: #{net_forward.1} parent=1 // loop_exit
      _
    %10079 = vsyncpa [#allocation3], 1
    %s10080 = scalar_lea.sflag [#allocation3], 1
    %10081 = vsyncpa %s10080, 1

</llo_original>
